<compile_context>
chip_gen: v7x
topology: tpu7x:2x2x1
jax: 0.10.0
libtpu: 0.0.40
codegen_flags: <defaults>
</compile_context>

<pallas_src>
import jax
import jax.numpy as jnp
from jax.experimental import pallas as pl
from jax.experimental.pallas import tpu as pltpu


def _ceil_to(x, m):
    return -(-x // m) * m


# ----------------------------- Pallas kernels -----------------------------

def _conv1_kernel(p_ref, w_ref, b_ref, o_ref):
    """Fused conv1 (im2col matmul) + bias + ReLU + 2x2 maxpool.

    p_ref: (4, TR, 32) bf16 -- dim 0 = the four 2x2 pool-window corners,
                               TR = tile of flattened (b, ph, pw) rows.
    w_ref: (32, 32)    bf16 -- (kh*5+kw, c_out) conv1 weight, zero padded.
    b_ref: (1, 32)     f32
    o_ref: (TR, 32)    bf16 -- pooled NHWC rows (20 real + 12 zero channels).
    Bias/ReLU commute with the corner max, so max runs on raw f32 accs.
    """
    w = w_ref[...]
    acc = jnp.dot(p_ref[0], w, preferred_element_type=jnp.float32)
    for c in range(1, 4):
        acc = jnp.maximum(
            acc, jnp.dot(p_ref[c], w, preferred_element_type=jnp.float32))
    o_ref[...] = jnp.maximum(acc + b_ref[...], 0.0).astype(o_ref.dtype)


def _conv2_kernel(ph_ref, w_ref, b_ref, o_ref):
    """Fused conv2 + bias + ReLU + 2x2 maxpool with IN-KERNEL im2col.

    ph_ref: (TB, 10, 10, 128) bf16 -- parity-packed, spatially padded conv1
            output: lane (a*2 + cp)*32 + c of pixel (h, w) holds the padded
            activation at spatial (2h+a, 2w+cp), channel c (< 20 real).
    w_ref : (1152, 512) bf16 -- combined-corner conv2 weight: K = 9 window
            buckets x 128 lanes, N = 4 pool corners x 128 output channels.
    b_ref : (1, 128) f32
    o_ref : (TB, 64, 128) bf16 -- pooled output on an 8x8 grid per image
            (row/col 7 are junk; they meet zero fc1 weight rows downstream).
    """
    tb = ph_ref.shape[0]
    rows = tb * 64
    slabs = []
    for dh in range(3):
        for dw in range(3):
            # Contiguous 8x8 window; reshape merges (TB, 8, 8) cleanly
            # (sublane dim stays a multiple of 8), no relayout.
            slabs.append(
                ph_ref[:, dh:dh + 8, dw:dw + 8, :].reshape(rows, 128))
    pat = jnp.concatenate(slabs, axis=1)                        # (rows, 1152)
    acc = jnp.dot(pat, w_ref[...], preferred_element_type=jnp.float32)
    m = jnp.maximum(jnp.maximum(acc[:, 0:128], acc[:, 128:256]),
                    jnp.maximum(acc[:, 256:384], acc[:, 384:512]))
    o_ref[...] = (jnp.maximum(m + b_ref[...], 0.0)
                  .reshape(tb, 64, 128).astype(o_ref.dtype))


def _fc_kernel(x_ref, w1_ref, b1_ref, w2_ref, b2_ref, w3_ref, b3_ref, o_ref):
    """Fused fc1(ReLU) -> fc2(ReLU) -> fc3; bf16 MXU inputs, f32 epilogues."""
    h = jnp.dot(x_ref[...], w1_ref[...], preferred_element_type=jnp.float32)
    h = jnp.maximum(h + b1_ref[...], 0.0).astype(jnp.bfloat16)
    h = jnp.dot(h, w2_ref[...], preferred_element_type=jnp.float32)
    h = jnp.maximum(h + b2_ref[...], 0.0).astype(jnp.bfloat16)
    o = jnp.dot(h, w3_ref[...], preferred_element_type=jnp.float32)
    o_ref[...] = (o + b3_ref[...]).astype(o_ref.dtype)


# --------------------------- pallas_call wrappers ---------------------------

def conv_pool1(patches, w, b):
    """patches: (4, R, 32) bf16 -> (R, 32) bf16, batch-folded 8-aligned rows."""
    _, R, K = patches.shape
    N = w.shape[1]
    Rp = _ceil_to(R, 8)
    if Rp >= 2048:
        TR = 1024
    elif Rp >= 16:
        TR = _ceil_to(-(-Rp // 2), 8)        # >= 2 grid steps (v7x megacore)
    else:
        TR = Rp
    Rpad = _ceil_to(Rp, TR)
    if Rpad != R:
        patches = jnp.pad(patches, ((0, 0), (0, Rpad - R), (0, 0)))
    out = pl.pallas_call(
        _conv1_kernel,
        out_shape=jax.ShapeDtypeStruct((Rpad, N), jnp.bfloat16),
        grid=(Rpad // TR,),
        in_specs=[
            pl.BlockSpec((4, TR, K), lambda i: (0, i, 0)),
            pl.BlockSpec((K, N), lambda i: (0, 0)),
            pl.BlockSpec((1, N), lambda i: (0, 0)),
        ],
        out_specs=pl.BlockSpec((TR, N), lambda i: (i, 0)),
        compiler_params=pltpu.CompilerParams(
            dimension_semantics=("parallel",)),
    )(patches, w, b)
    return out[:R]


def conv_pool2(ph, w, b):
    """ph: (B, 10, 10, 128) bf16 -> (B, 64, 128) bf16, TB images per step."""
    B = ph.shape[0]
    TB = 1 if B < 4 else min(8, B // 2)      # >= 2 steps, modest VMEM blocks
    Bp = _ceil_to(B, TB)
    if Bp != B:
        ph = jnp.pad(ph, ((0, Bp - B), (0, 0), (0, 0), (0, 0)))
    out = pl.pallas_call(
        _conv2_kernel,
        out_shape=jax.ShapeDtypeStruct((Bp, 64, 128), jnp.bfloat16),
        grid=(Bp // TB,),
        in_specs=[
            pl.BlockSpec((TB, 10, 10, 128), lambda i: (i, 0, 0, 0)),
            pl.BlockSpec(w.shape, lambda i: (0, 0)),
            pl.BlockSpec((1, 128), lambda i: (0, 0)),
        ],
        out_specs=pl.BlockSpec((TB, 64, 128), lambda i: (i, 0, 0)),
        compiler_params=pltpu.CompilerParams(
            dimension_semantics=("parallel",)),
    )(ph, w, b)
    return out[:B]


def fc_stack(x, w1, b1, w2, b2, w3, b3):
    """Single fused FC-stack kernel; batch padded UP to the row tile."""
    B, K = x.shape
    Bp8 = _ceil_to(B, 8)
    if Bp8 >= 512:
        TB = 256
    elif Bp8 >= 16:
        TB = _ceil_to(-(-Bp8 // 2), 8)       # >= 2 grid steps (v7x megacore)
    else:
        TB = Bp8
    Bp = _ceil_to(Bp8, TB)
    if Bp != B:
        x = jnp.pad(x, ((0, Bp - B), (0, 0)))
    N = w3.shape[1]
    out = pl.pallas_call(
        _fc_kernel,
        out_shape=jax.ShapeDtypeStruct((Bp, N), jnp.float32),
        grid=(Bp // TB,),
        in_specs=[
            pl.BlockSpec((TB, K), lambda i: (i, 0)),
            pl.BlockSpec(w1.shape, lambda i: (0, 0)),
            pl.BlockSpec((1, w1.shape[1]), lambda i: (0, 0)),
            pl.BlockSpec(w2.shape, lambda i: (0, 0)),
            pl.BlockSpec((1, w2.shape[1]), lambda i: (0, 0)),
            pl.BlockSpec(w3.shape, lambda i: (0, 0)),
            pl.BlockSpec((1, N), lambda i: (0, 0)),
        ],
        out_specs=pl.BlockSpec((TB, N), lambda i: (i, 0)),
        compiler_params=pltpu.CompilerParams(
            dimension_semantics=("parallel",)),
    )(x, w1, b1, w2, b2, w3, b3)
    return out[:B]


# ------------------------------- glue (JAX) --------------------------------

def conv1_patches(x_nhwc):
    """(B,28,28,1) bf16 -> (4, B*196, 32) bf16 im2col patches for the fused
    conv1(k=5, pad=2) + 2x2/2 maxpool; dim 0 = pool-window corner, patch
    vector is (kh, kw) ordered (single input channel), built fully in bf16."""
    B = x_nhwc.shape[0]
    xp = jnp.pad(x_nhwc, ((0, 0), (2, 2), (2, 2), (0, 0)))
    corners = []
    for ci in range(2):
        for cj in range(2):
            taps = []
            for kh in range(5):
                for kw in range(5):
                    taps.append(
                        xp[:, ci + kh:ci + kh + 28:2,
                           cj + kw:cj + kw + 28:2, 0])           # (B,14,14)
            corners.append(jnp.stack(taps, axis=-1).reshape(B * 196, 25))
    pat = jnp.stack(corners, axis=0)                             # (4,B*196,25)
    return jnp.pad(pat, ((0, 0), (0, 0), (0, 7)))                # (4,B*196,32)


def pack_conv2_input(y1, B):
    """(B*196, 32) pooled conv1 rows -> (B, 10, 10, 128) parity-packed,
    spatially padded conv2 input (lane = (row_par*2 + col_par)*32 + ch)."""
    y = y1.reshape(B, 14, 14, 32)
    yp = jnp.pad(y, ((0, 0), (2, 4), (2, 4), (0, 0)))            # (B,20,20,32)
    ph = yp.reshape(B, 10, 2, 10, 2, 32).transpose(0, 1, 3, 2, 4, 5)
    return ph.reshape(B, 10, 10, 128)


def init_params(key):
    """Deterministic synthetic parameters matching LeNet.__init__ shapes."""
    ks = jax.random.split(key, 10)
    f32 = jnp.float32
    return {
        "conv1_w": jax.random.normal(ks[0], (20, 1, 5, 5), f32) * 0.1,
        "conv1_b": jax.random.normal(ks[1], (20,), f32) * 0.1,
        "conv2_w": jax.random.normal(ks[2], (50, 20, 5, 5), f32) * 0.05,
        "conv2_b": jax.random.normal(ks[3], (50,), f32) * 0.05,
        "fc1_w": jax.random.normal(ks[4], (120, 2450), f32) * 0.02,
        "fc1_b": jax.random.normal(ks[5], (120,), f32) * 0.02,
        "fc2_w": jax.random.normal(ks[6], (84, 120), f32) * 0.05,
        "fc2_b": jax.random.normal(ks[7], (84,), f32) * 0.05,
        "fc3_w": jax.random.normal(ks[8], (10, 84), f32) * 0.05,
        "fc3_b": jax.random.normal(ks[9], (10,), f32) * 0.05,
    }


def prepare_params(p):
    """Torch-layout params -> zero-padded / permuted bf16 kernel params."""
    bf16, f32 = jnp.bfloat16, jnp.float32

    def padw(w, K, N):
        return jnp.zeros((K, N), f32).at[:w.shape[0], :w.shape[1]] \
                                     .set(w).astype(bf16)

    def padb(b, N):
        return jnp.zeros((1, N), f32).at[0, :b.shape[0]].set(b)

    # conv1: (kh*5+kw, c_out) -> (32, 32)
    w1 = p["conv1_w"].reshape(20, 25).T

    # conv2: combined-corner weight (9*128, 4*128).  Row = (dh*3+dw)*128 +
    # (a*2+cp)*32 + c_in matches the kernel's in-VMEM patch layout; the
    # column block `corner` = (ci, cj) gets tap (kh, kw) = (2dh+a-ci, 2dw+cp-cj)
    # when valid and zeros otherwise.
    w2 = p["conv2_w"]                                         # (50, 20, 5, 5)
    wc = jnp.zeros((9, 4, 32, 4, 128), f32)
    for dh in range(3):
        for dw in range(3):
            for a in range(2):
                for cp in range(2):
                    for ci in range(2):
                        for cj in range(2):
                            kh, kw = 2 * dh + a - ci, 2 * dw + cp - cj
                            if 0 <= kh <= 4 and 0 <= kw <= 4:
                                wc = wc.at[dh * 3 + dw, a * 2 + cp, :20,
                                           ci * 2 + cj, :50].set(
                                               w2[:, :, kh, kw].T)
    wc = wc.reshape(9 * 4 * 32, 4 * 128).astype(bf16)

    # fc1: fold PyTorch's NCHW flatten into a row permutation of the weight so
    # the conv2 kernel's (8x8 grid, 128 ch) flatten feeds it directly; junk
    # grid row/col 7 and channels >= 50 meet exactly-zero weight rows.
    f1 = p["fc1_w"].reshape(120, 50, 7, 7).transpose(2, 3, 1, 0)  # (7,7,50,120)
    f1p = jnp.zeros((8, 8, 128, 128), f32).at[:7, :7, :50, :120].set(f1)
    f1p = f1p.reshape(8 * 8 * 128, 128).astype(bf16)

    return {
        "c1_w": padw(w1, 32, 32),   "c1_b": padb(p["conv1_b"], 32),
        "c2_w": wc,                 "c2_b": padb(p["conv2_b"], 128),
        "f1_w": f1p,                "f1_b": padb(p["fc1_b"], 128),
        "f2_w": padw(p["fc2_w"].T, 128, 128), "f2_b": padb(p["fc2_b"], 128),
        "f3_w": padw(p["fc3_w"].T, 128, 128), "f3_b": padb(p["fc3_b"], 128),
    }


def lenet_forward(x_nchw, kp):
    B = x_nchw.shape[0]
    assert x_nchw.shape[1:] == (1, 28, 28)   # fc1 in-features 2450 = 50*7*7

    # bf16-first: all im2col / layout glue below runs in bf16.
    x = x_nchw.astype(jnp.bfloat16).transpose(0, 2, 3, 1)        # (B,28,28,1)

    # conv1 (1->20, k=5, pad=2) + ReLU + 2x2 maxpool, fused
    p1 = conv1_patches(x)                                        # (4,B*196,32)
    y1 = conv_pool1(p1, kp["c1_w"], kp["c1_b"])                  # (B*196, 32)

    # conv2 (20->50, k=5, pad=2) + ReLU + 2x2 maxpool, fused; its im2col is
    # assembled inside the kernel from this compact parity-packed map.
    ph = pack_conv2_input(y1, B)                                 # (B,10,10,128)
    y2 = conv_pool2(ph, kp["c2_w"], kp["c2_b"])                  # (B,64,128)

    # fused fc1 -> fc2 -> fc3 (flatten permutation folded into fc1's weight)
    out = fc_stack(y2.reshape(B, 64 * 128),
                   kp["f1_w"], kp["f1_b"], kp["f2_w"], kp["f2_b"],
                   kp["f3_w"], kp["f3_b"])                       # (B,128) f32
    return out[:, :10]


if __name__ == "__main__":
    key = jax.random.PRNGKey(0)
    pkey, xkey = jax.random.split(key)
    params = init_params(pkey)
    kparams = prepare_params(params)
    # fc1's 2450 input features force a 28x28 single-channel input.
    x = jax.random.normal(xkey, (2, 1, 28, 28), jnp.float32)

    logits = jax.jit(lenet_forward)(x, kparams)
    jax.block_until_ready(logits)
    assert logits.shape == (2, 10)
    print("KERNEL_OK")
</pallas_src>

<mosaic_0001>
module attributes {stable_mosaic.version = 11 : i64} {
  func.func @_conv1_kernel(%arg0: i32, %arg1: memref<4x200x32xbf16, #tpu.memory_space<vmem>>, %arg2: memref<32x32xbf16, #tpu.memory_space<vmem>>, %arg3: memref<1x32xf32, #tpu.memory_space<vmem>>, %arg4: memref<200x32xbf16, #tpu.memory_space<vmem>>) attributes {dimension_semantics = [#tpu.dimension_semantics<parallel>], iteration_bounds = array<i64: 2>, scalar_prefetch = 0 : i64, scratch_operands = 0 : i64, tpu.core_type = #tpu.core_type<tc>, window_params = [{transform_indices = @transform_0, window_bounds = array<i64: 4, 200, 32>}, {pipeline_mode = #tpu.pipeline_mode<synchronous>, transform_indices = @transform_1, window_bounds = array<i64: 32, 32>}, {pipeline_mode = #tpu.pipeline_mode<synchronous>, transform_indices = @transform_2, window_bounds = array<i64: 1, 32>}, {transform_indices = @transform_3, window_bounds = array<i64: 200, 32>}]} {
    %c0 = arith.constant 0 : index
    %c0_0 = arith.constant 0 : index
    %0 = vector.load %arg2[%c0, %c0_0] : memref<32x32xbf16, #tpu.memory_space<vmem>>, vector<32x32xbf16>
    %c0_1 = arith.constant 0 : index
    %c0_2 = arith.constant 0 : index
    %c0_3 = arith.constant 0 : index
    %1 = vector.load %arg1[%c0_1, %c0_2, %c0_3] : memref<4x200x32xbf16, #tpu.memory_space<vmem>>, vector<1x200x32xbf16>
    %2 = vector.shape_cast %1 : vector<1x200x32xbf16> to vector<200x32xbf16>
    %cst = arith.constant dense<0.000000e+00> : vector<200x32xf32>
    %3 = tpu.matmul %2, %0, %cst {dimension_numbers = #tpu.dot_dimension_numbers<[1], [0], [0], [1], [0, 0, 1, 1], [], []>} : vector<200x32xbf16>, vector<32x32xbf16>, vector<200x32xf32> -> vector<200x32xf32>
    %c1 = arith.constant 1 : index
    %c0_4 = arith.constant 0 : index
    %c0_5 = arith.constant 0 : index
    %4 = vector.load %arg1[%c1, %c0_4, %c0_5] : memref<4x200x32xbf16, #tpu.memory_space<vmem>>, vector<1x200x32xbf16>
    %5 = vector.shape_cast %4 : vector<1x200x32xbf16> to vector<200x32xbf16>
    %cst_6 = arith.constant dense<0.000000e+00> : vector<200x32xf32>
    %6 = tpu.matmul %5, %0, %cst_6 {dimension_numbers = #tpu.dot_dimension_numbers<[1], [0], [0], [1], [0, 0, 1, 1], [], []>} : vector<200x32xbf16>, vector<32x32xbf16>, vector<200x32xf32> -> vector<200x32xf32>
    %7 = arith.maximumf %3, %6 : vector<200x32xf32>
    %c2 = arith.constant 2 : index
    %c0_7 = arith.constant 0 : index
    %c0_8 = arith.constant 0 : index
    %8 = vector.load %arg1[%c2, %c0_7, %c0_8] : memref<4x200x32xbf16, #tpu.memory_space<vmem>>, vector<1x200x32xbf16>
    %9 = vector.shape_cast %8 : vector<1x200x32xbf16> to vector<200x32xbf16>
    %cst_9 = arith.constant dense<0.000000e+00> : vector<200x32xf32>
    %10 = tpu.matmul %9, %0, %cst_9 {dimension_numbers = #tpu.dot_dimension_numbers<[1], [0], [0], [1], [0, 0, 1, 1], [], []>} : vector<200x32xbf16>, vector<32x32xbf16>, vector<200x32xf32> -> vector<200x32xf32>
    %11 = arith.maximumf %7, %10 : vector<200x32xf32>
    %c3 = arith.constant 3 : index
    %c0_10 = arith.constant 0 : index
    %c0_11 = arith.constant 0 : index
    %12 = vector.load %arg1[%c3, %c0_10, %c0_11] : memref<4x200x32xbf16, #tpu.memory_space<vmem>>, vector<1x200x32xbf16>
    %13 = vector.shape_cast %12 : vector<1x200x32xbf16> to vector<200x32xbf16>
    %cst_12 = arith.constant dense<0.000000e+00> : vector<200x32xf32>
    %14 = tpu.matmul %13, %0, %cst_12 {dimension_numbers = #tpu.dot_dimension_numbers<[1], [0], [0], [1], [0, 0, 1, 1], [], []>} : vector<200x32xbf16>, vector<32x32xbf16>, vector<200x32xf32> -> vector<200x32xf32>
    %15 = arith.maximumf %11, %14 : vector<200x32xf32>
    %c0_13 = arith.constant 0 : index
    %c0_14 = arith.constant 0 : index
    %16 = vector.load %arg3[%c0_13, %c0_14] : memref<1x32xf32, #tpu.memory_space<vmem>>, vector<1x32xf32>
    %17 = vector.broadcast %16 : vector<1x32xf32> to vector<200x32xf32>
    %18 = arith.addf %15, %17 : vector<200x32xf32>
    %cst_15 = arith.constant 0.000000e+00 : f32
    %19 = vector.broadcast %cst_15 : f32 to vector<200x32xf32>
    %20 = arith.maximumf %18, %19 : vector<200x32xf32>
    %21 = arith.truncf %20 : vector<200x32xf32> to vector<200x32xbf16>
    %c0_16 = arith.constant 0 : index
    %c0_17 = arith.constant 0 : index
    %22 = vector.load %arg4[%c0_16, %c0_17] : memref<200x32xbf16, #tpu.memory_space<vmem>>, vector<200x32xbf16>
    tpu.vector_store %arg4[%c0_16, %c0_17], %21 {strides = array<i32>} : memref<200x32xbf16, #tpu.memory_space<vmem>>, vector<200x32xbf16>,
    return
  }
  func.func @transform_0(%arg0: i32) -> (i32, i32, i32) {
    %c0_i32 = arith.constant 0 : i32
    %c0_i32_0 = arith.constant 0 : i32
    %c0_i32_1 = arith.constant 0 : i32
    return %c0_i32, %arg0, %c0_i32_0 : i32, i32, i32
  }
  func.func @transform_1(%arg0: i32) -> (i32, i32) {
    %c0_i32 = arith.constant 0 : i32
    %c0_i32_0 = arith.constant 0 : i32
    %c0_i32_1 = arith.constant 0 : i32
    return %c0_i32, %c0_i32_0 : i32, i32
  }
  func.func @transform_2(%arg0: i32) -> (i32, i32) {
    %c0_i32 = arith.constant 0 : i32
    %c0_i32_0 = arith.constant 0 : i32
    %c0_i32_1 = arith.constant 0 : i32
    return %c0_i32, %c0_i32_0 : i32, i32
  }
  func.func @transform_3(%arg0: i32) -> (i32, i32) {
    %c0_i32 = arith.constant 0 : i32
    %c0_i32_0 = arith.constant 0 : i32
    return %arg0, %c0_i32 : i32, i32
  }
}

module attributes {stable_mosaic.version = 11 : i64} {
  func.func @_conv2_kernel(%arg0: i32, %arg1: memref<1x10x10x128xbf16, #tpu.memory_space<vmem>>, %arg2: memref<1152x512xbf16, #tpu.memory_space<vmem>>, %arg3: memref<1x128xf32, #tpu.memory_space<vmem>>, %arg4: memref<1x64x128xbf16, #tpu.memory_space<vmem>>) attributes {dimension_semantics = [#tpu.dimension_semantics<parallel>], iteration_bounds = array<i64: 2>, scalar_prefetch = 0 : i64, scratch_operands = 0 : i64, tpu.core_type = #tpu.core_type<tc>, window_params = [{transform_indices = @transform_0, window_bounds = array<i64: 1, 10, 10, 128>}, {pipeline_mode = #tpu.pipeline_mode<synchronous>, transform_indices = @transform_1, window_bounds = array<i64: 1152, 512>}, {pipeline_mode = #tpu.pipeline_mode<synchronous>, transform_indices = @transform_2, window_bounds = array<i64: 1, 128>}, {transform_indices = @transform_3, window_bounds = array<i64: 1, 64, 128>}]} {
    %c0 = arith.constant 0 : index
    %c0_0 = arith.constant 0 : index
    %c0_1 = arith.constant 0 : index
    %c0_2 = arith.constant 0 : index
    %0 = vector.load %arg1[%c0, %c0_0, %c0_1, %c0_2] : memref<1x10x10x128xbf16, #tpu.memory_space<vmem>>, vector<1x8x8x128xbf16>
    %1 = vector.shape_cast %0 : vector<1x8x8x128xbf16> to vector<64x128xbf16>
    %c0_3 = arith.constant 0 : index
    %c0_4 = arith.constant 0 : index
    %c1 = arith.constant 1 : index
    %c0_5 = arith.constant 0 : index
    %2 = vector.load %arg1[%c0_3, %c0_4, %c1, %c0_5] : memref<1x10x10x128xbf16, #tpu.memory_space<vmem>>, vector<1x8x8x128xbf16>
    %3 = vector.shape_cast %2 : vector<1x8x8x128xbf16> to vector<64x128xbf16>
    %c0_6 = arith.constant 0 : index
    %c0_7 = arith.constant 0 : index
    %c2 = arith.constant 2 : index
    %c0_8 = arith.constant 0 : index
    %4 = vector.load %arg1[%c0_6, %c0_7, %c2, %c0_8] : memref<1x10x10x128xbf16, #tpu.memory_space<vmem>>, vector<1x8x8x128xbf16>
    %5 = vector.shape_cast %4 : vector<1x8x8x128xbf16> to vector<64x128xbf16>
    %c0_9 = arith.constant 0 : index
    %c1_10 = arith.constant 1 : index
    %c0_11 = arith.constant 0 : index
    %c0_12 = arith.constant 0 : index
    %6 = vector.load %arg1[%c0_9, %c1_10, %c0_11, %c0_12] : memref<1x10x10x128xbf16, #tpu.memory_space<vmem>>, vector<1x8x8x128xbf16>
    %7 = vector.shape_cast %6 : vector<1x8x8x128xbf16> to vector<64x128xbf16>
    %c0_13 = arith.constant 0 : index
    %c1_14 = arith.constant 1 : index
    %c1_15 = arith.constant 1 : index
    %c0_16 = arith.constant 0 : index
    %8 = vector.load %arg1[%c0_13, %c1_14, %c1_15, %c0_16] : memref<1x10x10x128xbf16, #tpu.memory_space<vmem>>, vector<1x8x8x128xbf16>
    %9 = vector.shape_cast %8 : vector<1x8x8x128xbf16> to vector<64x128xbf16>
    %c0_17 = arith.constant 0 : index
    %c1_18 = arith.constant 1 : index
    %c2_19 = arith.constant 2 : index
    %c0_20 = arith.constant 0 : index
    %10 = vector.load %arg1[%c0_17, %c1_18, %c2_19, %c0_20] : memref<1x10x10x128xbf16, #tpu.memory_space<vmem>>, vector<1x8x8x128xbf16>
    %11 = vector.shape_cast %10 : vector<1x8x8x128xbf16> to vector<64x128xbf16>
    %c0_21 = arith.constant 0 : index
    %c2_22 = arith.constant 2 : index
    %c0_23 = arith.constant 0 : index
    %c0_24 = arith.constant 0 : index
    %12 = vector.load %arg1[%c0_21, %c2_22, %c0_23, %c0_24] : memref<1x10x10x128xbf16, #tpu.memory_space<vmem>>, vector<1x8x8x128xbf16>
    %13 = vector.shape_cast %12 : vector<1x8x8x128xbf16> to vector<64x128xbf16>
    %c0_25 = arith.constant 0 : index
    %c2_26 = arith.constant 2 : index
    %c1_27 = arith.constant 1 : index
    %c0_28 = arith.constant 0 : index
    %14 = vector.load %arg1[%c0_25, %c2_26, %c1_27, %c0_28] : memref<1x10x10x128xbf16, #tpu.memory_space<vmem>>, vector<1x8x8x128xbf16>
    %15 = vector.shape_cast %14 : vector<1x8x8x128xbf16> to vector<64x128xbf16>
    %c0_29 = arith.constant 0 : index
    %c2_30 = arith.constant 2 : index
    %c2_31 = arith.constant 2 : index
    %c0_32 = arith.constant 0 : index
    %16 = vector.load %arg1[%c0_29, %c2_30, %c2_31, %c0_32] : memref<1x10x10x128xbf16, #tpu.memory_space<vmem>>, vector<1x8x8x128xbf16>
    %17 = vector.shape_cast %16 : vector<1x8x8x128xbf16> to vector<64x128xbf16>
    %18 = tpu.concatenate %1, %3, %5, %7, %9, %11, %13, %15, %17 in 1 : vector<64x128xbf16>, vector<64x128xbf16>, vector<64x128xbf16>, vector<64x128xbf16>, vector<64x128xbf16>, vector<64x128xbf16>, vector<64x128xbf16>, vector<64x128xbf16>, vector<64x128xbf16> -> vector<64x1152xbf16>
    %c0_33 = arith.constant 0 : index
    %c0_34 = arith.constant 0 : index
    %19 = vector.load %arg2[%c0_33, %c0_34] : memref<1152x512xbf16, #tpu.memory_space<vmem>>, vector<1152x512xbf16>
    %cst = arith.constant dense<0.000000e+00> : vector<64x512xf32>
    %20 = tpu.matmul %18, %19, %cst {dimension_numbers = #tpu.dot_dimension_numbers<[1], [0], [0], [1], [0, 0, 1, 1], [], []>} : vector<64x1152xbf16>, vector<1152x512xbf16>, vector<64x512xf32> -> vector<64x512xf32>
    %21 = vector.extract_strided_slice %20 {offsets = [0, 0], sizes = [64, 128], strides = [1, 1]} : vector<64x512xf32> to vector<64x128xf32>
    %22 = vector.extract_strided_slice %20 {offsets = [0, 128], sizes = [64, 128], strides = [1, 1]} : vector<64x512xf32> to vector<64x128xf32>
    %23 = arith.maximumf %21, %22 : vector<64x128xf32>
    %24 = vector.extract_strided_slice %20 {offsets = [0, 256], sizes = [64, 128], strides = [1, 1]} : vector<64x512xf32> to vector<64x128xf32>
    %25 = vector.extract_strided_slice %20 {offsets = [0, 384], sizes = [64, 128], strides = [1, 1]} : vector<64x512xf32> to vector<64x128xf32>
    %26 = arith.maximumf %24, %25 : vector<64x128xf32>
    %27 = arith.maximumf %23, %26 : vector<64x128xf32>
    %c0_35 = arith.constant 0 : index
    %c0_36 = arith.constant 0 : index
    %28 = vector.load %arg3[%c0_35, %c0_36] : memref<1x128xf32, #tpu.memory_space<vmem>>, vector<1x128xf32>
    %29 = vector.broadcast %28 : vector<1x128xf32> to vector<64x128xf32>
    %30 = arith.addf %27, %29 : vector<64x128xf32>
    %cst_37 = arith.constant 0.000000e+00 : f32
    %31 = vector.broadcast %cst_37 : f32 to vector<64x128xf32>
    %32 = arith.maximumf %30, %31 : vector<64x128xf32>
    %33 = vector.shape_cast %32 : vector<64x128xf32> to vector<1x64x128xf32>
    %34 = arith.truncf %33 : vector<1x64x128xf32> to vector<1x64x128xbf16>
    %c0_38 = arith.constant 0 : index
    %c0_39 = arith.constant 0 : index
    %c0_40 = arith.constant 0 : index
    %35 = vector.load %arg4[%c0_38, %c0_39, %c0_40] : memref<1x64x128xbf16, #tpu.memory_space<vmem>>, vector<1x64x128xbf16>
    tpu.vector_store %arg4[%c0_38, %c0_39, %c0_40], %34 {strides = array<i32>} : memref<1x64x128xbf16, #tpu.memory_space<vmem>>, vector<1x64x128xbf16>,
    return
  }
  func.func @transform_0(%arg0: i32) -> (i32, i32, i32, i32) {
    %c0_i32 = arith.constant 0 : i32
    %c0_i32_0 = arith.constant 0 : i32
    %c0_i32_1 = arith.constant 0 : i32
    %c0_i32_2 = arith.constant 0 : i32
    return %arg0, %c0_i32, %c0_i32_0, %c0_i32_1 : i32, i32, i32, i32
  }
  func.func @transform_1(%arg0: i32) -> (i32, i32) {
    %c0_i32 = arith.constant 0 : i32
    %c0_i32_0 = arith.constant 0 : i32
    %c0_i32_1 = arith.constant 0 : i32
    return %c0_i32, %c0_i32_0 : i32, i32
  }
  func.func @transform_2(%arg0: i32) -> (i32, i32) {
    %c0_i32 = arith.constant 0 : i32
    %c0_i32_0 = arith.constant 0 : i32
    %c0_i32_1 = arith.constant 0 : i32
    return %c0_i32, %c0_i32_0 : i32, i32
  }
  func.func @transform_3(%arg0: i32) -> (i32, i32, i32) {
    %c0_i32 = arith.constant 0 : i32
    %c0_i32_0 = arith.constant 0 : i32
    %c0_i32_1 = arith.constant 0 : i32
    return %arg0, %c0_i32, %c0_i32_0 : i32, i32, i32
  }
}

module attributes {stable_mosaic.version = 11 : i64} {
  func.func @_fc_kernel(%arg0: i32, %arg1: memref<8x8192xbf16, #tpu.memory_space<vmem>>, %arg2: memref<8192x128xbf16, #tpu.memory_space<vmem>>, %arg3: memref<1x128xf32, #tpu.memory_space<vmem>>, %arg4: memref<128x128xbf16, #tpu.memory_space<vmem>>, %arg5: memref<1x128xf32, #tpu.memory_space<vmem>>, %arg6: memref<128x128xbf16, #tpu.memory_space<vmem>>, %arg7: memref<1x128xf32, #tpu.memory_space<vmem>>, %arg8: memref<8x128xf32, #tpu.memory_space<vmem>>) attributes {dimension_semantics = [#tpu.dimension_semantics<parallel>], iteration_bounds = array<i64: 1>, scalar_prefetch = 0 : i64, scratch_operands = 0 : i64, tpu.core_type = #tpu.core_type<tc>, window_params = [{transform_indices = @transform_0, window_bounds = array<i64: 8, 8192>}, {pipeline_mode = #tpu.pipeline_mode<synchronous>, transform_indices = @transform_1, window_bounds = array<i64: 8192, 128>}, {pipeline_mode = #tpu.pipeline_mode<synchronous>, transform_indices = @transform_2, window_bounds = array<i64: 1, 128>}, {pipeline_mode = #tpu.pipeline_mode<synchronous>, transform_indices = @transform_3, window_bounds = array<i64: 128, 128>}, {pipeline_mode = #tpu.pipeline_mode<synchronous>, transform_indices = @transform_4, window_bounds = array<i64: 1, 128>}, {pipeline_mode = #tpu.pipeline_mode<synchronous>, transform_indices = @transform_5, window_bounds = array<i64: 128, 128>}, {pipeline_mode = #tpu.pipeline_mode<synchronous>, transform_indices = @transform_6, window_bounds = array<i64: 1, 128>}, {transform_indices = @transform_7, window_bounds = array<i64: 8, 128>}]} {
    %c0 = arith.constant 0 : index
    %c0_0 = arith.constant 0 : index
    %0 = vector.load %arg1[%c0, %c0_0] : memref<8x8192xbf16, #tpu.memory_space<vmem>>, vector<8x8192xbf16>
    %c0_1 = arith.constant 0 : index
    %c0_2 = arith.constant 0 : index
    %1 = vector.load %arg2[%c0_1, %c0_2] : memref<8192x128xbf16, #tpu.memory_space<vmem>>, vector<8192x128xbf16>
    %cst = arith.constant dense<0.000000e+00> : vector<8x128xf32>
    %2 = tpu.matmul %0, %1, %cst {dimension_numbers = #tpu.dot_dimension_numbers<[1], [0], [0], [1], [0, 0, 1, 1], [], []>} : vector<8x8192xbf16>, vector<8192x128xbf16>, vector<8x128xf32> -> vector<8x128xf32>
    %c0_3 = arith.constant 0 : index
    %c0_4 = arith.constant 0 : index
    %3 = vector.load %arg3[%c0_3, %c0_4] : memref<1x128xf32, #tpu.memory_space<vmem>>, vector<1x128xf32>
    %4 = vector.broadcast %3 : vector<1x128xf32> to vector<8x128xf32>
    %5 = arith.addf %2, %4 : vector<8x128xf32>
    %cst_5 = arith.constant 0.000000e+00 : f32
    %6 = vector.broadcast %cst_5 : f32 to vector<8x128xf32>
    %7 = arith.maximumf %5, %6 : vector<8x128xf32>
    %8 = arith.truncf %7 : vector<8x128xf32> to vector<8x128xbf16>
    %c0_6 = arith.constant 0 : index
    %c0_7 = arith.constant 0 : index
    %9 = vector.load %arg4[%c0_6, %c0_7] : memref<128x128xbf16, #tpu.memory_space<vmem>>, vector<128x128xbf16>
    %cst_8 = arith.constant dense<0.000000e+00> : vector<8x128xf32>
    %10 = tpu.matmul %8, %9, %cst_8 {dimension_numbers = #tpu.dot_dimension_numbers<[1], [0], [0], [1], [0, 0, 1, 1], [], []>} : vector<8x128xbf16>, vector<128x128xbf16>, vector<8x128xf32> -> vector<8x128xf32>
    %c0_9 = arith.constant 0 : index
    %c0_10 = arith.constant 0 : index
    %11 = vector.load %arg5[%c0_9, %c0_10] : memref<1x128xf32, #tpu.memory_space<vmem>>, vector<1x128xf32>
    %12 = vector.broadcast %11 : vector<1x128xf32> to vector<8x128xf32>
    %13 = arith.addf %10, %12 : vector<8x128xf32>
    %cst_11 = arith.constant 0.000000e+00 : f32
    %14 = vector.broadcast %cst_11 : f32 to vector<8x128xf32>
    %15 = arith.maximumf %13, %14 : vector<8x128xf32>
    %16 = arith.truncf %15 : vector<8x128xf32> to vector<8x128xbf16>
    %c0_12 = arith.constant 0 : index
    %c0_13 = arith.constant 0 : index
    %17 = vector.load %arg6[%c0_12, %c0_13] : memref<128x128xbf16, #tpu.memory_space<vmem>>, vector<128x128xbf16>
    %cst_14 = arith.constant dense<0.000000e+00> : vector<8x128xf32>
    %18 = tpu.matmul %16, %17, %cst_14 {dimension_numbers = #tpu.dot_dimension_numbers<[1], [0], [0], [1], [0, 0, 1, 1], [], []>} : vector<8x128xbf16>, vector<128x128xbf16>, vector<8x128xf32> -> vector<8x128xf32>
    %c0_15 = arith.constant 0 : index
    %c0_16 = arith.constant 0 : index
    %19 = vector.load %arg7[%c0_15, %c0_16] : memref<1x128xf32, #tpu.memory_space<vmem>>, vector<1x128xf32>
    %20 = vector.broadcast %19 : vector<1x128xf32> to vector<8x128xf32>
    %21 = arith.addf %18, %20 : vector<8x128xf32>
    %c0_17 = arith.constant 0 : index
    %c0_18 = arith.constant 0 : index
    %22 = vector.load %arg8[%c0_17, %c0_18] : memref<8x128xf32, #tpu.memory_space<vmem>>, vector<8x128xf32>
    tpu.vector_store %arg8[%c0_17, %c0_18], %21 {strides = array<i32>} : memref<8x128xf32, #tpu.memory_space<vmem>>, vector<8x128xf32>,
    return
  }
  func.func @transform_0(%arg0: i32) -> (i32, i32) {
    %c0_i32 = arith.constant 0 : i32
    %c0_i32_0 = arith.constant 0 : i32
    return %arg0, %c0_i32 : i32, i32
  }
  func.func @transform_1(%arg0: i32) -> (i32, i32) {
    %c0_i32 = arith.constant 0 : i32
    %c0_i32_0 = arith.constant 0 : i32
    %c0_i32_1 = arith.constant 0 : i32
    return %c0_i32, %c0_i32_0 : i32, i32
  }
  func.func @transform_2(%arg0: i32) -> (i32, i32) {
    %c0_i32 = arith.constant 0 : i32
    %c0_i32_0 = arith.constant 0 : i32
    %c0_i32_1 = arith.constant 0 : i32
    return %c0_i32, %c0_i32_0 : i32, i32
  }
  func.func @transform_3(%arg0: i32) -> (i32, i32) {
    %c0_i32 = arith.constant 0 : i32
    %c0_i32_0 = arith.constant 0 : i32
    %c0_i32_1 = arith.constant 0 : i32
    return %c0_i32, %c0_i32_0 : i32, i32
  }
  func.func @transform_4(%arg0: i32) -> (i32, i32) {
    %c0_i32 = arith.constant 0 : i32
    %c0_i32_0 = arith.constant 0 : i32
    %c0_i32_1 = arith.constant 0 : i32
    return %c0_i32, %c0_i32_0 : i32, i32
  }
  func.func @transform_5(%arg0: i32) -> (i32, i32) {
    %c0_i32 = arith.constant 0 : i32
    %c0_i32_0 = arith.constant 0 : i32
    %c0_i32_1 = arith.constant 0 : i32
    return %c0_i32, %c0_i32_0 : i32, i32
  }
  func.func @transform_6(%arg0: i32) -> (i32, i32) {
    %c0_i32 = arith.constant 0 : i32
    %c0_i32_0 = arith.constant 0 : i32
    %c0_i32_1 = arith.constant 0 : i32
    return %c0_i32, %c0_i32_0 : i32, i32
  }
  func.func @transform_7(%arg0: i32) -> (i32, i32) {
    %c0_i32 = arith.constant 0 : i32
    %c0_i32_0 = arith.constant 0 : i32
    return %arg0, %c0_i32 : i32, i32
  }
}

</mosaic_0001>

<llo_original>
// kernel: lenet_forward.3
$region0: #{lenet_forward.3}
  #allocation0 [shape = 'u32[]', space=smem, size = 0x4, offset = 0x4, fixed_abs, tag = 'smem constant byte address 0x4 - core index']
  #allocation1 [shape = 'u32[144,128]{1,0:T(1,128)}', space=vmem, size = 0x12000, scoped, tag = 'internal scratch']
  %s0 = inlined_call_operand.vmem [shape: bf16[4,400,32], index: 0, kind: input, shape index: {}]
  %s1 = inlined_call_operand.vmem [shape: bf16[32,32], index: 1, kind: input, shape index: {}]
  %s2 = inlined_call_operand.vmem [shape: f32[1,32], index: 2, kind: input, shape index: {}]
  %s3 = inlined_call_operand.vmem [shape: bf16[400,32], index: 3, kind: output, shape index: {}]
  %s4 = sld [smem:[#allocation0]]
  $region86: #{lenet_forward.3} parent=0
    _
  %s6 = ssub.s32 1, %s4
  %s7 = scalar_select 0, %s6, %s4
  $region1: #{lenet_forward.3} parent=0
    #allocation2 [shape = 'u8[409600]{0}', space=vmem, size = 0x64000, scoped, tag = 'input window, operand 0']
    loop: start=0, step=1, limit=4
    $region2: #{lenet_forward.3} parent=1 // loop_pre_header
      _
    $region3: #{lenet_forward.3} parent=1 // loop_header
      %s9 = sphi 0, %s13
      %p10 = scmp.ge.s32.totalorder %s9, 4
      %s19 = sphi 0, %s21
      %s22 = sphi 0, %s19
      %s23 = sphi 0, %s22
      %s39 = sphi 0, %s23
      %s43 = sphi 0, %s43
      %s45 = sphi 0, %s43
      %s46 = sphi 0, %s45
      %s60 = sphi 0, %s46
      %s64 = sphi 0, %s64
      %s66 = sphi 0, %s64
      %s67 = sphi 0, %s66
      %s81 = sphi 0, %s67
      %s87 = sphi 0, %s89
      %s90 = sphi 0, %s87
      %s91 = sphi 0, %s90
      %s107 = sphi 0, %s91
    $region4: #{lenet_forward.3} parent=1 // loop_header_branch
      %12 = sbr.rel (%p10) target = $region8
    $region5: #{lenet_forward.3} parent=1 // loop_body
      %s14 = ssub.s32 %s9, 1
      %s15 = ssub.s32 %s9, 2
      %s16 = sadd.s32 %s9, 1
      %s17 = ssub.s32 %s9, %s16
      %p18 = scmp.eq.s32.totalorder %s17, 0
      %s20 = sadd.s32 %s19, 1
      %s21 = scalar_select %p18, %s19, %s20
      %p24 = pneg %p18
      %p25 = scmp.eq.s32.totalorder %s9, 1
      %p26 = por %p24, %p25
      %p27 = scmp.ne.s32.totalorder %s19, %s22
      %p28 = scmp.eq.s32.totalorder %s9, 0
      %p29 = por %p27, %p28
      %p30 = scmp.ne.s32.totalorder %s19, %s22
      %p31 = scmp.eq.s32.totalorder %s14, 1
      %p32 = por %p30, %p31
      %p33 = scmp.ne.s32.totalorder %s22, %s23
      %p34 = scmp.eq.s32.totalorder %s14, 0
      %p35 = por %p33, %p34
      %p36 = scmp.ne.s32.totalorder %s22, %s23
      %p37 = scmp.eq.s32.totalorder %s15, 1
      %p38 = por %p36, %p37
      %p40 = scmp.ne.s32.totalorder %s23, %s39
      %p41 = scmp.eq.s32.totalorder %s15, 0
      %p42 = por %p40, %p41
      %s44 = sadd.s32 %s43, 1
      %p47 = scmp.eq.s32.totalorder %s9, 1
      %p48 = scmp.ne.s32.totalorder %s43, %s45
      %p49 = scmp.eq.s32.totalorder %s9, 0
      %p50 = por %p48, %p49
      %p51 = scmp.ne.s32.totalorder %s43, %s45
      %p52 = scmp.eq.s32.totalorder %s14, 1
      %p53 = por %p51, %p52
      %p54 = scmp.ne.s32.totalorder %s45, %s46
      %p55 = scmp.eq.s32.totalorder %s14, 0
      %p56 = por %p54, %p55
      %p57 = scmp.ne.s32.totalorder %s45, %s46
      %p58 = scmp.eq.s32.totalorder %s15, 1
      %p59 = por %p57, %p58
      %p61 = scmp.ne.s32.totalorder %s46, %s60
      %p62 = scmp.eq.s32.totalorder %s15, 0
      %p63 = por %p61, %p62
      %s65 = sadd.s32 %s64, 1
      %p68 = scmp.eq.s32.totalorder %s9, 1
      %p69 = scmp.ne.s32.totalorder %s64, %s66
      %p70 = scmp.eq.s32.totalorder %s9, 0
      %p71 = por %p69, %p70
      %p72 = scmp.ne.s32.totalorder %s64, %s66
      %p73 = scmp.eq.s32.totalorder %s14, 1
      %p74 = por %p72, %p73
      %p75 = scmp.ne.s32.totalorder %s66, %s67
      %p76 = scmp.eq.s32.totalorder %s14, 0
      %p77 = por %p75, %p76
      %p78 = scmp.ne.s32.totalorder %s66, %s67
      %p79 = scmp.eq.s32.totalorder %s15, 1
      %p80 = por %p78, %p79
      %p82 = scmp.ne.s32.totalorder %s67, %s81
      %p83 = scmp.eq.s32.totalorder %s15, 0
      %p84 = por %p82, %p83
      %s85 = ssub.s32 %s9, %s16
      %p86 = scmp.eq.s32.totalorder %s85, 0
      %s88 = sadd.s32 %s87, 1
      %s89 = scalar_select %p86, %s87, %s88
      %p92 = pneg %p86
      %p93 = scmp.eq.s32.totalorder %s9, 1
      %p94 = por %p92, %p93
      %p95 = scmp.ne.s32.totalorder %s87, %s90
      %p96 = scmp.eq.s32.totalorder %s9, 0
      %p97 = por %p95, %p96
      %p98 = scmp.ne.s32.totalorder %s87, %s90
      %p99 = scmp.eq.s32.totalorder %s14, 1
      %p100 = por %p98, %p99
      %p101 = scmp.ne.s32.totalorder %s90, %s91
      %p102 = scmp.eq.s32.totalorder %s14, 0
      %p103 = por %p101, %p102
      %p104 = scmp.ne.s32.totalorder %s90, %s91
      %p105 = scmp.eq.s32.totalorder %s15, 1
      %p106 = por %p104, %p105
      %p108 = scmp.ne.s32.totalorder %s91, %s107
      %p109 = scmp.eq.s32.totalorder %s15, 0
      %p110 = por %p108, %p109
      %p111 = scmp.le.s32.totalorder 1, %s9
      %p112 = scmp.lt.s32.totalorder %s9, 3
      %p113 = pnand %p111, %p112
      %p114 = pneg %p113
      // Predicated region
      $region9: #{lenet_forward.3} parent=5 // pred_check
        _
      $region10: #{lenet_forward.3} parent=5 // pred_check_branch
        %116 = sbr.rel (%p113) target = $region12
      $region11: #{lenet_forward.3} parent=5 // pred_region
        %s117 = ssub.s32 %s9, 1
        // Predicated region
        $region13: #{lenet_forward.3} parent=11 // pred_check
          %p118 = pneg %p56
        $region14: #{lenet_forward.3} parent=11 // pred_check_branch
          %120 = sbr.rel (%p118) target = $region16
        $region15: #{lenet_forward.3} parent=11 // pred_region
          _
        $region16: #{lenet_forward.3} parent=11 // pred_fallthru
          _
        // Predicated region
        $region17: #{lenet_forward.3} parent=11 // pred_check
          %p121 = pneg %p77
        $region18: #{lenet_forward.3} parent=11 // pred_check_branch
          %123 = sbr.rel (%p121) target = $region20
        $region19: #{lenet_forward.3} parent=11 // pred_region
          _
        $region20: #{lenet_forward.3} parent=11 // pred_fallthru
          _
      $region12: #{lenet_forward.3} parent=5 // pred_fallthru
        _
      %p124 = scmp.lt.s32.totalorder %s9, 2
      // Predicated region
      $region21: #{lenet_forward.3} parent=5 // pred_check
        %p125 = pneg %p124
      $region22: #{lenet_forward.3} parent=5 // pred_check_branch
        %127 = sbr.rel (%p125) target = $region24
      $region23: #{lenet_forward.3} parent=5 // pred_region
        // Predicated region
        $region25: #{lenet_forward.3} parent=23 // pred_check
          %p128 = pneg %p29
        $region26: #{lenet_forward.3} parent=23 // pred_check_branch
          %130 = sbr.rel (%p128) target = $region28
        $region27: #{lenet_forward.3} parent=23 // pred_region
          %s131 = sand.u32 %s19, 1
          %s132 = sand.u32 %s19, 1
          %s133 = smul.addr %s132, 400
          %s134 = scalar_lea.vmem [#allocation2], %s133
          %s135 = smul.u32 25, %s9
          %s136 = smul.addr %s135, 4
          %s137 = scalar_lea.vmem %s0, %s136
          // Predicated region
          $region29: #{lenet_forward.3} parent=27 // pred_check
            _
          $region30: #{lenet_forward.3} parent=27 // pred_check_branch
            %139 = sbr.rel (0) target = $region32
          $region31: #{lenet_forward.3} parent=27 // pred_region
            // Predicated region
            $region33: #{lenet_forward.3} parent=31 // pred_check
              _
            $region34: #{lenet_forward.3} parent=31 // pred_check_branch
              %141 = sbr.rel target = $region36
            $region35: #{lenet_forward.3} parent=31 // pred_region
              // Predicated region
              $region48: #{lenet_forward.3} parent=35 // pred_check
                _
              $region49: #{lenet_forward.3} parent=35 // pred_check_branch
                %354 = sbr.rel (0) target = $region51
              $region50: #{lenet_forward.3} parent=35 // pred_region
                loop: start=0, step=1, limit=1
                $region52: #{lenet_forward.3} parent=50 // loop_pre_header
                  _
                $region53: #{lenet_forward.3} parent=50 // loop_header
                  %s356 = sphi 0, %s360
                  %p357 = scmp.ge.s32.totalorder %s356, 1
                  %s361 = sphi %s137, %s137
                  %s362 = sphi %s134, %s134
                $region54: #{lenet_forward.3} parent=50 // loop_header_branch
                  %359 = sbr.rel (%p357) target = $region58
                $region55: #{lenet_forward.3} parent=50 // loop_body
                  _
                $region56: #{lenet_forward.3} parent=50 // loop_footer
                  %s360 = sadd.s32 1, %s356
                $region57: #{lenet_forward.3} parent=50 // loop_footer_branch
                  %355 = sbr.rel target = $region53
                $region58: #{lenet_forward.3} parent=50 // loop_exit
                  _
                loop: start=0, step=1, limit=1
                $region59: #{lenet_forward.3} parent=50 // loop_pre_header
                  _
                $region60: #{lenet_forward.3} parent=50 // loop_header
                  %s365 = sphi 0, %s369
                  %p366 = scmp.ge.s32.totalorder %s365, 1
                  %s370 = sphi %s137, %s137
                  %s371 = sphi %s134, %s134
                $region61: #{lenet_forward.3} parent=50 // loop_header_branch
                  %368 = sbr.rel (%p366) target = $region65
                $region62: #{lenet_forward.3} parent=50 // loop_body
                  %v372 = vld [vmem:[%s370] sm:$0xf]
                  %373 = vst [vmem:[%s371] sm:$0xf] %v372
                  %v374 = vld [vmem:[%s370 + $0x4] sm:$0xf]
                  %375 = vst [vmem:[%s371 + $0x4] sm:$0xf] %v374
                  %v376 = vld [vmem:[%s370 + $0x8] sm:$0xf]
                  %377 = vst [vmem:[%s371 + $0x8] sm:$0xf] %v376
                  %v378 = vld [vmem:[%s370 + $0xc] sm:$0xf]
                  %379 = vst [vmem:[%s371 + $0xc] sm:$0xf] %v378
                  %v380 = vld [vmem:[%s370 + $0x10] sm:$0xf]
                  %381 = vst [vmem:[%s371 + $0x10] sm:$0xf] %v380
                  %v382 = vld [vmem:[%s370 + $0x14] sm:$0xf]
                  %383 = vst [vmem:[%s371 + $0x14] sm:$0xf] %v382
                  %v384 = vld [vmem:[%s370 + $0x18] sm:$0xf]
                  %385 = vst [vmem:[%s371 + $0x18] sm:$0xf] %v384
                  %v386 = vld [vmem:[%s370 + $0x1c] sm:$0xf]
                  %387 = vst [vmem:[%s371 + $0x1c] sm:$0xf] %v386
                  %v388 = vld [vmem:[%s370 + $0x20] sm:$0xf]
                  %389 = vst [vmem:[%s371 + $0x20] sm:$0xf] %v388
                  %v390 = vld [vmem:[%s370 + $0x24] sm:$0xf]
                  %391 = vst [vmem:[%s371 + $0x24] sm:$0xf] %v390
                  %v392 = vld [vmem:[%s370 + $0x28] sm:$0xf]
                  %393 = vst [vmem:[%s371 + $0x28] sm:$0xf] %v392
                  %v394 = vld [vmem:[%s370 + $0x2c] sm:$0xf]
                  %395 = vst [vmem:[%s371 + $0x2c] sm:$0xf] %v394
                  %v396 = vld [vmem:[%s370 + $0x30] sm:$0xf]
                  %397 = vst [vmem:[%s371 + $0x30] sm:$0xf] %v396
                  %v398 = vld [vmem:[%s370 + $0x34] sm:$0xf]
                  %399 = vst [vmem:[%s371 + $0x34] sm:$0xf] %v398
                  %v400 = vld [vmem:[%s370 + $0x38] sm:$0xf]
                  %401 = vst [vmem:[%s371 + $0x38] sm:$0xf] %v400
                  %v402 = vld [vmem:[%s370 + $0x3c] sm:$0xf]
                  %403 = vst [vmem:[%s371 + $0x3c] sm:$0xf] %v402
                  %v404 = vld [vmem:[%s370 + $0x40] sm:$0xf]
                  %405 = vst [vmem:[%s371 + $0x40] sm:$0xf] %v404
                  %v406 = vld [vmem:[%s370 + $0x44] sm:$0xf]
                  %407 = vst [vmem:[%s371 + $0x44] sm:$0xf] %v406
                  %v408 = vld [vmem:[%s370 + $0x48] sm:$0xf]
                  %409 = vst [vmem:[%s371 + $0x48] sm:$0xf] %v408
                  %v410 = vld [vmem:[%s370 + $0x4c] sm:$0xf]
                  %411 = vst [vmem:[%s371 + $0x4c] sm:$0xf] %v410
                  %v412 = vld [vmem:[%s370 + $0x50] sm:$0xf]
                  %413 = vst [vmem:[%s371 + $0x50] sm:$0xf] %v412
                  %v414 = vld [vmem:[%s370 + $0x54] sm:$0xf]
                  %415 = vst [vmem:[%s371 + $0x54] sm:$0xf] %v414
                  %v416 = vld [vmem:[%s370 + $0x58] sm:$0xf]
                  %417 = vst [vmem:[%s371 + $0x58] sm:$0xf] %v416
                  %v418 = vld [vmem:[%s370 + $0x5c] sm:$0xf]
                  %419 = vst [vmem:[%s371 + $0x5c] sm:$0xf] %v418
                  %v420 = vld [vmem:[%s370 + $0x60] sm:$0xf]
                  %421 = vst [vmem:[%s371 + $0x60] sm:$0xf] %v420
                  %v422 = vld [vmem:[%s370 + $0xc8] sm:$0xf]
                  %423 = vst [vmem:[%s371 + $0x64] sm:$0xf] %v422
                  %v424 = vld [vmem:[%s370 + $0xcc] sm:$0xf]
                  %425 = vst [vmem:[%s371 + $0x68] sm:$0xf] %v424
                  %v426 = vld [vmem:[%s370 + $0xd0] sm:$0xf]
                  %427 = vst [vmem:[%s371 + $0x6c] sm:$0xf] %v426
                  %v428 = vld [vmem:[%s370 + $0xd4] sm:$0xf]
                  %429 = vst [vmem:[%s371 + $0x70] sm:$0xf] %v428
                  %v430 = vld [vmem:[%s370 + $0xd8] sm:$0xf]
                  %431 = vst [vmem:[%s371 + $0x74] sm:$0xf] %v430
                  %v432 = vld [vmem:[%s370 + $0xdc] sm:$0xf]
                  %433 = vst [vmem:[%s371 + $0x78] sm:$0xf] %v432
                  %v434 = vld [vmem:[%s370 + $0xe0] sm:$0xf]
                  %435 = vst [vmem:[%s371 + $0x7c] sm:$0xf] %v434
                  %v436 = vld [vmem:[%s370 + $0xe4] sm:$0xf]
                  %437 = vst [vmem:[%s371 + $0x80] sm:$0xf] %v436
                  %v438 = vld [vmem:[%s370 + $0xe8] sm:$0xf]
                  %439 = vst [vmem:[%s371 + $0x84] sm:$0xf] %v438
                  %v440 = vld [vmem:[%s370 + $0xec] sm:$0xf]
                  %441 = vst [vmem:[%s371 + $0x88] sm:$0xf] %v440
                  %v442 = vld [vmem:[%s370 + $0xf0] sm:$0xf]
                  %443 = vst [vmem:[%s371 + $0x8c] sm:$0xf] %v442
                  %v444 = vld [vmem:[%s370 + $0xf4] sm:$0xf]
                  %445 = vst [vmem:[%s371 + $0x90] sm:$0xf] %v444
                  %v446 = vld [vmem:[%s370 + $0xf8] sm:$0xf]
                  %447 = vst [vmem:[%s371 + $0x94] sm:$0xf] %v446
                  %v448 = vld [vmem:[%s370 + $0xfc] sm:$0xf]
                  %449 = vst [vmem:[%s371 + $0x98] sm:$0xf] %v448
                  %v450 = vld [vmem:[%s370 + $0x100] sm:$0xf]
                  %451 = vst [vmem:[%s371 + $0x9c] sm:$0xf] %v450
                  %v452 = vld [vmem:[%s370 + $0x104] sm:$0xf]
                  %453 = vst [vmem:[%s371 + $0xa0] sm:$0xf] %v452
                  %v454 = vld [vmem:[%s370 + $0x108] sm:$0xf]
                  %455 = vst [vmem:[%s371 + $0xa4] sm:$0xf] %v454
                  %v456 = vld [vmem:[%s370 + $0x10c] sm:$0xf]
                  %457 = vst [vmem:[%s371 + $0xa8] sm:$0xf] %v456
                  %v458 = vld [vmem:[%s370 + $0x110] sm:$0xf]
                  %459 = vst [vmem:[%s371 + $0xac] sm:$0xf] %v458
                  %v460 = vld [vmem:[%s370 + $0x114] sm:$0xf]
                  %461 = vst [vmem:[%s371 + $0xb0] sm:$0xf] %v460
                  %v462 = vld [vmem:[%s370 + $0x118] sm:$0xf]
                  %463 = vst [vmem:[%s371 + $0xb4] sm:$0xf] %v462
                  %v464 = vld [vmem:[%s370 + $0x11c] sm:$0xf]
                  %465 = vst [vmem:[%s371 + $0xb8] sm:$0xf] %v464
                  %v466 = vld [vmem:[%s370 + $0x120] sm:$0xf]
                  %467 = vst [vmem:[%s371 + $0xbc] sm:$0xf] %v466
                  %v468 = vld [vmem:[%s370 + $0x124] sm:$0xf]
                  %469 = vst [vmem:[%s371 + $0xc0] sm:$0xf] %v468
                  %v470 = vld [vmem:[%s370 + $0x128] sm:$0xf]
                  %471 = vst [vmem:[%s371 + $0xc4] sm:$0xf] %v470
                  %v472 = vld [vmem:[%s370 + $0x190] sm:$0xf]
                  %473 = vst [vmem:[%s371 + $0xc8] sm:$0xf] %v472
                  %v474 = vld [vmem:[%s370 + $0x194] sm:$0xf]
                  %475 = vst [vmem:[%s371 + $0xcc] sm:$0xf] %v474
                  %v476 = vld [vmem:[%s370 + $0x198] sm:$0xf]
                  %477 = vst [vmem:[%s371 + $0xd0] sm:$0xf] %v476
                  %v478 = vld [vmem:[%s370 + $0x19c] sm:$0xf]
                  %479 = vst [vmem:[%s371 + $0xd4] sm:$0xf] %v478
                  %v480 = vld [vmem:[%s370 + $0x1a0] sm:$0xf]
                  %481 = vst [vmem:[%s371 + $0xd8] sm:$0xf] %v480
                  %v482 = vld [vmem:[%s370 + $0x1a4] sm:$0xf]
                  %483 = vst [vmem:[%s371 + $0xdc] sm:$0xf] %v482
                  %v484 = vld [vmem:[%s370 + $0x1a8] sm:$0xf]
                  %485 = vst [vmem:[%s371 + $0xe0] sm:$0xf] %v484
                  %v486 = vld [vmem:[%s370 + $0x1ac] sm:$0xf]
                  %487 = vst [vmem:[%s371 + $0xe4] sm:$0xf] %v486
                  %v488 = vld [vmem:[%s370 + $0x1b0] sm:$0xf]
                  %489 = vst [vmem:[%s371 + $0xe8] sm:$0xf] %v488
                  %v490 = vld [vmem:[%s370 + $0x1b4] sm:$0xf]
                  %491 = vst [vmem:[%s371 + $0xec] sm:$0xf] %v490
                  %v492 = vld [vmem:[%s370 + $0x1b8] sm:$0xf]
                  %493 = vst [vmem:[%s371 + $0xf0] sm:$0xf] %v492
                  %v494 = vld [vmem:[%s370 + $0x1bc] sm:$0xf]
                  %495 = vst [vmem:[%s371 + $0xf4] sm:$0xf] %v494
                  %v496 = vld [vmem:[%s370 + $0x1c0] sm:$0xf]
                  %497 = vst [vmem:[%s371 + $0xf8] sm:$0xf] %v496
                  %v498 = vld [vmem:[%s370 + $0x1c4] sm:$0xf]
                  %499 = vst [vmem:[%s371 + $0xfc] sm:$0xf] %v498
                  %v500 = vld [vmem:[%s370 + $0x1c8] sm:$0xf]
                  %501 = vst [vmem:[%s371 + $0x100] sm:$0xf] %v500
                  %v502 = vld [vmem:[%s370 + $0x1cc] sm:$0xf]
                  %503 = vst [vmem:[%s371 + $0x104] sm:$0xf] %v502
                  %v504 = vld [vmem:[%s370 + $0x1d0] sm:$0xf]
                  %505 = vst [vmem:[%s371 + $0x108] sm:$0xf] %v504
                  %v506 = vld [vmem:[%s370 + $0x1d4] sm:$0xf]
                  %507 = vst [vmem:[%s371 + $0x10c] sm:$0xf] %v506
                  %v508 = vld [vmem:[%s370 + $0x1d8] sm:$0xf]
                  %509 = vst [vmem:[%s371 + $0x110] sm:$0xf] %v508
                  %v510 = vld [vmem:[%s370 + $0x1dc] sm:$0xf]
                  %511 = vst [vmem:[%s371 + $0x114] sm:$0xf] %v510
                  %v512 = vld [vmem:[%s370 + $0x1e0] sm:$0xf]
                  %513 = vst [vmem:[%s371 + $0x118] sm:$0xf] %v512
                  %v514 = vld [vmem:[%s370 + $0x1e4] sm:$0xf]
                  %515 = vst [vmem:[%s371 + $0x11c] sm:$0xf] %v514
                  %v516 = vld [vmem:[%s370 + $0x1e8] sm:$0xf]
                  %517 = vst [vmem:[%s371 + $0x120] sm:$0xf] %v516
                  %v518 = vld [vmem:[%s370 + $0x1ec] sm:$0xf]
                  %519 = vst [vmem:[%s371 + $0x124] sm:$0xf] %v518
                  %v520 = vld [vmem:[%s370 + $0x1f0] sm:$0xf]
                  %521 = vst [vmem:[%s371 + $0x128] sm:$0xf] %v520
                  %v522 = vld [vmem:[%s370 + $0x258] sm:$0xf]
                  %523 = vst [vmem:[%s371 + $0x12c] sm:$0xf] %v522
                  %v524 = vld [vmem:[%s370 + $0x25c] sm:$0xf]
                  %525 = vst [vmem:[%s371 + $0x130] sm:$0xf] %v524
                  %v526 = vld [vmem:[%s370 + $0x260] sm:$0xf]
                  %527 = vst [vmem:[%s371 + $0x134] sm:$0xf] %v526
                  %v528 = vld [vmem:[%s370 + $0x264] sm:$0xf]
                  %529 = vst [vmem:[%s371 + $0x138] sm:$0xf] %v528
                  %v530 = vld [vmem:[%s370 + $0x268] sm:$0xf]
                  %531 = vst [vmem:[%s371 + $0x13c] sm:$0xf] %v530
                  %v532 = vld [vmem:[%s370 + $0x26c] sm:$0xf]
                  %533 = vst [vmem:[%s371 + $0x140] sm:$0xf] %v532
                  %v534 = vld [vmem:[%s370 + $0x270] sm:$0xf]
                  %535 = vst [vmem:[%s371 + $0x144] sm:$0xf] %v534
                  %v536 = vld [vmem:[%s370 + $0x274] sm:$0xf]
                  %537 = vst [vmem:[%s371 + $0x148] sm:$0xf] %v536
                  %v538 = vld [vmem:[%s370 + $0x278] sm:$0xf]
                  %539 = vst [vmem:[%s371 + $0x14c] sm:$0xf] %v538
                  %v540 = vld [vmem:[%s370 + $0x27c] sm:$0xf]
                  %541 = vst [vmem:[%s371 + $0x150] sm:$0xf] %v540
                  %v542 = vld [vmem:[%s370 + $0x280] sm:$0xf]
                  %543 = vst [vmem:[%s371 + $0x154] sm:$0xf] %v542
                  %v544 = vld [vmem:[%s370 + $0x284] sm:$0xf]
                  %545 = vst [vmem:[%s371 + $0x158] sm:$0xf] %v544
                  %v546 = vld [vmem:[%s370 + $0x288] sm:$0xf]
                  %547 = vst [vmem:[%s371 + $0x15c] sm:$0xf] %v546
                  %v548 = vld [vmem:[%s370 + $0x28c] sm:$0xf]
                  %549 = vst [vmem:[%s371 + $0x160] sm:$0xf] %v548
                  %v550 = vld [vmem:[%s370 + $0x290] sm:$0xf]
                  %551 = vst [vmem:[%s371 + $0x164] sm:$0xf] %v550
                  %v552 = vld [vmem:[%s370 + $0x294] sm:$0xf]
                  %553 = vst [vmem:[%s371 + $0x168] sm:$0xf] %v552
                  %v554 = vld [vmem:[%s370 + $0x298] sm:$0xf]
                  %555 = vst [vmem:[%s371 + $0x16c] sm:$0xf] %v554
                  %v556 = vld [vmem:[%s370 + $0x29c] sm:$0xf]
                  %557 = vst [vmem:[%s371 + $0x170] sm:$0xf] %v556
                  %v558 = vld [vmem:[%s370 + $0x2a0] sm:$0xf]
                  %559 = vst [vmem:[%s371 + $0x174] sm:$0xf] %v558
                  %v560 = vld [vmem:[%s370 + $0x2a4] sm:$0xf]
                  %561 = vst [vmem:[%s371 + $0x178] sm:$0xf] %v560
                  %v562 = vld [vmem:[%s370 + $0x2a8] sm:$0xf]
                  %563 = vst [vmem:[%s371 + $0x17c] sm:$0xf] %v562
                  %v564 = vld [vmem:[%s370 + $0x2ac] sm:$0xf]
                  %565 = vst [vmem:[%s371 + $0x180] sm:$0xf] %v564
                  %v566 = vld [vmem:[%s370 + $0x2b0] sm:$0xf]
                  %567 = vst [vmem:[%s371 + $0x184] sm:$0xf] %v566
                  %v568 = vld [vmem:[%s370 + $0x2b4] sm:$0xf]
                  %569 = vst [vmem:[%s371 + $0x188] sm:$0xf] %v568
                  %v570 = vld [vmem:[%s370 + $0x2b8] sm:$0xf]
                  %571 = vst [vmem:[%s371 + $0x18c] sm:$0xf] %v570
                $region63: #{lenet_forward.3} parent=50 // loop_footer
                  %s369 = sadd.s32 1, %s365
                $region64: #{lenet_forward.3} parent=50 // loop_footer_branch
                  %364 = sbr.rel target = $region60
                $region65: #{lenet_forward.3} parent=50 // loop_exit
                  _
              $region51: #{lenet_forward.3} parent=35 // pred_fallthru
                _
            $region36: #{lenet_forward.3} parent=31 // pred_fallthru
              _
            // Predicated region
            $region37: #{lenet_forward.3} parent=31 // pred_check
              _
            $region38: #{lenet_forward.3} parent=31 // pred_check_branch
              %143 = sbr.rel (0) target = $region40
            $region39: #{lenet_forward.3} parent=31 // pred_region
              loop: start=0, step=1, limit=1
              $region41: #{lenet_forward.3} parent=39 // loop_pre_header
                _
              $region42: #{lenet_forward.3} parent=39 // loop_header
                %s146 = sphi 0, %s150
                %p147 = scmp.ge.s32.totalorder %s146, 1
                %s151 = sphi %s137, %s137
                %s152 = sphi %s134, %s134
              $region43: #{lenet_forward.3} parent=39 // loop_header_branch
                %149 = sbr.rel (%p147) target = $region47
              $region44: #{lenet_forward.3} parent=39 // loop_body
                %v153 = vld [vmem:[%s151] sm:$0xf]
                %154 = vst [vmem:[%s152] sm:$0xf] %v153
                %v155 = vld [vmem:[%s151 + $0x4] sm:$0xf]
                %156 = vst [vmem:[%s152 + $0x4] sm:$0xf] %v155
                %v157 = vld [vmem:[%s151 + $0x8] sm:$0xf]
                %158 = vst [vmem:[%s152 + $0x8] sm:$0xf] %v157
                %v159 = vld [vmem:[%s151 + $0xc] sm:$0xf]
                %160 = vst [vmem:[%s152 + $0xc] sm:$0xf] %v159
                %v161 = vld [vmem:[%s151 + $0x10] sm:$0xf]
                %162 = vst [vmem:[%s152 + $0x10] sm:$0xf] %v161
                %v163 = vld [vmem:[%s151 + $0x14] sm:$0xf]
                %164 = vst [vmem:[%s152 + $0x14] sm:$0xf] %v163
                %v165 = vld [vmem:[%s151 + $0x18] sm:$0xf]
                %166 = vst [vmem:[%s152 + $0x18] sm:$0xf] %v165
                %v167 = vld [vmem:[%s151 + $0x1c] sm:$0xf]
                %168 = vst [vmem:[%s152 + $0x1c] sm:$0xf] %v167
                %v169 = vld [vmem:[%s151 + $0x20] sm:$0xf]
                %170 = vst [vmem:[%s152 + $0x20] sm:$0xf] %v169
                %v171 = vld [vmem:[%s151 + $0x24] sm:$0xf]
                %172 = vst [vmem:[%s152 + $0x24] sm:$0xf] %v171
                %v173 = vld [vmem:[%s151 + $0x28] sm:$0xf]
                %174 = vst [vmem:[%s152 + $0x28] sm:$0xf] %v173
                %v175 = vld [vmem:[%s151 + $0x2c] sm:$0xf]
                %176 = vst [vmem:[%s152 + $0x2c] sm:$0xf] %v175
                %v177 = vld [vmem:[%s151 + $0x30] sm:$0xf]
                %178 = vst [vmem:[%s152 + $0x30] sm:$0xf] %v177
                %v179 = vld [vmem:[%s151 + $0x34] sm:$0xf]
                %180 = vst [vmem:[%s152 + $0x34] sm:$0xf] %v179
                %v181 = vld [vmem:[%s151 + $0x38] sm:$0xf]
                %182 = vst [vmem:[%s152 + $0x38] sm:$0xf] %v181
                %v183 = vld [vmem:[%s151 + $0x3c] sm:$0xf]
                %184 = vst [vmem:[%s152 + $0x3c] sm:$0xf] %v183
                %v185 = vld [vmem:[%s151 + $0x40] sm:$0xf]
                %186 = vst [vmem:[%s152 + $0x40] sm:$0xf] %v185
                %v187 = vld [vmem:[%s151 + $0x44] sm:$0xf]
                %188 = vst [vmem:[%s152 + $0x44] sm:$0xf] %v187
                %v189 = vld [vmem:[%s151 + $0x48] sm:$0xf]
                %190 = vst [vmem:[%s152 + $0x48] sm:$0xf] %v189
                %v191 = vld [vmem:[%s151 + $0x4c] sm:$0xf]
                %192 = vst [vmem:[%s152 + $0x4c] sm:$0xf] %v191
                %v193 = vld [vmem:[%s151 + $0x50] sm:$0xf]
                %194 = vst [vmem:[%s152 + $0x50] sm:$0xf] %v193
                %v195 = vld [vmem:[%s151 + $0x54] sm:$0xf]
                %196 = vst [vmem:[%s152 + $0x54] sm:$0xf] %v195
                %v197 = vld [vmem:[%s151 + $0x58] sm:$0xf]
                %198 = vst [vmem:[%s152 + $0x58] sm:$0xf] %v197
                %v199 = vld [vmem:[%s151 + $0x5c] sm:$0xf]
                %200 = vst [vmem:[%s152 + $0x5c] sm:$0xf] %v199
                %v201 = vld [vmem:[%s151 + $0x60] sm:$0xf]
                %202 = vst [vmem:[%s152 + $0x60] sm:$0xf] %v201
                %v203 = vld [vmem:[%s151 + $0xc8] sm:$0xf]
                %204 = vst [vmem:[%s152 + $0x64] sm:$0xf] %v203
                %v205 = vld [vmem:[%s151 + $0xcc] sm:$0xf]
                %206 = vst [vmem:[%s152 + $0x68] sm:$0xf] %v205
                %v207 = vld [vmem:[%s151 + $0xd0] sm:$0xf]
                %208 = vst [vmem:[%s152 + $0x6c] sm:$0xf] %v207
                %v209 = vld [vmem:[%s151 + $0xd4] sm:$0xf]
                %210 = vst [vmem:[%s152 + $0x70] sm:$0xf] %v209
                %v211 = vld [vmem:[%s151 + $0xd8] sm:$0xf]
                %212 = vst [vmem:[%s152 + $0x74] sm:$0xf] %v211
                %v213 = vld [vmem:[%s151 + $0xdc] sm:$0xf]
                %214 = vst [vmem:[%s152 + $0x78] sm:$0xf] %v213
                %v215 = vld [vmem:[%s151 + $0xe0] sm:$0xf]
                %216 = vst [vmem:[%s152 + $0x7c] sm:$0xf] %v215
                %v217 = vld [vmem:[%s151 + $0xe4] sm:$0xf]
                %218 = vst [vmem:[%s152 + $0x80] sm:$0xf] %v217
                %v219 = vld [vmem:[%s151 + $0xe8] sm:$0xf]
                %220 = vst [vmem:[%s152 + $0x84] sm:$0xf] %v219
                %v221 = vld [vmem:[%s151 + $0xec] sm:$0xf]
                %222 = vst [vmem:[%s152 + $0x88] sm:$0xf] %v221
                %v223 = vld [vmem:[%s151 + $0xf0] sm:$0xf]
                %224 = vst [vmem:[%s152 + $0x8c] sm:$0xf] %v223
                %v225 = vld [vmem:[%s151 + $0xf4] sm:$0xf]
                %226 = vst [vmem:[%s152 + $0x90] sm:$0xf] %v225
                %v227 = vld [vmem:[%s151 + $0xf8] sm:$0xf]
                %228 = vst [vmem:[%s152 + $0x94] sm:$0xf] %v227
                %v229 = vld [vmem:[%s151 + $0xfc] sm:$0xf]
                %230 = vst [vmem:[%s152 + $0x98] sm:$0xf] %v229
                %v231 = vld [vmem:[%s151 + $0x100] sm:$0xf]
                %232 = vst [vmem:[%s152 + $0x9c] sm:$0xf] %v231
                %v233 = vld [vmem:[%s151 + $0x104] sm:$0xf]
                %234 = vst [vmem:[%s152 + $0xa0] sm:$0xf] %v233
                %v235 = vld [vmem:[%s151 + $0x108] sm:$0xf]
                %236 = vst [vmem:[%s152 + $0xa4] sm:$0xf] %v235
                %v237 = vld [vmem:[%s151 + $0x10c] sm:$0xf]
                %238 = vst [vmem:[%s152 + $0xa8] sm:$0xf] %v237
                %v239 = vld [vmem:[%s151 + $0x110] sm:$0xf]
                %240 = vst [vmem:[%s152 + $0xac] sm:$0xf] %v239
                %v241 = vld [vmem:[%s151 + $0x114] sm:$0xf]
                %242 = vst [vmem:[%s152 + $0xb0] sm:$0xf] %v241
                %v243 = vld [vmem:[%s151 + $0x118] sm:$0xf]
                %244 = vst [vmem:[%s152 + $0xb4] sm:$0xf] %v243
                %v245 = vld [vmem:[%s151 + $0x11c] sm:$0xf]
                %246 = vst [vmem:[%s152 + $0xb8] sm:$0xf] %v245
                %v247 = vld [vmem:[%s151 + $0x120] sm:$0xf]
                %248 = vst [vmem:[%s152 + $0xbc] sm:$0xf] %v247
                %v249 = vld [vmem:[%s151 + $0x124] sm:$0xf]
                %250 = vst [vmem:[%s152 + $0xc0] sm:$0xf] %v249
                %v251 = vld [vmem:[%s151 + $0x128] sm:$0xf]
                %252 = vst [vmem:[%s152 + $0xc4] sm:$0xf] %v251
                %v253 = vld [vmem:[%s151 + $0x190] sm:$0xf]
                %254 = vst [vmem:[%s152 + $0xc8] sm:$0xf] %v253
                %v255 = vld [vmem:[%s151 + $0x194] sm:$0xf]
                %256 = vst [vmem:[%s152 + $0xcc] sm:$0xf] %v255
                %v257 = vld [vmem:[%s151 + $0x198] sm:$0xf]
                %258 = vst [vmem:[%s152 + $0xd0] sm:$0xf] %v257
                %v259 = vld [vmem:[%s151 + $0x19c] sm:$0xf]
                %260 = vst [vmem:[%s152 + $0xd4] sm:$0xf] %v259
                %v261 = vld [vmem:[%s151 + $0x1a0] sm:$0xf]
                %262 = vst [vmem:[%s152 + $0xd8] sm:$0xf] %v261
                %v263 = vld [vmem:[%s151 + $0x1a4] sm:$0xf]
                %264 = vst [vmem:[%s152 + $0xdc] sm:$0xf] %v263
                %v265 = vld [vmem:[%s151 + $0x1a8] sm:$0xf]
                %266 = vst [vmem:[%s152 + $0xe0] sm:$0xf] %v265
                %v267 = vld [vmem:[%s151 + $0x1ac] sm:$0xf]
                %268 = vst [vmem:[%s152 + $0xe4] sm:$0xf] %v267
                %v269 = vld [vmem:[%s151 + $0x1b0] sm:$0xf]
                %270 = vst [vmem:[%s152 + $0xe8] sm:$0xf] %v269
                %v271 = vld [vmem:[%s151 + $0x1b4] sm:$0xf]
                %272 = vst [vmem:[%s152 + $0xec] sm:$0xf] %v271
                %v273 = vld [vmem:[%s151 + $0x1b8] sm:$0xf]
                %274 = vst [vmem:[%s152 + $0xf0] sm:$0xf] %v273
                %v275 = vld [vmem:[%s151 + $0x1bc] sm:$0xf]
                %276 = vst [vmem:[%s152 + $0xf4] sm:$0xf] %v275
                %v277 = vld [vmem:[%s151 + $0x1c0] sm:$0xf]
                %278 = vst [vmem:[%s152 + $0xf8] sm:$0xf] %v277
                %v279 = vld [vmem:[%s151 + $0x1c4] sm:$0xf]
                %280 = vst [vmem:[%s152 + $0xfc] sm:$0xf] %v279
                %v281 = vld [vmem:[%s151 + $0x1c8] sm:$0xf]
                %282 = vst [vmem:[%s152 + $0x100] sm:$0xf] %v281
                %v283 = vld [vmem:[%s151 + $0x1cc] sm:$0xf]
                %284 = vst [vmem:[%s152 + $0x104] sm:$0xf] %v283
                %v285 = vld [vmem:[%s151 + $0x1d0] sm:$0xf]
                %286 = vst [vmem:[%s152 + $0x108] sm:$0xf] %v285
                %v287 = vld [vmem:[%s151 + $0x1d4] sm:$0xf]
                %288 = vst [vmem:[%s152 + $0x10c] sm:$0xf] %v287
                %v289 = vld [vmem:[%s151 + $0x1d8] sm:$0xf]
                %290 = vst [vmem:[%s152 + $0x110] sm:$0xf] %v289
                %v291 = vld [vmem:[%s151 + $0x1dc] sm:$0xf]
                %292 = vst [vmem:[%s152 + $0x114] sm:$0xf] %v291
                %v293 = vld [vmem:[%s151 + $0x1e0] sm:$0xf]
                %294 = vst [vmem:[%s152 + $0x118] sm:$0xf] %v293
                %v295 = vld [vmem:[%s151 + $0x1e4] sm:$0xf]
                %296 = vst [vmem:[%s152 + $0x11c] sm:$0xf] %v295
                %v297 = vld [vmem:[%s151 + $0x1e8] sm:$0xf]
                %298 = vst [vmem:[%s152 + $0x120] sm:$0xf] %v297
                %v299 = vld [vmem:[%s151 + $0x1ec] sm:$0xf]
                %300 = vst [vmem:[%s152 + $0x124] sm:$0xf] %v299
                %v301 = vld [vmem:[%s151 + $0x1f0] sm:$0xf]
                %302 = vst [vmem:[%s152 + $0x128] sm:$0xf] %v301
                %v303 = vld [vmem:[%s151 + $0x258] sm:$0xf]
                %304 = vst [vmem:[%s152 + $0x12c] sm:$0xf] %v303
                %v305 = vld [vmem:[%s151 + $0x25c] sm:$0xf]
                %306 = vst [vmem:[%s152 + $0x130] sm:$0xf] %v305
                %v307 = vld [vmem:[%s151 + $0x260] sm:$0xf]
                %308 = vst [vmem:[%s152 + $0x134] sm:$0xf] %v307
                %v309 = vld [vmem:[%s151 + $0x264] sm:$0xf]
                %310 = vst [vmem:[%s152 + $0x138] sm:$0xf] %v309
                %v311 = vld [vmem:[%s151 + $0x268] sm:$0xf]
                %312 = vst [vmem:[%s152 + $0x13c] sm:$0xf] %v311
                %v313 = vld [vmem:[%s151 + $0x26c] sm:$0xf]
                %314 = vst [vmem:[%s152 + $0x140] sm:$0xf] %v313
                %v315 = vld [vmem:[%s151 + $0x270] sm:$0xf]
                %316 = vst [vmem:[%s152 + $0x144] sm:$0xf] %v315
                %v317 = vld [vmem:[%s151 + $0x274] sm:$0xf]
                %318 = vst [vmem:[%s152 + $0x148] sm:$0xf] %v317
                %v319 = vld [vmem:[%s151 + $0x278] sm:$0xf]
                %320 = vst [vmem:[%s152 + $0x14c] sm:$0xf] %v319
                %v321 = vld [vmem:[%s151 + $0x27c] sm:$0xf]
                %322 = vst [vmem:[%s152 + $0x150] sm:$0xf] %v321
                %v323 = vld [vmem:[%s151 + $0x280] sm:$0xf]
                %324 = vst [vmem:[%s152 + $0x154] sm:$0xf] %v323
                %v325 = vld [vmem:[%s151 + $0x284] sm:$0xf]
                %326 = vst [vmem:[%s152 + $0x158] sm:$0xf] %v325
                %v327 = vld [vmem:[%s151 + $0x288] sm:$0xf]
                %328 = vst [vmem:[%s152 + $0x15c] sm:$0xf] %v327
                %v329 = vld [vmem:[%s151 + $0x28c] sm:$0xf]
                %330 = vst [vmem:[%s152 + $0x160] sm:$0xf] %v329
                %v331 = vld [vmem:[%s151 + $0x290] sm:$0xf]
                %332 = vst [vmem:[%s152 + $0x164] sm:$0xf] %v331
                %v333 = vld [vmem:[%s151 + $0x294] sm:$0xf]
                %334 = vst [vmem:[%s152 + $0x168] sm:$0xf] %v333
                %v335 = vld [vmem:[%s151 + $0x298] sm:$0xf]
                %336 = vst [vmem:[%s152 + $0x16c] sm:$0xf] %v335
                %v337 = vld [vmem:[%s151 + $0x29c] sm:$0xf]
                %338 = vst [vmem:[%s152 + $0x170] sm:$0xf] %v337
                %v339 = vld [vmem:[%s151 + $0x2a0] sm:$0xf]
                %340 = vst [vmem:[%s152 + $0x174] sm:$0xf] %v339
                %v341 = vld [vmem:[%s151 + $0x2a4] sm:$0xf]
                %342 = vst [vmem:[%s152 + $0x178] sm:$0xf] %v341
                %v343 = vld [vmem:[%s151 + $0x2a8] sm:$0xf]
                %344 = vst [vmem:[%s152 + $0x17c] sm:$0xf] %v343
                %v345 = vld [vmem:[%s151 + $0x2ac] sm:$0xf]
                %346 = vst [vmem:[%s152 + $0x180] sm:$0xf] %v345
                %v347 = vld [vmem:[%s151 + $0x2b0] sm:$0xf]
                %348 = vst [vmem:[%s152 + $0x184] sm:$0xf] %v347
                %v349 = vld [vmem:[%s151 + $0x2b4] sm:$0xf]
                %350 = vst [vmem:[%s152 + $0x188] sm:$0xf] %v349
                %v351 = vld [vmem:[%s151 + $0x2b8] sm:$0xf]
                %352 = vst [vmem:[%s152 + $0x18c] sm:$0xf] %v351
              $region45: #{lenet_forward.3} parent=39 // loop_footer
                %s150 = sadd.s32 1, %s146
              $region46: #{lenet_forward.3} parent=39 // loop_footer_branch
                %145 = sbr.rel target = $region42
              $region47: #{lenet_forward.3} parent=39 // loop_exit
                _
            $region40: #{lenet_forward.3} parent=31 // pred_fallthru
              _
          $region32: #{lenet_forward.3} parent=27 // pred_fallthru
            _
          %572 = vnop
        $region28: #{lenet_forward.3} parent=23 // pred_fallthru
          _
      $region24: #{lenet_forward.3} parent=5 // pred_fallthru
        _
      %p573 = scmp.le.s32.totalorder 1, %s9
      %p574 = scmp.lt.s32.totalorder %s9, 3
      %p575 = pnand %p573, %p574
      %p576 = pneg %p575
      // Predicated region
      $region66: #{lenet_forward.3} parent=5 // pred_check
        _
      $region67: #{lenet_forward.3} parent=5 // pred_check_branch
        %578 = sbr.rel (%p575) target = $region69
      $region68: #{lenet_forward.3} parent=5 // pred_region
        %s579 = ssub.s32 %s9, 1
        %s580 = sand.u32 %s22, 1
        %s581 = sand.u32 %s22, 1
        %s582 = smul.addr %s581, 400
        %s583 = scalar_lea.vmem [#allocation2], %s582
        // Predicated region
        $region70: #{lenet_forward.3} parent=68 // pred_check
          %p584 = pneg %p35
        $region71: #{lenet_forward.3} parent=68 // pred_check_branch
          %586 = sbr.rel (%p584) target = $region73
        $region72: #{lenet_forward.3} parent=68 // pred_region
          _
        $region73: #{lenet_forward.3} parent=68 // pred_fallthru
          _
        %s587 = sand.u32 %s22, 1
        %s588 = sand.u32 %s22, 1
        %s589 = smul.addr %s588, 400
        %s590 = scalar_lea.vmem [#allocation2], %s589
        %p591 = pneg %p35
        %p592 = pneg %p32
        %p593 = pneg %p56
        %p594 = pneg %p53
        %p595 = pneg %p77
        %p596 = pneg %p74
        %p597 = pneg %p103
        %p598 = pneg %p100
        %s599 = smul.u32 25, %s14
        %p600 = scmp.lt.s32.totalorder %s599, 49
        %s601 = scalar_select %p600, %s599, 49
        %s602 = smul.addr %s601, 4
        %s603 = scalar_lea.vmem %s3, %s602
        %s604 = smul.u32 25, %s14
        %s605 = smul.u32 25, %s14
        %p606 = scmp.lt.s32.totalorder %s605, 49
        %s607 = scalar_select %p606, %s605, 49
        %s608 = smul.addr %s607, 4
        %s609 = scalar_lea.vmem %s3, %s608
        %s610 = smul.u32 25, %s14
        %v612 = vld [vmem:[%s1] sm:$0xf]
        %v613 = vld [vmem:[%s1 + $0x4] sm:$0xf]
        %v614 = vld [vmem:[%s1 + $0x8] sm:$0xf]
        %v615 = vld [vmem:[%s1 + $0xc] sm:$0xf]
        %v616 = vld [vmem:[%s583] sm:$0xf]
        %v617 = vld [vmem:[%s583 + $0x4] sm:$0xf]
        %v618 = vld [vmem:[%s583 + $0x8] sm:$0xf]
        %v619 = vld [vmem:[%s583 + $0xc] sm:$0xf]
        %v620 = vld [vmem:[%s583 + $0x10] sm:$0xf]
        %v621 = vld [vmem:[%s583 + $0x14] sm:$0xf]
        %v622 = vld [vmem:[%s583 + $0x18] sm:$0xf]
        %v623 = vld [vmem:[%s583 + $0x1c] sm:$0xf]
        %v624 = vld [vmem:[%s583 + $0x20] sm:$0xf]
        %v625 = vld [vmem:[%s583 + $0x24] sm:$0xf]
        %v626 = vld [vmem:[%s583 + $0x28] sm:$0xf]
        %v627 = vld [vmem:[%s583 + $0x2c] sm:$0xf]
        %v628 = vld [vmem:[%s583 + $0x30] sm:$0xf]
        %v629 = vld [vmem:[%s583 + $0x34] sm:$0xf]
        %v630 = vld [vmem:[%s583 + $0x38] sm:$0xf]
        %v631 = vld [vmem:[%s583 + $0x3c] sm:$0xf]
        %v632 = vld [vmem:[%s583 + $0x40] sm:$0xf]
        %v633 = vld [vmem:[%s583 + $0x44] sm:$0xf]
        %v634 = vld [vmem:[%s583 + $0x48] sm:$0xf]
        %v635 = vld [vmem:[%s583 + $0x4c] sm:$0xf]
        %v636 = vld [vmem:[%s583 + $0x50] sm:$0xf]
        %v637 = vld [vmem:[%s583 + $0x54] sm:$0xf]
        %v638 = vld [vmem:[%s583 + $0x58] sm:$0xf]
        %v639 = vld [vmem:[%s583 + $0x5c] sm:$0xf]
        %v640 = vld [vmem:[%s583 + $0x60] sm:$0xf]
        %v666 = vunpack.c.l.b16 %v616
        %v667 = vunpack.c.l.b16 %v617
        %v668 = vunpack.c.l.b16 %v618
        %v669 = vunpack.c.l.b16 %v619
        %v670 = vunpack.c.l.b16 %v620
        %v671 = vunpack.c.l.b16 %v621
        %v672 = vunpack.c.l.b16 %v622
        %v673 = vunpack.c.l.b16 %v623
        %v674 = vunpack.c.l.b16 %v624
        %v675 = vunpack.c.l.b16 %v625
        %v676 = vunpack.c.l.b16 %v626
        %v677 = vunpack.c.l.b16 %v627
        %v678 = vunpack.c.l.b16 %v628
        %v679 = vunpack.c.l.b16 %v629
        %v680 = vunpack.c.l.b16 %v630
        %v681 = vunpack.c.l.b16 %v631
        %v682 = vunpack.c.l.b16 %v632
        %v683 = vunpack.c.l.b16 %v633
        %v684 = vunpack.c.l.b16 %v634
        %v685 = vunpack.c.l.b16 %v635
        %v686 = vunpack.c.l.b16 %v636
        %v687 = vunpack.c.l.b16 %v637
        %v688 = vunpack.c.l.b16 %v638
        %v689 = vunpack.c.l.b16 %v639
        %v690 = vunpack.c.l.b16 %v640
        %v691 = vpack.c.b16 %v667, %v666
        %v692 = vpack.c.b16 %v669, %v668
        %v693 = vpack.c.b16 %v671, %v670
        %v694 = vpack.c.b16 %v673, %v672
        %v695 = vpack.c.b16 %v675, %v674
        %v696 = vpack.c.b16 %v677, %v676
        %v697 = vpack.c.b16 %v679, %v678
        %v698 = vpack.c.b16 %v681, %v680
        %v699 = vpack.c.b16 %v683, %v682
        %v700 = vpack.c.b16 %v685, %v684
        %v701 = vpack.c.b16 %v687, %v686
        %v702 = vpack.c.b16 %v689, %v688
        %v703 = vpack.c.b16 %v690, %v690
        %v708 = vunpack.c.l.b16 %v612
        %v709 = vunpack.c.l.b16 %v613
        %v710 = vunpack.c.l.b16 %v614
        %v711 = vunpack.c.l.b16 %v615
        %v712 = vpack.c.b16 %v709, %v708
        %v713 = vpack.c.b16 %v711, %v710
        %vm716 = vcmask 261120
        %v718 = vsel %vm716, %v691, 0
        %v721 = vsel %vm716, %v692, 0
        %v724 = vsel %vm716, %v693, 0
        %v727 = vsel %vm716, %v694, 0
        %v730 = vsel %vm716, %v695, 0
        %v733 = vsel %vm716, %v696, 0
        %v736 = vsel %vm716, %v697, 0
        %v739 = vsel %vm716, %v698, 0
        %v742 = vsel %vm716, %v699, 0
        %v745 = vsel %vm716, %v700, 0
        %v748 = vsel %vm716, %v701, 0
        %v751 = vsel %vm716, %v702, 0
        %v754 = vsel %vm716, %v703, 0
        %756 = vmatprep.subr.bf16.mxu0 0
        %757 = vmatpush1.bf16.msra.mxu0 %v712
        %758 = vmatprep.subr.bf16.mxu0 0
        %759 = vmatpush1.bf16.msra.mxu0 %v713
        %760 = vmatprep.subr.bf16.mxu0 0
        %761 = vmatpush1.bf16.msra.mxu0 0
        %762 = vmatprep.subr.bf16.mxu0 0
        %763 = vmatpush1.bf16.msra.mxu0 0
        %764 = vmatprep.subr.bf16.mxu0 0
        %765 = vmatpush1.bf16.msra.mxu0 0
        %766 = vmatprep.subr.bf16.mxu0 0
        %767 = vmatpush1.bf16.msra.mxu0 0
        %768 = vmatprep.subr.bf16.mxu0 0
        %769 = vmatpush1.bf16.msra.mxu0 0
        %770 = vmatprep.subr.bf16.mxu0 0
        %771 = vmatpush1.bf16.msra.mxu0 0
        %772 = vmatprep.subr.bf16.mxu0 0
        %773 = vmatpush1.bf16.msra.mxu0 0
        %774 = vmatprep.subr.bf16.mxu0 0
        %775 = vmatpush1.bf16.msra.mxu0 0
        %776 = vmatprep.subr.bf16.mxu0 0
        %777 = vmatpush1.bf16.msra.mxu0 0
        %778 = vmatprep.subr.bf16.mxu0 0
        %779 = vmatpush1.bf16.msra.mxu0 0
        %780 = vmatprep.subr.bf16.mxu0 0
        %781 = vmatpush1.bf16.msra.mxu0 0
        %782 = vmatprep.subr.bf16.mxu0 0
        %783 = vmatpush1.bf16.msra.mxu0 0
        %784 = vmatprep.subr.bf16.mxu0 0
        %785 = vmatpush1.bf16.msra.mxu0 0
        %786 = vmatprep.subr.bf16.mxu0 0
        %787 = vmatpush1.bf16.msra.mxu0 0
        %788 = vmatprep.mubr.bf16.mxu0 0
        %789 = vmatmul.mubr.bf16.gmra.mrb[0].mxu0 %v718
        %v790 = vpop.f32.mrb[0].mxu0
        %v791 = vadd.f32 0.0, %v790
        %v792 = vpop.f32.mrb[0].mxu0
        %v793 = vpop.f32.mrb[0].mxu0
        %v794 = vadd.f32 0.0, %v793
        %v795 = vpop.f32.mrb[0].mxu0
        %796 = vmatprep.mubr.bf16.mxu0 0
        %797 = vmatmul.mubr.bf16.gmra.mrb[0].mxu0 %v721
        %v798 = vpop.f32.mrb[0].mxu0
        %v799 = vadd.f32 0.0, %v798
        %v800 = vpop.f32.mrb[0].mxu0
        %v801 = vpop.f32.mrb[0].mxu0
        %v802 = vadd.f32 0.0, %v801
        %v803 = vpop.f32.mrb[0].mxu0
        %804 = vmatprep.mubr.bf16.mxu0 0
        %805 = vmatmul.mubr.bf16.gmra.mrb[0].mxu0 %v724
        %v806 = vpop.f32.mrb[0].mxu0
        %v807 = vadd.f32 0.0, %v806
        %v808 = vpop.f32.mrb[0].mxu0
        %v809 = vpop.f32.mrb[0].mxu0
        %v810 = vadd.f32 0.0, %v809
        %v811 = vpop.f32.mrb[0].mxu0
        %812 = vmatprep.mubr.bf16.mxu0 0
        %813 = vmatmul.mubr.bf16.gmra.mrb[0].mxu0 %v727
        %v814 = vpop.f32.mrb[0].mxu0
        %v815 = vadd.f32 0.0, %v814
        %v816 = vpop.f32.mrb[0].mxu0
        %v817 = vpop.f32.mrb[0].mxu0
        %v818 = vadd.f32 0.0, %v817
        %v819 = vpop.f32.mrb[0].mxu0
        %820 = vmatprep.mubr.bf16.mxu0 0
        %821 = vmatmul.mubr.bf16.gmra.mrb[0].mxu0 %v730
        %v822 = vpop.f32.mrb[0].mxu0
        %v823 = vadd.f32 0.0, %v822
        %v824 = vpop.f32.mrb[0].mxu0
        %v825 = vpop.f32.mrb[0].mxu0
        %v826 = vadd.f32 0.0, %v825
        %v827 = vpop.f32.mrb[0].mxu0
        %828 = vmatprep.mubr.bf16.mxu0 0
        %829 = vmatmul.mubr.bf16.gmra.mrb[0].mxu0 %v733
        %v830 = vpop.f32.mrb[0].mxu0
        %v831 = vadd.f32 0.0, %v830
        %v832 = vpop.f32.mrb[0].mxu0
        %v833 = vpop.f32.mrb[0].mxu0
        %v834 = vadd.f32 0.0, %v833
        %v835 = vpop.f32.mrb[0].mxu0
        %836 = vmatprep.mubr.bf16.mxu0 0
        %837 = vmatmul.mubr.bf16.gmra.mrb[0].mxu0 %v736
        %v838 = vpop.f32.mrb[0].mxu0
        %v839 = vadd.f32 0.0, %v838
        %v840 = vpop.f32.mrb[0].mxu0
        %v841 = vpop.f32.mrb[0].mxu0
        %v842 = vadd.f32 0.0, %v841
        %v843 = vpop.f32.mrb[0].mxu0
        %844 = vmatprep.mubr.bf16.mxu0 0
        %845 = vmatmul.mubr.bf16.gmra.mrb[0].mxu0 %v739
        %v846 = vpop.f32.mrb[0].mxu0
        %v847 = vadd.f32 0.0, %v846
        %v848 = vpop.f32.mrb[0].mxu0
        %v849 = vpop.f32.mrb[0].mxu0
        %v850 = vadd.f32 0.0, %v849
        %v851 = vpop.f32.mrb[0].mxu0
        %852 = vmatprep.mubr.bf16.mxu0 0
        %853 = vmatmul.mubr.bf16.gmra.mrb[0].mxu0 %v742
        %v854 = vpop.f32.mrb[0].mxu0
        %v855 = vadd.f32 0.0, %v854
        %v856 = vpop.f32.mrb[0].mxu0
        %v857 = vpop.f32.mrb[0].mxu0
        %v858 = vadd.f32 0.0, %v857
        %v859 = vpop.f32.mrb[0].mxu0
        %860 = vmatprep.mubr.bf16.mxu0 0
        %861 = vmatmul.mubr.bf16.gmra.mrb[0].mxu0 %v745
        %v862 = vpop.f32.mrb[0].mxu0
        %v863 = vadd.f32 0.0, %v862
        %v864 = vpop.f32.mrb[0].mxu0
        %v865 = vpop.f32.mrb[0].mxu0
        %v866 = vadd.f32 0.0, %v865
        %v867 = vpop.f32.mrb[0].mxu0
        %868 = vmatprep.mubr.bf16.mxu0 0
        %869 = vmatmul.mubr.bf16.gmra.mrb[0].mxu0 %v748
        %v870 = vpop.f32.mrb[0].mxu0
        %v871 = vadd.f32 0.0, %v870
        %v872 = vpop.f32.mrb[0].mxu0
        %v873 = vpop.f32.mrb[0].mxu0
        %v874 = vadd.f32 0.0, %v873
        %v875 = vpop.f32.mrb[0].mxu0
        %876 = vmatprep.mubr.bf16.mxu0 0
        %877 = vmatmul.mubr.bf16.gmra.mrb[0].mxu0 %v751
        %v878 = vpop.f32.mrb[0].mxu0
        %v879 = vadd.f32 0.0, %v878
        %v880 = vpop.f32.mrb[0].mxu0
        %v881 = vpop.f32.mrb[0].mxu0
        %v882 = vadd.f32 0.0, %v881
        %v883 = vpop.f32.mrb[0].mxu0
        %884 = vmatprep.mubr.bf16.mxu0 0
        %885 = vmatmul.mubr.bf16.gmra.mrb[0].mxu0 %v754
        %v886 = vpop.f32.mrb[0].mxu0
        %v887 = vadd.f32 0.0, %v886
        %v888 = vpop.f32.mrb[0].mxu0
        %v889 = vpop.f32.mrb[0].mxu0
        %v890 = vpop.f32.mrb[0].mxu0
        %891 = vdwg.mxu0
        %s892 = scalar_lea.vmem %s583, 100 [#allocation2]
        %v893 = vld [vmem:[%s892] sm:$0xf]
        %v894 = vld [vmem:[%s892 + $0x4] sm:$0xf]
        %v895 = vld [vmem:[%s892 + $0x8] sm:$0xf]
        %v896 = vld [vmem:[%s892 + $0xc] sm:$0xf]
        %v897 = vld [vmem:[%s892 + $0x10] sm:$0xf]
        %v898 = vld [vmem:[%s892 + $0x14] sm:$0xf]
        %v899 = vld [vmem:[%s892 + $0x18] sm:$0xf]
        %v900 = vld [vmem:[%s892 + $0x1c] sm:$0xf]
        %v901 = vld [vmem:[%s892 + $0x20] sm:$0xf]
        %v902 = vld [vmem:[%s892 + $0x24] sm:$0xf]
        %v903 = vld [vmem:[%s892 + $0x28] sm:$0xf]
        %v904 = vld [vmem:[%s892 + $0x2c] sm:$0xf]
        %v905 = vld [vmem:[%s892 + $0x30] sm:$0xf]
        %v906 = vld [vmem:[%s892 + $0x34] sm:$0xf]
        %v907 = vld [vmem:[%s892 + $0x38] sm:$0xf]
        %v908 = vld [vmem:[%s892 + $0x3c] sm:$0xf]
        %v909 = vld [vmem:[%s892 + $0x40] sm:$0xf]
        %v910 = vld [vmem:[%s892 + $0x44] sm:$0xf]
        %v911 = vld [vmem:[%s892 + $0x48] sm:$0xf]
        %v912 = vld [vmem:[%s892 + $0x4c] sm:$0xf]
        %v913 = vld [vmem:[%s892 + $0x50] sm:$0xf]
        %v914 = vld [vmem:[%s892 + $0x54] sm:$0xf]
        %v915 = vld [vmem:[%s892 + $0x58] sm:$0xf]
        %v916 = vld [vmem:[%s892 + $0x5c] sm:$0xf]
        %v917 = vld [vmem:[%s892 + $0x60] sm:$0xf]
        %v943 = vunpack.c.l.b16 %v893
        %v944 = vunpack.c.l.b16 %v894
        %v945 = vunpack.c.l.b16 %v895
        %v946 = vunpack.c.l.b16 %v896
        %v947 = vunpack.c.l.b16 %v897
        %v948 = vunpack.c.l.b16 %v898
        %v949 = vunpack.c.l.b16 %v899
        %v950 = vunpack.c.l.b16 %v900
        %v951 = vunpack.c.l.b16 %v901
        %v952 = vunpack.c.l.b16 %v902
        %v953 = vunpack.c.l.b16 %v903
        %v954 = vunpack.c.l.b16 %v904
        %v955 = vunpack.c.l.b16 %v905
        %v956 = vunpack.c.l.b16 %v906
        %v957 = vunpack.c.l.b16 %v907
        %v958 = vunpack.c.l.b16 %v908
        %v959 = vunpack.c.l.b16 %v909
        %v960 = vunpack.c.l.b16 %v910
        %v961 = vunpack.c.l.b16 %v911
        %v962 = vunpack.c.l.b16 %v912
        %v963 = vunpack.c.l.b16 %v913
        %v964 = vunpack.c.l.b16 %v914
        %v965 = vunpack.c.l.b16 %v915
        %v966 = vunpack.c.l.b16 %v916
        %v967 = vunpack.c.l.b16 %v917
        %v968 = vpack.c.b16 %v944, %v943
        %v969 = vpack.c.b16 %v946, %v945
        %v970 = vpack.c.b16 %v948, %v947
        %v971 = vpack.c.b16 %v950, %v949
        %v972 = vpack.c.b16 %v952, %v951
        %v973 = vpack.c.b16 %v954, %v953
        %v974 = vpack.c.b16 %v956, %v955
        %v975 = vpack.c.b16 %v958, %v957
        %v976 = vpack.c.b16 %v960, %v959
        %v977 = vpack.c.b16 %v962, %v961
        %v978 = vpack.c.b16 %v964, %v963
        %v979 = vpack.c.b16 %v966, %v965
        %v980 = vpack.c.b16 %v967, %v967
        %v982 = vsel %vm716, %v968, 0
        %v985 = vsel %vm716, %v969, 0
        %v988 = vsel %vm716, %v970, 0
        %v991 = vsel %vm716, %v971, 0
        %v994 = vsel %vm716, %v972, 0
        %v997 = vsel %vm716, %v973, 0
        %v1000 = vsel %vm716, %v974, 0
        %v1003 = vsel %vm716, %v975, 0
        %v1006 = vsel %vm716, %v976, 0
        %v1009 = vsel %vm716, %v977, 0
        %v1012 = vsel %vm716, %v978, 0
        %v1015 = vsel %vm716, %v979, 0
        %v1018 = vsel %vm716, %v980, 0
        %1020 = vmatprep.subr.bf16.mxu0 0
        %1021 = vmatpush1.bf16.msra.mxu0 %v712
        %1022 = vmatprep.subr.bf16.mxu0 0
        %1023 = vmatpush1.bf16.msra.mxu0 %v713
        %1024 = vmatprep.subr.bf16.mxu0 0
        %1025 = vmatpush1.bf16.msra.mxu0 0
        %1026 = vmatprep.subr.bf16.mxu0 0
        %1027 = vmatpush1.bf16.msra.mxu0 0
        %1028 = vmatprep.subr.bf16.mxu0 0
        %1029 = vmatpush1.bf16.msra.mxu0 0
        %1030 = vmatprep.subr.bf16.mxu0 0
        %1031 = vmatpush1.bf16.msra.mxu0 0
        %1032 = vmatprep.subr.bf16.mxu0 0
        %1033 = vmatpush1.bf16.msra.mxu0 0
        %1034 = vmatprep.subr.bf16.mxu0 0
        %1035 = vmatpush1.bf16.msra.mxu0 0
        %1036 = vmatprep.subr.bf16.mxu0 0
        %1037 = vmatpush1.bf16.msra.mxu0 0
        %1038 = vmatprep.subr.bf16.mxu0 0
        %1039 = vmatpush1.bf16.msra.mxu0 0
        %1040 = vmatprep.subr.bf16.mxu0 0
        %1041 = vmatpush1.bf16.msra.mxu0 0
        %1042 = vmatprep.subr.bf16.mxu0 0
        %1043 = vmatpush1.bf16.msra.mxu0 0
        %1044 = vmatprep.subr.bf16.mxu0 0
        %1045 = vmatpush1.bf16.msra.mxu0 0
        %1046 = vmatprep.subr.bf16.mxu0 0
        %1047 = vmatpush1.bf16.msra.mxu0 0
        %1048 = vmatprep.subr.bf16.mxu0 0
        %1049 = vmatpush1.bf16.msra.mxu0 0
        %1050 = vmatprep.subr.bf16.mxu0 0
        %1051 = vmatpush1.bf16.msra.mxu0 0
        %1052 = vmatprep.mubr.bf16.mxu0 0
        %1053 = vmatmul.mubr.bf16.gmra.mrb[0].mxu0 %v982
        %v1054 = vpop.f32.mrb[0].mxu0
        %v1055 = vadd.f32 0.0, %v1054
        %v1056 = vpop.f32.mrb[0].mxu0
        %v1057 = vpop.f32.mrb[0].mxu0
        %v1058 = vadd.f32 0.0, %v1057
        %v1059 = vpop.f32.mrb[0].mxu0
        %1060 = vmatprep.mubr.bf16.mxu0 0
        %1061 = vmatmul.mubr.bf16.gmra.mrb[0].mxu0 %v985
        %v1062 = vpop.f32.mrb[0].mxu0
        %v1063 = vadd.f32 0.0, %v1062
        %v1064 = vpop.f32.mrb[0].mxu0
        %v1065 = vpop.f32.mrb[0].mxu0
        %v1066 = vadd.f32 0.0, %v1065
        %v1067 = vpop.f32.mrb[0].mxu0
        %1068 = vmatprep.mubr.bf16.mxu0 0
        %1069 = vmatmul.mubr.bf16.gmra.mrb[0].mxu0 %v988
        %v1070 = vpop.f32.mrb[0].mxu0
        %v1071 = vadd.f32 0.0, %v1070
        %v1072 = vpop.f32.mrb[0].mxu0
        %v1073 = vpop.f32.mrb[0].mxu0
        %v1074 = vadd.f32 0.0, %v1073
        %v1075 = vpop.f32.mrb[0].mxu0
        %1076 = vmatprep.mubr.bf16.mxu0 0
        %1077 = vmatmul.mubr.bf16.gmra.mrb[0].mxu0 %v991
        %v1078 = vpop.f32.mrb[0].mxu0
        %v1079 = vadd.f32 0.0, %v1078
        %v1080 = vpop.f32.mrb[0].mxu0
        %v1081 = vpop.f32.mrb[0].mxu0
        %v1082 = vadd.f32 0.0, %v1081
        %v1083 = vpop.f32.mrb[0].mxu0
        %1084 = vmatprep.mubr.bf16.mxu0 0
        %1085 = vmatmul.mubr.bf16.gmra.mrb[0].mxu0 %v994
        %v1086 = vpop.f32.mrb[0].mxu0
        %v1087 = vadd.f32 0.0, %v1086
        %v1088 = vpop.f32.mrb[0].mxu0
        %v1089 = vpop.f32.mrb[0].mxu0
        %v1090 = vadd.f32 0.0, %v1089
        %v1091 = vpop.f32.mrb[0].mxu0
        %1092 = vmatprep.mubr.bf16.mxu0 0
        %1093 = vmatmul.mubr.bf16.gmra.mrb[0].mxu0 %v997
        %v1094 = vpop.f32.mrb[0].mxu0
        %v1095 = vadd.f32 0.0, %v1094
        %v1096 = vpop.f32.mrb[0].mxu0
        %v1097 = vpop.f32.mrb[0].mxu0
        %v1098 = vadd.f32 0.0, %v1097
        %v1099 = vpop.f32.mrb[0].mxu0
        %1100 = vmatprep.mubr.bf16.mxu0 0
        %1101 = vmatmul.mubr.bf16.gmra.mrb[0].mxu0 %v1000
        %v1102 = vpop.f32.mrb[0].mxu0
        %v1103 = vadd.f32 0.0, %v1102
        %v1104 = vpop.f32.mrb[0].mxu0
        %v1105 = vpop.f32.mrb[0].mxu0
        %v1106 = vadd.f32 0.0, %v1105
        %v1107 = vpop.f32.mrb[0].mxu0
        %1108 = vmatprep.mubr.bf16.mxu0 0
        %1109 = vmatmul.mubr.bf16.gmra.mrb[0].mxu0 %v1003
        %v1110 = vpop.f32.mrb[0].mxu0
        %v1111 = vadd.f32 0.0, %v1110
        %v1112 = vpop.f32.mrb[0].mxu0
        %v1113 = vpop.f32.mrb[0].mxu0
        %v1114 = vadd.f32 0.0, %v1113
        %v1115 = vpop.f32.mrb[0].mxu0
        %1116 = vmatprep.mubr.bf16.mxu0 0
        %1117 = vmatmul.mubr.bf16.gmra.mrb[0].mxu0 %v1006
        %v1118 = vpop.f32.mrb[0].mxu0
        %v1119 = vadd.f32 0.0, %v1118
        %v1120 = vpop.f32.mrb[0].mxu0
        %v1121 = vpop.f32.mrb[0].mxu0
        %v1122 = vadd.f32 0.0, %v1121
        %v1123 = vpop.f32.mrb[0].mxu0
        %1124 = vmatprep.mubr.bf16.mxu0 0
        %1125 = vmatmul.mubr.bf16.gmra.mrb[0].mxu0 %v1009
        %v1126 = vpop.f32.mrb[0].mxu0
        %v1127 = vadd.f32 0.0, %v1126
        %v1128 = vpop.f32.mrb[0].mxu0
        %v1129 = vpop.f32.mrb[0].mxu0
        %v1130 = vadd.f32 0.0, %v1129
        %v1131 = vpop.f32.mrb[0].mxu0
        %1132 = vmatprep.mubr.bf16.mxu0 0
        %1133 = vmatmul.mubr.bf16.gmra.mrb[0].mxu0 %v1012
        %v1134 = vpop.f32.mrb[0].mxu0
        %v1135 = vadd.f32 0.0, %v1134
        %v1136 = vpop.f32.mrb[0].mxu0
        %v1137 = vpop.f32.mrb[0].mxu0
        %v1138 = vadd.f32 0.0, %v1137
        %v1139 = vpop.f32.mrb[0].mxu0
        %1140 = vmatprep.mubr.bf16.mxu0 0
        %1141 = vmatmul.mubr.bf16.gmra.mrb[0].mxu0 %v1015
        %v1142 = vpop.f32.mrb[0].mxu0
        %v1143 = vadd.f32 0.0, %v1142
        %v1144 = vpop.f32.mrb[0].mxu0
        %v1145 = vpop.f32.mrb[0].mxu0
        %v1146 = vadd.f32 0.0, %v1145
        %v1147 = vpop.f32.mrb[0].mxu0
        %1148 = vmatprep.mubr.bf16.mxu0 0
        %1149 = vmatmul.mubr.bf16.gmra.mrb[0].mxu0 %v1018
        %v1150 = vpop.f32.mrb[0].mxu0
        %v1151 = vadd.f32 0.0, %v1150
        %v1152 = vpop.f32.mrb[0].mxu0
        %v1153 = vpop.f32.mrb[0].mxu0
        %v1154 = vpop.f32.mrb[0].mxu0
        %1155 = vdwg.mxu0
        %v1156 = vmax.f32 %v791, %v1055
        %v1157 = vmax.f32 %v794, %v1058
        %v1158 = vmax.f32 %v799, %v1063
        %v1159 = vmax.f32 %v802, %v1066
        %v1160 = vmax.f32 %v807, %v1071
        %v1161 = vmax.f32 %v810, %v1074
        %v1162 = vmax.f32 %v815, %v1079
        %v1163 = vmax.f32 %v818, %v1082
        %v1164 = vmax.f32 %v823, %v1087
        %v1165 = vmax.f32 %v826, %v1090
        %v1166 = vmax.f32 %v831, %v1095
        %v1167 = vmax.f32 %v834, %v1098
        %v1168 = vmax.f32 %v839, %v1103
        %v1169 = vmax.f32 %v842, %v1106
        %v1170 = vmax.f32 %v847, %v1111
        %v1171 = vmax.f32 %v850, %v1114
        %v1172 = vmax.f32 %v855, %v1119
        %v1173 = vmax.f32 %v858, %v1122
        %v1174 = vmax.f32 %v863, %v1127
        %v1175 = vmax.f32 %v866, %v1130
        %v1176 = vmax.f32 %v871, %v1135
        %v1177 = vmax.f32 %v874, %v1138
        %v1178 = vmax.f32 %v879, %v1143
        %v1179 = vmax.f32 %v882, %v1146
        %v1180 = vmax.f32 %v887, %v1151
        %s1181 = scalar_lea.vmem %s583, 200 [#allocation2]
        %v1182 = vld [vmem:[%s1181] sm:$0xf]
        %v1183 = vld [vmem:[%s1181 + $0x4] sm:$0xf]
        %v1184 = vld [vmem:[%s1181 + $0x8] sm:$0xf]
        %v1185 = vld [vmem:[%s1181 + $0xc] sm:$0xf]
        %v1186 = vld [vmem:[%s1181 + $0x10] sm:$0xf]
        %v1187 = vld [vmem:[%s1181 + $0x14] sm:$0xf]
        %v1188 = vld [vmem:[%s1181 + $0x18] sm:$0xf]
        %v1189 = vld [vmem:[%s1181 + $0x1c] sm:$0xf]
        %v1190 = vld [vmem:[%s1181 + $0x20] sm:$0xf]
        %v1191 = vld [vmem:[%s1181 + $0x24] sm:$0xf]
        %v1192 = vld [vmem:[%s1181 + $0x28] sm:$0xf]
        %v1193 = vld [vmem:[%s1181 + $0x2c] sm:$0xf]
        %v1194 = vld [vmem:[%s1181 + $0x30] sm:$0xf]
        %v1195 = vld [vmem:[%s1181 + $0x34] sm:$0xf]
        %v1196 = vld [vmem:[%s1181 + $0x38] sm:$0xf]
        %v1197 = vld [vmem:[%s1181 + $0x3c] sm:$0xf]
        %v1198 = vld [vmem:[%s1181 + $0x40] sm:$0xf]
        %v1199 = vld [vmem:[%s1181 + $0x44] sm:$0xf]
        %v1200 = vld [vmem:[%s1181 + $0x48] sm:$0xf]
        %v1201 = vld [vmem:[%s1181 + $0x4c] sm:$0xf]
        %v1202 = vld [vmem:[%s1181 + $0x50] sm:$0xf]
        %v1203 = vld [vmem:[%s1181 + $0x54] sm:$0xf]
        %v1204 = vld [vmem:[%s1181 + $0x58] sm:$0xf]
        %v1205 = vld [vmem:[%s1181 + $0x5c] sm:$0xf]
        %v1206 = vld [vmem:[%s1181 + $0x60] sm:$0xf]
        %v1232 = vunpack.c.l.b16 %v1182
        %v1233 = vunpack.c.l.b16 %v1183
        %v1234 = vunpack.c.l.b16 %v1184
        %v1235 = vunpack.c.l.b16 %v1185
        %v1236 = vunpack.c.l.b16 %v1186
        %v1237 = vunpack.c.l.b16 %v1187
        %v1238 = vunpack.c.l.b16 %v1188
        %v1239 = vunpack.c.l.b16 %v1189
        %v1240 = vunpack.c.l.b16 %v1190
        %v1241 = vunpack.c.l.b16 %v1191
        %v1242 = vunpack.c.l.b16 %v1192
        %v1243 = vunpack.c.l.b16 %v1193
        %v1244 = vunpack.c.l.b16 %v1194
        %v1245 = vunpack.c.l.b16 %v1195
        %v1246 = vunpack.c.l.b16 %v1196
        %v1247 = vunpack.c.l.b16 %v1197
        %v1248 = vunpack.c.l.b16 %v1198
        %v1249 = vunpack.c.l.b16 %v1199
        %v1250 = vunpack.c.l.b16 %v1200
        %v1251 = vunpack.c.l.b16 %v1201
        %v1252 = vunpack.c.l.b16 %v1202
        %v1253 = vunpack.c.l.b16 %v1203
        %v1254 = vunpack.c.l.b16 %v1204
        %v1255 = vunpack.c.l.b16 %v1205
        %v1256 = vunpack.c.l.b16 %v1206
        %v1257 = vpack.c.b16 %v1233, %v1232
        %v1258 = vpack.c.b16 %v1235, %v1234
        %v1259 = vpack.c.b16 %v1237, %v1236
        %v1260 = vpack.c.b16 %v1239, %v1238
        %v1261 = vpack.c.b16 %v1241, %v1240
        %v1262 = vpack.c.b16 %v1243, %v1242
        %v1263 = vpack.c.b16 %v1245, %v1244
        %v1264 = vpack.c.b16 %v1247, %v1246
        %v1265 = vpack.c.b16 %v1249, %v1248
        %v1266 = vpack.c.b16 %v1251, %v1250
        %v1267 = vpack.c.b16 %v1253, %v1252
        %v1268 = vpack.c.b16 %v1255, %v1254
        %v1269 = vpack.c.b16 %v1256, %v1256
        %v1271 = vsel %vm716, %v1257, 0
        %v1274 = vsel %vm716, %v1258, 0
        %v1277 = vsel %vm716, %v1259, 0
        %v1280 = vsel %vm716, %v1260, 0
        %v1283 = vsel %vm716, %v1261, 0
        %v1286 = vsel %vm716, %v1262, 0
        %v1289 = vsel %vm716, %v1263, 0
        %v1292 = vsel %vm716, %v1264, 0
        %v1295 = vsel %vm716, %v1265, 0
        %v1298 = vsel %vm716, %v1266, 0
        %v1301 = vsel %vm716, %v1267, 0
        %v1304 = vsel %vm716, %v1268, 0
        %v1307 = vsel %vm716, %v1269, 0
        %1309 = vmatprep.subr.bf16.mxu0 0
        %1310 = vmatpush1.bf16.msra.mxu0 %v712
        %1311 = vmatprep.subr.bf16.mxu0 0
        %1312 = vmatpush1.bf16.msra.mxu0 %v713
        %1313 = vmatprep.subr.bf16.mxu0 0
        %1314 = vmatpush1.bf16.msra.mxu0 0
        %1315 = vmatprep.subr.bf16.mxu0 0
        %1316 = vmatpush1.bf16.msra.mxu0 0
        %1317 = vmatprep.subr.bf16.mxu0 0
        %1318 = vmatpush1.bf16.msra.mxu0 0
        %1319 = vmatprep.subr.bf16.mxu0 0
        %1320 = vmatpush1.bf16.msra.mxu0 0
        %1321 = vmatprep.subr.bf16.mxu0 0
        %1322 = vmatpush1.bf16.msra.mxu0 0
        %1323 = vmatprep.subr.bf16.mxu0 0
        %1324 = vmatpush1.bf16.msra.mxu0 0
        %1325 = vmatprep.subr.bf16.mxu0 0
        %1326 = vmatpush1.bf16.msra.mxu0 0
        %1327 = vmatprep.subr.bf16.mxu0 0
        %1328 = vmatpush1.bf16.msra.mxu0 0
        %1329 = vmatprep.subr.bf16.mxu0 0
        %1330 = vmatpush1.bf16.msra.mxu0 0
        %1331 = vmatprep.subr.bf16.mxu0 0
        %1332 = vmatpush1.bf16.msra.mxu0 0
        %1333 = vmatprep.subr.bf16.mxu0 0
        %1334 = vmatpush1.bf16.msra.mxu0 0
        %1335 = vmatprep.subr.bf16.mxu0 0
        %1336 = vmatpush1.bf16.msra.mxu0 0
        %1337 = vmatprep.subr.bf16.mxu0 0
        %1338 = vmatpush1.bf16.msra.mxu0 0
        %1339 = vmatprep.subr.bf16.mxu0 0
        %1340 = vmatpush1.bf16.msra.mxu0 0
        %1341 = vmatprep.mubr.bf16.mxu0 0
        %1342 = vmatmul.mubr.bf16.gmra.mrb[0].mxu0 %v1271
        %v1343 = vpop.f32.mrb[0].mxu0
        %v1344 = vadd.f32 0.0, %v1343
        %v1345 = vpop.f32.mrb[0].mxu0
        %v1346 = vpop.f32.mrb[0].mxu0
        %v1347 = vadd.f32 0.0, %v1346
        %v1348 = vpop.f32.mrb[0].mxu0
        %1349 = vmatprep.mubr.bf16.mxu0 0
        %1350 = vmatmul.mubr.bf16.gmra.mrb[0].mxu0 %v1274
        %v1351 = vpop.f32.mrb[0].mxu0
        %v1352 = vadd.f32 0.0, %v1351
        %v1353 = vpop.f32.mrb[0].mxu0
        %v1354 = vpop.f32.mrb[0].mxu0
        %v1355 = vadd.f32 0.0, %v1354
        %v1356 = vpop.f32.mrb[0].mxu0
        %1357 = vmatprep.mubr.bf16.mxu0 0
        %1358 = vmatmul.mubr.bf16.gmra.mrb[0].mxu0 %v1277
        %v1359 = vpop.f32.mrb[0].mxu0
        %v1360 = vadd.f32 0.0, %v1359
        %v1361 = vpop.f32.mrb[0].mxu0
        %v1362 = vpop.f32.mrb[0].mxu0
        %v1363 = vadd.f32 0.0, %v1362
        %v1364 = vpop.f32.mrb[0].mxu0
        %1365 = vmatprep.mubr.bf16.mxu0 0
        %1366 = vmatmul.mubr.bf16.gmra.mrb[0].mxu0 %v1280
        %v1367 = vpop.f32.mrb[0].mxu0
        %v1368 = vadd.f32 0.0, %v1367
        %v1369 = vpop.f32.mrb[0].mxu0
        %v1370 = vpop.f32.mrb[0].mxu0
        %v1371 = vadd.f32 0.0, %v1370
        %v1372 = vpop.f32.mrb[0].mxu0
        %1373 = vmatprep.mubr.bf16.mxu0 0
        %1374 = vmatmul.mubr.bf16.gmra.mrb[0].mxu0 %v1283
        %v1375 = vpop.f32.mrb[0].mxu0
        %v1376 = vadd.f32 0.0, %v1375
        %v1377 = vpop.f32.mrb[0].mxu0
        %v1378 = vpop.f32.mrb[0].mxu0
        %v1379 = vadd.f32 0.0, %v1378
        %v1380 = vpop.f32.mrb[0].mxu0
        %1381 = vmatprep.mubr.bf16.mxu0 0
        %1382 = vmatmul.mubr.bf16.gmra.mrb[0].mxu0 %v1286
        %v1383 = vpop.f32.mrb[0].mxu0
        %v1384 = vadd.f32 0.0, %v1383
        %v1385 = vpop.f32.mrb[0].mxu0
        %v1386 = vpop.f32.mrb[0].mxu0
        %v1387 = vadd.f32 0.0, %v1386
        %v1388 = vpop.f32.mrb[0].mxu0
        %1389 = vmatprep.mubr.bf16.mxu0 0
        %1390 = vmatmul.mubr.bf16.gmra.mrb[0].mxu0 %v1289
        %v1391 = vpop.f32.mrb[0].mxu0
        %v1392 = vadd.f32 0.0, %v1391
        %v1393 = vpop.f32.mrb[0].mxu0
        %v1394 = vpop.f32.mrb[0].mxu0
        %v1395 = vadd.f32 0.0, %v1394
        %v1396 = vpop.f32.mrb[0].mxu0
        %1397 = vmatprep.mubr.bf16.mxu0 0
        %1398 = vmatmul.mubr.bf16.gmra.mrb[0].mxu0 %v1292
        %v1399 = vpop.f32.mrb[0].mxu0
        %v1400 = vadd.f32 0.0, %v1399
        %v1401 = vpop.f32.mrb[0].mxu0
        %v1402 = vpop.f32.mrb[0].mxu0
        %v1403 = vadd.f32 0.0, %v1402
        %v1404 = vpop.f32.mrb[0].mxu0
        %1405 = vmatprep.mubr.bf16.mxu0 0
        %1406 = vmatmul.mubr.bf16.gmra.mrb[0].mxu0 %v1295
        %v1407 = vpop.f32.mrb[0].mxu0
        %v1408 = vadd.f32 0.0, %v1407
        %v1409 = vpop.f32.mrb[0].mxu0
        %v1410 = vpop.f32.mrb[0].mxu0
        %v1411 = vadd.f32 0.0, %v1410
        %v1412 = vpop.f32.mrb[0].mxu0
        %1413 = vmatprep.mubr.bf16.mxu0 0
        %1414 = vmatmul.mubr.bf16.gmra.mrb[0].mxu0 %v1298
        %v1415 = vpop.f32.mrb[0].mxu0
        %v1416 = vadd.f32 0.0, %v1415
        %v1417 = vpop.f32.mrb[0].mxu0
        %v1418 = vpop.f32.mrb[0].mxu0
        %v1419 = vadd.f32 0.0, %v1418
        %v1420 = vpop.f32.mrb[0].mxu0
        %1421 = vmatprep.mubr.bf16.mxu0 0
        %1422 = vmatmul.mubr.bf16.gmra.mrb[0].mxu0 %v1301
        %v1423 = vpop.f32.mrb[0].mxu0
        %v1424 = vadd.f32 0.0, %v1423
        %v1425 = vpop.f32.mrb[0].mxu0
        %v1426 = vpop.f32.mrb[0].mxu0
        %v1427 = vadd.f32 0.0, %v1426
        %v1428 = vpop.f32.mrb[0].mxu0
        %1429 = vmatprep.mubr.bf16.mxu0 0
        %1430 = vmatmul.mubr.bf16.gmra.mrb[0].mxu0 %v1304
        %v1431 = vpop.f32.mrb[0].mxu0
        %v1432 = vadd.f32 0.0, %v1431
        %v1433 = vpop.f32.mrb[0].mxu0
        %v1434 = vpop.f32.mrb[0].mxu0
        %v1435 = vadd.f32 0.0, %v1434
        %v1436 = vpop.f32.mrb[0].mxu0
        %1437 = vmatprep.mubr.bf16.mxu0 0
        %1438 = vmatmul.mubr.bf16.gmra.mrb[0].mxu0 %v1307
        %v1439 = vpop.f32.mrb[0].mxu0
        %v1440 = vadd.f32 0.0, %v1439
        %v1441 = vpop.f32.mrb[0].mxu0
        %v1442 = vpop.f32.mrb[0].mxu0
        %v1443 = vpop.f32.mrb[0].mxu0
        %1444 = vdwg.mxu0
        %v1445 = vmax.f32 %v1156, %v1344
        %v1446 = vmax.f32 %v1157, %v1347
        %v1447 = vmax.f32 %v1158, %v1352
        %v1448 = vmax.f32 %v1159, %v1355
        %v1449 = vmax.f32 %v1160, %v1360
        %v1450 = vmax.f32 %v1161, %v1363
        %v1451 = vmax.f32 %v1162, %v1368
        %v1452 = vmax.f32 %v1163, %v1371
        %v1453 = vmax.f32 %v1164, %v1376
        %v1454 = vmax.f32 %v1165, %v1379
        %v1455 = vmax.f32 %v1166, %v1384
        %v1456 = vmax.f32 %v1167, %v1387
        %v1457 = vmax.f32 %v1168, %v1392
        %v1458 = vmax.f32 %v1169, %v1395
        %v1459 = vmax.f32 %v1170, %v1400
        %v1460 = vmax.f32 %v1171, %v1403
        %v1461 = vmax.f32 %v1172, %v1408
        %v1462 = vmax.f32 %v1173, %v1411
        %v1463 = vmax.f32 %v1174, %v1416
        %v1464 = vmax.f32 %v1175, %v1419
        %v1465 = vmax.f32 %v1176, %v1424
        %v1466 = vmax.f32 %v1177, %v1427
        %v1467 = vmax.f32 %v1178, %v1432
        %v1468 = vmax.f32 %v1179, %v1435
        %v1469 = vmax.f32 %v1180, %v1440
        %s1470 = scalar_lea.vmem %s583, 300 [#allocation2]
        %v1471 = vld [vmem:[%s1470] sm:$0xf]
        %v1472 = vld [vmem:[%s1470 + $0x4] sm:$0xf]
        %v1473 = vld [vmem:[%s1470 + $0x8] sm:$0xf]
        %v1474 = vld [vmem:[%s1470 + $0xc] sm:$0xf]
        %v1475 = vld [vmem:[%s1470 + $0x10] sm:$0xf]
        %v1476 = vld [vmem:[%s1470 + $0x14] sm:$0xf]
        %v1477 = vld [vmem:[%s1470 + $0x18] sm:$0xf]
        %v1478 = vld [vmem:[%s1470 + $0x1c] sm:$0xf]
        %v1479 = vld [vmem:[%s1470 + $0x20] sm:$0xf]
        %v1480 = vld [vmem:[%s1470 + $0x24] sm:$0xf]
        %v1481 = vld [vmem:[%s1470 + $0x28] sm:$0xf]
        %v1482 = vld [vmem:[%s1470 + $0x2c] sm:$0xf]
        %v1483 = vld [vmem:[%s1470 + $0x30] sm:$0xf]
        %v1484 = vld [vmem:[%s1470 + $0x34] sm:$0xf]
        %v1485 = vld [vmem:[%s1470 + $0x38] sm:$0xf]
        %v1486 = vld [vmem:[%s1470 + $0x3c] sm:$0xf]
        %v1487 = vld [vmem:[%s1470 + $0x40] sm:$0xf]
        %v1488 = vld [vmem:[%s1470 + $0x44] sm:$0xf]
        %v1489 = vld [vmem:[%s1470 + $0x48] sm:$0xf]
        %v1490 = vld [vmem:[%s1470 + $0x4c] sm:$0xf]
        %v1491 = vld [vmem:[%s1470 + $0x50] sm:$0xf]
        %v1492 = vld [vmem:[%s1470 + $0x54] sm:$0xf]
        %v1493 = vld [vmem:[%s1470 + $0x58] sm:$0xf]
        %v1494 = vld [vmem:[%s1470 + $0x5c] sm:$0xf]
        %v1495 = vld [vmem:[%s1470 + $0x60] sm:$0xf]
        %v1521 = vunpack.c.l.b16 %v1471
        %v1522 = vunpack.c.l.b16 %v1472
        %v1523 = vunpack.c.l.b16 %v1473
        %v1524 = vunpack.c.l.b16 %v1474
        %v1525 = vunpack.c.l.b16 %v1475
        %v1526 = vunpack.c.l.b16 %v1476
        %v1527 = vunpack.c.l.b16 %v1477
        %v1528 = vunpack.c.l.b16 %v1478
        %v1529 = vunpack.c.l.b16 %v1479
        %v1530 = vunpack.c.l.b16 %v1480
        %v1531 = vunpack.c.l.b16 %v1481
        %v1532 = vunpack.c.l.b16 %v1482
        %v1533 = vunpack.c.l.b16 %v1483
        %v1534 = vunpack.c.l.b16 %v1484
        %v1535 = vunpack.c.l.b16 %v1485
        %v1536 = vunpack.c.l.b16 %v1486
        %v1537 = vunpack.c.l.b16 %v1487
        %v1538 = vunpack.c.l.b16 %v1488
        %v1539 = vunpack.c.l.b16 %v1489
        %v1540 = vunpack.c.l.b16 %v1490
        %v1541 = vunpack.c.l.b16 %v1491
        %v1542 = vunpack.c.l.b16 %v1492
        %v1543 = vunpack.c.l.b16 %v1493
        %v1544 = vunpack.c.l.b16 %v1494
        %v1545 = vunpack.c.l.b16 %v1495
        %v1546 = vpack.c.b16 %v1522, %v1521
        %v1547 = vpack.c.b16 %v1524, %v1523
        %v1548 = vpack.c.b16 %v1526, %v1525
        %v1549 = vpack.c.b16 %v1528, %v1527
        %v1550 = vpack.c.b16 %v1530, %v1529
        %v1551 = vpack.c.b16 %v1532, %v1531
        %v1552 = vpack.c.b16 %v1534, %v1533
        %v1553 = vpack.c.b16 %v1536, %v1535
        %v1554 = vpack.c.b16 %v1538, %v1537
        %v1555 = vpack.c.b16 %v1540, %v1539
        %v1556 = vpack.c.b16 %v1542, %v1541
        %v1557 = vpack.c.b16 %v1544, %v1543
        %v1558 = vpack.c.b16 %v1545, %v1545
        %v1560 = vsel %vm716, %v1546, 0
        %v1563 = vsel %vm716, %v1547, 0
        %v1566 = vsel %vm716, %v1548, 0
        %v1569 = vsel %vm716, %v1549, 0
        %v1572 = vsel %vm716, %v1550, 0
        %v1575 = vsel %vm716, %v1551, 0
        %v1578 = vsel %vm716, %v1552, 0
        %v1581 = vsel %vm716, %v1553, 0
        %v1584 = vsel %vm716, %v1554, 0
        %v1587 = vsel %vm716, %v1555, 0
        %v1590 = vsel %vm716, %v1556, 0
        %v1593 = vsel %vm716, %v1557, 0
        %v1596 = vsel %vm716, %v1558, 0
        %1598 = vmatprep.subr.bf16.mxu0 0
        %1599 = vmatpush1.bf16.msra.mxu0 %v712
        %1600 = vmatprep.subr.bf16.mxu0 0
        %1601 = vmatpush1.bf16.msra.mxu0 %v713
        %1602 = vmatprep.subr.bf16.mxu0 0
        %1603 = vmatpush1.bf16.msra.mxu0 0
        %1604 = vmatprep.subr.bf16.mxu0 0
        %1605 = vmatpush1.bf16.msra.mxu0 0
        %1606 = vmatprep.subr.bf16.mxu0 0
        %1607 = vmatpush1.bf16.msra.mxu0 0
        %1608 = vmatprep.subr.bf16.mxu0 0
        %1609 = vmatpush1.bf16.msra.mxu0 0
        %1610 = vmatprep.subr.bf16.mxu0 0
        %1611 = vmatpush1.bf16.msra.mxu0 0
        %1612 = vmatprep.subr.bf16.mxu0 0
        %1613 = vmatpush1.bf16.msra.mxu0 0
        %1614 = vmatprep.subr.bf16.mxu0 0
        %1615 = vmatpush1.bf16.msra.mxu0 0
        %1616 = vmatprep.subr.bf16.mxu0 0
        %1617 = vmatpush1.bf16.msra.mxu0 0
        %1618 = vmatprep.subr.bf16.mxu0 0
        %1619 = vmatpush1.bf16.msra.mxu0 0
        %1620 = vmatprep.subr.bf16.mxu0 0
        %1621 = vmatpush1.bf16.msra.mxu0 0
        %1622 = vmatprep.subr.bf16.mxu0 0
        %1623 = vmatpush1.bf16.msra.mxu0 0
        %1624 = vmatprep.subr.bf16.mxu0 0
        %1625 = vmatpush1.bf16.msra.mxu0 0
        %1626 = vmatprep.subr.bf16.mxu0 0
        %1627 = vmatpush1.bf16.msra.mxu0 0
        %1628 = vmatprep.subr.bf16.mxu0 0
        %1629 = vmatpush1.bf16.msra.mxu0 0
        %1630 = vmatprep.mubr.bf16.mxu0 0
        %1631 = vmatmul.mubr.bf16.gmra.mrb[0].mxu0 %v1560
        %v1632 = vpop.f32.mrb[0].mxu0
        %v1633 = vadd.f32 0.0, %v1632
        %v1634 = vpop.f32.mrb[0].mxu0
        %v1635 = vpop.f32.mrb[0].mxu0
        %v1636 = vadd.f32 0.0, %v1635
        %v1637 = vpop.f32.mrb[0].mxu0
        %1638 = vmatprep.mubr.bf16.mxu0 0
        %1639 = vmatmul.mubr.bf16.gmra.mrb[0].mxu0 %v1563
        %v1640 = vpop.f32.mrb[0].mxu0
        %v1641 = vadd.f32 0.0, %v1640
        %v1642 = vpop.f32.mrb[0].mxu0
        %v1643 = vpop.f32.mrb[0].mxu0
        %v1644 = vadd.f32 0.0, %v1643
        %v1645 = vpop.f32.mrb[0].mxu0
        %1646 = vmatprep.mubr.bf16.mxu0 0
        %1647 = vmatmul.mubr.bf16.gmra.mrb[0].mxu0 %v1566
        %v1648 = vpop.f32.mrb[0].mxu0
        %v1649 = vadd.f32 0.0, %v1648
        %v1650 = vpop.f32.mrb[0].mxu0
        %v1651 = vpop.f32.mrb[0].mxu0
        %v1652 = vadd.f32 0.0, %v1651
        %v1653 = vpop.f32.mrb[0].mxu0
        %1654 = vmatprep.mubr.bf16.mxu0 0
        %1655 = vmatmul.mubr.bf16.gmra.mrb[0].mxu0 %v1569
        %v1656 = vpop.f32.mrb[0].mxu0
        %v1657 = vadd.f32 0.0, %v1656
        %v1658 = vpop.f32.mrb[0].mxu0
        %v1659 = vpop.f32.mrb[0].mxu0
        %v1660 = vadd.f32 0.0, %v1659
        %v1661 = vpop.f32.mrb[0].mxu0
        %1662 = vmatprep.mubr.bf16.mxu0 0
        %1663 = vmatmul.mubr.bf16.gmra.mrb[0].mxu0 %v1572
        %v1664 = vpop.f32.mrb[0].mxu0
        %v1665 = vadd.f32 0.0, %v1664
        %v1666 = vpop.f32.mrb[0].mxu0
        %v1667 = vpop.f32.mrb[0].mxu0
        %v1668 = vadd.f32 0.0, %v1667
        %v1669 = vpop.f32.mrb[0].mxu0
        %1670 = vmatprep.mubr.bf16.mxu0 0
        %1671 = vmatmul.mubr.bf16.gmra.mrb[0].mxu0 %v1575
        %v1672 = vpop.f32.mrb[0].mxu0
        %v1673 = vadd.f32 0.0, %v1672
        %v1674 = vpop.f32.mrb[0].mxu0
        %v1675 = vpop.f32.mrb[0].mxu0
        %v1676 = vadd.f32 0.0, %v1675
        %v1677 = vpop.f32.mrb[0].mxu0
        %1678 = vmatprep.mubr.bf16.mxu0 0
        %1679 = vmatmul.mubr.bf16.gmra.mrb[0].mxu0 %v1578
        %v1680 = vpop.f32.mrb[0].mxu0
        %v1681 = vadd.f32 0.0, %v1680
        %v1682 = vpop.f32.mrb[0].mxu0
        %v1683 = vpop.f32.mrb[0].mxu0
        %v1684 = vadd.f32 0.0, %v1683
        %v1685 = vpop.f32.mrb[0].mxu0
        %1686 = vmatprep.mubr.bf16.mxu0 0
        %1687 = vmatmul.mubr.bf16.gmra.mrb[0].mxu0 %v1581
        %v1688 = vpop.f32.mrb[0].mxu0
        %v1689 = vadd.f32 0.0, %v1688
        %v1690 = vpop.f32.mrb[0].mxu0
        %v1691 = vpop.f32.mrb[0].mxu0
        %v1692 = vadd.f32 0.0, %v1691
        %v1693 = vpop.f32.mrb[0].mxu0
        %1694 = vmatprep.mubr.bf16.mxu0 0
        %1695 = vmatmul.mubr.bf16.gmra.mrb[0].mxu0 %v1584
        %v1696 = vpop.f32.mrb[0].mxu0
        %v1697 = vadd.f32 0.0, %v1696
        %v1698 = vpop.f32.mrb[0].mxu0
        %v1699 = vpop.f32.mrb[0].mxu0
        %v1700 = vadd.f32 0.0, %v1699
        %v1701 = vpop.f32.mrb[0].mxu0
        %1702 = vmatprep.mubr.bf16.mxu0 0
        %1703 = vmatmul.mubr.bf16.gmra.mrb[0].mxu0 %v1587
        %v1704 = vpop.f32.mrb[0].mxu0
        %v1705 = vadd.f32 0.0, %v1704
        %v1706 = vpop.f32.mrb[0].mxu0
        %v1707 = vpop.f32.mrb[0].mxu0
        %v1708 = vadd.f32 0.0, %v1707
        %v1709 = vpop.f32.mrb[0].mxu0
        %1710 = vmatprep.mubr.bf16.mxu0 0
        %1711 = vmatmul.mubr.bf16.gmra.mrb[0].mxu0 %v1590
        %v1712 = vpop.f32.mrb[0].mxu0
        %v1713 = vadd.f32 0.0, %v1712
        %v1714 = vpop.f32.mrb[0].mxu0
        %v1715 = vpop.f32.mrb[0].mxu0
        %v1716 = vadd.f32 0.0, %v1715
        %v1717 = vpop.f32.mrb[0].mxu0
        %1718 = vmatprep.mubr.bf16.mxu0 0
        %1719 = vmatmul.mubr.bf16.gmra.mrb[0].mxu0 %v1593
        %v1720 = vpop.f32.mrb[0].mxu0
        %v1721 = vadd.f32 0.0, %v1720
        %v1722 = vpop.f32.mrb[0].mxu0
        %v1723 = vpop.f32.mrb[0].mxu0
        %v1724 = vadd.f32 0.0, %v1723
        %v1725 = vpop.f32.mrb[0].mxu0
        %1726 = vmatprep.mubr.bf16.mxu0 0
        %1727 = vmatmul.mubr.bf16.gmra.mrb[0].mxu0 %v1596
        %v1728 = vpop.f32.mrb[0].mxu0
        %v1729 = vadd.f32 0.0, %v1728
        %v1730 = vpop.f32.mrb[0].mxu0
        %v1731 = vpop.f32.mrb[0].mxu0
        %v1732 = vpop.f32.mrb[0].mxu0
        %1733 = vdwg.mxu0
        %v1734 = vmax.f32 %v1445, %v1633
        %v1735 = vmax.f32 %v1446, %v1636
        %v1736 = vmax.f32 %v1447, %v1641
        %v1737 = vmax.f32 %v1448, %v1644
        %v1738 = vmax.f32 %v1449, %v1649
        %v1739 = vmax.f32 %v1450, %v1652
        %v1740 = vmax.f32 %v1451, %v1657
        %v1741 = vmax.f32 %v1452, %v1660
        %v1742 = vmax.f32 %v1453, %v1665
        %v1743 = vmax.f32 %v1454, %v1668
        %v1744 = vmax.f32 %v1455, %v1673
        %v1745 = vmax.f32 %v1456, %v1676
        %v1746 = vmax.f32 %v1457, %v1681
        %v1747 = vmax.f32 %v1458, %v1684
        %v1748 = vmax.f32 %v1459, %v1689
        %v1749 = vmax.f32 %v1460, %v1692
        %v1750 = vmax.f32 %v1461, %v1697
        %v1751 = vmax.f32 %v1462, %v1700
        %v1752 = vmax.f32 %v1463, %v1705
        %v1753 = vmax.f32 %v1464, %v1708
        %v1754 = vmax.f32 %v1465, %v1713
        %v1755 = vmax.f32 %v1466, %v1716
        %v1756 = vmax.f32 %v1467, %v1721
        %v1757 = vmax.f32 %v1468, %v1724
        %v1758 = vmax.f32 %v1469, %v1729
        %v1759 = vld [vmem:[%s2] sm:$0x1]
        %v1761 = vlaneseq
        %v1762 = vshrl.u32 %v1761, 7
        %v1763 = vsub.s32 0, %v1762
        %v1764 = vrot.slane %v1759, %v1763
        %v1766 = vadd.f32 %v1734, %v1764
        %v1767 = vadd.f32 %v1735, %v1764
        %v1768 = vadd.f32 %v1736, %v1764
        %v1769 = vadd.f32 %v1737, %v1764
        %v1770 = vadd.f32 %v1738, %v1764
        %v1771 = vadd.f32 %v1739, %v1764
        %v1772 = vadd.f32 %v1740, %v1764
        %v1773 = vadd.f32 %v1741, %v1764
        %v1774 = vadd.f32 %v1742, %v1764
        %v1775 = vadd.f32 %v1743, %v1764
        %v1776 = vadd.f32 %v1744, %v1764
        %v1777 = vadd.f32 %v1745, %v1764
        %v1778 = vadd.f32 %v1746, %v1764
        %v1779 = vadd.f32 %v1747, %v1764
        %v1780 = vadd.f32 %v1748, %v1764
        %v1781 = vadd.f32 %v1749, %v1764
        %v1782 = vadd.f32 %v1750, %v1764
        %v1783 = vadd.f32 %v1751, %v1764
        %v1784 = vadd.f32 %v1752, %v1764
        %v1785 = vadd.f32 %v1753, %v1764
        %v1786 = vadd.f32 %v1754, %v1764
        %v1787 = vadd.f32 %v1755, %v1764
        %v1788 = vadd.f32 %v1756, %v1764
        %v1789 = vadd.f32 %v1757, %v1764
        %v1790 = vadd.f32 %v1758, %v1764
        %v1791 = vmax.f32 %v1766, 0.0
        %v1792 = vmax.f32 %v1767, 0.0
        %v1793 = vmax.f32 %v1768, 0.0
        %v1794 = vmax.f32 %v1769, 0.0
        %v1795 = vmax.f32 %v1770, 0.0
        %v1796 = vmax.f32 %v1771, 0.0
        %v1797 = vmax.f32 %v1772, 0.0
        %v1798 = vmax.f32 %v1773, 0.0
        %v1799 = vmax.f32 %v1774, 0.0
        %v1800 = vmax.f32 %v1775, 0.0
        %v1801 = vmax.f32 %v1776, 0.0
        %v1802 = vmax.f32 %v1777, 0.0
        %v1803 = vmax.f32 %v1778, 0.0
        %v1804 = vmax.f32 %v1779, 0.0
        %v1805 = vmax.f32 %v1780, 0.0
        %v1806 = vmax.f32 %v1781, 0.0
        %v1807 = vmax.f32 %v1782, 0.0
        %v1808 = vmax.f32 %v1783, 0.0
        %v1809 = vmax.f32 %v1784, 0.0
        %v1810 = vmax.f32 %v1785, 0.0
        %v1811 = vmax.f32 %v1786, 0.0
        %v1812 = vmax.f32 %v1787, 0.0
        %v1813 = vmax.f32 %v1788, 0.0
        %v1814 = vmax.f32 %v1789, 0.0
        %v1815 = vmax.f32 %v1790, 0.0
        %v1816 = vpack.c.bf16 %v1792, %v1791
        %v1817 = vpack.c.bf16 %v1794, %v1793
        %v1818 = vpack.c.bf16 %v1796, %v1795
        %v1819 = vpack.c.bf16 %v1798, %v1797
        %v1820 = vpack.c.bf16 %v1800, %v1799
        %v1821 = vpack.c.bf16 %v1802, %v1801
        %v1822 = vpack.c.bf16 %v1804, %v1803
        %v1823 = vpack.c.bf16 %v1806, %v1805
        %v1824 = vpack.c.bf16 %v1808, %v1807
        %v1825 = vpack.c.bf16 %v1810, %v1809
        %v1826 = vpack.c.bf16 %v1812, %v1811
        %v1827 = vpack.c.bf16 %v1814, %v1813
        %v1828 = vpack.c.bf16 %v1815, %v1815
        %v1842 = vunpack.c.l.b16 %v1816
        %v1843 = vunpack.c.h.b16 %v1816
        %v1844 = vunpack.c.l.b16 %v1817
        %v1845 = vunpack.c.h.b16 %v1817
        %v1846 = vunpack.c.l.b16 %v1818
        %v1847 = vunpack.c.h.b16 %v1818
        %v1848 = vunpack.c.l.b16 %v1819
        %v1849 = vunpack.c.h.b16 %v1819
        %v1850 = vunpack.c.l.b16 %v1820
        %v1851 = vunpack.c.h.b16 %v1820
        %v1852 = vunpack.c.l.b16 %v1821
        %v1853 = vunpack.c.h.b16 %v1821
        %v1854 = vunpack.c.l.b16 %v1822
        %v1855 = vunpack.c.h.b16 %v1822
        %v1856 = vunpack.c.l.b16 %v1823
        %v1857 = vunpack.c.h.b16 %v1823
        %v1858 = vunpack.c.l.b16 %v1824
        %v1859 = vunpack.c.h.b16 %v1824
        %v1860 = vunpack.c.l.b16 %v1825
        %v1861 = vunpack.c.h.b16 %v1825
        %v1862 = vunpack.c.l.b16 %v1826
        %v1863 = vunpack.c.h.b16 %v1826
        %v1864 = vunpack.c.l.b16 %v1827
        %v1865 = vunpack.c.h.b16 %v1827
        %v1866 = vunpack.c.l.b16 %v1828
        %v1867 = vpack.c.b16 %v1842, %v1842
        %v1868 = vpack.c.b16 %v1843, %v1843
        %v1869 = vpack.c.b16 %v1844, %v1844
        %v1870 = vpack.c.b16 %v1845, %v1845
        %v1871 = vpack.c.b16 %v1846, %v1846
        %v1872 = vpack.c.b16 %v1847, %v1847
        %v1873 = vpack.c.b16 %v1848, %v1848
        %v1874 = vpack.c.b16 %v1849, %v1849
        %v1875 = vpack.c.b16 %v1850, %v1850
        %v1876 = vpack.c.b16 %v1851, %v1851
        %v1877 = vpack.c.b16 %v1852, %v1852
        %v1878 = vpack.c.b16 %v1853, %v1853
        %v1879 = vpack.c.b16 %v1854, %v1854
        %v1880 = vpack.c.b16 %v1855, %v1855
        %v1881 = vpack.c.b16 %v1856, %v1856
        %v1882 = vpack.c.b16 %v1857, %v1857
        %v1883 = vpack.c.b16 %v1858, %v1858
        %v1884 = vpack.c.b16 %v1859, %v1859
        %v1885 = vpack.c.b16 %v1860, %v1860
        %v1886 = vpack.c.b16 %v1861, %v1861
        %v1887 = vpack.c.b16 %v1862, %v1862
        %v1888 = vpack.c.b16 %v1863, %v1863
        %v1889 = vpack.c.b16 %v1864, %v1864
        %v1890 = vpack.c.b16 %v1865, %v1865
        %v1891 = vpack.c.b16 %v1866, %v1866
        %vm1917 = vcmask 257024
        %1918 = vst.msk [vmem:[%s609] sm:$0xf] %vm1917, %v1867
        %1919 = vst.msk [vmem:[%s609 + $0x4] sm:$0xf] %vm1917, %v1868
        %1920 = vst.msk [vmem:[%s609 + $0x8] sm:$0xf] %vm1917, %v1869
        %1921 = vst.msk [vmem:[%s609 + $0xc] sm:$0xf] %vm1917, %v1870
        %1922 = vst.msk [vmem:[%s609 + $0x10] sm:$0xf] %vm1917, %v1871
        %1923 = vst.msk [vmem:[%s609 + $0x14] sm:$0xf] %vm1917, %v1872
        %1924 = vst.msk [vmem:[%s609 + $0x18] sm:$0xf] %vm1917, %v1873
        %1925 = vst.msk [vmem:[%s609 + $0x1c] sm:$0xf] %vm1917, %v1874
        %1926 = vst.msk [vmem:[%s609 + $0x20] sm:$0xf] %vm1917, %v1875
        %1927 = vst.msk [vmem:[%s609 + $0x24] sm:$0xf] %vm1917, %v1876
        %1928 = vst.msk [vmem:[%s609 + $0x28] sm:$0xf] %vm1917, %v1877
        %1929 = vst.msk [vmem:[%s609 + $0x2c] sm:$0xf] %vm1917, %v1878
        %1930 = vst.msk [vmem:[%s609 + $0x30] sm:$0xf] %vm1917, %v1879
        %1931 = vst.msk [vmem:[%s609 + $0x34] sm:$0xf] %vm1917, %v1880
        %1932 = vst.msk [vmem:[%s609 + $0x38] sm:$0xf] %vm1917, %v1881
        %1933 = vst.msk [vmem:[%s609 + $0x3c] sm:$0xf] %vm1917, %v1882
        %1934 = vst.msk [vmem:[%s609 + $0x40] sm:$0xf] %vm1917, %v1883
        %1935 = vst.msk [vmem:[%s609 + $0x44] sm:$0xf] %vm1917, %v1884
        %1936 = vst.msk [vmem:[%s609 + $0x48] sm:$0xf] %vm1917, %v1885
        %1937 = vst.msk [vmem:[%s609 + $0x4c] sm:$0xf] %vm1917, %v1886
        %1938 = vst.msk [vmem:[%s609 + $0x50] sm:$0xf] %vm1917, %v1887
        %1939 = vst.msk [vmem:[%s609 + $0x54] sm:$0xf] %vm1917, %v1888
        %1940 = vst.msk [vmem:[%s609 + $0x58] sm:$0xf] %vm1917, %v1889
        %1941 = vst.msk [vmem:[%s609 + $0x5c] sm:$0xf] %vm1917, %v1890
        %1942 = vst.msk [vmem:[%s609 + $0x60] sm:$0xf] %vm1917, %v1891
        %s1943 = smul.u32 25, %s14
        %p1944 = scmp.lt.s32.totalorder %s1943, 49
        %s1945 = scalar_select %p1944, %s1943, 49
        %s1946 = smul.addr %s1945, 4
        %s1947 = scalar_lea.vmem %s3, %s1946
        // Predicated region
        $region74: #{lenet_forward.3} parent=68 // pred_check
          %p1948 = pneg %p100
        $region75: #{lenet_forward.3} parent=68 // pred_check_branch
          %1950 = sbr.rel (%p1948) target = $region77
        $region76: #{lenet_forward.3} parent=68 // pred_region
          %s1951 = smul.u32 25, %s14
        $region77: #{lenet_forward.3} parent=68 // pred_fallthru
          _
      $region69: #{lenet_forward.3} parent=5 // pred_fallthru
        _
      %p1952 = scmp.le.s32.totalorder 2, %s9
      // Predicated region
      $region78: #{lenet_forward.3} parent=5 // pred_check
        %p1953 = pneg %p1952
      $region79: #{lenet_forward.3} parent=5 // pred_check_branch
        %1955 = sbr.rel (%p1953) target = $region81
      $region80: #{lenet_forward.3} parent=5 // pred_region
        %s1956 = ssub.s32 %s9, 2
        // Predicated region
        $region82: #{lenet_forward.3} parent=80 // pred_check
          %p1957 = pneg %p106
        $region83: #{lenet_forward.3} parent=80 // pred_check_branch
          %1959 = sbr.rel (%p1957) target = $region85
        $region84: #{lenet_forward.3} parent=80 // pred_region
          %s1960 = smul.u32 25, %s15
          %p1961 = scmp.lt.s32.totalorder %s1960, 49
          %s1962 = scalar_select %p1961, %s1960, 49
          %s1963 = smul.addr %s1962, 4
          %s1964 = scalar_lea.vmem %s3, %s1963
        $region85: #{lenet_forward.3} parent=80 // pred_fallthru
          _
      $region81: #{lenet_forward.3} parent=5 // pred_fallthru
        _
    $region6: #{lenet_forward.3} parent=1 // loop_footer
      %s13 = sadd.s32 1, %s9
    $region7: #{lenet_forward.3} parent=1 // loop_footer_branch
      %8 = sbr.rel target = $region3
    $region8: #{lenet_forward.3} parent=1 // loop_exit
      _

// kernel: lenet_forward.4
$region0: #{lenet_forward.4}
  #allocation0 [shape = 'u32[]', space=smem, size = 0x4, offset = 0x4, fixed_abs, tag = 'smem constant byte address 0x4 - core index']
  #allocation1 [shape = 'u32[144,128]{1,0:T(1,128)}', space=vmem, size = 0x12000, scoped, tag = 'internal scratch']
  %s0 = inlined_call_operand.vmem [shape: bf16[2,10,10,128], index: 0, kind: input, shape index: {}]
  %s1 = inlined_call_operand.vmem [shape: bf16[1152,512], index: 1, kind: input, shape index: {}]
  %s2 = inlined_call_operand.vmem [shape: f32[1,128], index: 2, kind: input, shape index: {}]
  %s3 = inlined_call_operand.vmem [shape: bf16[2,64,128], index: 3, kind: output, shape index: {}]
  %s4 = sld [smem:[#allocation0]]
  $region45: #{lenet_forward.4} parent=0
    _
  %s6 = ssub.s32 1, %s4
  %s7 = scalar_select 0, %s6, %s4
  loop: start=0, step=1, limit=4
  $region2: #{lenet_forward.4} parent=0 // loop_pre_header
    _
  $region3: #{lenet_forward.4} parent=0 // loop_header
    %s9 = sphi 0, %s13
    %p10 = scmp.ge.s32.totalorder %s9, 4
    %s19 = sphi 0, %s21
    %s22 = sphi 0, %s19
    %s23 = sphi 0, %s22
    %s39 = sphi 0, %s23
    %s43 = sphi 0, %s43
    %s45 = sphi 0, %s43
    %s46 = sphi 0, %s45
    %s60 = sphi 0, %s46
    %s64 = sphi 0, %s64
    %s66 = sphi 0, %s64
    %s67 = sphi 0, %s66
    %s81 = sphi 0, %s67
    %s87 = sphi 0, %s89
    %s90 = sphi 0, %s87
    %s91 = sphi 0, %s90
    %s107 = sphi 0, %s91
  $region4: #{lenet_forward.4} parent=0 // loop_header_branch
    %12 = sbr.rel (%p10) target = $region8
  $region5: #{lenet_forward.4} parent=0 // loop_body
    %s14 = ssub.s32 %s9, 1
    %s15 = ssub.s32 %s9, 2
    %s16 = sadd.s32 %s9, 1
    %s17 = ssub.s32 %s9, %s16
    %p18 = scmp.eq.s32.totalorder %s17, 0
    %s20 = sadd.s32 %s19, 1
    %s21 = scalar_select %p18, %s19, %s20
    %p24 = pneg %p18
    %p25 = scmp.eq.s32.totalorder %s9, 1
    %p26 = por %p24, %p25
    %p27 = scmp.ne.s32.totalorder %s19, %s22
    %p28 = scmp.eq.s32.totalorder %s9, 0
    %p29 = por %p27, %p28
    %p30 = scmp.ne.s32.totalorder %s19, %s22
    %p31 = scmp.eq.s32.totalorder %s14, 1
    %p32 = por %p30, %p31
    %p33 = scmp.ne.s32.totalorder %s22, %s23
    %p34 = scmp.eq.s32.totalorder %s14, 0
    %p35 = por %p33, %p34
    %p36 = scmp.ne.s32.totalorder %s22, %s23
    %p37 = scmp.eq.s32.totalorder %s15, 1
    %p38 = por %p36, %p37
    %p40 = scmp.ne.s32.totalorder %s23, %s39
    %p41 = scmp.eq.s32.totalorder %s15, 0
    %p42 = por %p40, %p41
    %s44 = sadd.s32 %s43, 1
    %p47 = scmp.eq.s32.totalorder %s9, 1
    %p48 = scmp.ne.s32.totalorder %s43, %s45
    %p49 = scmp.eq.s32.totalorder %s9, 0
    %p50 = por %p48, %p49
    %p51 = scmp.ne.s32.totalorder %s43, %s45
    %p52 = scmp.eq.s32.totalorder %s14, 1
    %p53 = por %p51, %p52
    %p54 = scmp.ne.s32.totalorder %s45, %s46
    %p55 = scmp.eq.s32.totalorder %s14, 0
    %p56 = por %p54, %p55
    %p57 = scmp.ne.s32.totalorder %s45, %s46
    %p58 = scmp.eq.s32.totalorder %s15, 1
    %p59 = por %p57, %p58
    %p61 = scmp.ne.s32.totalorder %s46, %s60
    %p62 = scmp.eq.s32.totalorder %s15, 0
    %p63 = por %p61, %p62
    %s65 = sadd.s32 %s64, 1
    %p68 = scmp.eq.s32.totalorder %s9, 1
    %p69 = scmp.ne.s32.totalorder %s64, %s66
    %p70 = scmp.eq.s32.totalorder %s9, 0
    %p71 = por %p69, %p70
    %p72 = scmp.ne.s32.totalorder %s64, %s66
    %p73 = scmp.eq.s32.totalorder %s14, 1
    %p74 = por %p72, %p73
    %p75 = scmp.ne.s32.totalorder %s66, %s67
    %p76 = scmp.eq.s32.totalorder %s14, 0
    %p77 = por %p75, %p76
    %p78 = scmp.ne.s32.totalorder %s66, %s67
    %p79 = scmp.eq.s32.totalorder %s15, 1
    %p80 = por %p78, %p79
    %p82 = scmp.ne.s32.totalorder %s67, %s81
    %p83 = scmp.eq.s32.totalorder %s15, 0
    %p84 = por %p82, %p83
    %s85 = ssub.s32 %s9, %s16
    %p86 = scmp.eq.s32.totalorder %s85, 0
    %s88 = sadd.s32 %s87, 1
    %s89 = scalar_select %p86, %s87, %s88
    %p92 = pneg %p86
    %p93 = scmp.eq.s32.totalorder %s9, 1
    %p94 = por %p92, %p93
    %p95 = scmp.ne.s32.totalorder %s87, %s90
    %p96 = scmp.eq.s32.totalorder %s9, 0
    %p97 = por %p95, %p96
    %p98 = scmp.ne.s32.totalorder %s87, %s90
    %p99 = scmp.eq.s32.totalorder %s14, 1
    %p100 = por %p98, %p99
    %p101 = scmp.ne.s32.totalorder %s90, %s91
    %p102 = scmp.eq.s32.totalorder %s14, 0
    %p103 = por %p101, %p102
    %p104 = scmp.ne.s32.totalorder %s90, %s91
    %p105 = scmp.eq.s32.totalorder %s15, 1
    %p106 = por %p104, %p105
    %p108 = scmp.ne.s32.totalorder %s91, %s107
    %p109 = scmp.eq.s32.totalorder %s15, 0
    %p110 = por %p108, %p109
    %p111 = scmp.le.s32.totalorder 1, %s9
    %p112 = scmp.lt.s32.totalorder %s9, 3
    %p113 = pnand %p111, %p112
    %p114 = pneg %p113
    // Predicated region
    $region9: #{lenet_forward.4} parent=5 // pred_check
      _
    $region10: #{lenet_forward.4} parent=5 // pred_check_branch
      %116 = sbr.rel (%p113) target = $region12
    $region11: #{lenet_forward.4} parent=5 // pred_region
      %s117 = ssub.s32 %s9, 1
      // Predicated region
      $region13: #{lenet_forward.4} parent=11 // pred_check
        %p118 = pneg %p56
      $region14: #{lenet_forward.4} parent=11 // pred_check_branch
        %120 = sbr.rel (%p118) target = $region16
      $region15: #{lenet_forward.4} parent=11 // pred_region
        _
      $region16: #{lenet_forward.4} parent=11 // pred_fallthru
        _
      // Predicated region
      $region17: #{lenet_forward.4} parent=11 // pred_check
        %p121 = pneg %p77
      $region18: #{lenet_forward.4} parent=11 // pred_check_branch
        %123 = sbr.rel (%p121) target = $region20
      $region19: #{lenet_forward.4} parent=11 // pred_region
        _
      $region20: #{lenet_forward.4} parent=11 // pred_fallthru
        _
    $region12: #{lenet_forward.4} parent=5 // pred_fallthru
      _
    %p124 = scmp.lt.s32.totalorder %s9, 2
    // Predicated region
    $region21: #{lenet_forward.4} parent=5 // pred_check
      %p125 = pneg %p124
    $region22: #{lenet_forward.4} parent=5 // pred_check_branch
      %127 = sbr.rel (%p125) target = $region24
    $region23: #{lenet_forward.4} parent=5 // pred_region
      // Predicated region
      $region25: #{lenet_forward.4} parent=23 // pred_check
        %p128 = pneg %p29
      $region26: #{lenet_forward.4} parent=23 // pred_check_branch
        %130 = sbr.rel (%p128) target = $region28
      $region27: #{lenet_forward.4} parent=23 // pred_region
        %p131 = scmp.lt.s32.totalorder %s9, 1
        %s132 = scalar_select %p131, %s9, 1
        %s133 = smul.addr %s132, 20
        %s134 = smul.addr %s133, 4
        %s135 = scalar_lea.vmem %s0, %s134
      $region28: #{lenet_forward.4} parent=23 // pred_fallthru
        _
    $region24: #{lenet_forward.4} parent=5 // pred_fallthru
      _
    %p136 = scmp.le.s32.totalorder 1, %s9
    %p137 = scmp.lt.s32.totalorder %s9, 3
    %p138 = pnand %p136, %p137
    %p139 = pneg %p138
    // Predicated region
    $region29: #{lenet_forward.4} parent=5 // pred_check
      _
    $region30: #{lenet_forward.4} parent=5 // pred_check_branch
      %141 = sbr.rel (%p138) target = $region32
    $region31: #{lenet_forward.4} parent=5 // pred_region
      %s142 = ssub.s32 %s9, 1
      %p143 = scmp.lt.s32.totalorder %s14, 1
      %s144 = scalar_select %p143, %s14, 1
      %s145 = smul.addr %s144, 20
      %s146 = smul.addr %s145, 4
      %s147 = scalar_lea.vmem %s0, %s146
      %p148 = pneg %p35
      %p149 = pneg %p32
      %p150 = pneg %p56
      %p151 = pneg %p53
      %p152 = pneg %p77
      %p153 = pneg %p74
      %p154 = pneg %p103
      %p155 = pneg %p100
      %p156 = scmp.lt.s32.totalorder %s14, 1
      %s157 = scalar_select %p156, %s14, 1
      %s158 = smul.addr %s157, 8
      %s159 = smul.addr %s158, 4
      %s160 = scalar_lea.vmem %s3, %s159
      %p161 = scmp.lt.s32.totalorder %s14, 1
      %s162 = scalar_select %p161, %s14, 1
      %s163 = smul.addr %s162, 20
      %s164 = smul.addr %s163, 4
      %s165 = scalar_lea.vmem %s0, %s164
      %p166 = scmp.lt.s32.totalorder %s14, 1
      %s167 = scalar_select %p166, %s14, 1
      %s168 = smul.addr %s167, 8
      %s169 = smul.addr %s168, 4
      %s170 = scalar_lea.vmem %s3, %s169
      %v172 = vld [vmem:[%s165] sm:$0xf]
      %v173 = vld [vmem:[%s165 + $0x8] sm:$0xf]
      %v174 = vld [vmem:[%s165 + $0x10] sm:$0xf]
      %v175 = vld [vmem:[%s165 + $0x18] sm:$0xf]
      %v176 = vld [vmem:[%s165 + $0x20] sm:$0xf]
      %v177 = vld [vmem:[%s165 + $0x28] sm:$0xf]
      %v178 = vld [vmem:[%s165 + $0x30] sm:$0xf]
      %v179 = vld [vmem:[%s165 + $0x38] sm:$0xf]
      %v180 = vld [vmem:[%s165 + $0x4] sm:$0x1]
      %v181 = vld [vmem:[%s165 + $0xc] sm:$0x1]
      %v182 = vld [vmem:[%s165 + $0x14] sm:$0x1]
      %v183 = vld [vmem:[%s165 + $0x1c] sm:$0x1]
      %v184 = vld [vmem:[%s165 + $0x24] sm:$0x1]
      %v185 = vld [vmem:[%s165 + $0x2c] sm:$0x1]
      %v186 = vld [vmem:[%s165 + $0x34] sm:$0x1]
      %v187 = vld [vmem:[%s165 + $0x3c] sm:$0x1]
      %vm188 = vsmask.f32 3328
      %vm189 = vsmask.f32 7440
      %vm190 = vmor %vm188, %vm189
      %v192 = vshrl.u32 %v172, 16
      %v194 = vrot.slane %v192, 4
      %v195 = vshll.u32 %v172, 16
      %v197 = vrot.slane %v195, 5
      %v198 = vor.u32 %v194, %v197
      %v199 = vrot.slane %v198, 4
      %v201 = vshll.u32 %v180, 16
      %v203 = vrot.slane %v201, 5
      %v204 = vsel %vm190, %v199, %v203
      %v206 = vshrl.u32 %v173, 16
      %v208 = vrot.slane %v206, 4
      %v209 = vshll.u32 %v173, 16
      %v211 = vrot.slane %v209, 5
      %v212 = vor.u32 %v208, %v211
      %v213 = vrot.slane %v212, 4
      %v215 = vshll.u32 %v181, 16
      %v217 = vrot.slane %v215, 5
      %v218 = vsel %vm190, %v213, %v217
      %v220 = vshrl.u32 %v174, 16
      %v222 = vrot.slane %v220, 4
      %v223 = vshll.u32 %v174, 16
      %v225 = vrot.slane %v223, 5
      %v226 = vor.u32 %v222, %v225
      %v227 = vrot.slane %v226, 4
      %v229 = vshll.u32 %v182, 16
      %v231 = vrot.slane %v229, 5
      %v232 = vsel %vm190, %v227, %v231
      %v234 = vshrl.u32 %v175, 16
      %v236 = vrot.slane %v234, 4
      %v237 = vshll.u32 %v175, 16
      %v239 = vrot.slane %v237, 5
      %v240 = vor.u32 %v236, %v239
      %v241 = vrot.slane %v240, 4
      %v243 = vshll.u32 %v183, 16
      %v245 = vrot.slane %v243, 5
      %v246 = vsel %vm190, %v241, %v245
      %v248 = vshrl.u32 %v176, 16
      %v250 = vrot.slane %v248, 4
      %v251 = vshll.u32 %v176, 16
      %v253 = vrot.slane %v251, 5
      %v254 = vor.u32 %v250, %v253
      %v255 = vrot.slane %v254, 4
      %v257 = vshll.u32 %v184, 16
      %v259 = vrot.slane %v257, 5
      %v260 = vsel %vm190, %v255, %v259
      %v262 = vshrl.u32 %v177, 16
      %v264 = vrot.slane %v262, 4
      %v265 = vshll.u32 %v177, 16
      %v267 = vrot.slane %v265, 5
      %v268 = vor.u32 %v264, %v267
      %v269 = vrot.slane %v268, 4
      %v271 = vshll.u32 %v185, 16
      %v273 = vrot.slane %v271, 5
      %v274 = vsel %vm190, %v269, %v273
      %v276 = vshrl.u32 %v178, 16
      %v278 = vrot.slane %v276, 4
      %v279 = vshll.u32 %v178, 16
      %v281 = vrot.slane %v279, 5
      %v282 = vor.u32 %v278, %v281
      %v283 = vrot.slane %v282, 4
      %v285 = vshll.u32 %v186, 16
      %v287 = vrot.slane %v285, 5
      %v288 = vsel %vm190, %v283, %v287
      %v290 = vshrl.u32 %v179, 16
      %v292 = vrot.slane %v290, 4
      %v293 = vshll.u32 %v179, 16
      %v295 = vrot.slane %v293, 5
      %v296 = vor.u32 %v292, %v295
      %v297 = vrot.slane %v296, 4
      %v299 = vshll.u32 %v187, 16
      %v301 = vrot.slane %v299, 5
      %v302 = vsel %vm190, %v297, %v301
      %v303 = vld [vmem:[%s165] sm:$0xe]
      %v304 = vld [vmem:[%s165 + $0x8] sm:$0xe]
      %v305 = vld [vmem:[%s165 + $0x10] sm:$0xe]
      %v306 = vld [vmem:[%s165 + $0x18] sm:$0xe]
      %v307 = vld [vmem:[%s165 + $0x20] sm:$0xe]
      %v308 = vld [vmem:[%s165 + $0x28] sm:$0xe]
      %v309 = vld [vmem:[%s165 + $0x30] sm:$0xe]
      %v310 = vld [vmem:[%s165 + $0x38] sm:$0xe]
      %vm327 = vcmask 1042432
      %vm328 = vcmask 1046532
      %vm329 = vmor %vm327, %vm328
      %v330 = vrot.slane %v303, 5
      %v331 = vrot.slane %v330, 4
      %v332 = vrot.slane %v180, 5
      %v333 = vsel %vm329, %v331, %v332
      %v334 = vrot.slane %v304, 5
      %v335 = vrot.slane %v334, 4
      %v336 = vrot.slane %v181, 5
      %v337 = vsel %vm329, %v335, %v336
      %v338 = vrot.slane %v305, 5
      %v339 = vrot.slane %v338, 4
      %v340 = vrot.slane %v182, 5
      %v341 = vsel %vm329, %v339, %v340
      %v342 = vrot.slane %v306, 5
      %v343 = vrot.slane %v342, 4
      %v344 = vrot.slane %v183, 5
      %v345 = vsel %vm329, %v343, %v344
      %v346 = vrot.slane %v307, 5
      %v347 = vrot.slane %v346, 4
      %v348 = vrot.slane %v184, 5
      %v349 = vsel %vm329, %v347, %v348
      %v350 = vrot.slane %v308, 5
      %v351 = vrot.slane %v350, 4
      %v352 = vrot.slane %v185, 5
      %v353 = vsel %vm329, %v351, %v352
      %v354 = vrot.slane %v309, 5
      %v355 = vrot.slane %v354, 4
      %v356 = vrot.slane %v186, 5
      %v357 = vsel %vm329, %v355, %v356
      %v358 = vrot.slane %v310, 5
      %v359 = vrot.slane %v358, 4
      %v360 = vrot.slane %v187, 5
      %v361 = vsel %vm329, %v359, %v360
      %s362 = scalar_lea.vmem %s165, 8
      %v363 = vld [vmem:[%s362] sm:$0xf]
      %v364 = vld [vmem:[%s362 + $0x8] sm:$0xf]
      %v365 = vld [vmem:[%s362 + $0x10] sm:$0xf]
      %v366 = vld [vmem:[%s362 + $0x18] sm:$0xf]
      %v367 = vld [vmem:[%s362 + $0x20] sm:$0xf]
      %v368 = vld [vmem:[%s362 + $0x28] sm:$0xf]
      %v369 = vld [vmem:[%s362 + $0x30] sm:$0xf]
      %v370 = vld [vmem:[%s362 + $0x38] sm:$0xf]
      %v371 = vld [vmem:[%s362 + $0x4] sm:$0x1]
      %v372 = vld [vmem:[%s362 + $0xc] sm:$0x1]
      %v373 = vld [vmem:[%s362 + $0x14] sm:$0x1]
      %v374 = vld [vmem:[%s362 + $0x1c] sm:$0x1]
      %v375 = vld [vmem:[%s362 + $0x24] sm:$0x1]
      %v376 = vld [vmem:[%s362 + $0x2c] sm:$0x1]
      %v377 = vld [vmem:[%s362 + $0x34] sm:$0x1]
      %v378 = vld [vmem:[%s362 + $0x3c] sm:$0x1]
      %v380 = vshrl.u32 %v363, 16
      %v382 = vrot.slane %v380, 4
      %v383 = vshll.u32 %v363, 16
      %v385 = vrot.slane %v383, 5
      %v386 = vor.u32 %v382, %v385
      %v387 = vrot.slane %v386, 4
      %v389 = vshll.u32 %v371, 16
      %v391 = vrot.slane %v389, 5
      %v392 = vsel %vm190, %v387, %v391
      %v394 = vshrl.u32 %v364, 16
      %v396 = vrot.slane %v394, 4
      %v397 = vshll.u32 %v364, 16
      %v399 = vrot.slane %v397, 5
      %v400 = vor.u32 %v396, %v399
      %v401 = vrot.slane %v400, 4
      %v403 = vshll.u32 %v372, 16
      %v405 = vrot.slane %v403, 5
      %v406 = vsel %vm190, %v401, %v405
      %v408 = vshrl.u32 %v365, 16
      %v410 = vrot.slane %v408, 4
      %v411 = vshll.u32 %v365, 16
      %v413 = vrot.slane %v411, 5
      %v414 = vor.u32 %v410, %v413
      %v415 = vrot.slane %v414, 4
      %v417 = vshll.u32 %v373, 16
      %v419 = vrot.slane %v417, 5
      %v420 = vsel %vm190, %v415, %v419
      %v422 = vshrl.u32 %v366, 16
      %v424 = vrot.slane %v422, 4
      %v425 = vshll.u32 %v366, 16
      %v427 = vrot.slane %v425, 5
      %v428 = vor.u32 %v424, %v427
      %v429 = vrot.slane %v428, 4
      %v431 = vshll.u32 %v374, 16
      %v433 = vrot.slane %v431, 5
      %v434 = vsel %vm190, %v429, %v433
      %v436 = vshrl.u32 %v367, 16
      %v438 = vrot.slane %v436, 4
      %v439 = vshll.u32 %v367, 16
      %v441 = vrot.slane %v439, 5
      %v442 = vor.u32 %v438, %v441
      %v443 = vrot.slane %v442, 4
      %v445 = vshll.u32 %v375, 16
      %v447 = vrot.slane %v445, 5
      %v448 = vsel %vm190, %v443, %v447
      %v450 = vshrl.u32 %v368, 16
      %v452 = vrot.slane %v450, 4
      %v453 = vshll.u32 %v368, 16
      %v455 = vrot.slane %v453, 5
      %v456 = vor.u32 %v452, %v455
      %v457 = vrot.slane %v456, 4
      %v459 = vshll.u32 %v376, 16
      %v461 = vrot.slane %v459, 5
      %v462 = vsel %vm190, %v457, %v461
      %v464 = vshrl.u32 %v369, 16
      %v466 = vrot.slane %v464, 4
      %v467 = vshll.u32 %v369, 16
      %v469 = vrot.slane %v467, 5
      %v470 = vor.u32 %v466, %v469
      %v471 = vrot.slane %v470, 4
      %v473 = vshll.u32 %v377, 16
      %v475 = vrot.slane %v473, 5
      %v476 = vsel %vm190, %v471, %v475
      %v478 = vshrl.u32 %v370, 16
      %v480 = vrot.slane %v478, 4
      %v481 = vshll.u32 %v370, 16
      %v483 = vrot.slane %v481, 5
      %v484 = vor.u32 %v480, %v483
      %v485 = vrot.slane %v484, 4
      %v487 = vshll.u32 %v378, 16
      %v489 = vrot.slane %v487, 5
      %v490 = vsel %vm190, %v485, %v489
      %v491 = vld [vmem:[%s362] sm:$0xe]
      %v492 = vld [vmem:[%s362 + $0x8] sm:$0xe]
      %v493 = vld [vmem:[%s362 + $0x10] sm:$0xe]
      %v494 = vld [vmem:[%s362 + $0x18] sm:$0xe]
      %v495 = vld [vmem:[%s362 + $0x20] sm:$0xe]
      %v496 = vld [vmem:[%s362 + $0x28] sm:$0xe]
      %v497 = vld [vmem:[%s362 + $0x30] sm:$0xe]
      %v498 = vld [vmem:[%s362 + $0x38] sm:$0xe]
      %v515 = vrot.slane %v491, 5
      %v516 = vrot.slane %v515, 4
      %v517 = vrot.slane %v371, 5
      %v518 = vsel %vm329, %v516, %v517
      %v519 = vrot.slane %v492, 5
      %v520 = vrot.slane %v519, 4
      %v521 = vrot.slane %v372, 5
      %v522 = vsel %vm329, %v520, %v521
      %v523 = vrot.slane %v493, 5
      %v524 = vrot.slane %v523, 4
      %v525 = vrot.slane %v373, 5
      %v526 = vsel %vm329, %v524, %v525
      %v527 = vrot.slane %v494, 5
      %v528 = vrot.slane %v527, 4
      %v529 = vrot.slane %v374, 5
      %v530 = vsel %vm329, %v528, %v529
      %v531 = vrot.slane %v495, 5
      %v532 = vrot.slane %v531, 4
      %v533 = vrot.slane %v375, 5
      %v534 = vsel %vm329, %v532, %v533
      %v535 = vrot.slane %v496, 5
      %v536 = vrot.slane %v535, 4
      %v537 = vrot.slane %v376, 5
      %v538 = vsel %vm329, %v536, %v537
      %v539 = vrot.slane %v497, 5
      %v540 = vrot.slane %v539, 4
      %v541 = vrot.slane %v377, 5
      %v542 = vsel %vm329, %v540, %v541
      %v543 = vrot.slane %v498, 5
      %v544 = vrot.slane %v543, 4
      %v545 = vrot.slane %v378, 5
      %v546 = vsel %vm329, %v544, %v545
      %s547 = scalar_lea.vmem %s165, 16
      %v548 = vld [vmem:[%s547] sm:$0xf]
      %v549 = vld [vmem:[%s547 + $0x8] sm:$0xf]
      %v550 = vld [vmem:[%s547 + $0x10] sm:$0xf]
      %v551 = vld [vmem:[%s547 + $0x18] sm:$0xf]
      %v552 = vld [vmem:[%s547 + $0x20] sm:$0xf]
      %v553 = vld [vmem:[%s547 + $0x28] sm:$0xf]
      %v554 = vld [vmem:[%s547 + $0x30] sm:$0xf]
      %v555 = vld [vmem:[%s547 + $0x38] sm:$0xf]
      %v556 = vld [vmem:[%s547 + $0x4] sm:$0x1]
      %v557 = vld [vmem:[%s547 + $0xc] sm:$0x1]
      %v558 = vld [vmem:[%s547 + $0x14] sm:$0x1]
      %v559 = vld [vmem:[%s547 + $0x1c] sm:$0x1]
      %v560 = vld [vmem:[%s547 + $0x24] sm:$0x1]
      %v561 = vld [vmem:[%s547 + $0x2c] sm:$0x1]
      %v562 = vld [vmem:[%s547 + $0x34] sm:$0x1]
      %v563 = vld [vmem:[%s547 + $0x3c] sm:$0x1]
      %v565 = vshrl.u32 %v548, 16
      %v567 = vrot.slane %v565, 4
      %v568 = vshll.u32 %v548, 16
      %v570 = vrot.slane %v568, 5
      %v571 = vor.u32 %v567, %v570
      %v572 = vrot.slane %v571, 4
      %v574 = vshll.u32 %v556, 16
      %v576 = vrot.slane %v574, 5
      %v577 = vsel %vm190, %v572, %v576
      %v579 = vshrl.u32 %v549, 16
      %v581 = vrot.slane %v579, 4
      %v582 = vshll.u32 %v549, 16
      %v584 = vrot.slane %v582, 5
      %v585 = vor.u32 %v581, %v584
      %v586 = vrot.slane %v585, 4
      %v588 = vshll.u32 %v557, 16
      %v590 = vrot.slane %v588, 5
      %v591 = vsel %vm190, %v586, %v590
      %v593 = vshrl.u32 %v550, 16
      %v595 = vrot.slane %v593, 4
      %v596 = vshll.u32 %v550, 16
      %v598 = vrot.slane %v596, 5
      %v599 = vor.u32 %v595, %v598
      %v600 = vrot.slane %v599, 4
      %v602 = vshll.u32 %v558, 16
      %v604 = vrot.slane %v602, 5
      %v605 = vsel %vm190, %v600, %v604
      %v607 = vshrl.u32 %v551, 16
      %v609 = vrot.slane %v607, 4
      %v610 = vshll.u32 %v551, 16
      %v612 = vrot.slane %v610, 5
      %v613 = vor.u32 %v609, %v612
      %v614 = vrot.slane %v613, 4
      %v616 = vshll.u32 %v559, 16
      %v618 = vrot.slane %v616, 5
      %v619 = vsel %vm190, %v614, %v618
      %v621 = vshrl.u32 %v552, 16
      %v623 = vrot.slane %v621, 4
      %v624 = vshll.u32 %v552, 16
      %v626 = vrot.slane %v624, 5
      %v627 = vor.u32 %v623, %v626
      %v628 = vrot.slane %v627, 4
      %v630 = vshll.u32 %v560, 16
      %v632 = vrot.slane %v630, 5
      %v633 = vsel %vm190, %v628, %v632
      %v635 = vshrl.u32 %v553, 16
      %v637 = vrot.slane %v635, 4
      %v638 = vshll.u32 %v553, 16
      %v640 = vrot.slane %v638, 5
      %v641 = vor.u32 %v637, %v640
      %v642 = vrot.slane %v641, 4
      %v644 = vshll.u32 %v561, 16
      %v646 = vrot.slane %v644, 5
      %v647 = vsel %vm190, %v642, %v646
      %v649 = vshrl.u32 %v554, 16
      %v651 = vrot.slane %v649, 4
      %v652 = vshll.u32 %v554, 16
      %v654 = vrot.slane %v652, 5
      %v655 = vor.u32 %v651, %v654
      %v656 = vrot.slane %v655, 4
      %v658 = vshll.u32 %v562, 16
      %v660 = vrot.slane %v658, 5
      %v661 = vsel %vm190, %v656, %v660
      %v663 = vshrl.u32 %v555, 16
      %v665 = vrot.slane %v663, 4
      %v666 = vshll.u32 %v555, 16
      %v668 = vrot.slane %v666, 5
      %v669 = vor.u32 %v665, %v668
      %v670 = vrot.slane %v669, 4
      %v672 = vshll.u32 %v563, 16
      %v674 = vrot.slane %v672, 5
      %v675 = vsel %vm190, %v670, %v674
      %v676 = vld [vmem:[%s547] sm:$0xe]
      %v677 = vld [vmem:[%s547 + $0x8] sm:$0xe]
      %v678 = vld [vmem:[%s547 + $0x10] sm:$0xe]
      %v679 = vld [vmem:[%s547 + $0x18] sm:$0xe]
      %v680 = vld [vmem:[%s547 + $0x20] sm:$0xe]
      %v681 = vld [vmem:[%s547 + $0x28] sm:$0xe]
      %v682 = vld [vmem:[%s547 + $0x30] sm:$0xe]
      %v683 = vld [vmem:[%s547 + $0x38] sm:$0xe]
      %v700 = vrot.slane %v676, 5
      %v701 = vrot.slane %v700, 4
      %v702 = vrot.slane %v556, 5
      %v703 = vsel %vm329, %v701, %v702
      %v704 = vrot.slane %v677, 5
      %v705 = vrot.slane %v704, 4
      %v706 = vrot.slane %v557, 5
      %v707 = vsel %vm329, %v705, %v706
      %v708 = vrot.slane %v678, 5
      %v709 = vrot.slane %v708, 4
      %v710 = vrot.slane %v558, 5
      %v711 = vsel %vm329, %v709, %v710
      %v712 = vrot.slane %v679, 5
      %v713 = vrot.slane %v712, 4
      %v714 = vrot.slane %v559, 5
      %v715 = vsel %vm329, %v713, %v714
      %v716 = vrot.slane %v680, 5
      %v717 = vrot.slane %v716, 4
      %v718 = vrot.slane %v560, 5
      %v719 = vsel %vm329, %v717, %v718
      %v720 = vrot.slane %v681, 5
      %v721 = vrot.slane %v720, 4
      %v722 = vrot.slane %v561, 5
      %v723 = vsel %vm329, %v721, %v722
      %v724 = vrot.slane %v682, 5
      %v725 = vrot.slane %v724, 4
      %v726 = vrot.slane %v562, 5
      %v727 = vsel %vm329, %v725, %v726
      %v728 = vrot.slane %v683, 5
      %v729 = vrot.slane %v728, 4
      %v730 = vrot.slane %v563, 5
      %v731 = vsel %vm329, %v729, %v730
      %v740 = vunpack.c.l.b16 %v172
      %v741 = vunpack.c.l.b16 %v173
      %v742 = vunpack.c.l.b16 %v174
      %v743 = vunpack.c.l.b16 %v175
      %v744 = vunpack.c.l.b16 %v176
      %v745 = vunpack.c.l.b16 %v177
      %v746 = vunpack.c.l.b16 %v178
      %v747 = vunpack.c.l.b16 %v179
      %v748 = vpack.c.b16 %v741, %v740
      %v749 = vpack.c.b16 %v743, %v742
      %v750 = vpack.c.b16 %v745, %v744
      %v751 = vpack.c.b16 %v747, %v746
      %v756 = vunpack.c.l.b16 %v204
      %v757 = vunpack.c.l.b16 %v218
      %v758 = vunpack.c.l.b16 %v232
      %v759 = vunpack.c.l.b16 %v246
      %v760 = vunpack.c.l.b16 %v260
      %v761 = vunpack.c.l.b16 %v274
      %v762 = vunpack.c.l.b16 %v288
      %v763 = vunpack.c.l.b16 %v302
      %v764 = vpack.c.b16 %v757, %v756
      %v765 = vpack.c.b16 %v759, %v758
      %v766 = vpack.c.b16 %v761, %v760
      %v767 = vpack.c.b16 %v763, %v762
      %v772 = vunpack.c.l.b16 %v333
      %v773 = vunpack.c.l.b16 %v337
      %v774 = vunpack.c.l.b16 %v341
      %v775 = vunpack.c.l.b16 %v345
      %v776 = vunpack.c.l.b16 %v349
      %v777 = vunpack.c.l.b16 %v353
      %v778 = vunpack.c.l.b16 %v357
      %v779 = vunpack.c.l.b16 %v361
      %v780 = vpack.c.b16 %v773, %v772
      %v781 = vpack.c.b16 %v775, %v774
      %v782 = vpack.c.b16 %v777, %v776
      %v783 = vpack.c.b16 %v779, %v778
      %v796 = vunpack.c.l.b16 %v363
      %v797 = vunpack.c.l.b16 %v364
      %v798 = vunpack.c.l.b16 %v365
      %v799 = vunpack.c.l.b16 %v366
      %v800 = vunpack.c.l.b16 %v367
      %v801 = vunpack.c.l.b16 %v368
      %v802 = vunpack.c.l.b16 %v369
      %v803 = vunpack.c.l.b16 %v370
      %v804 = vpack.c.b16 %v797, %v796
      %v805 = vpack.c.b16 %v799, %v798
      %v806 = vpack.c.b16 %v801, %v800
      %v807 = vpack.c.b16 %v803, %v802
      %v812 = vunpack.c.l.b16 %v392
      %v813 = vunpack.c.l.b16 %v406
      %v814 = vunpack.c.l.b16 %v420
      %v815 = vunpack.c.l.b16 %v434
      %v816 = vunpack.c.l.b16 %v448
      %v817 = vunpack.c.l.b16 %v462
      %v818 = vunpack.c.l.b16 %v476
      %v819 = vunpack.c.l.b16 %v490
      %v820 = vpack.c.b16 %v813, %v812
      %v821 = vpack.c.b16 %v815, %v814
      %v822 = vpack.c.b16 %v817, %v816
      %v823 = vpack.c.b16 %v819, %v818
      %v828 = vunpack.c.l.b16 %v518
      %v829 = vunpack.c.l.b16 %v522
      %v830 = vunpack.c.l.b16 %v526
      %v831 = vunpack.c.l.b16 %v530
      %v832 = vunpack.c.l.b16 %v534
      %v833 = vunpack.c.l.b16 %v538
      %v834 = vunpack.c.l.b16 %v542
      %v835 = vunpack.c.l.b16 %v546
      %v836 = vpack.c.b16 %v829, %v828
      %v837 = vpack.c.b16 %v831, %v830
      %v838 = vpack.c.b16 %v833, %v832
      %v839 = vpack.c.b16 %v835, %v834
      %v852 = vunpack.c.l.b16 %v548
      %v853 = vunpack.c.l.b16 %v549
      %v854 = vunpack.c.l.b16 %v550
      %v855 = vunpack.c.l.b16 %v551
      %v856 = vunpack.c.l.b16 %v552
      %v857 = vunpack.c.l.b16 %v553
      %v858 = vunpack.c.l.b16 %v554
      %v859 = vunpack.c.l.b16 %v555
      %v860 = vpack.c.b16 %v853, %v852
      %v861 = vpack.c.b16 %v855, %v854
      %v862 = vpack.c.b16 %v857, %v856
      %v863 = vpack.c.b16 %v859, %v858
      %v868 = vunpack.c.l.b16 %v577
      %v869 = vunpack.c.l.b16 %v591
      %v870 = vunpack.c.l.b16 %v605
      %v871 = vunpack.c.l.b16 %v619
      %v872 = vunpack.c.l.b16 %v633
      %v873 = vunpack.c.l.b16 %v647
      %v874 = vunpack.c.l.b16 %v661
      %v875 = vunpack.c.l.b16 %v675
      %v876 = vpack.c.b16 %v869, %v868
      %v877 = vpack.c.b16 %v871, %v870
      %v878 = vpack.c.b16 %v873, %v872
      %v879 = vpack.c.b16 %v875, %v874
      %v884 = vunpack.c.l.b16 %v703
      %v885 = vunpack.c.l.b16 %v707
      %v886 = vunpack.c.l.b16 %v711
      %v887 = vunpack.c.l.b16 %v715
      %v888 = vunpack.c.l.b16 %v719
      %v889 = vunpack.c.l.b16 %v723
      %v890 = vunpack.c.l.b16 %v727
      %v891 = vunpack.c.l.b16 %v731
      %v892 = vpack.c.b16 %v885, %v884
      %v893 = vpack.c.b16 %v887, %v886
      %v894 = vpack.c.b16 %v889, %v888
      %v895 = vpack.c.b16 %v891, %v890
      %v900 = vld [vmem:[%s1] sm:$0xff]
      %v901 = vld [vmem:[%s1 + $0x8] sm:$0xff]
      %v902 = vld [vmem:[%s1 + $0x10] sm:$0xff]
      %v903 = vld [vmem:[%s1 + $0x18] sm:$0xff]
      %v904 = vld [vmem:[%s1 + $0x20] sm:$0xff]
      %v905 = vld [vmem:[%s1 + $0x28] sm:$0xff]
      %v906 = vld [vmem:[%s1 + $0x30] sm:$0xff]
      %v907 = vld [vmem:[%s1 + $0x38] sm:$0xff]
      %v908 = vld [vmem:[%s1 + $0x40] sm:$0xff]
      %v909 = vld [vmem:[%s1 + $0x48] sm:$0xff]
      %v910 = vld [vmem:[%s1 + $0x50] sm:$0xff]
      %v911 = vld [vmem:[%s1 + $0x58] sm:$0xff]
      %v912 = vld [vmem:[%s1 + $0x60] sm:$0xff]
      %v913 = vld [vmem:[%s1 + $0x68] sm:$0xff]
      %v914 = vld [vmem:[%s1 + $0x70] sm:$0xff]
      %v915 = vld [vmem:[%s1 + $0x78] sm:$0xff]
      %v916 = vld [vmem:[%s1 + $0x80] sm:$0xff]
      %v917 = vld [vmem:[%s1 + $0x88] sm:$0xff]
      %v918 = vld [vmem:[%s1 + $0x90] sm:$0xff]
      %v919 = vld [vmem:[%s1 + $0x98] sm:$0xff]
      %v920 = vld [vmem:[%s1 + $0xa0] sm:$0xff]
      %v921 = vld [vmem:[%s1 + $0xa8] sm:$0xff]
      %v922 = vld [vmem:[%s1 + $0xb0] sm:$0xff]
      %v923 = vld [vmem:[%s1 + $0xb8] sm:$0xff]
      %v924 = vld [vmem:[%s1 + $0xc0] sm:$0xff]
      %v925 = vld [vmem:[%s1 + $0xc8] sm:$0xff]
      %v926 = vld [vmem:[%s1 + $0xd0] sm:$0xff]
      %v927 = vld [vmem:[%s1 + $0xd8] sm:$0xff]
      %v928 = vld [vmem:[%s1 + $0xe0] sm:$0xff]
      %v929 = vld [vmem:[%s1 + $0xe8] sm:$0xff]
      %v930 = vld [vmem:[%s1 + $0xf0] sm:$0xff]
      %v931 = vld [vmem:[%s1 + $0xf8] sm:$0xff]
      %v932 = vld [vmem:[%s1 + $0x100] sm:$0xff]
      %v933 = vld [vmem:[%s1 + $0x108] sm:$0xff]
      %v934 = vld [vmem:[%s1 + $0x110] sm:$0xff]
      %v935 = vld [vmem:[%s1 + $0x118] sm:$0xff]
      %v936 = vld [vmem:[%s1 + $0x120] sm:$0xff]
      %v937 = vld [vmem:[%s1 + $0x128] sm:$0xff]
      %v938 = vld [vmem:[%s1 + $0x130] sm:$0xff]
      %v939 = vld [vmem:[%s1 + $0x138] sm:$0xff]
      %v940 = vld [vmem:[%s1 + $0x140] sm:$0xff]
      %v941 = vld [vmem:[%s1 + $0x148] sm:$0xff]
      %v942 = vld [vmem:[%s1 + $0x150] sm:$0xff]
      %v943 = vld [vmem:[%s1 + $0x158] sm:$0xff]
      %v944 = vld [vmem:[%s1 + $0x160] sm:$0xff]
      %v945 = vld [vmem:[%s1 + $0x168] sm:$0xff]
      %v946 = vld [vmem:[%s1 + $0x170] sm:$0xff]
      %v947 = vld [vmem:[%s1 + $0x178] sm:$0xff]
      %v948 = vld [vmem:[%s1 + $0x180] sm:$0xff]
      %v949 = vld [vmem:[%s1 + $0x188] sm:$0xff]
      %v950 = vld [vmem:[%s1 + $0x190] sm:$0xff]
      %v951 = vld [vmem:[%s1 + $0x198] sm:$0xff]
      %v952 = vld [vmem:[%s1 + $0x1a0] sm:$0xff]
      %v953 = vld [vmem:[%s1 + $0x1a8] sm:$0xff]
      %v954 = vld [vmem:[%s1 + $0x1b0] sm:$0xff]
      %v955 = vld [vmem:[%s1 + $0x1b8] sm:$0xff]
      %v956 = vld [vmem:[%s1 + $0x1c0] sm:$0xff]
      %v957 = vld [vmem:[%s1 + $0x1c8] sm:$0xff]
      %v958 = vld [vmem:[%s1 + $0x1d0] sm:$0xff]
      %v959 = vld [vmem:[%s1 + $0x1d8] sm:$0xff]
      %v960 = vld [vmem:[%s1 + $0x1e0] sm:$0xff]
      %v961 = vld [vmem:[%s1 + $0x1e8] sm:$0xff]
      %v962 = vld [vmem:[%s1 + $0x1f0] sm:$0xff]
      %v963 = vld [vmem:[%s1 + $0x1f8] sm:$0xff]
      %v964 = vld [vmem:[%s1 + $0x200] sm:$0xff]
      %v965 = vld [vmem:[%s1 + $0x208] sm:$0xff]
      %v966 = vld [vmem:[%s1 + $0x210] sm:$0xff]
      %v967 = vld [vmem:[%s1 + $0x218] sm:$0xff]
      %v968 = vld [vmem:[%s1 + $0x220] sm:$0xff]
      %v969 = vld [vmem:[%s1 + $0x228] sm:$0xff]
      %v970 = vld [vmem:[%s1 + $0x230] sm:$0xff]
      %v971 = vld [vmem:[%s1 + $0x238] sm:$0xff]
      %v972 = vld [vmem:[%s1 + $0x240] sm:$0xff]
      %v973 = vld [vmem:[%s1 + $0x248] sm:$0xff]
      %v974 = vld [vmem:[%s1 + $0x250] sm:$0xff]
      %v975 = vld [vmem:[%s1 + $0x258] sm:$0xff]
      %v976 = vld [vmem:[%s1 + $0x260] sm:$0xff]
      %v977 = vld [vmem:[%s1 + $0x268] sm:$0xff]
      %v978 = vld [vmem:[%s1 + $0x270] sm:$0xff]
      %v979 = vld [vmem:[%s1 + $0x278] sm:$0xff]
      %v980 = vld [vmem:[%s1 + $0x280] sm:$0xff]
      %v981 = vld [vmem:[%s1 + $0x288] sm:$0xff]
      %v982 = vld [vmem:[%s1 + $0x290] sm:$0xff]
      %v983 = vld [vmem:[%s1 + $0x298] sm:$0xff]
      %v984 = vld [vmem:[%s1 + $0x2a0] sm:$0xff]
      %v985 = vld [vmem:[%s1 + $0x2a8] sm:$0xff]
      %v986 = vld [vmem:[%s1 + $0x2b0] sm:$0xff]
      %v987 = vld [vmem:[%s1 + $0x2b8] sm:$0xff]
      %v988 = vld [vmem:[%s1 + $0x2c0] sm:$0xff]
      %v989 = vld [vmem:[%s1 + $0x2c8] sm:$0xff]
      %v990 = vld [vmem:[%s1 + $0x2d0] sm:$0xff]
      %v991 = vld [vmem:[%s1 + $0x2d8] sm:$0xff]
      %v992 = vld [vmem:[%s1 + $0x2e0] sm:$0xff]
      %v993 = vld [vmem:[%s1 + $0x2e8] sm:$0xff]
      %v994 = vld [vmem:[%s1 + $0x2f0] sm:$0xff]
      %v995 = vld [vmem:[%s1 + $0x2f8] sm:$0xff]
      %v996 = vld [vmem:[%s1 + $0x300] sm:$0xff]
      %v997 = vld [vmem:[%s1 + $0x308] sm:$0xff]
      %v998 = vld [vmem:[%s1 + $0x310] sm:$0xff]
      %v999 = vld [vmem:[%s1 + $0x318] sm:$0xff]
      %v1000 = vld [vmem:[%s1 + $0x320] sm:$0xff]
      %v1001 = vld [vmem:[%s1 + $0x328] sm:$0xff]
      %v1002 = vld [vmem:[%s1 + $0x330] sm:$0xff]
      %v1003 = vld [vmem:[%s1 + $0x338] sm:$0xff]
      %v1004 = vld [vmem:[%s1 + $0x340] sm:$0xff]
      %v1005 = vld [vmem:[%s1 + $0x348] sm:$0xff]
      %v1006 = vld [vmem:[%s1 + $0x350] sm:$0xff]
      %v1007 = vld [vmem:[%s1 + $0x358] sm:$0xff]
      %v1008 = vld [vmem:[%s1 + $0x360] sm:$0xff]
      %v1009 = vld [vmem:[%s1 + $0x368] sm:$0xff]
      %v1010 = vld [vmem:[%s1 + $0x370] sm:$0xff]
      %v1011 = vld [vmem:[%s1 + $0x378] sm:$0xff]
      %v1012 = vld [vmem:[%s1 + $0x380] sm:$0xff]
      %v1013 = vld [vmem:[%s1 + $0x388] sm:$0xff]
      %v1014 = vld [vmem:[%s1 + $0x390] sm:$0xff]
      %v1015 = vld [vmem:[%s1 + $0x398] sm:$0xff]
      %v1016 = vld [vmem:[%s1 + $0x3a0] sm:$0xff]
      %v1017 = vld [vmem:[%s1 + $0x3a8] sm:$0xff]
      %v1018 = vld [vmem:[%s1 + $0x3b0] sm:$0xff]
      %v1019 = vld [vmem:[%s1 + $0x3b8] sm:$0xff]
      %v1020 = vld [vmem:[%s1 + $0x3c0] sm:$0xff]
      %v1021 = vld [vmem:[%s1 + $0x3c8] sm:$0xff]
      %v1022 = vld [vmem:[%s1 + $0x3d0] sm:$0xff]
      %v1023 = vld [vmem:[%s1 + $0x3d8] sm:$0xff]
      %v1024 = vld [vmem:[%s1 + $0x3e0] sm:$0xff]
      %v1025 = vld [vmem:[%s1 + $0x3e8] sm:$0xff]
      %v1026 = vld [vmem:[%s1 + $0x3f0] sm:$0xff]
      %v1027 = vld [vmem:[%s1 + $0x3f8] sm:$0xff]
      %v1028 = vld [vmem:[%s1 + $0x400] sm:$0xff]
      %v1029 = vld [vmem:[%s1 + $0x408] sm:$0xff]
      %v1030 = vld [vmem:[%s1 + $0x410] sm:$0xff]
      %v1031 = vld [vmem:[%s1 + $0x418] sm:$0xff]
      %v1032 = vld [vmem:[%s1 + $0x420] sm:$0xff]
      %v1033 = vld [vmem:[%s1 + $0x428] sm:$0xff]
      %v1034 = vld [vmem:[%s1 + $0x430] sm:$0xff]
      %v1035 = vld [vmem:[%s1 + $0x438] sm:$0xff]
      %v1036 = vld [vmem:[%s1 + $0x440] sm:$0xff]
      %v1037 = vld [vmem:[%s1 + $0x448] sm:$0xff]
      %v1038 = vld [vmem:[%s1 + $0x450] sm:$0xff]
      %v1039 = vld [vmem:[%s1 + $0x458] sm:$0xff]
      %v1040 = vld [vmem:[%s1 + $0x460] sm:$0xff]
      %v1041 = vld [vmem:[%s1 + $0x468] sm:$0xff]
      %v1042 = vld [vmem:[%s1 + $0x470] sm:$0xff]
      %v1043 = vld [vmem:[%s1 + $0x478] sm:$0xff]
      %v1044 = vld [vmem:[%s1 + $0x480] sm:$0xff]
      %v1045 = vld [vmem:[%s1 + $0x488] sm:$0xff]
      %v1046 = vld [vmem:[%s1 + $0x490] sm:$0xff]
      %v1047 = vld [vmem:[%s1 + $0x498] sm:$0xff]
      %v1048 = vld [vmem:[%s1 + $0x4a0] sm:$0xff]
      %v1049 = vld [vmem:[%s1 + $0x4a8] sm:$0xff]
      %v1050 = vld [vmem:[%s1 + $0x4b0] sm:$0xff]
      %v1051 = vld [vmem:[%s1 + $0x4b8] sm:$0xff]
      %v1052 = vld [vmem:[%s1 + $0x4c0] sm:$0xff]
      %v1053 = vld [vmem:[%s1 + $0x4c8] sm:$0xff]
      %v1054 = vld [vmem:[%s1 + $0x4d0] sm:$0xff]
      %v1055 = vld [vmem:[%s1 + $0x4d8] sm:$0xff]
      %v1056 = vld [vmem:[%s1 + $0x4e0] sm:$0xff]
      %v1057 = vld [vmem:[%s1 + $0x4e8] sm:$0xff]
      %v1058 = vld [vmem:[%s1 + $0x4f0] sm:$0xff]
      %v1059 = vld [vmem:[%s1 + $0x4f8] sm:$0xff]
      %v1060 = vld [vmem:[%s1 + $0x500] sm:$0xff]
      %v1061 = vld [vmem:[%s1 + $0x508] sm:$0xff]
      %v1062 = vld [vmem:[%s1 + $0x510] sm:$0xff]
      %v1063 = vld [vmem:[%s1 + $0x518] sm:$0xff]
      %v1064 = vld [vmem:[%s1 + $0x520] sm:$0xff]
      %v1065 = vld [vmem:[%s1 + $0x528] sm:$0xff]
      %v1066 = vld [vmem:[%s1 + $0x530] sm:$0xff]
      %v1067 = vld [vmem:[%s1 + $0x538] sm:$0xff]
      %v1068 = vld [vmem:[%s1 + $0x540] sm:$0xff]
      %v1069 = vld [vmem:[%s1 + $0x548] sm:$0xff]
      %v1070 = vld [vmem:[%s1 + $0x550] sm:$0xff]
      %v1071 = vld [vmem:[%s1 + $0x558] sm:$0xff]
      %v1072 = vld [vmem:[%s1 + $0x560] sm:$0xff]
      %v1073 = vld [vmem:[%s1 + $0x568] sm:$0xff]
      %v1074 = vld [vmem:[%s1 + $0x570] sm:$0xff]
      %v1075 = vld [vmem:[%s1 + $0x578] sm:$0xff]
      %v1076 = vld [vmem:[%s1 + $0x580] sm:$0xff]
      %v1077 = vld [vmem:[%s1 + $0x588] sm:$0xff]
      %v1078 = vld [vmem:[%s1 + $0x590] sm:$0xff]
      %v1079 = vld [vmem:[%s1 + $0x598] sm:$0xff]
      %v1080 = vld [vmem:[%s1 + $0x5a0] sm:$0xff]
      %v1081 = vld [vmem:[%s1 + $0x5a8] sm:$0xff]
      %v1082 = vld [vmem:[%s1 + $0x5b0] sm:$0xff]
      %v1083 = vld [vmem:[%s1 + $0x5b8] sm:$0xff]
      %v1084 = vld [vmem:[%s1 + $0x5c0] sm:$0xff]
      %v1085 = vld [vmem:[%s1 + $0x5c8] sm:$0xff]
      %v1086 = vld [vmem:[%s1 + $0x5d0] sm:$0xff]
      %v1087 = vld [vmem:[%s1 + $0x5d8] sm:$0xff]
      %v1088 = vld [vmem:[%s1 + $0x5e0] sm:$0xff]
      %v1089 = vld [vmem:[%s1 + $0x5e8] sm:$0xff]
      %v1090 = vld [vmem:[%s1 + $0x5f0] sm:$0xff]
      %v1091 = vld [vmem:[%s1 + $0x5f8] sm:$0xff]
      %v1092 = vld [vmem:[%s1 + $0x600] sm:$0xff]
      %v1093 = vld [vmem:[%s1 + $0x608] sm:$0xff]
      %v1094 = vld [vmem:[%s1 + $0x610] sm:$0xff]
      %v1095 = vld [vmem:[%s1 + $0x618] sm:$0xff]
      %v1096 = vld [vmem:[%s1 + $0x620] sm:$0xff]
      %v1097 = vld [vmem:[%s1 + $0x628] sm:$0xff]
      %v1098 = vld [vmem:[%s1 + $0x630] sm:$0xff]
      %v1099 = vld [vmem:[%s1 + $0x638] sm:$0xff]
      %v1100 = vld [vmem:[%s1 + $0x640] sm:$0xff]
      %v1101 = vld [vmem:[%s1 + $0x648] sm:$0xff]
      %v1102 = vld [vmem:[%s1 + $0x650] sm:$0xff]
      %v1103 = vld [vmem:[%s1 + $0x658] sm:$0xff]
      %v1104 = vld [vmem:[%s1 + $0x660] sm:$0xff]
      %v1105 = vld [vmem:[%s1 + $0x668] sm:$0xff]
      %v1106 = vld [vmem:[%s1 + $0x670] sm:$0xff]
      %v1107 = vld [vmem:[%s1 + $0x678] sm:$0xff]
      %v1108 = vld [vmem:[%s1 + $0x680] sm:$0xff]
      %v1109 = vld [vmem:[%s1 + $0x688] sm:$0xff]
      %v1110 = vld [vmem:[%s1 + $0x690] sm:$0xff]
      %v1111 = vld [vmem:[%s1 + $0x698] sm:$0xff]
      %v1112 = vld [vmem:[%s1 + $0x6a0] sm:$0xff]
      %v1113 = vld [vmem:[%s1 + $0x6a8] sm:$0xff]
      %v1114 = vld [vmem:[%s1 + $0x6b0] sm:$0xff]
      %v1115 = vld [vmem:[%s1 + $0x6b8] sm:$0xff]
      %v1116 = vld [vmem:[%s1 + $0x6c0] sm:$0xff]
      %v1117 = vld [vmem:[%s1 + $0x6c8] sm:$0xff]
      %v1118 = vld [vmem:[%s1 + $0x6d0] sm:$0xff]
      %v1119 = vld [vmem:[%s1 + $0x6d8] sm:$0xff]
      %v1120 = vld [vmem:[%s1 + $0x6e0] sm:$0xff]
      %v1121 = vld [vmem:[%s1 + $0x6e8] sm:$0xff]
      %v1122 = vld [vmem:[%s1 + $0x6f0] sm:$0xff]
      %v1123 = vld [vmem:[%s1 + $0x6f8] sm:$0xff]
      %v1124 = vld [vmem:[%s1 + $0x700] sm:$0xff]
      %v1125 = vld [vmem:[%s1 + $0x708] sm:$0xff]
      %v1126 = vld [vmem:[%s1 + $0x710] sm:$0xff]
      %v1127 = vld [vmem:[%s1 + $0x718] sm:$0xff]
      %v1128 = vld [vmem:[%s1 + $0x720] sm:$0xff]
      %v1129 = vld [vmem:[%s1 + $0x728] sm:$0xff]
      %v1130 = vld [vmem:[%s1 + $0x730] sm:$0xff]
      %v1131 = vld [vmem:[%s1 + $0x738] sm:$0xff]
      %v1132 = vld [vmem:[%s1 + $0x740] sm:$0xff]
      %v1133 = vld [vmem:[%s1 + $0x748] sm:$0xff]
      %v1134 = vld [vmem:[%s1 + $0x750] sm:$0xff]
      %v1135 = vld [vmem:[%s1 + $0x758] sm:$0xff]
      %v1136 = vld [vmem:[%s1 + $0x760] sm:$0xff]
      %v1137 = vld [vmem:[%s1 + $0x768] sm:$0xff]
      %v1138 = vld [vmem:[%s1 + $0x770] sm:$0xff]
      %v1139 = vld [vmem:[%s1 + $0x778] sm:$0xff]
      %v1140 = vld [vmem:[%s1 + $0x780] sm:$0xff]
      %v1141 = vld [vmem:[%s1 + $0x788] sm:$0xff]
      %v1142 = vld [vmem:[%s1 + $0x790] sm:$0xff]
      %v1143 = vld [vmem:[%s1 + $0x798] sm:$0xff]
      %v1144 = vld [vmem:[%s1 + $0x7a0] sm:$0xff]
      %v1145 = vld [vmem:[%s1 + $0x7a8] sm:$0xff]
      %v1146 = vld [vmem:[%s1 + $0x7b0] sm:$0xff]
      %v1147 = vld [vmem:[%s1 + $0x7b8] sm:$0xff]
      %v1148 = vld [vmem:[%s1 + $0x7c0] sm:$0xff]
      %v1149 = vld [vmem:[%s1 + $0x7c8] sm:$0xff]
      %v1150 = vld [vmem:[%s1 + $0x7d0] sm:$0xff]
      %v1151 = vld [vmem:[%s1 + $0x7d8] sm:$0xff]
      %v1152 = vld [vmem:[%s1 + $0x7e0] sm:$0xff]
      %v1153 = vld [vmem:[%s1 + $0x7e8] sm:$0xff]
      %v1154 = vld [vmem:[%s1 + $0x7f0] sm:$0xff]
      %v1155 = vld [vmem:[%s1 + $0x7f8] sm:$0xff]
      %v1156 = vld [vmem:[%s1 + $0x800] sm:$0xff]
      %v1157 = vld [vmem:[%s1 + $0x808] sm:$0xff]
      %v1158 = vld [vmem:[%s1 + $0x810] sm:$0xff]
      %v1159 = vld [vmem:[%s1 + $0x818] sm:$0xff]
      %v1160 = vld [vmem:[%s1 + $0x820] sm:$0xff]
      %v1161 = vld [vmem:[%s1 + $0x828] sm:$0xff]
      %v1162 = vld [vmem:[%s1 + $0x830] sm:$0xff]
      %v1163 = vld [vmem:[%s1 + $0x838] sm:$0xff]
      %v1164 = vld [vmem:[%s1 + $0x840] sm:$0xff]
      %v1165 = vld [vmem:[%s1 + $0x848] sm:$0xff]
      %v1166 = vld [vmem:[%s1 + $0x850] sm:$0xff]
      %v1167 = vld [vmem:[%s1 + $0x858] sm:$0xff]
      %v1168 = vld [vmem:[%s1 + $0x860] sm:$0xff]
      %v1169 = vld [vmem:[%s1 + $0x868] sm:$0xff]
      %v1170 = vld [vmem:[%s1 + $0x870] sm:$0xff]
      %v1171 = vld [vmem:[%s1 + $0x878] sm:$0xff]
      %v1172 = vld [vmem:[%s1 + $0x880] sm:$0xff]
      %v1173 = vld [vmem:[%s1 + $0x888] sm:$0xff]
      %v1174 = vld [vmem:[%s1 + $0x890] sm:$0xff]
      %v1175 = vld [vmem:[%s1 + $0x898] sm:$0xff]
      %v1176 = vld [vmem:[%s1 + $0x8a0] sm:$0xff]
      %v1177 = vld [vmem:[%s1 + $0x8a8] sm:$0xff]
      %v1178 = vld [vmem:[%s1 + $0x8b0] sm:$0xff]
      %v1179 = vld [vmem:[%s1 + $0x8b8] sm:$0xff]
      %v1180 = vld [vmem:[%s1 + $0x8c0] sm:$0xff]
      %v1181 = vld [vmem:[%s1 + $0x8c8] sm:$0xff]
      %v1182 = vld [vmem:[%s1 + $0x8d0] sm:$0xff]
      %v1183 = vld [vmem:[%s1 + $0x8d8] sm:$0xff]
      %v1184 = vld [vmem:[%s1 + $0x8e0] sm:$0xff]
      %v1185 = vld [vmem:[%s1 + $0x8e8] sm:$0xff]
      %v1186 = vld [vmem:[%s1 + $0x8f0] sm:$0xff]
      %v1187 = vld [vmem:[%s1 + $0x8f8] sm:$0xff]
      %v1476 = vunpack.c.l.b16 %v900
      %v1477 = vunpack.c.h.b16 %v900
      %v1478 = vunpack.c.l.b16 %v901
      %v1479 = vunpack.c.h.b16 %v901
      %v1480 = vunpack.c.l.b16 %v902
      %v1481 = vunpack.c.h.b16 %v902
      %v1482 = vunpack.c.l.b16 %v903
      %v1483 = vunpack.c.h.b16 %v903
      %v1484 = vunpack.c.l.b16 %v904
      %v1485 = vunpack.c.h.b16 %v904
      %v1486 = vunpack.c.l.b16 %v905
      %v1487 = vunpack.c.h.b16 %v905
      %v1488 = vunpack.c.l.b16 %v906
      %v1489 = vunpack.c.h.b16 %v906
      %v1490 = vunpack.c.l.b16 %v907
      %v1491 = vunpack.c.h.b16 %v907
      %v1492 = vunpack.c.l.b16 %v908
      %v1493 = vunpack.c.h.b16 %v908
      %v1494 = vunpack.c.l.b16 %v909
      %v1495 = vunpack.c.h.b16 %v909
      %v1496 = vunpack.c.l.b16 %v910
      %v1497 = vunpack.c.h.b16 %v910
      %v1498 = vunpack.c.l.b16 %v911
      %v1499 = vunpack.c.h.b16 %v911
      %v1500 = vunpack.c.l.b16 %v912
      %v1501 = vunpack.c.h.b16 %v912
      %v1502 = vunpack.c.l.b16 %v913
      %v1503 = vunpack.c.h.b16 %v913
      %v1504 = vunpack.c.l.b16 %v914
      %v1505 = vunpack.c.h.b16 %v914
      %v1506 = vunpack.c.l.b16 %v915
      %v1507 = vunpack.c.h.b16 %v915
      %v1508 = vunpack.c.l.b16 %v916
      %v1509 = vunpack.c.h.b16 %v916
      %v1510 = vunpack.c.l.b16 %v917
      %v1511 = vunpack.c.h.b16 %v917
      %v1512 = vunpack.c.l.b16 %v918
      %v1513 = vunpack.c.h.b16 %v918
      %v1514 = vunpack.c.l.b16 %v919
      %v1515 = vunpack.c.h.b16 %v919
      %v1516 = vunpack.c.l.b16 %v920
      %v1517 = vunpack.c.h.b16 %v920
      %v1518 = vunpack.c.l.b16 %v921
      %v1519 = vunpack.c.h.b16 %v921
      %v1520 = vunpack.c.l.b16 %v922
      %v1521 = vunpack.c.h.b16 %v922
      %v1522 = vunpack.c.l.b16 %v923
      %v1523 = vunpack.c.h.b16 %v923
      %v1524 = vunpack.c.l.b16 %v924
      %v1525 = vunpack.c.h.b16 %v924
      %v1526 = vunpack.c.l.b16 %v925
      %v1527 = vunpack.c.h.b16 %v925
      %v1528 = vunpack.c.l.b16 %v926
      %v1529 = vunpack.c.h.b16 %v926
      %v1530 = vunpack.c.l.b16 %v927
      %v1531 = vunpack.c.h.b16 %v927
      %v1532 = vunpack.c.l.b16 %v928
      %v1533 = vunpack.c.h.b16 %v928
      %v1534 = vunpack.c.l.b16 %v929
      %v1535 = vunpack.c.h.b16 %v929
      %v1536 = vunpack.c.l.b16 %v930
      %v1537 = vunpack.c.h.b16 %v930
      %v1538 = vunpack.c.l.b16 %v931
      %v1539 = vunpack.c.h.b16 %v931
      %v1540 = vunpack.c.l.b16 %v932
      %v1541 = vunpack.c.h.b16 %v932
      %v1542 = vunpack.c.l.b16 %v933
      %v1543 = vunpack.c.h.b16 %v933
      %v1544 = vunpack.c.l.b16 %v934
      %v1545 = vunpack.c.h.b16 %v934
      %v1546 = vunpack.c.l.b16 %v935
      %v1547 = vunpack.c.h.b16 %v935
      %v1548 = vunpack.c.l.b16 %v936
      %v1549 = vunpack.c.h.b16 %v936
      %v1550 = vunpack.c.l.b16 %v937
      %v1551 = vunpack.c.h.b16 %v937
      %v1552 = vunpack.c.l.b16 %v938
      %v1553 = vunpack.c.h.b16 %v938
      %v1554 = vunpack.c.l.b16 %v939
      %v1555 = vunpack.c.h.b16 %v939
      %v1556 = vunpack.c.l.b16 %v940
      %v1557 = vunpack.c.h.b16 %v940
      %v1558 = vunpack.c.l.b16 %v941
      %v1559 = vunpack.c.h.b16 %v941
      %v1560 = vunpack.c.l.b16 %v942
      %v1561 = vunpack.c.h.b16 %v942
      %v1562 = vunpack.c.l.b16 %v943
      %v1563 = vunpack.c.h.b16 %v943
      %v1564 = vunpack.c.l.b16 %v944
      %v1565 = vunpack.c.h.b16 %v944
      %v1566 = vunpack.c.l.b16 %v945
      %v1567 = vunpack.c.h.b16 %v945
      %v1568 = vunpack.c.l.b16 %v946
      %v1569 = vunpack.c.h.b16 %v946
      %v1570 = vunpack.c.l.b16 %v947
      %v1571 = vunpack.c.h.b16 %v947
      %v1572 = vunpack.c.l.b16 %v948
      %v1573 = vunpack.c.h.b16 %v948
      %v1574 = vunpack.c.l.b16 %v949
      %v1575 = vunpack.c.h.b16 %v949
      %v1576 = vunpack.c.l.b16 %v950
      %v1577 = vunpack.c.h.b16 %v950
      %v1578 = vunpack.c.l.b16 %v951
      %v1579 = vunpack.c.h.b16 %v951
      %v1580 = vunpack.c.l.b16 %v952
      %v1581 = vunpack.c.h.b16 %v952
      %v1582 = vunpack.c.l.b16 %v953
      %v1583 = vunpack.c.h.b16 %v953
      %v1584 = vunpack.c.l.b16 %v954
      %v1585 = vunpack.c.h.b16 %v954
      %v1586 = vunpack.c.l.b16 %v955
      %v1587 = vunpack.c.h.b16 %v955
      %v1588 = vunpack.c.l.b16 %v956
      %v1589 = vunpack.c.h.b16 %v956
      %v1590 = vunpack.c.l.b16 %v957
      %v1591 = vunpack.c.h.b16 %v957
      %v1592 = vunpack.c.l.b16 %v958
      %v1593 = vunpack.c.h.b16 %v958
      %v1594 = vunpack.c.l.b16 %v959
      %v1595 = vunpack.c.h.b16 %v959
      %v1596 = vunpack.c.l.b16 %v960
      %v1597 = vunpack.c.h.b16 %v960
      %v1598 = vunpack.c.l.b16 %v961
      %v1599 = vunpack.c.h.b16 %v961
      %v1600 = vunpack.c.l.b16 %v962
      %v1601 = vunpack.c.h.b16 %v962
      %v1602 = vunpack.c.l.b16 %v963
      %v1603 = vunpack.c.h.b16 %v963
      %v1604 = vunpack.c.l.b16 %v964
      %v1605 = vunpack.c.h.b16 %v964
      %v1606 = vunpack.c.l.b16 %v965
      %v1607 = vunpack.c.h.b16 %v965
      %v1608 = vunpack.c.l.b16 %v966
      %v1609 = vunpack.c.h.b16 %v966
      %v1610 = vunpack.c.l.b16 %v967
      %v1611 = vunpack.c.h.b16 %v967
      %v1612 = vunpack.c.l.b16 %v968
      %v1613 = vunpack.c.h.b16 %v968
      %v1614 = vunpack.c.l.b16 %v969
      %v1615 = vunpack.c.h.b16 %v969
      %v1616 = vunpack.c.l.b16 %v970
      %v1617 = vunpack.c.h.b16 %v970
      %v1618 = vunpack.c.l.b16 %v971
      %v1619 = vunpack.c.h.b16 %v971
      %v1620 = vunpack.c.l.b16 %v972
      %v1621 = vunpack.c.h.b16 %v972
      %v1622 = vunpack.c.l.b16 %v973
      %v1623 = vunpack.c.h.b16 %v973
      %v1624 = vunpack.c.l.b16 %v974
      %v1625 = vunpack.c.h.b16 %v974
      %v1626 = vunpack.c.l.b16 %v975
      %v1627 = vunpack.c.h.b16 %v975
      %v1628 = vunpack.c.l.b16 %v976
      %v1629 = vunpack.c.h.b16 %v976
      %v1630 = vunpack.c.l.b16 %v977
      %v1631 = vunpack.c.h.b16 %v977
      %v1632 = vunpack.c.l.b16 %v978
      %v1633 = vunpack.c.h.b16 %v978
      %v1634 = vunpack.c.l.b16 %v979
      %v1635 = vunpack.c.h.b16 %v979
      %v1636 = vunpack.c.l.b16 %v980
      %v1637 = vunpack.c.h.b16 %v980
      %v1638 = vunpack.c.l.b16 %v981
      %v1639 = vunpack.c.h.b16 %v981
      %v1640 = vunpack.c.l.b16 %v982
      %v1641 = vunpack.c.h.b16 %v982
      %v1642 = vunpack.c.l.b16 %v983
      %v1643 = vunpack.c.h.b16 %v983
      %v1644 = vunpack.c.l.b16 %v984
      %v1645 = vunpack.c.h.b16 %v984
      %v1646 = vunpack.c.l.b16 %v985
      %v1647 = vunpack.c.h.b16 %v985
      %v1648 = vunpack.c.l.b16 %v986
      %v1649 = vunpack.c.h.b16 %v986
      %v1650 = vunpack.c.l.b16 %v987
      %v1651 = vunpack.c.h.b16 %v987
      %v1652 = vunpack.c.l.b16 %v988
      %v1653 = vunpack.c.h.b16 %v988
      %v1654 = vunpack.c.l.b16 %v989
      %v1655 = vunpack.c.h.b16 %v989
      %v1656 = vunpack.c.l.b16 %v990
      %v1657 = vunpack.c.h.b16 %v990
      %v1658 = vunpack.c.l.b16 %v991
      %v1659 = vunpack.c.h.b16 %v991
      %v1660 = vunpack.c.l.b16 %v992
      %v1661 = vunpack.c.h.b16 %v992
      %v1662 = vunpack.c.l.b16 %v993
      %v1663 = vunpack.c.h.b16 %v993
      %v1664 = vunpack.c.l.b16 %v994
      %v1665 = vunpack.c.h.b16 %v994
      %v1666 = vunpack.c.l.b16 %v995
      %v1667 = vunpack.c.h.b16 %v995
      %v1668 = vunpack.c.l.b16 %v996
      %v1669 = vunpack.c.h.b16 %v996
      %v1670 = vunpack.c.l.b16 %v997
      %v1671 = vunpack.c.h.b16 %v997
      %v1672 = vunpack.c.l.b16 %v998
      %v1673 = vunpack.c.h.b16 %v998
      %v1674 = vunpack.c.l.b16 %v999
      %v1675 = vunpack.c.h.b16 %v999
      %v1676 = vunpack.c.l.b16 %v1000
      %v1677 = vunpack.c.h.b16 %v1000
      %v1678 = vunpack.c.l.b16 %v1001
      %v1679 = vunpack.c.h.b16 %v1001
      %v1680 = vunpack.c.l.b16 %v1002
      %v1681 = vunpack.c.h.b16 %v1002
      %v1682 = vunpack.c.l.b16 %v1003
      %v1683 = vunpack.c.h.b16 %v1003
      %v1684 = vunpack.c.l.b16 %v1004
      %v1685 = vunpack.c.h.b16 %v1004
      %v1686 = vunpack.c.l.b16 %v1005
      %v1687 = vunpack.c.h.b16 %v1005
      %v1688 = vunpack.c.l.b16 %v1006
      %v1689 = vunpack.c.h.b16 %v1006
      %v1690 = vunpack.c.l.b16 %v1007
      %v1691 = vunpack.c.h.b16 %v1007
      %v1692 = vunpack.c.l.b16 %v1008
      %v1693 = vunpack.c.h.b16 %v1008
      %v1694 = vunpack.c.l.b16 %v1009
      %v1695 = vunpack.c.h.b16 %v1009
      %v1696 = vunpack.c.l.b16 %v1010
      %v1697 = vunpack.c.h.b16 %v1010
      %v1698 = vunpack.c.l.b16 %v1011
      %v1699 = vunpack.c.h.b16 %v1011
      %v1700 = vunpack.c.l.b16 %v1012
      %v1701 = vunpack.c.h.b16 %v1012
      %v1702 = vunpack.c.l.b16 %v1013
      %v1703 = vunpack.c.h.b16 %v1013
      %v1704 = vunpack.c.l.b16 %v1014
      %v1705 = vunpack.c.h.b16 %v1014
      %v1706 = vunpack.c.l.b16 %v1015
      %v1707 = vunpack.c.h.b16 %v1015
      %v1708 = vunpack.c.l.b16 %v1016
      %v1709 = vunpack.c.h.b16 %v1016
      %v1710 = vunpack.c.l.b16 %v1017
      %v1711 = vunpack.c.h.b16 %v1017
      %v1712 = vunpack.c.l.b16 %v1018
      %v1713 = vunpack.c.h.b16 %v1018
      %v1714 = vunpack.c.l.b16 %v1019
      %v1715 = vunpack.c.h.b16 %v1019
      %v1716 = vunpack.c.l.b16 %v1020
      %v1717 = vunpack.c.h.b16 %v1020
      %v1718 = vunpack.c.l.b16 %v1021
      %v1719 = vunpack.c.h.b16 %v1021
      %v1720 = vunpack.c.l.b16 %v1022
      %v1721 = vunpack.c.h.b16 %v1022
      %v1722 = vunpack.c.l.b16 %v1023
      %v1723 = vunpack.c.h.b16 %v1023
      %v1724 = vunpack.c.l.b16 %v1024
      %v1725 = vunpack.c.h.b16 %v1024
      %v1726 = vunpack.c.l.b16 %v1025
      %v1727 = vunpack.c.h.b16 %v1025
      %v1728 = vunpack.c.l.b16 %v1026
      %v1729 = vunpack.c.h.b16 %v1026
      %v1730 = vunpack.c.l.b16 %v1027
      %v1731 = vunpack.c.h.b16 %v1027
      %v1732 = vunpack.c.l.b16 %v1028
      %v1733 = vunpack.c.h.b16 %v1028
      %v1734 = vunpack.c.l.b16 %v1029
      %v1735 = vunpack.c.h.b16 %v1029
      %v1736 = vunpack.c.l.b16 %v1030
      %v1737 = vunpack.c.h.b16 %v1030
      %v1738 = vunpack.c.l.b16 %v1031
      %v1739 = vunpack.c.h.b16 %v1031
      %v1740 = vunpack.c.l.b16 %v1032
      %v1741 = vunpack.c.h.b16 %v1032
      %v1742 = vunpack.c.l.b16 %v1033
      %v1743 = vunpack.c.h.b16 %v1033
      %v1744 = vunpack.c.l.b16 %v1034
      %v1745 = vunpack.c.h.b16 %v1034
      %v1746 = vunpack.c.l.b16 %v1035
      %v1747 = vunpack.c.h.b16 %v1035
      %v1748 = vunpack.c.l.b16 %v1036
      %v1749 = vunpack.c.h.b16 %v1036
      %v1750 = vunpack.c.l.b16 %v1037
      %v1751 = vunpack.c.h.b16 %v1037
      %v1752 = vunpack.c.l.b16 %v1038
      %v1753 = vunpack.c.h.b16 %v1038
      %v1754 = vunpack.c.l.b16 %v1039
      %v1755 = vunpack.c.h.b16 %v1039
      %v1756 = vunpack.c.l.b16 %v1040
      %v1757 = vunpack.c.h.b16 %v1040
      %v1758 = vunpack.c.l.b16 %v1041
      %v1759 = vunpack.c.h.b16 %v1041
      %v1760 = vunpack.c.l.b16 %v1042
      %v1761 = vunpack.c.h.b16 %v1042
      %v1762 = vunpack.c.l.b16 %v1043
      %v1763 = vunpack.c.h.b16 %v1043
      %v1764 = vunpack.c.l.b16 %v1044
      %v1765 = vunpack.c.h.b16 %v1044
      %v1766 = vunpack.c.l.b16 %v1045
      %v1767 = vunpack.c.h.b16 %v1045
      %v1768 = vunpack.c.l.b16 %v1046
      %v1769 = vunpack.c.h.b16 %v1046
      %v1770 = vunpack.c.l.b16 %v1047
      %v1771 = vunpack.c.h.b16 %v1047
      %v1772 = vunpack.c.l.b16 %v1048
      %v1773 = vunpack.c.h.b16 %v1048
      %v1774 = vunpack.c.l.b16 %v1049
      %v1775 = vunpack.c.h.b16 %v1049
      %v1776 = vunpack.c.l.b16 %v1050
      %v1777 = vunpack.c.h.b16 %v1050
      %v1778 = vunpack.c.l.b16 %v1051
      %v1779 = vunpack.c.h.b16 %v1051
      %v1780 = vunpack.c.l.b16 %v1052
      %v1781 = vunpack.c.h.b16 %v1052
      %v1782 = vunpack.c.l.b16 %v1053
      %v1783 = vunpack.c.h.b16 %v1053
      %v1784 = vunpack.c.l.b16 %v1054
      %v1785 = vunpack.c.h.b16 %v1054
      %v1786 = vunpack.c.l.b16 %v1055
      %v1787 = vunpack.c.h.b16 %v1055
      %v1788 = vunpack.c.l.b16 %v1056
      %v1789 = vunpack.c.h.b16 %v1056
      %v1790 = vunpack.c.l.b16 %v1057
      %v1791 = vunpack.c.h.b16 %v1057
      %v1792 = vunpack.c.l.b16 %v1058
      %v1793 = vunpack.c.h.b16 %v1058
      %v1794 = vunpack.c.l.b16 %v1059
      %v1795 = vunpack.c.h.b16 %v1059
      %v1796 = vunpack.c.l.b16 %v1060
      %v1797 = vunpack.c.h.b16 %v1060
      %v1798 = vunpack.c.l.b16 %v1061
      %v1799 = vunpack.c.h.b16 %v1061
      %v1800 = vunpack.c.l.b16 %v1062
      %v1801 = vunpack.c.h.b16 %v1062
      %v1802 = vunpack.c.l.b16 %v1063
      %v1803 = vunpack.c.h.b16 %v1063
      %v1804 = vunpack.c.l.b16 %v1064
      %v1805 = vunpack.c.h.b16 %v1064
      %v1806 = vunpack.c.l.b16 %v1065
      %v1807 = vunpack.c.h.b16 %v1065
      %v1808 = vunpack.c.l.b16 %v1066
      %v1809 = vunpack.c.h.b16 %v1066
      %v1810 = vunpack.c.l.b16 %v1067
      %v1811 = vunpack.c.h.b16 %v1067
      %v1812 = vunpack.c.l.b16 %v1068
      %v1813 = vunpack.c.h.b16 %v1068
      %v1814 = vunpack.c.l.b16 %v1069
      %v1815 = vunpack.c.h.b16 %v1069
      %v1816 = vunpack.c.l.b16 %v1070
      %v1817 = vunpack.c.h.b16 %v1070
      %v1818 = vunpack.c.l.b16 %v1071
      %v1819 = vunpack.c.h.b16 %v1071
      %v1820 = vunpack.c.l.b16 %v1072
      %v1821 = vunpack.c.h.b16 %v1072
      %v1822 = vunpack.c.l.b16 %v1073
      %v1823 = vunpack.c.h.b16 %v1073
      %v1824 = vunpack.c.l.b16 %v1074
      %v1825 = vunpack.c.h.b16 %v1074
      %v1826 = vunpack.c.l.b16 %v1075
      %v1827 = vunpack.c.h.b16 %v1075
      %v1828 = vunpack.c.l.b16 %v1076
      %v1829 = vunpack.c.h.b16 %v1076
      %v1830 = vunpack.c.l.b16 %v1077
      %v1831 = vunpack.c.h.b16 %v1077
      %v1832 = vunpack.c.l.b16 %v1078
      %v1833 = vunpack.c.h.b16 %v1078
      %v1834 = vunpack.c.l.b16 %v1079
      %v1835 = vunpack.c.h.b16 %v1079
      %v1836 = vunpack.c.l.b16 %v1080
      %v1837 = vunpack.c.h.b16 %v1080
      %v1838 = vunpack.c.l.b16 %v1081
      %v1839 = vunpack.c.h.b16 %v1081
      %v1840 = vunpack.c.l.b16 %v1082
      %v1841 = vunpack.c.h.b16 %v1082
      %v1842 = vunpack.c.l.b16 %v1083
      %v1843 = vunpack.c.h.b16 %v1083
      %v1844 = vunpack.c.l.b16 %v1084
      %v1845 = vunpack.c.h.b16 %v1084
      %v1846 = vunpack.c.l.b16 %v1085
      %v1847 = vunpack.c.h.b16 %v1085
      %v1848 = vunpack.c.l.b16 %v1086
      %v1849 = vunpack.c.h.b16 %v1086
      %v1850 = vunpack.c.l.b16 %v1087
      %v1851 = vunpack.c.h.b16 %v1087
      %v1852 = vunpack.c.l.b16 %v1088
      %v1853 = vunpack.c.h.b16 %v1088
      %v1854 = vunpack.c.l.b16 %v1089
      %v1855 = vunpack.c.h.b16 %v1089
      %v1856 = vunpack.c.l.b16 %v1090
      %v1857 = vunpack.c.h.b16 %v1090
      %v1858 = vunpack.c.l.b16 %v1091
      %v1859 = vunpack.c.h.b16 %v1091
      %v1860 = vunpack.c.l.b16 %v1092
      %v1861 = vunpack.c.h.b16 %v1092
      %v1862 = vunpack.c.l.b16 %v1093
      %v1863 = vunpack.c.h.b16 %v1093
      %v1864 = vunpack.c.l.b16 %v1094
      %v1865 = vunpack.c.h.b16 %v1094
      %v1866 = vunpack.c.l.b16 %v1095
      %v1867 = vunpack.c.h.b16 %v1095
      %v1868 = vunpack.c.l.b16 %v1096
      %v1869 = vunpack.c.h.b16 %v1096
      %v1870 = vunpack.c.l.b16 %v1097
      %v1871 = vunpack.c.h.b16 %v1097
      %v1872 = vunpack.c.l.b16 %v1098
      %v1873 = vunpack.c.h.b16 %v1098
      %v1874 = vunpack.c.l.b16 %v1099
      %v1875 = vunpack.c.h.b16 %v1099
      %v1876 = vunpack.c.l.b16 %v1100
      %v1877 = vunpack.c.h.b16 %v1100
      %v1878 = vunpack.c.l.b16 %v1101
      %v1879 = vunpack.c.h.b16 %v1101
      %v1880 = vunpack.c.l.b16 %v1102
      %v1881 = vunpack.c.h.b16 %v1102
      %v1882 = vunpack.c.l.b16 %v1103
      %v1883 = vunpack.c.h.b16 %v1103
      %v1884 = vunpack.c.l.b16 %v1104
      %v1885 = vunpack.c.h.b16 %v1104
      %v1886 = vunpack.c.l.b16 %v1105
      %v1887 = vunpack.c.h.b16 %v1105
      %v1888 = vunpack.c.l.b16 %v1106
      %v1889 = vunpack.c.h.b16 %v1106
      %v1890 = vunpack.c.l.b16 %v1107
      %v1891 = vunpack.c.h.b16 %v1107
      %v1892 = vunpack.c.l.b16 %v1108
      %v1893 = vunpack.c.h.b16 %v1108
      %v1894 = vunpack.c.l.b16 %v1109
      %v1895 = vunpack.c.h.b16 %v1109
      %v1896 = vunpack.c.l.b16 %v1110
      %v1897 = vunpack.c.h.b16 %v1110
      %v1898 = vunpack.c.l.b16 %v1111
      %v1899 = vunpack.c.h.b16 %v1111
      %v1900 = vunpack.c.l.b16 %v1112
      %v1901 = vunpack.c.h.b16 %v1112
      %v1902 = vunpack.c.l.b16 %v1113
      %v1903 = vunpack.c.h.b16 %v1113
      %v1904 = vunpack.c.l.b16 %v1114
      %v1905 = vunpack.c.h.b16 %v1114
      %v1906 = vunpack.c.l.b16 %v1115
      %v1907 = vunpack.c.h.b16 %v1115
      %v1908 = vunpack.c.l.b16 %v1116
      %v1909 = vunpack.c.h.b16 %v1116
      %v1910 = vunpack.c.l.b16 %v1117
      %v1911 = vunpack.c.h.b16 %v1117
      %v1912 = vunpack.c.l.b16 %v1118
      %v1913 = vunpack.c.h.b16 %v1118
      %v1914 = vunpack.c.l.b16 %v1119
      %v1915 = vunpack.c.h.b16 %v1119
      %v1916 = vunpack.c.l.b16 %v1120
      %v1917 = vunpack.c.h.b16 %v1120
      %v1918 = vunpack.c.l.b16 %v1121
      %v1919 = vunpack.c.h.b16 %v1121
      %v1920 = vunpack.c.l.b16 %v1122
      %v1921 = vunpack.c.h.b16 %v1122
      %v1922 = vunpack.c.l.b16 %v1123
      %v1923 = vunpack.c.h.b16 %v1123
      %v1924 = vunpack.c.l.b16 %v1124
      %v1925 = vunpack.c.h.b16 %v1124
      %v1926 = vunpack.c.l.b16 %v1125
      %v1927 = vunpack.c.h.b16 %v1125
      %v1928 = vunpack.c.l.b16 %v1126
      %v1929 = vunpack.c.h.b16 %v1126
      %v1930 = vunpack.c.l.b16 %v1127
      %v1931 = vunpack.c.h.b16 %v1127
      %v1932 = vunpack.c.l.b16 %v1128
      %v1933 = vunpack.c.h.b16 %v1128
      %v1934 = vunpack.c.l.b16 %v1129
      %v1935 = vunpack.c.h.b16 %v1129
      %v1936 = vunpack.c.l.b16 %v1130
      %v1937 = vunpack.c.h.b16 %v1130
      %v1938 = vunpack.c.l.b16 %v1131
      %v1939 = vunpack.c.h.b16 %v1131
      %v1940 = vunpack.c.l.b16 %v1132
      %v1941 = vunpack.c.h.b16 %v1132
      %v1942 = vunpack.c.l.b16 %v1133
      %v1943 = vunpack.c.h.b16 %v1133
      %v1944 = vunpack.c.l.b16 %v1134
      %v1945 = vunpack.c.h.b16 %v1134
      %v1946 = vunpack.c.l.b16 %v1135
      %v1947 = vunpack.c.h.b16 %v1135
      %v1948 = vunpack.c.l.b16 %v1136
      %v1949 = vunpack.c.h.b16 %v1136
      %v1950 = vunpack.c.l.b16 %v1137
      %v1951 = vunpack.c.h.b16 %v1137
      %v1952 = vunpack.c.l.b16 %v1138
      %v1953 = vunpack.c.h.b16 %v1138
      %v1954 = vunpack.c.l.b16 %v1139
      %v1955 = vunpack.c.h.b16 %v1139
      %v1956 = vunpack.c.l.b16 %v1140
      %v1957 = vunpack.c.h.b16 %v1140
      %v1958 = vunpack.c.l.b16 %v1141
      %v1959 = vunpack.c.h.b16 %v1141
      %v1960 = vunpack.c.l.b16 %v1142
      %v1961 = vunpack.c.h.b16 %v1142
      %v1962 = vunpack.c.l.b16 %v1143
      %v1963 = vunpack.c.h.b16 %v1143
      %v1964 = vunpack.c.l.b16 %v1144
      %v1965 = vunpack.c.h.b16 %v1144
      %v1966 = vunpack.c.l.b16 %v1145
      %v1967 = vunpack.c.h.b16 %v1145
      %v1968 = vunpack.c.l.b16 %v1146
      %v1969 = vunpack.c.h.b16 %v1146
      %v1970 = vunpack.c.l.b16 %v1147
      %v1971 = vunpack.c.h.b16 %v1147
      %v1972 = vunpack.c.l.b16 %v1148
      %v1973 = vunpack.c.h.b16 %v1148
      %v1974 = vunpack.c.l.b16 %v1149
      %v1975 = vunpack.c.h.b16 %v1149
      %v1976 = vunpack.c.l.b16 %v1150
      %v1977 = vunpack.c.h.b16 %v1150
      %v1978 = vunpack.c.l.b16 %v1151
      %v1979 = vunpack.c.h.b16 %v1151
      %v1980 = vunpack.c.l.b16 %v1152
      %v1981 = vunpack.c.h.b16 %v1152
      %v1982 = vunpack.c.l.b16 %v1153
      %v1983 = vunpack.c.h.b16 %v1153
      %v1984 = vunpack.c.l.b16 %v1154
      %v1985 = vunpack.c.h.b16 %v1154
      %v1986 = vunpack.c.l.b16 %v1155
      %v1987 = vunpack.c.h.b16 %v1155
      %v1988 = vunpack.c.l.b16 %v1156
      %v1989 = vunpack.c.h.b16 %v1156
      %v1990 = vunpack.c.l.b16 %v1157
      %v1991 = vunpack.c.h.b16 %v1157
      %v1992 = vunpack.c.l.b16 %v1158
      %v1993 = vunpack.c.h.b16 %v1158
      %v1994 = vunpack.c.l.b16 %v1159
      %v1995 = vunpack.c.h.b16 %v1159
      %v1996 = vunpack.c.l.b16 %v1160
      %v1997 = vunpack.c.h.b16 %v1160
      %v1998 = vunpack.c.l.b16 %v1161
      %v1999 = vunpack.c.h.b16 %v1161
      %v2000 = vunpack.c.l.b16 %v1162
      %v2001 = vunpack.c.h.b16 %v1162
      %v2002 = vunpack.c.l.b16 %v1163
      %v2003 = vunpack.c.h.b16 %v1163
      %v2004 = vunpack.c.l.b16 %v1164
      %v2005 = vunpack.c.h.b16 %v1164
      %v2006 = vunpack.c.l.b16 %v1165
      %v2007 = vunpack.c.h.b16 %v1165
      %v2008 = vunpack.c.l.b16 %v1166
      %v2009 = vunpack.c.h.b16 %v1166
      %v2010 = vunpack.c.l.b16 %v1167
      %v2011 = vunpack.c.h.b16 %v1167
      %v2012 = vunpack.c.l.b16 %v1168
      %v2013 = vunpack.c.h.b16 %v1168
      %v2014 = vunpack.c.l.b16 %v1169
      %v2015 = vunpack.c.h.b16 %v1169
      %v2016 = vunpack.c.l.b16 %v1170
      %v2017 = vunpack.c.h.b16 %v1170
      %v2018 = vunpack.c.l.b16 %v1171
      %v2019 = vunpack.c.h.b16 %v1171
      %v2020 = vunpack.c.l.b16 %v1172
      %v2021 = vunpack.c.h.b16 %v1172
      %v2022 = vunpack.c.l.b16 %v1173
      %v2023 = vunpack.c.h.b16 %v1173
      %v2024 = vunpack.c.l.b16 %v1174
      %v2025 = vunpack.c.h.b16 %v1174
      %v2026 = vunpack.c.l.b16 %v1175
      %v2027 = vunpack.c.h.b16 %v1175
      %v2028 = vunpack.c.l.b16 %v1176
      %v2029 = vunpack.c.h.b16 %v1176
      %v2030 = vunpack.c.l.b16 %v1177
      %v2031 = vunpack.c.h.b16 %v1177
      %v2032 = vunpack.c.l.b16 %v1178
      %v2033 = vunpack.c.h.b16 %v1178
      %v2034 = vunpack.c.l.b16 %v1179
      %v2035 = vunpack.c.h.b16 %v1179
      %v2036 = vunpack.c.l.b16 %v1180
      %v2037 = vunpack.c.h.b16 %v1180
      %v2038 = vunpack.c.l.b16 %v1181
      %v2039 = vunpack.c.h.b16 %v1181
      %v2040 = vunpack.c.l.b16 %v1182
      %v2041 = vunpack.c.h.b16 %v1182
      %v2042 = vunpack.c.l.b16 %v1183
      %v2043 = vunpack.c.h.b16 %v1183
      %v2044 = vunpack.c.l.b16 %v1184
      %v2045 = vunpack.c.h.b16 %v1184
      %v2046 = vunpack.c.l.b16 %v1185
      %v2047 = vunpack.c.h.b16 %v1185
      %v2048 = vunpack.c.l.b16 %v1186
      %v2049 = vunpack.c.h.b16 %v1186
      %v2050 = vunpack.c.l.b16 %v1187
      %v2051 = vunpack.c.h.b16 %v1187
      %v2052 = vpack.c.b16 %v1480, %v1476
      %v2053 = vpack.c.b16 %v1481, %v1477
      %v2054 = vpack.c.b16 %v1482, %v1478
      %v2055 = vpack.c.b16 %v1483, %v1479
      %v2056 = vpack.c.b16 %v1488, %v1484
      %v2057 = vpack.c.b16 %v1489, %v1485
      %v2058 = vpack.c.b16 %v1490, %v1486
      %v2059 = vpack.c.b16 %v1491, %v1487
      %v2060 = vpack.c.b16 %v1496, %v1492
      %v2061 = vpack.c.b16 %v1497, %v1493
      %v2062 = vpack.c.b16 %v1498, %v1494
      %v2063 = vpack.c.b16 %v1499, %v1495
      %v2064 = vpack.c.b16 %v1504, %v1500
      %v2065 = vpack.c.b16 %v1505, %v1501
      %v2066 = vpack.c.b16 %v1506, %v1502
      %v2067 = vpack.c.b16 %v1507, %v1503
      %v2068 = vpack.c.b16 %v1512, %v1508
      %v2069 = vpack.c.b16 %v1513, %v1509
      %v2070 = vpack.c.b16 %v1514, %v1510
      %v2071 = vpack.c.b16 %v1515, %v1511
      %v2072 = vpack.c.b16 %v1520, %v1516
      %v2073 = vpack.c.b16 %v1521, %v1517
      %v2074 = vpack.c.b16 %v1522, %v1518
      %v2075 = vpack.c.b16 %v1523, %v1519
      %v2076 = vpack.c.b16 %v1528, %v1524
      %v2077 = vpack.c.b16 %v1529, %v1525
      %v2078 = vpack.c.b16 %v1530, %v1526
      %v2079 = vpack.c.b16 %v1531, %v1527
      %v2080 = vpack.c.b16 %v1536, %v1532
      %v2081 = vpack.c.b16 %v1537, %v1533
      %v2082 = vpack.c.b16 %v1538, %v1534
      %v2083 = vpack.c.b16 %v1539, %v1535
      %v2084 = vpack.c.b16 %v1544, %v1540
      %v2085 = vpack.c.b16 %v1545, %v1541
      %v2086 = vpack.c.b16 %v1546, %v1542
      %v2087 = vpack.c.b16 %v1547, %v1543
      %v2088 = vpack.c.b16 %v1552, %v1548
      %v2089 = vpack.c.b16 %v1553, %v1549
      %v2090 = vpack.c.b16 %v1554, %v1550
      %v2091 = vpack.c.b16 %v1555, %v1551
      %v2092 = vpack.c.b16 %v1560, %v1556
      %v2093 = vpack.c.b16 %v1561, %v1557
      %v2094 = vpack.c.b16 %v1562, %v1558
      %v2095 = vpack.c.b16 %v1563, %v1559
      %v2096 = vpack.c.b16 %v1568, %v1564
      %v2097 = vpack.c.b16 %v1569, %v1565
      %v2098 = vpack.c.b16 %v1570, %v1566
      %v2099 = vpack.c.b16 %v1571, %v1567
      %v2100 = vpack.c.b16 %v1576, %v1572
      %v2101 = vpack.c.b16 %v1577, %v1573
      %v2102 = vpack.c.b16 %v1578, %v1574
      %v2103 = vpack.c.b16 %v1579, %v1575
      %v2104 = vpack.c.b16 %v1584, %v1580
      %v2105 = vpack.c.b16 %v1585, %v1581
      %v2106 = vpack.c.b16 %v1586, %v1582
      %v2107 = vpack.c.b16 %v1587, %v1583
      %v2108 = vpack.c.b16 %v1592, %v1588
      %v2109 = vpack.c.b16 %v1593, %v1589
      %v2110 = vpack.c.b16 %v1594, %v1590
      %v2111 = vpack.c.b16 %v1595, %v1591
      %v2112 = vpack.c.b16 %v1600, %v1596
      %v2113 = vpack.c.b16 %v1601, %v1597
      %v2114 = vpack.c.b16 %v1602, %v1598
      %v2115 = vpack.c.b16 %v1603, %v1599
      %v2116 = vpack.c.b16 %v1608, %v1604
      %v2117 = vpack.c.b16 %v1609, %v1605
      %v2118 = vpack.c.b16 %v1610, %v1606
      %v2119 = vpack.c.b16 %v1611, %v1607
      %v2120 = vpack.c.b16 %v1616, %v1612
      %v2121 = vpack.c.b16 %v1617, %v1613
      %v2122 = vpack.c.b16 %v1618, %v1614
      %v2123 = vpack.c.b16 %v1619, %v1615
      %v2124 = vpack.c.b16 %v1624, %v1620
      %v2125 = vpack.c.b16 %v1625, %v1621
      %v2126 = vpack.c.b16 %v1626, %v1622
      %v2127 = vpack.c.b16 %v1627, %v1623
      %v2128 = vpack.c.b16 %v1632, %v1628
      %v2129 = vpack.c.b16 %v1633, %v1629
      %v2130 = vpack.c.b16 %v1634, %v1630
      %v2131 = vpack.c.b16 %v1635, %v1631
      %v2132 = vpack.c.b16 %v1640, %v1636
      %v2133 = vpack.c.b16 %v1641, %v1637
      %v2134 = vpack.c.b16 %v1642, %v1638
      %v2135 = vpack.c.b16 %v1643, %v1639
      %v2136 = vpack.c.b16 %v1648, %v1644
      %v2137 = vpack.c.b16 %v1649, %v1645
      %v2138 = vpack.c.b16 %v1650, %v1646
      %v2139 = vpack.c.b16 %v1651, %v1647
      %v2140 = vpack.c.b16 %v1656, %v1652
      %v2141 = vpack.c.b16 %v1657, %v1653
      %v2142 = vpack.c.b16 %v1658, %v1654
      %v2143 = vpack.c.b16 %v1659, %v1655
      %v2144 = vpack.c.b16 %v1664, %v1660
      %v2145 = vpack.c.b16 %v1665, %v1661
      %v2146 = vpack.c.b16 %v1666, %v1662
      %v2147 = vpack.c.b16 %v1667, %v1663
      %v2148 = vpack.c.b16 %v1672, %v1668
      %v2149 = vpack.c.b16 %v1673, %v1669
      %v2150 = vpack.c.b16 %v1674, %v1670
      %v2151 = vpack.c.b16 %v1675, %v1671
      %v2152 = vpack.c.b16 %v1680, %v1676
      %v2153 = vpack.c.b16 %v1681, %v1677
      %v2154 = vpack.c.b16 %v1682, %v1678
      %v2155 = vpack.c.b16 %v1683, %v1679
      %v2156 = vpack.c.b16 %v1688, %v1684
      %v2157 = vpack.c.b16 %v1689, %v1685
      %v2158 = vpack.c.b16 %v1690, %v1686
      %v2159 = vpack.c.b16 %v1691, %v1687
      %v2160 = vpack.c.b16 %v1696, %v1692
      %v2161 = vpack.c.b16 %v1697, %v1693
      %v2162 = vpack.c.b16 %v1698, %v1694
      %v2163 = vpack.c.b16 %v1699, %v1695
      %v2164 = vpack.c.b16 %v1704, %v1700
      %v2165 = vpack.c.b16 %v1705, %v1701
      %v2166 = vpack.c.b16 %v1706, %v1702
      %v2167 = vpack.c.b16 %v1707, %v1703
      %v2168 = vpack.c.b16 %v1712, %v1708
      %v2169 = vpack.c.b16 %v1713, %v1709
      %v2170 = vpack.c.b16 %v1714, %v1710
      %v2171 = vpack.c.b16 %v1715, %v1711
      %v2172 = vpack.c.b16 %v1720, %v1716
      %v2173 = vpack.c.b16 %v1721, %v1717
      %v2174 = vpack.c.b16 %v1722, %v1718
      %v2175 = vpack.c.b16 %v1723, %v1719
      %v2176 = vpack.c.b16 %v1728, %v1724
      %v2177 = vpack.c.b16 %v1729, %v1725
      %v2178 = vpack.c.b16 %v1730, %v1726
      %v2179 = vpack.c.b16 %v1731, %v1727
      %v2180 = vpack.c.b16 %v1736, %v1732
      %v2181 = vpack.c.b16 %v1737, %v1733
      %v2182 = vpack.c.b16 %v1738, %v1734
      %v2183 = vpack.c.b16 %v1739, %v1735
      %v2184 = vpack.c.b16 %v1744, %v1740
      %v2185 = vpack.c.b16 %v1745, %v1741
      %v2186 = vpack.c.b16 %v1746, %v1742
      %v2187 = vpack.c.b16 %v1747, %v1743
      %v2188 = vpack.c.b16 %v1752, %v1748
      %v2189 = vpack.c.b16 %v1753, %v1749
      %v2190 = vpack.c.b16 %v1754, %v1750
      %v2191 = vpack.c.b16 %v1755, %v1751
      %v2192 = vpack.c.b16 %v1760, %v1756
      %v2193 = vpack.c.b16 %v1761, %v1757
      %v2194 = vpack.c.b16 %v1762, %v1758
      %v2195 = vpack.c.b16 %v1763, %v1759
      %v2196 = vpack.c.b16 %v1768, %v1764
      %v2197 = vpack.c.b16 %v1769, %v1765
      %v2198 = vpack.c.b16 %v1770, %v1766
      %v2199 = vpack.c.b16 %v1771, %v1767
      %v2200 = vpack.c.b16 %v1776, %v1772
      %v2201 = vpack.c.b16 %v1777, %v1773
      %v2202 = vpack.c.b16 %v1778, %v1774
      %v2203 = vpack.c.b16 %v1779, %v1775
      %v2204 = vpack.c.b16 %v1784, %v1780
      %v2205 = vpack.c.b16 %v1785, %v1781
      %v2206 = vpack.c.b16 %v1786, %v1782
      %v2207 = vpack.c.b16 %v1787, %v1783
      %v2208 = vpack.c.b16 %v1792, %v1788
      %v2209 = vpack.c.b16 %v1793, %v1789
      %v2210 = vpack.c.b16 %v1794, %v1790
      %v2211 = vpack.c.b16 %v1795, %v1791
      %v2212 = vpack.c.b16 %v1800, %v1796
      %v2213 = vpack.c.b16 %v1801, %v1797
      %v2214 = vpack.c.b16 %v1802, %v1798
      %v2215 = vpack.c.b16 %v1803, %v1799
      %v2216 = vpack.c.b16 %v1808, %v1804
      %v2217 = vpack.c.b16 %v1809, %v1805
      %v2218 = vpack.c.b16 %v1810, %v1806
      %v2219 = vpack.c.b16 %v1811, %v1807
      %v2220 = vpack.c.b16 %v1816, %v1812
      %v2221 = vpack.c.b16 %v1817, %v1813
      %v2222 = vpack.c.b16 %v1818, %v1814
      %v2223 = vpack.c.b16 %v1819, %v1815
      %v2224 = vpack.c.b16 %v1824, %v1820
      %v2225 = vpack.c.b16 %v1825, %v1821
      %v2226 = vpack.c.b16 %v1826, %v1822
      %v2227 = vpack.c.b16 %v1827, %v1823
      %v2228 = vpack.c.b16 %v1832, %v1828
      %v2229 = vpack.c.b16 %v1833, %v1829
      %v2230 = vpack.c.b16 %v1834, %v1830
      %v2231 = vpack.c.b16 %v1835, %v1831
      %v2232 = vpack.c.b16 %v1840, %v1836
      %v2233 = vpack.c.b16 %v1841, %v1837
      %v2234 = vpack.c.b16 %v1842, %v1838
      %v2235 = vpack.c.b16 %v1843, %v1839
      %v2236 = vpack.c.b16 %v1848, %v1844
      %v2237 = vpack.c.b16 %v1849, %v1845
      %v2238 = vpack.c.b16 %v1850, %v1846
      %v2239 = vpack.c.b16 %v1851, %v1847
      %v2240 = vpack.c.b16 %v1856, %v1852
      %v2241 = vpack.c.b16 %v1857, %v1853
      %v2242 = vpack.c.b16 %v1858, %v1854
      %v2243 = vpack.c.b16 %v1859, %v1855
      %v2244 = vpack.c.b16 %v1864, %v1860
      %v2245 = vpack.c.b16 %v1865, %v1861
      %v2246 = vpack.c.b16 %v1866, %v1862
      %v2247 = vpack.c.b16 %v1867, %v1863
      %v2248 = vpack.c.b16 %v1872, %v1868
      %v2249 = vpack.c.b16 %v1873, %v1869
      %v2250 = vpack.c.b16 %v1874, %v1870
      %v2251 = vpack.c.b16 %v1875, %v1871
      %v2252 = vpack.c.b16 %v1880, %v1876
      %v2253 = vpack.c.b16 %v1881, %v1877
      %v2254 = vpack.c.b16 %v1882, %v1878
      %v2255 = vpack.c.b16 %v1883, %v1879
      %v2256 = vpack.c.b16 %v1888, %v1884
      %v2257 = vpack.c.b16 %v1889, %v1885
      %v2258 = vpack.c.b16 %v1890, %v1886
      %v2259 = vpack.c.b16 %v1891, %v1887
      %v2260 = vpack.c.b16 %v1896, %v1892
      %v2261 = vpack.c.b16 %v1897, %v1893
      %v2262 = vpack.c.b16 %v1898, %v1894
      %v2263 = vpack.c.b16 %v1899, %v1895
      %v2264 = vpack.c.b16 %v1904, %v1900
      %v2265 = vpack.c.b16 %v1905, %v1901
      %v2266 = vpack.c.b16 %v1906, %v1902
      %v2267 = vpack.c.b16 %v1907, %v1903
      %v2268 = vpack.c.b16 %v1912, %v1908
      %v2269 = vpack.c.b16 %v1913, %v1909
      %v2270 = vpack.c.b16 %v1914, %v1910
      %v2271 = vpack.c.b16 %v1915, %v1911
      %v2272 = vpack.c.b16 %v1920, %v1916
      %v2273 = vpack.c.b16 %v1921, %v1917
      %v2274 = vpack.c.b16 %v1922, %v1918
      %v2275 = vpack.c.b16 %v1923, %v1919
      %v2276 = vpack.c.b16 %v1928, %v1924
      %v2277 = vpack.c.b16 %v1929, %v1925
      %v2278 = vpack.c.b16 %v1930, %v1926
      %v2279 = vpack.c.b16 %v1931, %v1927
      %v2280 = vpack.c.b16 %v1936, %v1932
      %v2281 = vpack.c.b16 %v1937, %v1933
      %v2282 = vpack.c.b16 %v1938, %v1934
      %v2283 = vpack.c.b16 %v1939, %v1935
      %v2284 = vpack.c.b16 %v1944, %v1940
      %v2285 = vpack.c.b16 %v1945, %v1941
      %v2286 = vpack.c.b16 %v1946, %v1942
      %v2287 = vpack.c.b16 %v1947, %v1943
      %v2288 = vpack.c.b16 %v1952, %v1948
      %v2289 = vpack.c.b16 %v1953, %v1949
      %v2290 = vpack.c.b16 %v1954, %v1950
      %v2291 = vpack.c.b16 %v1955, %v1951
      %v2292 = vpack.c.b16 %v1960, %v1956
      %v2293 = vpack.c.b16 %v1961, %v1957
      %v2294 = vpack.c.b16 %v1962, %v1958
      %v2295 = vpack.c.b16 %v1963, %v1959
      %v2296 = vpack.c.b16 %v1968, %v1964
      %v2297 = vpack.c.b16 %v1969, %v1965
      %v2298 = vpack.c.b16 %v1970, %v1966
      %v2299 = vpack.c.b16 %v1971, %v1967
      %v2300 = vpack.c.b16 %v1976, %v1972
      %v2301 = vpack.c.b16 %v1977, %v1973
      %v2302 = vpack.c.b16 %v1978, %v1974
      %v2303 = vpack.c.b16 %v1979, %v1975
      %v2304 = vpack.c.b16 %v1984, %v1980
      %v2305 = vpack.c.b16 %v1985, %v1981
      %v2306 = vpack.c.b16 %v1986, %v1982
      %v2307 = vpack.c.b16 %v1987, %v1983
      %v2308 = vpack.c.b16 %v1992, %v1988
      %v2309 = vpack.c.b16 %v1993, %v1989
      %v2310 = vpack.c.b16 %v1994, %v1990
      %v2311 = vpack.c.b16 %v1995, %v1991
      %v2312 = vpack.c.b16 %v2000, %v1996
      %v2313 = vpack.c.b16 %v2001, %v1997
      %v2314 = vpack.c.b16 %v2002, %v1998
      %v2315 = vpack.c.b16 %v2003, %v1999
      %v2316 = vpack.c.b16 %v2008, %v2004
      %v2317 = vpack.c.b16 %v2009, %v2005
      %v2318 = vpack.c.b16 %v2010, %v2006
      %v2319 = vpack.c.b16 %v2011, %v2007
      %v2320 = vpack.c.b16 %v2016, %v2012
      %v2321 = vpack.c.b16 %v2017, %v2013
      %v2322 = vpack.c.b16 %v2018, %v2014
      %v2323 = vpack.c.b16 %v2019, %v2015
      %v2324 = vpack.c.b16 %v2024, %v2020
      %v2325 = vpack.c.b16 %v2025, %v2021
      %v2326 = vpack.c.b16 %v2026, %v2022
      %v2327 = vpack.c.b16 %v2027, %v2023
      %v2328 = vpack.c.b16 %v2032, %v2028
      %v2329 = vpack.c.b16 %v2033, %v2029
      %v2330 = vpack.c.b16 %v2034, %v2030
      %v2331 = vpack.c.b16 %v2035, %v2031
      %v2332 = vpack.c.b16 %v2040, %v2036
      %v2333 = vpack.c.b16 %v2041, %v2037
      %v2334 = vpack.c.b16 %v2042, %v2038
      %v2335 = vpack.c.b16 %v2043, %v2039
      %v2336 = vpack.c.b16 %v2048, %v2044
      %v2337 = vpack.c.b16 %v2049, %v2045
      %v2338 = vpack.c.b16 %v2050, %v2046
      %v2339 = vpack.c.b16 %v2051, %v2047
      %2628 = vmatprep.subr.bf16.mxu0 %v2053
      %2629 = vmatpush1.bf16.msra.mxu0 %v2052
      %2630 = vmatprep.subr.bf16.mxu0 %v2057
      %2631 = vmatpush1.bf16.msra.mxu0 %v2056
      %2632 = vmatprep.subr.bf16.mxu0 %v2061
      %2633 = vmatpush1.bf16.msra.mxu0 %v2060
      %2634 = vmatprep.subr.bf16.mxu0 %v2065
      %2635 = vmatpush1.bf16.msra.mxu0 %v2064
      %2636 = vmatprep.subr.bf16.mxu0 %v2069
      %2637 = vmatpush1.bf16.msra.mxu0 %v2068
      %2638 = vmatprep.subr.bf16.mxu0 %v2073
      %2639 = vmatpush1.bf16.msra.mxu0 %v2072
      %2640 = vmatprep.subr.bf16.mxu0 %v2077
      %2641 = vmatpush1.bf16.msra.mxu0 %v2076
      %2642 = vmatprep.subr.bf16.mxu0 %v2081
      %2643 = vmatpush1.bf16.msra.mxu0 %v2080
      %2644 = vmatprep.subr.bf16.mxu0 %v2085
      %2645 = vmatpush1.bf16.msra.mxu0 %v2084
      %2646 = vmatprep.subr.bf16.mxu0 %v2089
      %2647 = vmatpush1.bf16.msra.mxu0 %v2088
      %2648 = vmatprep.subr.bf16.mxu0 %v2093
      %2649 = vmatpush1.bf16.msra.mxu0 %v2092
      %2650 = vmatprep.subr.bf16.mxu0 %v2097
      %2651 = vmatpush1.bf16.msra.mxu0 %v2096
      %2652 = vmatprep.subr.bf16.mxu0 %v2101
      %2653 = vmatpush1.bf16.msra.mxu0 %v2100
      %2654 = vmatprep.subr.bf16.mxu0 %v2105
      %2655 = vmatpush1.bf16.msra.mxu0 %v2104
      %2656 = vmatprep.subr.bf16.mxu0 %v2109
      %2657 = vmatpush1.bf16.msra.mxu0 %v2108
      %2658 = vmatprep.subr.bf16.mxu0 %v2113
      %2659 = vmatpush1.bf16.msra.mxu0 %v2112
      %2660 = vmatprep.mubr.bf16.mxu0 %v764
      %2661 = vmatmul.mubr.bf16.gmra.mrb[0].mxu0 %v748
      %v2662 = vpop.f32.mrb[0].mxu0
      %v2663 = vadd.f32 0.0, %v2662
      %v2664 = vpop.f32.mrb[0].mxu0
      %v2665 = vadd.f32 0.0, %v2664
      %v2666 = vpop.f32.mrb[0].mxu0
      %v2667 = vadd.f32 0.0, %v2666
      %v2668 = vpop.f32.mrb[0].mxu0
      %v2669 = vadd.f32 0.0, %v2668
      %2670 = vmatprep.mubr.bf16.mxu0 %v765
      %2671 = vmatmul.mubr.bf16.gmra.mrb[0].mxu0 %v749
      %v2672 = vpop.f32.mrb[0].mxu0
      %v2673 = vadd.f32 0.0, %v2672
      %v2674 = vpop.f32.mrb[0].mxu0
      %v2675 = vadd.f32 0.0, %v2674
      %v2676 = vpop.f32.mrb[0].mxu0
      %v2677 = vadd.f32 0.0, %v2676
      %v2678 = vpop.f32.mrb[0].mxu0
      %v2679 = vadd.f32 0.0, %v2678
      %2680 = vmatprep.mubr.bf16.mxu0 %v766
      %2681 = vmatmul.mubr.bf16.gmra.mrb[0].mxu0 %v750
      %v2682 = vpop.f32.mrb[0].mxu0
      %v2683 = vadd.f32 0.0, %v2682
      %v2684 = vpop.f32.mrb[0].mxu0
      %v2685 = vadd.f32 0.0, %v2684
      %v2686 = vpop.f32.mrb[0].mxu0
      %v2687 = vadd.f32 0.0, %v2686
      %v2688 = vpop.f32.mrb[0].mxu0
      %v2689 = vadd.f32 0.0, %v2688
      %2690 = vmatprep.mubr.bf16.mxu0 %v767
      %2691 = vmatmul.mubr.bf16.gmra.mrb[0].mxu0 %v751
      %v2692 = vpop.f32.mrb[0].mxu0
      %v2693 = vadd.f32 0.0, %v2692
      %v2694 = vpop.f32.mrb[0].mxu0
      %v2695 = vadd.f32 0.0, %v2694
      %v2696 = vpop.f32.mrb[0].mxu0
      %v2697 = vadd.f32 0.0, %v2696
      %v2698 = vpop.f32.mrb[0].mxu0
      %v2699 = vadd.f32 0.0, %v2698
      %2700 = vdwg.mxu0
      %2701 = vmatprep.subr.bf16.mxu0 %v2117
      %2702 = vmatpush1.bf16.msra.mxu0 %v2116
      %2703 = vmatprep.subr.bf16.mxu0 %v2121
      %2704 = vmatpush1.bf16.msra.mxu0 %v2120
      %2705 = vmatprep.subr.bf16.mxu0 %v2125
      %2706 = vmatpush1.bf16.msra.mxu0 %v2124
      %2707 = vmatprep.subr.bf16.mxu0 %v2129
      %2708 = vmatpush1.bf16.msra.mxu0 %v2128
      %2709 = vmatprep.subr.bf16.mxu0 %v2133
      %2710 = vmatpush1.bf16.msra.mxu0 %v2132
      %2711 = vmatprep.subr.bf16.mxu0 %v2137
      %2712 = vmatpush1.bf16.msra.mxu0 %v2136
      %2713 = vmatprep.subr.bf16.mxu0 %v2141
      %2714 = vmatpush1.bf16.msra.mxu0 %v2140
      %2715 = vmatprep.subr.bf16.mxu0 %v2145
      %2716 = vmatpush1.bf16.msra.mxu0 %v2144
      %2717 = vmatprep.subr.bf16.mxu0 %v2149
      %2718 = vmatpush1.bf16.msra.mxu0 %v2148
      %2719 = vmatprep.subr.bf16.mxu0 %v2153
      %2720 = vmatpush1.bf16.msra.mxu0 %v2152
      %2721 = vmatprep.subr.bf16.mxu0 %v2157
      %2722 = vmatpush1.bf16.msra.mxu0 %v2156
      %2723 = vmatprep.subr.bf16.mxu0 %v2161
      %2724 = vmatpush1.bf16.msra.mxu0 %v2160
      %2725 = vmatprep.subr.bf16.mxu0 %v2165
      %2726 = vmatpush1.bf16.msra.mxu0 %v2164
      %2727 = vmatprep.subr.bf16.mxu0 %v2169
      %2728 = vmatpush1.bf16.msra.mxu0 %v2168
      %2729 = vmatprep.subr.bf16.mxu0 %v2173
      %2730 = vmatpush1.bf16.msra.mxu0 %v2172
      %2731 = vmatprep.subr.bf16.mxu0 %v2177
      %2732 = vmatpush1.bf16.msra.mxu0 %v2176
      %2733 = vmatprep.mubr.bf16.mxu0 %v804
      %2734 = vmatmul.mubr.bf16.gmra.mrb[0].mxu0 %v780
      %v2735 = vpop.f32.mrb[0].mxu0
      %v2736 = vadd.f32 %v2663, %v2735
      %v2737 = vpop.f32.mrb[0].mxu0
      %v2738 = vadd.f32 %v2665, %v2737
      %v2739 = vpop.f32.mrb[0].mxu0
      %v2740 = vadd.f32 %v2667, %v2739
      %v2741 = vpop.f32.mrb[0].mxu0
      %v2742 = vadd.f32 %v2669, %v2741
      %2743 = vmatprep.mubr.bf16.mxu0 %v805
      %2744 = vmatmul.mubr.bf16.gmra.mrb[0].mxu0 %v781
      %v2745 = vpop.f32.mrb[0].mxu0
      %v2746 = vadd.f32 %v2673, %v2745
      %v2747 = vpop.f32.mrb[0].mxu0
      %v2748 = vadd.f32 %v2675, %v2747
      %v2749 = vpop.f32.mrb[0].mxu0
      %v2750 = vadd.f32 %v2677, %v2749
      %v2751 = vpop.f32.mrb[0].mxu0
      %v2752 = vadd.f32 %v2679, %v2751
      %2753 = vmatprep.mubr.bf16.mxu0 %v806
      %2754 = vmatmul.mubr.bf16.gmra.mrb[0].mxu0 %v782
      %v2755 = vpop.f32.mrb[0].mxu0
      %v2756 = vadd.f32 %v2683, %v2755
      %v2757 = vpop.f32.mrb[0].mxu0
      %v2758 = vadd.f32 %v2685, %v2757
      %v2759 = vpop.f32.mrb[0].mxu0
      %v2760 = vadd.f32 %v2687, %v2759
      %v2761 = vpop.f32.mrb[0].mxu0
      %v2762 = vadd.f32 %v2689, %v2761
      %2763 = vmatprep.mubr.bf16.mxu0 %v807
      %2764 = vmatmul.mubr.bf16.gmra.mrb[0].mxu0 %v783
      %v2765 = vpop.f32.mrb[0].mxu0
      %v2766 = vadd.f32 %v2693, %v2765
      %v2767 = vpop.f32.mrb[0].mxu0
      %v2768 = vadd.f32 %v2695, %v2767
      %v2769 = vpop.f32.mrb[0].mxu0
      %v2770 = vadd.f32 %v2697, %v2769
      %v2771 = vpop.f32.mrb[0].mxu0
      %v2772 = vadd.f32 %v2699, %v2771
      %2773 = vdwg.mxu0
      %2774 = vmatprep.subr.bf16.mxu0 %v2181
      %2775 = vmatpush1.bf16.msra.mxu0 %v2180
      %2776 = vmatprep.subr.bf16.mxu0 %v2185
      %2777 = vmatpush1.bf16.msra.mxu0 %v2184
      %2778 = vmatprep.subr.bf16.mxu0 %v2189
      %2779 = vmatpush1.bf16.msra.mxu0 %v2188
      %2780 = vmatprep.subr.bf16.mxu0 %v2193
      %2781 = vmatpush1.bf16.msra.mxu0 %v2192
      %2782 = vmatprep.subr.bf16.mxu0 %v2197
      %2783 = vmatpush1.bf16.msra.mxu0 %v2196
      %2784 = vmatprep.subr.bf16.mxu0 %v2201
      %2785 = vmatpush1.bf16.msra.mxu0 %v2200
      %2786 = vmatprep.subr.bf16.mxu0 %v2205
      %2787 = vmatpush1.bf16.msra.mxu0 %v2204
      %2788 = vmatprep.subr.bf16.mxu0 %v2209
      %2789 = vmatpush1.bf16.msra.mxu0 %v2208
      %2790 = vmatprep.subr.bf16.mxu0 %v2213
      %2791 = vmatpush1.bf16.msra.mxu0 %v2212
      %2792 = vmatprep.subr.bf16.mxu0 %v2217
      %2793 = vmatpush1.bf16.msra.mxu0 %v2216
      %2794 = vmatprep.subr.bf16.mxu0 %v2221
      %2795 = vmatpush1.bf16.msra.mxu0 %v2220
      %2796 = vmatprep.subr.bf16.mxu0 %v2225
      %2797 = vmatpush1.bf16.msra.mxu0 %v2224
      %2798 = vmatprep.subr.bf16.mxu0 %v2229
      %2799 = vmatpush1.bf16.msra.mxu0 %v2228
      %2800 = vmatprep.subr.bf16.mxu0 %v2233
      %2801 = vmatpush1.bf16.msra.mxu0 %v2232
      %2802 = vmatprep.subr.bf16.mxu0 %v2237
      %2803 = vmatpush1.bf16.msra.mxu0 %v2236
      %2804 = vmatprep.subr.bf16.mxu0 %v2241
      %2805 = vmatpush1.bf16.msra.mxu0 %v2240
      %2806 = vmatprep.mubr.bf16.mxu0 %v836
      %2807 = vmatmul.mubr.bf16.gmra.mrb[0].mxu0 %v820
      %v2808 = vpop.f32.mrb[0].mxu0
      %v2809 = vadd.f32 %v2736, %v2808
      %v2810 = vpop.f32.mrb[0].mxu0
      %v2811 = vadd.f32 %v2738, %v2810
      %v2812 = vpop.f32.mrb[0].mxu0
      %v2813 = vadd.f32 %v2740, %v2812
      %v2814 = vpop.f32.mrb[0].mxu0
      %v2815 = vadd.f32 %v2742, %v2814
      %2816 = vmatprep.mubr.bf16.mxu0 %v837
      %2817 = vmatmul.mubr.bf16.gmra.mrb[0].mxu0 %v821
      %v2818 = vpop.f32.mrb[0].mxu0
      %v2819 = vadd.f32 %v2746, %v2818
      %v2820 = vpop.f32.mrb[0].mxu0
      %v2821 = vadd.f32 %v2748, %v2820
      %v2822 = vpop.f32.mrb[0].mxu0
      %v2823 = vadd.f32 %v2750, %v2822
      %v2824 = vpop.f32.mrb[0].mxu0
      %v2825 = vadd.f32 %v2752, %v2824
      %2826 = vmatprep.mubr.bf16.mxu0 %v838
      %2827 = vmatmul.mubr.bf16.gmra.mrb[0].mxu0 %v822
      %v2828 = vpop.f32.mrb[0].mxu0
      %v2829 = vadd.f32 %v2756, %v2828
      %v2830 = vpop.f32.mrb[0].mxu0
      %v2831 = vadd.f32 %v2758, %v2830
      %v2832 = vpop.f32.mrb[0].mxu0
      %v2833 = vadd.f32 %v2760, %v2832
      %v2834 = vpop.f32.mrb[0].mxu0
      %v2835 = vadd.f32 %v2762, %v2834
      %2836 = vmatprep.mubr.bf16.mxu0 %v839
      %2837 = vmatmul.mubr.bf16.gmra.mrb[0].mxu0 %v823
      %v2838 = vpop.f32.mrb[0].mxu0
      %v2839 = vadd.f32 %v2766, %v2838
      %v2840 = vpop.f32.mrb[0].mxu0
      %v2841 = vadd.f32 %v2768, %v2840
      %v2842 = vpop.f32.mrb[0].mxu0
      %v2843 = vadd.f32 %v2770, %v2842
      %v2844 = vpop.f32.mrb[0].mxu0
      %v2845 = vadd.f32 %v2772, %v2844
      %2846 = vdwg.mxu0
      %2847 = vmatprep.subr.bf16.mxu0 %v2245
      %2848 = vmatpush1.bf16.msra.mxu0 %v2244
      %2849 = vmatprep.subr.bf16.mxu0 %v2249
      %2850 = vmatpush1.bf16.msra.mxu0 %v2248
      %2851 = vmatprep.subr.bf16.mxu0 %v2253
      %2852 = vmatpush1.bf16.msra.mxu0 %v2252
      %2853 = vmatprep.subr.bf16.mxu0 %v2257
      %2854 = vmatpush1.bf16.msra.mxu0 %v2256
      %2855 = vmatprep.subr.bf16.mxu0 %v2261
      %2856 = vmatpush1.bf16.msra.mxu0 %v2260
      %2857 = vmatprep.subr.bf16.mxu0 %v2265
      %2858 = vmatpush1.bf16.msra.mxu0 %v2264
      %2859 = vmatprep.subr.bf16.mxu0 %v2269
      %2860 = vmatpush1.bf16.msra.mxu0 %v2268
      %2861 = vmatprep.subr.bf16.mxu0 %v2273
      %2862 = vmatpush1.bf16.msra.mxu0 %v2272
      %2863 = vmatprep.subr.bf16.mxu0 %v2277
      %2864 = vmatpush1.bf16.msra.mxu0 %v2276
      %2865 = vmatprep.subr.bf16.mxu0 %v2281
      %2866 = vmatpush1.bf16.msra.mxu0 %v2280
      %2867 = vmatprep.subr.bf16.mxu0 %v2285
      %2868 = vmatpush1.bf16.msra.mxu0 %v2284
      %2869 = vmatprep.subr.bf16.mxu0 %v2289
      %2870 = vmatpush1.bf16.msra.mxu0 %v2288
      %2871 = vmatprep.subr.bf16.mxu0 %v2293
      %2872 = vmatpush1.bf16.msra.mxu0 %v2292
      %2873 = vmatprep.subr.bf16.mxu0 %v2297
      %2874 = vmatpush1.bf16.msra.mxu0 %v2296
      %2875 = vmatprep.subr.bf16.mxu0 %v2301
      %2876 = vmatpush1.bf16.msra.mxu0 %v2300
      %2877 = vmatprep.subr.bf16.mxu0 %v2305
      %2878 = vmatpush1.bf16.msra.mxu0 %v2304
      %2879 = vmatprep.mubr.bf16.mxu0 %v876
      %2880 = vmatmul.mubr.bf16.gmra.mrb[0].mxu0 %v860
      %v2881 = vpop.f32.mrb[0].mxu0
      %v2882 = vadd.f32 %v2809, %v2881
      %v2883 = vpop.f32.mrb[0].mxu0
      %v2884 = vadd.f32 %v2811, %v2883
      %v2885 = vpop.f32.mrb[0].mxu0
      %v2886 = vadd.f32 %v2813, %v2885
      %v2887 = vpop.f32.mrb[0].mxu0
      %v2888 = vadd.f32 %v2815, %v2887
      %2889 = vmatprep.mubr.bf16.mxu0 %v877
      %2890 = vmatmul.mubr.bf16.gmra.mrb[0].mxu0 %v861
      %v2891 = vpop.f32.mrb[0].mxu0
      %v2892 = vadd.f32 %v2819, %v2891
      %v2893 = vpop.f32.mrb[0].mxu0
      %v2894 = vadd.f32 %v2821, %v2893
      %v2895 = vpop.f32.mrb[0].mxu0
      %v2896 = vadd.f32 %v2823, %v2895
      %v2897 = vpop.f32.mrb[0].mxu0
      %v2898 = vadd.f32 %v2825, %v2897
      %2899 = vmatprep.mubr.bf16.mxu0 %v878
      %2900 = vmatmul.mubr.bf16.gmra.mrb[0].mxu0 %v862
      %v2901 = vpop.f32.mrb[0].mxu0
      %v2902 = vadd.f32 %v2829, %v2901
      %v2903 = vpop.f32.mrb[0].mxu0
      %v2904 = vadd.f32 %v2831, %v2903
      %v2905 = vpop.f32.mrb[0].mxu0
      %v2906 = vadd.f32 %v2833, %v2905
      %v2907 = vpop.f32.mrb[0].mxu0
      %v2908 = vadd.f32 %v2835, %v2907
      %2909 = vmatprep.mubr.bf16.mxu0 %v879
      %2910 = vmatmul.mubr.bf16.gmra.mrb[0].mxu0 %v863
      %v2911 = vpop.f32.mrb[0].mxu0
      %v2912 = vadd.f32 %v2839, %v2911
      %v2913 = vpop.f32.mrb[0].mxu0
      %v2914 = vadd.f32 %v2841, %v2913
      %v2915 = vpop.f32.mrb[0].mxu0
      %v2916 = vadd.f32 %v2843, %v2915
      %v2917 = vpop.f32.mrb[0].mxu0
      %v2918 = vadd.f32 %v2845, %v2917
      %2919 = vdwg.mxu0
      %2920 = vmatprep.subr.bf16.mxu0 %v2309
      %2921 = vmatpush1.bf16.msra.mxu0 %v2308
      %2922 = vmatprep.subr.bf16.mxu0 %v2313
      %2923 = vmatpush1.bf16.msra.mxu0 %v2312
      %2924 = vmatprep.subr.bf16.mxu0 %v2317
      %2925 = vmatpush1.bf16.msra.mxu0 %v2316
      %2926 = vmatprep.subr.bf16.mxu0 %v2321
      %2927 = vmatpush1.bf16.msra.mxu0 %v2320
      %2928 = vmatprep.subr.bf16.mxu0 %v2325
      %2929 = vmatpush1.bf16.msra.mxu0 %v2324
      %2930 = vmatprep.subr.bf16.mxu0 %v2329
      %2931 = vmatpush1.bf16.msra.mxu0 %v2328
      %2932 = vmatprep.subr.bf16.mxu0 %v2333
      %2933 = vmatpush1.bf16.msra.mxu0 %v2332
      %2934 = vmatprep.subr.bf16.mxu0 %v2337
      %2935 = vmatpush1.bf16.msra.mxu0 %v2336
      %2936 = vmatprep.subr.bf16.mxu0 0
      %2937 = vmatpush1.bf16.msra.mxu0 0
      %2938 = vmatprep.subr.bf16.mxu0 0
      %2939 = vmatpush1.bf16.msra.mxu0 0
      %2940 = vmatprep.subr.bf16.mxu0 0
      %2941 = vmatpush1.bf16.msra.mxu0 0
      %2942 = vmatprep.subr.bf16.mxu0 0
      %2943 = vmatpush1.bf16.msra.mxu0 0
      %2944 = vmatprep.subr.bf16.mxu0 0
      %2945 = vmatpush1.bf16.msra.mxu0 0
      %2946 = vmatprep.subr.bf16.mxu0 0
      %2947 = vmatpush1.bf16.msra.mxu0 0
      %2948 = vmatprep.subr.bf16.mxu0 0
      %2949 = vmatpush1.bf16.msra.mxu0 0
      %2950 = vmatprep.subr.bf16.mxu0 0
      %2951 = vmatpush1.bf16.msra.mxu0 0
      %2952 = vmatprep.mubr.bf16.mxu0 0
      %2953 = vmatmul.mubr.bf16.gmra.mrb[0].mxu0 %v892
      %v2954 = vpop.f32.mrb[0].mxu0
      %v2955 = vadd.f32 %v2882, %v2954
      %v2956 = vpop.f32.mrb[0].mxu0
      %v2957 = vadd.f32 %v2884, %v2956
      %v2958 = vpop.f32.mrb[0].mxu0
      %v2959 = vadd.f32 %v2886, %v2958
      %v2960 = vpop.f32.mrb[0].mxu0
      %v2961 = vadd.f32 %v2888, %v2960
      %2962 = vmatprep.mubr.bf16.mxu0 0
      %2963 = vmatmul.mubr.bf16.gmra.mrb[0].mxu0 %v893
      %v2964 = vpop.f32.mrb[0].mxu0
      %v2965 = vadd.f32 %v2892, %v2964
      %v2966 = vpop.f32.mrb[0].mxu0
      %v2967 = vadd.f32 %v2894, %v2966
      %v2968 = vpop.f32.mrb[0].mxu0
      %v2969 = vadd.f32 %v2896, %v2968
      %v2970 = vpop.f32.mrb[0].mxu0
      %v2971 = vadd.f32 %v2898, %v2970
      %2972 = vmatprep.mubr.bf16.mxu0 0
      %2973 = vmatmul.mubr.bf16.gmra.mrb[0].mxu0 %v894
      %v2974 = vpop.f32.mrb[0].mxu0
      %v2975 = vadd.f32 %v2902, %v2974
      %v2976 = vpop.f32.mrb[0].mxu0
      %v2977 = vadd.f32 %v2904, %v2976
      %v2978 = vpop.f32.mrb[0].mxu0
      %v2979 = vadd.f32 %v2906, %v2978
      %v2980 = vpop.f32.mrb[0].mxu0
      %v2981 = vadd.f32 %v2908, %v2980
      %2982 = vmatprep.mubr.bf16.mxu0 0
      %2983 = vmatmul.mubr.bf16.gmra.mrb[0].mxu0 %v895
      %v2984 = vpop.f32.mrb[0].mxu0
      %v2985 = vadd.f32 %v2912, %v2984
      %v2986 = vpop.f32.mrb[0].mxu0
      %v2987 = vadd.f32 %v2914, %v2986
      %v2988 = vpop.f32.mrb[0].mxu0
      %v2989 = vadd.f32 %v2916, %v2988
      %v2990 = vpop.f32.mrb[0].mxu0
      %v2991 = vadd.f32 %v2918, %v2990
      %2992 = vdwg.mxu0
      %2993 = vmatprep.subr.bf16.mxu0 %v2055
      %2994 = vmatpush1.bf16.msra.mxu0 %v2054
      %2995 = vmatprep.subr.bf16.mxu0 %v2059
      %2996 = vmatpush1.bf16.msra.mxu0 %v2058
      %2997 = vmatprep.subr.bf16.mxu0 %v2063
      %2998 = vmatpush1.bf16.msra.mxu0 %v2062
      %2999 = vmatprep.subr.bf16.mxu0 %v2067
      %3000 = vmatpush1.bf16.msra.mxu0 %v2066
      %3001 = vmatprep.subr.bf16.mxu0 %v2071
      %3002 = vmatpush1.bf16.msra.mxu0 %v2070
      %3003 = vmatprep.subr.bf16.mxu0 %v2075
      %3004 = vmatpush1.bf16.msra.mxu0 %v2074
      %3005 = vmatprep.subr.bf16.mxu0 %v2079
      %3006 = vmatpush1.bf16.msra.mxu0 %v2078
      %3007 = vmatprep.subr.bf16.mxu0 %v2083
      %3008 = vmatpush1.bf16.msra.mxu0 %v2082
      %3009 = vmatprep.subr.bf16.mxu0 %v2087
      %3010 = vmatpush1.bf16.msra.mxu0 %v2086
      %3011 = vmatprep.subr.bf16.mxu0 %v2091
      %3012 = vmatpush1.bf16.msra.mxu0 %v2090
      %3013 = vmatprep.subr.bf16.mxu0 %v2095
      %3014 = vmatpush1.bf16.msra.mxu0 %v2094
      %3015 = vmatprep.subr.bf16.mxu0 %v2099
      %3016 = vmatpush1.bf16.msra.mxu0 %v2098
      %3017 = vmatprep.subr.bf16.mxu0 %v2103
      %3018 = vmatpush1.bf16.msra.mxu0 %v2102
      %3019 = vmatprep.subr.bf16.mxu0 %v2107
      %3020 = vmatpush1.bf16.msra.mxu0 %v2106
      %3021 = vmatprep.subr.bf16.mxu0 %v2111
      %3022 = vmatpush1.bf16.msra.mxu0 %v2110
      %3023 = vmatprep.subr.bf16.mxu0 %v2115
      %3024 = vmatpush1.bf16.msra.mxu0 %v2114
      %3025 = vmatprep.mubr.bf16.mxu0 %v764
      %3026 = vmatmul.mubr.bf16.gmra.mrb[0].mxu0 %v748
      %v3027 = vpop.f32.mrb[0].mxu0
      %v3028 = vadd.f32 0.0, %v3027
      %v3029 = vpop.f32.mrb[0].mxu0
      %v3030 = vadd.f32 0.0, %v3029
      %v3031 = vpop.f32.mrb[0].mxu0
      %v3032 = vadd.f32 0.0, %v3031
      %v3033 = vpop.f32.mrb[0].mxu0
      %v3034 = vadd.f32 0.0, %v3033
      %3035 = vmatprep.mubr.bf16.mxu0 %v765
      %3036 = vmatmul.mubr.bf16.gmra.mrb[0].mxu0 %v749
      %v3037 = vpop.f32.mrb[0].mxu0
      %v3038 = vadd.f32 0.0, %v3037
      %v3039 = vpop.f32.mrb[0].mxu0
      %v3040 = vadd.f32 0.0, %v3039
      %v3041 = vpop.f32.mrb[0].mxu0
      %v3042 = vadd.f32 0.0, %v3041
      %v3043 = vpop.f32.mrb[0].mxu0
      %v3044 = vadd.f32 0.0, %v3043
      %3045 = vmatprep.mubr.bf16.mxu0 %v766
      %3046 = vmatmul.mubr.bf16.gmra.mrb[0].mxu0 %v750
      %v3047 = vpop.f32.mrb[0].mxu0
      %v3048 = vadd.f32 0.0, %v3047
      %v3049 = vpop.f32.mrb[0].mxu0
      %v3050 = vadd.f32 0.0, %v3049
      %v3051 = vpop.f32.mrb[0].mxu0
      %v3052 = vadd.f32 0.0, %v3051
      %v3053 = vpop.f32.mrb[0].mxu0
      %v3054 = vadd.f32 0.0, %v3053
      %3055 = vmatprep.mubr.bf16.mxu0 %v767
      %3056 = vmatmul.mubr.bf16.gmra.mrb[0].mxu0 %v751
      %v3057 = vpop.f32.mrb[0].mxu0
      %v3058 = vadd.f32 0.0, %v3057
      %v3059 = vpop.f32.mrb[0].mxu0
      %v3060 = vadd.f32 0.0, %v3059
      %v3061 = vpop.f32.mrb[0].mxu0
      %v3062 = vadd.f32 0.0, %v3061
      %v3063 = vpop.f32.mrb[0].mxu0
      %v3064 = vadd.f32 0.0, %v3063
      %3065 = vdwg.mxu0
      %3066 = vmatprep.subr.bf16.mxu0 %v2119
      %3067 = vmatpush1.bf16.msra.mxu0 %v2118
      %3068 = vmatprep.subr.bf16.mxu0 %v2123
      %3069 = vmatpush1.bf16.msra.mxu0 %v2122
      %3070 = vmatprep.subr.bf16.mxu0 %v2127
      %3071 = vmatpush1.bf16.msra.mxu0 %v2126
      %3072 = vmatprep.subr.bf16.mxu0 %v2131
      %3073 = vmatpush1.bf16.msra.mxu0 %v2130
      %3074 = vmatprep.subr.bf16.mxu0 %v2135
      %3075 = vmatpush1.bf16.msra.mxu0 %v2134
      %3076 = vmatprep.subr.bf16.mxu0 %v2139
      %3077 = vmatpush1.bf16.msra.mxu0 %v2138
      %3078 = vmatprep.subr.bf16.mxu0 %v2143
      %3079 = vmatpush1.bf16.msra.mxu0 %v2142
      %3080 = vmatprep.subr.bf16.mxu0 %v2147
      %3081 = vmatpush1.bf16.msra.mxu0 %v2146
      %3082 = vmatprep.subr.bf16.mxu0 %v2151
      %3083 = vmatpush1.bf16.msra.mxu0 %v2150
      %3084 = vmatprep.subr.bf16.mxu0 %v2155
      %3085 = vmatpush1.bf16.msra.mxu0 %v2154
      %3086 = vmatprep.subr.bf16.mxu0 %v2159
      %3087 = vmatpush1.bf16.msra.mxu0 %v2158
      %3088 = vmatprep.subr.bf16.mxu0 %v2163
      %3089 = vmatpush1.bf16.msra.mxu0 %v2162
      %3090 = vmatprep.subr.bf16.mxu0 %v2167
      %3091 = vmatpush1.bf16.msra.mxu0 %v2166
      %3092 = vmatprep.subr.bf16.mxu0 %v2171
      %3093 = vmatpush1.bf16.msra.mxu0 %v2170
      %3094 = vmatprep.subr.bf16.mxu0 %v2175
      %3095 = vmatpush1.bf16.msra.mxu0 %v2174
      %3096 = vmatprep.subr.bf16.mxu0 %v2179
      %3097 = vmatpush1.bf16.msra.mxu0 %v2178
      %3098 = vmatprep.mubr.bf16.mxu0 %v804
      %3099 = vmatmul.mubr.bf16.gmra.mrb[0].mxu0 %v780
      %v3100 = vpop.f32.mrb[0].mxu0
      %v3101 = vadd.f32 %v3028, %v3100
      %v3102 = vpop.f32.mrb[0].mxu0
      %v3103 = vadd.f32 %v3030, %v3102
      %v3104 = vpop.f32.mrb[0].mxu0
      %v3105 = vadd.f32 %v3032, %v3104
      %v3106 = vpop.f32.mrb[0].mxu0
      %v3107 = vadd.f32 %v3034, %v3106
      %3108 = vmatprep.mubr.bf16.mxu0 %v805
      %3109 = vmatmul.mubr.bf16.gmra.mrb[0].mxu0 %v781
      %v3110 = vpop.f32.mrb[0].mxu0
      %v3111 = vadd.f32 %v3038, %v3110
      %v3112 = vpop.f32.mrb[0].mxu0
      %v3113 = vadd.f32 %v3040, %v3112
      %v3114 = vpop.f32.mrb[0].mxu0
      %v3115 = vadd.f32 %v3042, %v3114
      %v3116 = vpop.f32.mrb[0].mxu0
      %v3117 = vadd.f32 %v3044, %v3116
      %3118 = vmatprep.mubr.bf16.mxu0 %v806
      %3119 = vmatmul.mubr.bf16.gmra.mrb[0].mxu0 %v782
      %v3120 = vpop.f32.mrb[0].mxu0
      %v3121 = vadd.f32 %v3048, %v3120
      %v3122 = vpop.f32.mrb[0].mxu0
      %v3123 = vadd.f32 %v3050, %v3122
      %v3124 = vpop.f32.mrb[0].mxu0
      %v3125 = vadd.f32 %v3052, %v3124
      %v3126 = vpop.f32.mrb[0].mxu0
      %v3127 = vadd.f32 %v3054, %v3126
      %3128 = vmatprep.mubr.bf16.mxu0 %v807
      %3129 = vmatmul.mubr.bf16.gmra.mrb[0].mxu0 %v783
      %v3130 = vpop.f32.mrb[0].mxu0
      %v3131 = vadd.f32 %v3058, %v3130
      %v3132 = vpop.f32.mrb[0].mxu0
      %v3133 = vadd.f32 %v3060, %v3132
      %v3134 = vpop.f32.mrb[0].mxu0
      %v3135 = vadd.f32 %v3062, %v3134
      %v3136 = vpop.f32.mrb[0].mxu0
      %v3137 = vadd.f32 %v3064, %v3136
      %3138 = vdwg.mxu0
      %3139 = vmatprep.subr.bf16.mxu0 %v2183
      %3140 = vmatpush1.bf16.msra.mxu0 %v2182
      %3141 = vmatprep.subr.bf16.mxu0 %v2187
      %3142 = vmatpush1.bf16.msra.mxu0 %v2186
      %3143 = vmatprep.subr.bf16.mxu0 %v2191
      %3144 = vmatpush1.bf16.msra.mxu0 %v2190
      %3145 = vmatprep.subr.bf16.mxu0 %v2195
      %3146 = vmatpush1.bf16.msra.mxu0 %v2194
      %3147 = vmatprep.subr.bf16.mxu0 %v2199
      %3148 = vmatpush1.bf16.msra.mxu0 %v2198
      %3149 = vmatprep.subr.bf16.mxu0 %v2203
      %3150 = vmatpush1.bf16.msra.mxu0 %v2202
      %3151 = vmatprep.subr.bf16.mxu0 %v2207
      %3152 = vmatpush1.bf16.msra.mxu0 %v2206
      %3153 = vmatprep.subr.bf16.mxu0 %v2211
      %3154 = vmatpush1.bf16.msra.mxu0 %v2210
      %3155 = vmatprep.subr.bf16.mxu0 %v2215
      %3156 = vmatpush1.bf16.msra.mxu0 %v2214
      %3157 = vmatprep.subr.bf16.mxu0 %v2219
      %3158 = vmatpush1.bf16.msra.mxu0 %v2218
      %3159 = vmatprep.subr.bf16.mxu0 %v2223
      %3160 = vmatpush1.bf16.msra.mxu0 %v2222
      %3161 = vmatprep.subr.bf16.mxu0 %v2227
      %3162 = vmatpush1.bf16.msra.mxu0 %v2226
      %3163 = vmatprep.subr.bf16.mxu0 %v2231
      %3164 = vmatpush1.bf16.msra.mxu0 %v2230
      %3165 = vmatprep.subr.bf16.mxu0 %v2235
      %3166 = vmatpush1.bf16.msra.mxu0 %v2234
      %3167 = vmatprep.subr.bf16.mxu0 %v2239
      %3168 = vmatpush1.bf16.msra.mxu0 %v2238
      %3169 = vmatprep.subr.bf16.mxu0 %v2243
      %3170 = vmatpush1.bf16.msra.mxu0 %v2242
      %3171 = vmatprep.mubr.bf16.mxu0 %v836
      %3172 = vmatmul.mubr.bf16.gmra.mrb[0].mxu0 %v820
      %v3173 = vpop.f32.mrb[0].mxu0
      %v3174 = vadd.f32 %v3101, %v3173
      %v3175 = vpop.f32.mrb[0].mxu0
      %v3176 = vadd.f32 %v3103, %v3175
      %v3177 = vpop.f32.mrb[0].mxu0
      %v3178 = vadd.f32 %v3105, %v3177
      %v3179 = vpop.f32.mrb[0].mxu0
      %v3180 = vadd.f32 %v3107, %v3179
      %3181 = vmatprep.mubr.bf16.mxu0 %v837
      %3182 = vmatmul.mubr.bf16.gmra.mrb[0].mxu0 %v821
      %v3183 = vpop.f32.mrb[0].mxu0
      %v3184 = vadd.f32 %v3111, %v3183
      %v3185 = vpop.f32.mrb[0].mxu0
      %v3186 = vadd.f32 %v3113, %v3185
      %v3187 = vpop.f32.mrb[0].mxu0
      %v3188 = vadd.f32 %v3115, %v3187
      %v3189 = vpop.f32.mrb[0].mxu0
      %v3190 = vadd.f32 %v3117, %v3189
      %3191 = vmatprep.mubr.bf16.mxu0 %v838
      %3192 = vmatmul.mubr.bf16.gmra.mrb[0].mxu0 %v822
      %v3193 = vpop.f32.mrb[0].mxu0
      %v3194 = vadd.f32 %v3121, %v3193
      %v3195 = vpop.f32.mrb[0].mxu0
      %v3196 = vadd.f32 %v3123, %v3195
      %v3197 = vpop.f32.mrb[0].mxu0
      %v3198 = vadd.f32 %v3125, %v3197
      %v3199 = vpop.f32.mrb[0].mxu0
      %v3200 = vadd.f32 %v3127, %v3199
      %3201 = vmatprep.mubr.bf16.mxu0 %v839
      %3202 = vmatmul.mubr.bf16.gmra.mrb[0].mxu0 %v823
      %v3203 = vpop.f32.mrb[0].mxu0
      %v3204 = vadd.f32 %v3131, %v3203
      %v3205 = vpop.f32.mrb[0].mxu0
      %v3206 = vadd.f32 %v3133, %v3205
      %v3207 = vpop.f32.mrb[0].mxu0
      %v3208 = vadd.f32 %v3135, %v3207
      %v3209 = vpop.f32.mrb[0].mxu0
      %v3210 = vadd.f32 %v3137, %v3209
      %3211 = vdwg.mxu0
      %3212 = vmatprep.subr.bf16.mxu0 %v2247
      %3213 = vmatpush1.bf16.msra.mxu0 %v2246
      %3214 = vmatprep.subr.bf16.mxu0 %v2251
      %3215 = vmatpush1.bf16.msra.mxu0 %v2250
      %3216 = vmatprep.subr.bf16.mxu0 %v2255
      %3217 = vmatpush1.bf16.msra.mxu0 %v2254
      %3218 = vmatprep.subr.bf16.mxu0 %v2259
      %3219 = vmatpush1.bf16.msra.mxu0 %v2258
      %3220 = vmatprep.subr.bf16.mxu0 %v2263
      %3221 = vmatpush1.bf16.msra.mxu0 %v2262
      %3222 = vmatprep.subr.bf16.mxu0 %v2267
      %3223 = vmatpush1.bf16.msra.mxu0 %v2266
      %3224 = vmatprep.subr.bf16.mxu0 %v2271
      %3225 = vmatpush1.bf16.msra.mxu0 %v2270
      %3226 = vmatprep.subr.bf16.mxu0 %v2275
      %3227 = vmatpush1.bf16.msra.mxu0 %v2274
      %3228 = vmatprep.subr.bf16.mxu0 %v2279
      %3229 = vmatpush1.bf16.msra.mxu0 %v2278
      %3230 = vmatprep.subr.bf16.mxu0 %v2283
      %3231 = vmatpush1.bf16.msra.mxu0 %v2282
      %3232 = vmatprep.subr.bf16.mxu0 %v2287
      %3233 = vmatpush1.bf16.msra.mxu0 %v2286
      %3234 = vmatprep.subr.bf16.mxu0 %v2291
      %3235 = vmatpush1.bf16.msra.mxu0 %v2290
      %3236 = vmatprep.subr.bf16.mxu0 %v2295
      %3237 = vmatpush1.bf16.msra.mxu0 %v2294
      %3238 = vmatprep.subr.bf16.mxu0 %v2299
      %3239 = vmatpush1.bf16.msra.mxu0 %v2298
      %3240 = vmatprep.subr.bf16.mxu0 %v2303
      %3241 = vmatpush1.bf16.msra.mxu0 %v2302
      %3242 = vmatprep.subr.bf16.mxu0 %v2307
      %3243 = vmatpush1.bf16.msra.mxu0 %v2306
      %3244 = vmatprep.mubr.bf16.mxu0 %v876
      %3245 = vmatmul.mubr.bf16.gmra.mrb[0].mxu0 %v860
      %v3246 = vpop.f32.mrb[0].mxu0
      %v3247 = vadd.f32 %v3174, %v3246
      %v3248 = vpop.f32.mrb[0].mxu0
      %v3249 = vadd.f32 %v3176, %v3248
      %v3250 = vpop.f32.mrb[0].mxu0
      %v3251 = vadd.f32 %v3178, %v3250
      %v3252 = vpop.f32.mrb[0].mxu0
      %v3253 = vadd.f32 %v3180, %v3252
      %3254 = vmatprep.mubr.bf16.mxu0 %v877
      %3255 = vmatmul.mubr.bf16.gmra.mrb[0].mxu0 %v861
      %v3256 = vpop.f32.mrb[0].mxu0
      %v3257 = vadd.f32 %v3184, %v3256
      %v3258 = vpop.f32.mrb[0].mxu0
      %v3259 = vadd.f32 %v3186, %v3258
      %v3260 = vpop.f32.mrb[0].mxu0
      %v3261 = vadd.f32 %v3188, %v3260
      %v3262 = vpop.f32.mrb[0].mxu0
      %v3263 = vadd.f32 %v3190, %v3262
      %3264 = vmatprep.mubr.bf16.mxu0 %v878
      %3265 = vmatmul.mubr.bf16.gmra.mrb[0].mxu0 %v862
      %v3266 = vpop.f32.mrb[0].mxu0
      %v3267 = vadd.f32 %v3194, %v3266
      %v3268 = vpop.f32.mrb[0].mxu0
      %v3269 = vadd.f32 %v3196, %v3268
      %v3270 = vpop.f32.mrb[0].mxu0
      %v3271 = vadd.f32 %v3198, %v3270
      %v3272 = vpop.f32.mrb[0].mxu0
      %v3273 = vadd.f32 %v3200, %v3272
      %3274 = vmatprep.mubr.bf16.mxu0 %v879
      %3275 = vmatmul.mubr.bf16.gmra.mrb[0].mxu0 %v863
      %v3276 = vpop.f32.mrb[0].mxu0
      %v3277 = vadd.f32 %v3204, %v3276
      %v3278 = vpop.f32.mrb[0].mxu0
      %v3279 = vadd.f32 %v3206, %v3278
      %v3280 = vpop.f32.mrb[0].mxu0
      %v3281 = vadd.f32 %v3208, %v3280
      %v3282 = vpop.f32.mrb[0].mxu0
      %v3283 = vadd.f32 %v3210, %v3282
      %3284 = vdwg.mxu0
      %3285 = vmatprep.subr.bf16.mxu0 %v2311
      %3286 = vmatpush1.bf16.msra.mxu0 %v2310
      %3287 = vmatprep.subr.bf16.mxu0 %v2315
      %3288 = vmatpush1.bf16.msra.mxu0 %v2314
      %3289 = vmatprep.subr.bf16.mxu0 %v2319
      %3290 = vmatpush1.bf16.msra.mxu0 %v2318
      %3291 = vmatprep.subr.bf16.mxu0 %v2323
      %3292 = vmatpush1.bf16.msra.mxu0 %v2322
      %3293 = vmatprep.subr.bf16.mxu0 %v2327
      %3294 = vmatpush1.bf16.msra.mxu0 %v2326
      %3295 = vmatprep.subr.bf16.mxu0 %v2331
      %3296 = vmatpush1.bf16.msra.mxu0 %v2330
      %3297 = vmatprep.subr.bf16.mxu0 %v2335
      %3298 = vmatpush1.bf16.msra.mxu0 %v2334
      %3299 = vmatprep.subr.bf16.mxu0 %v2339
      %3300 = vmatpush1.bf16.msra.mxu0 %v2338
      %3301 = vmatprep.subr.bf16.mxu0 0
      %3302 = vmatpush1.bf16.msra.mxu0 0
      %3303 = vmatprep.subr.bf16.mxu0 0
      %3304 = vmatpush1.bf16.msra.mxu0 0
      %3305 = vmatprep.subr.bf16.mxu0 0
      %3306 = vmatpush1.bf16.msra.mxu0 0
      %3307 = vmatprep.subr.bf16.mxu0 0
      %3308 = vmatpush1.bf16.msra.mxu0 0
      %3309 = vmatprep.subr.bf16.mxu0 0
      %3310 = vmatpush1.bf16.msra.mxu0 0
      %3311 = vmatprep.subr.bf16.mxu0 0
      %3312 = vmatpush1.bf16.msra.mxu0 0
      %3313 = vmatprep.subr.bf16.mxu0 0
      %3314 = vmatpush1.bf16.msra.mxu0 0
      %3315 = vmatprep.subr.bf16.mxu0 0
      %3316 = vmatpush1.bf16.msra.mxu0 0
      %3317 = vmatprep.mubr.bf16.mxu0 0
      %3318 = vmatmul.mubr.bf16.gmra.mrb[0].mxu0 %v892
      %v3319 = vpop.f32.mrb[0].mxu0
      %v3320 = vadd.f32 %v3247, %v3319
      %v3321 = vpop.f32.mrb[0].mxu0
      %v3322 = vadd.f32 %v3249, %v3321
      %v3323 = vpop.f32.mrb[0].mxu0
      %v3324 = vadd.f32 %v3251, %v3323
      %v3325 = vpop.f32.mrb[0].mxu0
      %v3326 = vadd.f32 %v3253, %v3325
      %3327 = vmatprep.mubr.bf16.mxu0 0
      %3328 = vmatmul.mubr.bf16.gmra.mrb[0].mxu0 %v893
      %v3329 = vpop.f32.mrb[0].mxu0
      %v3330 = vadd.f32 %v3257, %v3329
      %v3331 = vpop.f32.mrb[0].mxu0
      %v3332 = vadd.f32 %v3259, %v3331
      %v3333 = vpop.f32.mrb[0].mxu0
      %v3334 = vadd.f32 %v3261, %v3333
      %v3335 = vpop.f32.mrb[0].mxu0
      %v3336 = vadd.f32 %v3263, %v3335
      %3337 = vmatprep.mubr.bf16.mxu0 0
      %3338 = vmatmul.mubr.bf16.gmra.mrb[0].mxu0 %v894
      %v3339 = vpop.f32.mrb[0].mxu0
      %v3340 = vadd.f32 %v3267, %v3339
      %v3341 = vpop.f32.mrb[0].mxu0
      %v3342 = vadd.f32 %v3269, %v3341
      %v3343 = vpop.f32.mrb[0].mxu0
      %v3344 = vadd.f32 %v3271, %v3343
      %v3345 = vpop.f32.mrb[0].mxu0
      %v3346 = vadd.f32 %v3273, %v3345
      %3347 = vmatprep.mubr.bf16.mxu0 0
      %3348 = vmatmul.mubr.bf16.gmra.mrb[0].mxu0 %v895
      %v3349 = vpop.f32.mrb[0].mxu0
      %v3350 = vadd.f32 %v3277, %v3349
      %v3351 = vpop.f32.mrb[0].mxu0
      %v3352 = vadd.f32 %v3279, %v3351
      %v3353 = vpop.f32.mrb[0].mxu0
      %v3354 = vadd.f32 %v3281, %v3353
      %v3355 = vpop.f32.mrb[0].mxu0
      %v3356 = vadd.f32 %v3283, %v3355
      %3357 = vdwg.mxu0
      %v3358 = vmax.f32 %v2955, %v2957
      %v3359 = vmax.f32 %v2959, %v2961
      %v3360 = vmax.f32 %v2965, %v2967
      %v3361 = vmax.f32 %v2969, %v2971
      %v3362 = vmax.f32 %v2975, %v2977
      %v3363 = vmax.f32 %v2979, %v2981
      %v3364 = vmax.f32 %v2985, %v2987
      %v3365 = vmax.f32 %v2989, %v2991
      %v3366 = vmax.f32 %v3320, %v3322
      %v3367 = vmax.f32 %v3324, %v3326
      %v3368 = vmax.f32 %v3330, %v3332
      %v3369 = vmax.f32 %v3334, %v3336
      %v3370 = vmax.f32 %v3340, %v3342
      %v3371 = vmax.f32 %v3344, %v3346
      %v3372 = vmax.f32 %v3350, %v3352
      %v3373 = vmax.f32 %v3354, %v3356
      %v3374 = vmax.f32 %v3358, %v3366
      %v3375 = vmax.f32 %v3359, %v3367
      %v3376 = vmax.f32 %v3360, %v3368
      %v3377 = vmax.f32 %v3361, %v3369
      %v3378 = vmax.f32 %v3362, %v3370
      %v3379 = vmax.f32 %v3363, %v3371
      %v3380 = vmax.f32 %v3364, %v3372
      %v3381 = vmax.f32 %v3365, %v3373
      %v3382 = vld [vmem:[%s2] sm:$0x1]
      %v3384 = vlaneseq
      %v3385 = vshrl.u32 %v3384, 7
      %v3386 = vsub.s32 0, %v3385
      %v3387 = vrot.slane %v3382, %v3386
      %v3389 = vadd.f32 %v3374, %v3387
      %v3390 = vadd.f32 %v3375, %v3387
      %v3391 = vadd.f32 %v3376, %v3387
      %v3392 = vadd.f32 %v3377, %v3387
      %v3393 = vadd.f32 %v3378, %v3387
      %v3394 = vadd.f32 %v3379, %v3387
      %v3395 = vadd.f32 %v3380, %v3387
      %v3396 = vadd.f32 %v3381, %v3387
      %v3397 = vmax.f32 %v3389, 0.0
      %v3398 = vmax.f32 %v3390, 0.0
      %v3399 = vmax.f32 %v3391, 0.0
      %v3400 = vmax.f32 %v3392, 0.0
      %v3401 = vmax.f32 %v3393, 0.0
      %v3402 = vmax.f32 %v3394, 0.0
      %v3403 = vmax.f32 %v3395, 0.0
      %v3404 = vmax.f32 %v3396, 0.0
      %v3405 = vpack.c.bf16 %v3398, %v3397
      %v3406 = vpack.c.bf16 %v3400, %v3399
      %v3407 = vpack.c.bf16 %v3402, %v3401
      %v3408 = vpack.c.bf16 %v3404, %v3403
      %v3413 = vunpack.c.l.b16 %v3405
      %v3414 = vunpack.c.h.b16 %v3405
      %v3415 = vunpack.c.l.b16 %v3406
      %v3416 = vunpack.c.h.b16 %v3406
      %v3417 = vunpack.c.l.b16 %v3407
      %v3418 = vunpack.c.h.b16 %v3407
      %v3419 = vunpack.c.l.b16 %v3408
      %v3420 = vunpack.c.h.b16 %v3408
      %v3421 = vpack.c.b16 %v3413, %v3413
      %v3422 = vpack.c.b16 %v3414, %v3414
      %v3423 = vpack.c.b16 %v3415, %v3415
      %v3424 = vpack.c.b16 %v3416, %v3416
      %v3425 = vpack.c.b16 %v3417, %v3417
      %v3426 = vpack.c.b16 %v3418, %v3418
      %v3427 = vpack.c.b16 %v3419, %v3419
      %v3428 = vpack.c.b16 %v3420, %v3420
      %3437 = vst [vmem:[%s170] sm:$0xf] %v3421
      %3438 = vst [vmem:[%s170 + $0x4] sm:$0xf] %v3422
      %3439 = vst [vmem:[%s170 + $0x8] sm:$0xf] %v3423
      %3440 = vst [vmem:[%s170 + $0xc] sm:$0xf] %v3424
      %3441 = vst [vmem:[%s170 + $0x10] sm:$0xf] %v3425
      %3442 = vst [vmem:[%s170 + $0x14] sm:$0xf] %v3426
      %3443 = vst [vmem:[%s170 + $0x18] sm:$0xf] %v3427
      %3444 = vst [vmem:[%s170 + $0x1c] sm:$0xf] %v3428
      %p3445 = scmp.lt.s32.totalorder %s14, 1
      %s3446 = scalar_select %p3445, %s14, 1
      %s3447 = smul.addr %s3446, 8
      %s3448 = smul.addr %s3447, 4
      %s3449 = scalar_lea.vmem %s3, %s3448
      // Predicated region
      $region33: #{lenet_forward.4} parent=31 // pred_check
        %p3450 = pneg %p100
      $region34: #{lenet_forward.4} parent=31 // pred_check_branch
        %3452 = sbr.rel (%p3450) target = $region36
      $region35: #{lenet_forward.4} parent=31 // pred_region
        _
      $region36: #{lenet_forward.4} parent=31 // pred_fallthru
        _
    $region32: #{lenet_forward.4} parent=5 // pred_fallthru
      _
    %p3453 = scmp.le.s32.totalorder 2, %s9
    // Predicated region
    $region37: #{lenet_forward.4} parent=5 // pred_check
      %p3454 = pneg %p3453
    $region38: #{lenet_forward.4} parent=5 // pred_check_branch
      %3456 = sbr.rel (%p3454) target = $region40
    $region39: #{lenet_forward.4} parent=5 // pred_region
      %s3457 = ssub.s32 %s9, 2
      // Predicated region
      $region41: #{lenet_forward.4} parent=39 // pred_check
        %p3458 = pneg %p106
      $region42: #{lenet_forward.4} parent=39 // pred_check_branch
        %3460 = sbr.rel (%p3458) target = $region44
      $region43: #{lenet_forward.4} parent=39 // pred_region
        %p3461 = scmp.lt.s32.totalorder %s15, 1
        %s3462 = scalar_select %p3461, %s15, 1
        %s3463 = smul.addr %s3462, 8
        %s3464 = smul.addr %s3463, 4
        %s3465 = scalar_lea.vmem %s3, %s3464
      $region44: #{lenet_forward.4} parent=39 // pred_fallthru
        _
    $region40: #{lenet_forward.4} parent=5 // pred_fallthru
      _
  $region6: #{lenet_forward.4} parent=0 // loop_footer
    %s13 = sadd.s32 1, %s9
  $region7: #{lenet_forward.4} parent=0 // loop_footer_branch
    %8 = sbr.rel target = $region3
  $region8: #{lenet_forward.4} parent=0 // loop_exit
    _

// kernel: lenet_forward.5
$region0: #{lenet_forward.5}
  #allocation0 [shape = 'u32[]', space=smem, size = 0x4, offset = 0x4, fixed_abs, tag = 'smem constant byte address 0x4 - core index']
  #allocation1 [shape = 'u32[144,128]{1,0:T(1,128)}', space=vmem, size = 0x12000, scoped, tag = 'internal scratch']
  %s0 = inlined_call_operand.vmem [shape: bf16[8,8192], index: 0, kind: input, shape index: {}]
  %s1 = inlined_call_operand.vmem [shape: bf16[8192,128], index: 1, kind: input, shape index: {}]
  %s2 = inlined_call_operand.vmem [shape: f32[1,128], index: 2, kind: input, shape index: {}]
  %s3 = inlined_call_operand.vmem [shape: bf16[128,128], index: 3, kind: input, shape index: {}]
  %s4 = inlined_call_operand.vmem [shape: f32[1,128], index: 4, kind: input, shape index: {}]
  %s5 = inlined_call_operand.vmem [shape: bf16[128,128], index: 5, kind: input, shape index: {}]
  %s6 = inlined_call_operand.vmem [shape: f32[1,128], index: 6, kind: input, shape index: {}]
  %s7 = inlined_call_operand.vmem [shape: f32[8,128], index: 7, kind: output, shape index: {}]
  %s8 = sld [smem:[#allocation0]]
  $region38: #{lenet_forward.5} parent=0
    _
  %s10 = ssub.s32 1, %s8
  %s11 = scalar_select 0, %s10, %s8
  // Predicated region
  $region2: #{lenet_forward.5} parent=0 // pred_check
    _
  $region3: #{lenet_forward.5} parent=0 // pred_check_branch
    %13 = sbr.rel (0) target = $region5
  $region4: #{lenet_forward.5} parent=0 // pred_region
    _
  $region5: #{lenet_forward.5} parent=0 // pred_fallthru
    _
  // Predicated region
  $region6: #{lenet_forward.5} parent=0 // pred_check
    _
  $region7: #{lenet_forward.5} parent=0 // pred_check_branch
    %15 = sbr.rel (0) target = $region9
  $region8: #{lenet_forward.5} parent=0 // pred_region
    _
  $region9: #{lenet_forward.5} parent=0 // pred_fallthru
    _
  // Predicated region
  $region10: #{lenet_forward.5} parent=0 // pred_check
    _
  $region11: #{lenet_forward.5} parent=0 // pred_check_branch
    %17 = sbr.rel (0) target = $region13
  $region12: #{lenet_forward.5} parent=0 // pred_region
    _
  $region13: #{lenet_forward.5} parent=0 // pred_fallthru
    _
  // Predicated region
  $region14: #{lenet_forward.5} parent=0 // pred_check
    _
  $region15: #{lenet_forward.5} parent=0 // pred_check_branch
    %19 = sbr.rel (0) target = $region17
  $region16: #{lenet_forward.5} parent=0 // pred_region
    _
  $region17: #{lenet_forward.5} parent=0 // pred_fallthru
    _
  // Predicated region
  $region18: #{lenet_forward.5} parent=0 // pred_check
    _
  $region19: #{lenet_forward.5} parent=0 // pred_check_branch
    %21 = sbr.rel (0) target = $region21
  $region20: #{lenet_forward.5} parent=0 // pred_region
    _
  $region21: #{lenet_forward.5} parent=0 // pred_fallthru
    _
  // Predicated region
  $region22: #{lenet_forward.5} parent=0 // pred_check
    _
  $region23: #{lenet_forward.5} parent=0 // pred_check_branch
    %23 = sbr.rel (0) target = $region25
  $region24: #{lenet_forward.5} parent=0 // pred_region
    _
  $region25: #{lenet_forward.5} parent=0 // pred_fallthru
    _
  // Predicated region
  $region26: #{lenet_forward.5} parent=0 // pred_check
    _
  $region27: #{lenet_forward.5} parent=0 // pred_check_branch
    %25 = sbr.rel (0) target = $region29
  $region28: #{lenet_forward.5} parent=0 // pred_region
    _
  $region29: #{lenet_forward.5} parent=0 // pred_fallthru
    _
  %v27 = vld [vmem:[%s0] sm:$0xff]
  %v28 = vld [vmem:[%s0 + $0x8] sm:$0xff]
  %v29 = vld [vmem:[%s0 + $0x10] sm:$0xff]
  %v30 = vld [vmem:[%s0 + $0x18] sm:$0xff]
  %v31 = vld [vmem:[%s0 + $0x20] sm:$0xff]
  %v32 = vld [vmem:[%s0 + $0x28] sm:$0xff]
  %v33 = vld [vmem:[%s0 + $0x30] sm:$0xff]
  %v34 = vld [vmem:[%s0 + $0x38] sm:$0xff]
  %v35 = vld [vmem:[%s0 + $0x40] sm:$0xff]
  %v36 = vld [vmem:[%s0 + $0x48] sm:$0xff]
  %v37 = vld [vmem:[%s0 + $0x50] sm:$0xff]
  %v38 = vld [vmem:[%s0 + $0x58] sm:$0xff]
  %v39 = vld [vmem:[%s0 + $0x60] sm:$0xff]
  %v40 = vld [vmem:[%s0 + $0x68] sm:$0xff]
  %v41 = vld [vmem:[%s0 + $0x70] sm:$0xff]
  %v42 = vld [vmem:[%s0 + $0x78] sm:$0xff]
  %v43 = vld [vmem:[%s0 + $0x80] sm:$0xff]
  %v44 = vld [vmem:[%s0 + $0x88] sm:$0xff]
  %v45 = vld [vmem:[%s0 + $0x90] sm:$0xff]
  %v46 = vld [vmem:[%s0 + $0x98] sm:$0xff]
  %v47 = vld [vmem:[%s0 + $0xa0] sm:$0xff]
  %v48 = vld [vmem:[%s0 + $0xa8] sm:$0xff]
  %v49 = vld [vmem:[%s0 + $0xb0] sm:$0xff]
  %v50 = vld [vmem:[%s0 + $0xb8] sm:$0xff]
  %v51 = vld [vmem:[%s0 + $0xc0] sm:$0xff]
  %v52 = vld [vmem:[%s0 + $0xc8] sm:$0xff]
  %v53 = vld [vmem:[%s0 + $0xd0] sm:$0xff]
  %v54 = vld [vmem:[%s0 + $0xd8] sm:$0xff]
  %v55 = vld [vmem:[%s0 + $0xe0] sm:$0xff]
  %v56 = vld [vmem:[%s0 + $0xe8] sm:$0xff]
  %v57 = vld [vmem:[%s0 + $0xf0] sm:$0xff]
  %v58 = vld [vmem:[%s0 + $0xf8] sm:$0xff]
  %v59 = vld [vmem:[%s1] sm:$0xf]
  %v60 = vld [vmem:[%s1 + $0x4] sm:$0xf]
  %v61 = vld [vmem:[%s1 + $0x8] sm:$0xf]
  %v62 = vld [vmem:[%s1 + $0xc] sm:$0xf]
  %v63 = vld [vmem:[%s1 + $0x10] sm:$0xf]
  %v64 = vld [vmem:[%s1 + $0x14] sm:$0xf]
  %v65 = vld [vmem:[%s1 + $0x18] sm:$0xf]
  %v66 = vld [vmem:[%s1 + $0x1c] sm:$0xf]
  %v67 = vld [vmem:[%s1 + $0x20] sm:$0xf]
  %v68 = vld [vmem:[%s1 + $0x24] sm:$0xf]
  %v69 = vld [vmem:[%s1 + $0x28] sm:$0xf]
  %v70 = vld [vmem:[%s1 + $0x2c] sm:$0xf]
  %v71 = vld [vmem:[%s1 + $0x30] sm:$0xf]
  %v72 = vld [vmem:[%s1 + $0x34] sm:$0xf]
  %v73 = vld [vmem:[%s1 + $0x38] sm:$0xf]
  %v74 = vld [vmem:[%s1 + $0x3c] sm:$0xf]
  %v75 = vld [vmem:[%s1 + $0x40] sm:$0xf]
  %v76 = vld [vmem:[%s1 + $0x44] sm:$0xf]
  %v77 = vld [vmem:[%s1 + $0x48] sm:$0xf]
  %v78 = vld [vmem:[%s1 + $0x4c] sm:$0xf]
  %v79 = vld [vmem:[%s1 + $0x50] sm:$0xf]
  %v80 = vld [vmem:[%s1 + $0x54] sm:$0xf]
  %v81 = vld [vmem:[%s1 + $0x58] sm:$0xf]
  %v82 = vld [vmem:[%s1 + $0x5c] sm:$0xf]
  %v83 = vld [vmem:[%s1 + $0x60] sm:$0xf]
  %v84 = vld [vmem:[%s1 + $0x64] sm:$0xf]
  %v85 = vld [vmem:[%s1 + $0x68] sm:$0xf]
  %v86 = vld [vmem:[%s1 + $0x6c] sm:$0xf]
  %v87 = vld [vmem:[%s1 + $0x70] sm:$0xf]
  %v88 = vld [vmem:[%s1 + $0x74] sm:$0xf]
  %v89 = vld [vmem:[%s1 + $0x78] sm:$0xf]
  %v90 = vld [vmem:[%s1 + $0x7c] sm:$0xf]
  %v91 = vld [vmem:[%s1 + $0x80] sm:$0xf]
  %v92 = vld [vmem:[%s1 + $0x84] sm:$0xf]
  %v93 = vld [vmem:[%s1 + $0x88] sm:$0xf]
  %v94 = vld [vmem:[%s1 + $0x8c] sm:$0xf]
  %v95 = vld [vmem:[%s1 + $0x90] sm:$0xf]
  %v96 = vld [vmem:[%s1 + $0x94] sm:$0xf]
  %v97 = vld [vmem:[%s1 + $0x98] sm:$0xf]
  %v98 = vld [vmem:[%s1 + $0x9c] sm:$0xf]
  %v99 = vld [vmem:[%s1 + $0xa0] sm:$0xf]
  %v100 = vld [vmem:[%s1 + $0xa4] sm:$0xf]
  %v101 = vld [vmem:[%s1 + $0xa8] sm:$0xf]
  %v102 = vld [vmem:[%s1 + $0xac] sm:$0xf]
  %v103 = vld [vmem:[%s1 + $0xb0] sm:$0xf]
  %v104 = vld [vmem:[%s1 + $0xb4] sm:$0xf]
  %v105 = vld [vmem:[%s1 + $0xb8] sm:$0xf]
  %v106 = vld [vmem:[%s1 + $0xbc] sm:$0xf]
  %v107 = vld [vmem:[%s1 + $0xc0] sm:$0xf]
  %v108 = vld [vmem:[%s1 + $0xc4] sm:$0xf]
  %v109 = vld [vmem:[%s1 + $0xc8] sm:$0xf]
  %v110 = vld [vmem:[%s1 + $0xcc] sm:$0xf]
  %v111 = vld [vmem:[%s1 + $0xd0] sm:$0xf]
  %v112 = vld [vmem:[%s1 + $0xd4] sm:$0xf]
  %v113 = vld [vmem:[%s1 + $0xd8] sm:$0xf]
  %v114 = vld [vmem:[%s1 + $0xdc] sm:$0xf]
  %v115 = vld [vmem:[%s1 + $0xe0] sm:$0xf]
  %v116 = vld [vmem:[%s1 + $0xe4] sm:$0xf]
  %v117 = vld [vmem:[%s1 + $0xe8] sm:$0xf]
  %v118 = vld [vmem:[%s1 + $0xec] sm:$0xf]
  %v119 = vld [vmem:[%s1 + $0xf0] sm:$0xf]
  %v120 = vld [vmem:[%s1 + $0xf4] sm:$0xf]
  %v121 = vld [vmem:[%s1 + $0xf8] sm:$0xf]
  %v122 = vld [vmem:[%s1 + $0xfc] sm:$0xf]
  %v123 = vld [vmem:[%s1 + $0x100] sm:$0xf]
  %v124 = vld [vmem:[%s1 + $0x104] sm:$0xf]
  %v125 = vld [vmem:[%s1 + $0x108] sm:$0xf]
  %v126 = vld [vmem:[%s1 + $0x10c] sm:$0xf]
  %v127 = vld [vmem:[%s1 + $0x110] sm:$0xf]
  %v128 = vld [vmem:[%s1 + $0x114] sm:$0xf]
  %v129 = vld [vmem:[%s1 + $0x118] sm:$0xf]
  %v130 = vld [vmem:[%s1 + $0x11c] sm:$0xf]
  %v131 = vld [vmem:[%s1 + $0x120] sm:$0xf]
  %v132 = vld [vmem:[%s1 + $0x124] sm:$0xf]
  %v133 = vld [vmem:[%s1 + $0x128] sm:$0xf]
  %v134 = vld [vmem:[%s1 + $0x12c] sm:$0xf]
  %v135 = vld [vmem:[%s1 + $0x130] sm:$0xf]
  %v136 = vld [vmem:[%s1 + $0x134] sm:$0xf]
  %v137 = vld [vmem:[%s1 + $0x138] sm:$0xf]
  %v138 = vld [vmem:[%s1 + $0x13c] sm:$0xf]
  %v139 = vld [vmem:[%s1 + $0x140] sm:$0xf]
  %v140 = vld [vmem:[%s1 + $0x144] sm:$0xf]
  %v141 = vld [vmem:[%s1 + $0x148] sm:$0xf]
  %v142 = vld [vmem:[%s1 + $0x14c] sm:$0xf]
  %v143 = vld [vmem:[%s1 + $0x150] sm:$0xf]
  %v144 = vld [vmem:[%s1 + $0x154] sm:$0xf]
  %v145 = vld [vmem:[%s1 + $0x158] sm:$0xf]
  %v146 = vld [vmem:[%s1 + $0x15c] sm:$0xf]
  %v147 = vld [vmem:[%s1 + $0x160] sm:$0xf]
  %v148 = vld [vmem:[%s1 + $0x164] sm:$0xf]
  %v149 = vld [vmem:[%s1 + $0x168] sm:$0xf]
  %v150 = vld [vmem:[%s1 + $0x16c] sm:$0xf]
  %v151 = vld [vmem:[%s1 + $0x170] sm:$0xf]
  %v152 = vld [vmem:[%s1 + $0x174] sm:$0xf]
  %v153 = vld [vmem:[%s1 + $0x178] sm:$0xf]
  %v154 = vld [vmem:[%s1 + $0x17c] sm:$0xf]
  %v155 = vld [vmem:[%s1 + $0x180] sm:$0xf]
  %v156 = vld [vmem:[%s1 + $0x184] sm:$0xf]
  %v157 = vld [vmem:[%s1 + $0x188] sm:$0xf]
  %v158 = vld [vmem:[%s1 + $0x18c] sm:$0xf]
  %v159 = vld [vmem:[%s1 + $0x190] sm:$0xf]
  %v160 = vld [vmem:[%s1 + $0x194] sm:$0xf]
  %v161 = vld [vmem:[%s1 + $0x198] sm:$0xf]
  %v162 = vld [vmem:[%s1 + $0x19c] sm:$0xf]
  %v163 = vld [vmem:[%s1 + $0x1a0] sm:$0xf]
  %v164 = vld [vmem:[%s1 + $0x1a4] sm:$0xf]
  %v165 = vld [vmem:[%s1 + $0x1a8] sm:$0xf]
  %v166 = vld [vmem:[%s1 + $0x1ac] sm:$0xf]
  %v167 = vld [vmem:[%s1 + $0x1b0] sm:$0xf]
  %v168 = vld [vmem:[%s1 + $0x1b4] sm:$0xf]
  %v169 = vld [vmem:[%s1 + $0x1b8] sm:$0xf]
  %v170 = vld [vmem:[%s1 + $0x1bc] sm:$0xf]
  %v171 = vld [vmem:[%s1 + $0x1c0] sm:$0xf]
  %v172 = vld [vmem:[%s1 + $0x1c4] sm:$0xf]
  %v173 = vld [vmem:[%s1 + $0x1c8] sm:$0xf]
  %v174 = vld [vmem:[%s1 + $0x1cc] sm:$0xf]
  %v175 = vld [vmem:[%s1 + $0x1d0] sm:$0xf]
  %v176 = vld [vmem:[%s1 + $0x1d4] sm:$0xf]
  %v177 = vld [vmem:[%s1 + $0x1d8] sm:$0xf]
  %v178 = vld [vmem:[%s1 + $0x1dc] sm:$0xf]
  %v179 = vld [vmem:[%s1 + $0x1e0] sm:$0xf]
  %v180 = vld [vmem:[%s1 + $0x1e4] sm:$0xf]
  %v181 = vld [vmem:[%s1 + $0x1e8] sm:$0xf]
  %v182 = vld [vmem:[%s1 + $0x1ec] sm:$0xf]
  %v183 = vld [vmem:[%s1 + $0x1f0] sm:$0xf]
  %v184 = vld [vmem:[%s1 + $0x1f4] sm:$0xf]
  %v185 = vld [vmem:[%s1 + $0x1f8] sm:$0xf]
  %v186 = vld [vmem:[%s1 + $0x1fc] sm:$0xf]
  %v187 = vld [vmem:[%s1 + $0x200] sm:$0xf]
  %v188 = vld [vmem:[%s1 + $0x204] sm:$0xf]
  %v189 = vld [vmem:[%s1 + $0x208] sm:$0xf]
  %v190 = vld [vmem:[%s1 + $0x20c] sm:$0xf]
  %v191 = vld [vmem:[%s1 + $0x210] sm:$0xf]
  %v192 = vld [vmem:[%s1 + $0x214] sm:$0xf]
  %v193 = vld [vmem:[%s1 + $0x218] sm:$0xf]
  %v194 = vld [vmem:[%s1 + $0x21c] sm:$0xf]
  %v195 = vld [vmem:[%s1 + $0x220] sm:$0xf]
  %v196 = vld [vmem:[%s1 + $0x224] sm:$0xf]
  %v197 = vld [vmem:[%s1 + $0x228] sm:$0xf]
  %v198 = vld [vmem:[%s1 + $0x22c] sm:$0xf]
  %v199 = vld [vmem:[%s1 + $0x230] sm:$0xf]
  %v200 = vld [vmem:[%s1 + $0x234] sm:$0xf]
  %v201 = vld [vmem:[%s1 + $0x238] sm:$0xf]
  %v202 = vld [vmem:[%s1 + $0x23c] sm:$0xf]
  %v203 = vld [vmem:[%s1 + $0x240] sm:$0xf]
  %v204 = vld [vmem:[%s1 + $0x244] sm:$0xf]
  %v205 = vld [vmem:[%s1 + $0x248] sm:$0xf]
  %v206 = vld [vmem:[%s1 + $0x24c] sm:$0xf]
  %v207 = vld [vmem:[%s1 + $0x250] sm:$0xf]
  %v208 = vld [vmem:[%s1 + $0x254] sm:$0xf]
  %v209 = vld [vmem:[%s1 + $0x258] sm:$0xf]
  %v210 = vld [vmem:[%s1 + $0x25c] sm:$0xf]
  %v211 = vld [vmem:[%s1 + $0x260] sm:$0xf]
  %v212 = vld [vmem:[%s1 + $0x264] sm:$0xf]
  %v213 = vld [vmem:[%s1 + $0x268] sm:$0xf]
  %v214 = vld [vmem:[%s1 + $0x26c] sm:$0xf]
  %v215 = vld [vmem:[%s1 + $0x270] sm:$0xf]
  %v216 = vld [vmem:[%s1 + $0x274] sm:$0xf]
  %v217 = vld [vmem:[%s1 + $0x278] sm:$0xf]
  %v218 = vld [vmem:[%s1 + $0x27c] sm:$0xf]
  %v219 = vld [vmem:[%s1 + $0x280] sm:$0xf]
  %v220 = vld [vmem:[%s1 + $0x284] sm:$0xf]
  %v221 = vld [vmem:[%s1 + $0x288] sm:$0xf]
  %v222 = vld [vmem:[%s1 + $0x28c] sm:$0xf]
  %v223 = vld [vmem:[%s1 + $0x290] sm:$0xf]
  %v224 = vld [vmem:[%s1 + $0x294] sm:$0xf]
  %v225 = vld [vmem:[%s1 + $0x298] sm:$0xf]
  %v226 = vld [vmem:[%s1 + $0x29c] sm:$0xf]
  %v227 = vld [vmem:[%s1 + $0x2a0] sm:$0xf]
  %v228 = vld [vmem:[%s1 + $0x2a4] sm:$0xf]
  %v229 = vld [vmem:[%s1 + $0x2a8] sm:$0xf]
  %v230 = vld [vmem:[%s1 + $0x2ac] sm:$0xf]
  %v231 = vld [vmem:[%s1 + $0x2b0] sm:$0xf]
  %v232 = vld [vmem:[%s1 + $0x2b4] sm:$0xf]
  %v233 = vld [vmem:[%s1 + $0x2b8] sm:$0xf]
  %v234 = vld [vmem:[%s1 + $0x2bc] sm:$0xf]
  %v235 = vld [vmem:[%s1 + $0x2c0] sm:$0xf]
  %v236 = vld [vmem:[%s1 + $0x2c4] sm:$0xf]
  %v237 = vld [vmem:[%s1 + $0x2c8] sm:$0xf]
  %v238 = vld [vmem:[%s1 + $0x2cc] sm:$0xf]
  %v239 = vld [vmem:[%s1 + $0x2d0] sm:$0xf]
  %v240 = vld [vmem:[%s1 + $0x2d4] sm:$0xf]
  %v241 = vld [vmem:[%s1 + $0x2d8] sm:$0xf]
  %v242 = vld [vmem:[%s1 + $0x2dc] sm:$0xf]
  %v243 = vld [vmem:[%s1 + $0x2e0] sm:$0xf]
  %v244 = vld [vmem:[%s1 + $0x2e4] sm:$0xf]
  %v245 = vld [vmem:[%s1 + $0x2e8] sm:$0xf]
  %v246 = vld [vmem:[%s1 + $0x2ec] sm:$0xf]
  %v247 = vld [vmem:[%s1 + $0x2f0] sm:$0xf]
  %v248 = vld [vmem:[%s1 + $0x2f4] sm:$0xf]
  %v249 = vld [vmem:[%s1 + $0x2f8] sm:$0xf]
  %v250 = vld [vmem:[%s1 + $0x2fc] sm:$0xf]
  %v251 = vld [vmem:[%s1 + $0x300] sm:$0xf]
  %v252 = vld [vmem:[%s1 + $0x304] sm:$0xf]
  %v253 = vld [vmem:[%s1 + $0x308] sm:$0xf]
  %v254 = vld [vmem:[%s1 + $0x30c] sm:$0xf]
  %v255 = vld [vmem:[%s1 + $0x310] sm:$0xf]
  %v256 = vld [vmem:[%s1 + $0x314] sm:$0xf]
  %v257 = vld [vmem:[%s1 + $0x318] sm:$0xf]
  %v258 = vld [vmem:[%s1 + $0x31c] sm:$0xf]
  %v259 = vld [vmem:[%s1 + $0x320] sm:$0xf]
  %v260 = vld [vmem:[%s1 + $0x324] sm:$0xf]
  %v261 = vld [vmem:[%s1 + $0x328] sm:$0xf]
  %v262 = vld [vmem:[%s1 + $0x32c] sm:$0xf]
  %v263 = vld [vmem:[%s1 + $0x330] sm:$0xf]
  %v264 = vld [vmem:[%s1 + $0x334] sm:$0xf]
  %v265 = vld [vmem:[%s1 + $0x338] sm:$0xf]
  %v266 = vld [vmem:[%s1 + $0x33c] sm:$0xf]
  %v267 = vld [vmem:[%s1 + $0x340] sm:$0xf]
  %v268 = vld [vmem:[%s1 + $0x344] sm:$0xf]
  %v269 = vld [vmem:[%s1 + $0x348] sm:$0xf]
  %v270 = vld [vmem:[%s1 + $0x34c] sm:$0xf]
  %v271 = vld [vmem:[%s1 + $0x350] sm:$0xf]
  %v272 = vld [vmem:[%s1 + $0x354] sm:$0xf]
  %v273 = vld [vmem:[%s1 + $0x358] sm:$0xf]
  %v274 = vld [vmem:[%s1 + $0x35c] sm:$0xf]
  %v275 = vld [vmem:[%s1 + $0x360] sm:$0xf]
  %v276 = vld [vmem:[%s1 + $0x364] sm:$0xf]
  %v277 = vld [vmem:[%s1 + $0x368] sm:$0xf]
  %v278 = vld [vmem:[%s1 + $0x36c] sm:$0xf]
  %v279 = vld [vmem:[%s1 + $0x370] sm:$0xf]
  %v280 = vld [vmem:[%s1 + $0x374] sm:$0xf]
  %v281 = vld [vmem:[%s1 + $0x378] sm:$0xf]
  %v282 = vld [vmem:[%s1 + $0x37c] sm:$0xf]
  %v283 = vld [vmem:[%s1 + $0x380] sm:$0xf]
  %v284 = vld [vmem:[%s1 + $0x384] sm:$0xf]
  %v285 = vld [vmem:[%s1 + $0x388] sm:$0xf]
  %v286 = vld [vmem:[%s1 + $0x38c] sm:$0xf]
  %v287 = vld [vmem:[%s1 + $0x390] sm:$0xf]
  %v288 = vld [vmem:[%s1 + $0x394] sm:$0xf]
  %v289 = vld [vmem:[%s1 + $0x398] sm:$0xf]
  %v290 = vld [vmem:[%s1 + $0x39c] sm:$0xf]
  %v291 = vld [vmem:[%s1 + $0x3a0] sm:$0xf]
  %v292 = vld [vmem:[%s1 + $0x3a4] sm:$0xf]
  %v293 = vld [vmem:[%s1 + $0x3a8] sm:$0xf]
  %v294 = vld [vmem:[%s1 + $0x3ac] sm:$0xf]
  %v295 = vld [vmem:[%s1 + $0x3b0] sm:$0xf]
  %v296 = vld [vmem:[%s1 + $0x3b4] sm:$0xf]
  %v297 = vld [vmem:[%s1 + $0x3b8] sm:$0xf]
  %v298 = vld [vmem:[%s1 + $0x3bc] sm:$0xf]
  %v299 = vld [vmem:[%s1 + $0x3c0] sm:$0xf]
  %v300 = vld [vmem:[%s1 + $0x3c4] sm:$0xf]
  %v301 = vld [vmem:[%s1 + $0x3c8] sm:$0xf]
  %v302 = vld [vmem:[%s1 + $0x3cc] sm:$0xf]
  %v303 = vld [vmem:[%s1 + $0x3d0] sm:$0xf]
  %v304 = vld [vmem:[%s1 + $0x3d4] sm:$0xf]
  %v305 = vld [vmem:[%s1 + $0x3d8] sm:$0xf]
  %v306 = vld [vmem:[%s1 + $0x3dc] sm:$0xf]
  %v307 = vld [vmem:[%s1 + $0x3e0] sm:$0xf]
  %v308 = vld [vmem:[%s1 + $0x3e4] sm:$0xf]
  %v309 = vld [vmem:[%s1 + $0x3e8] sm:$0xf]
  %v310 = vld [vmem:[%s1 + $0x3ec] sm:$0xf]
  %v311 = vld [vmem:[%s1 + $0x3f0] sm:$0xf]
  %v312 = vld [vmem:[%s1 + $0x3f4] sm:$0xf]
  %v313 = vld [vmem:[%s1 + $0x3f8] sm:$0xf]
  %v314 = vld [vmem:[%s1 + $0x3fc] sm:$0xf]
  %v315 = vld [vmem:[%s1 + $0x400] sm:$0xf]
  %v316 = vld [vmem:[%s1 + $0x404] sm:$0xf]
  %v317 = vld [vmem:[%s1 + $0x408] sm:$0xf]
  %v318 = vld [vmem:[%s1 + $0x40c] sm:$0xf]
  %v319 = vld [vmem:[%s1 + $0x410] sm:$0xf]
  %v320 = vld [vmem:[%s1 + $0x414] sm:$0xf]
  %v321 = vld [vmem:[%s1 + $0x418] sm:$0xf]
  %v322 = vld [vmem:[%s1 + $0x41c] sm:$0xf]
  %v323 = vld [vmem:[%s1 + $0x420] sm:$0xf]
  %v324 = vld [vmem:[%s1 + $0x424] sm:$0xf]
  %v325 = vld [vmem:[%s1 + $0x428] sm:$0xf]
  %v326 = vld [vmem:[%s1 + $0x42c] sm:$0xf]
  %v327 = vld [vmem:[%s1 + $0x430] sm:$0xf]
  %v328 = vld [vmem:[%s1 + $0x434] sm:$0xf]
  %v329 = vld [vmem:[%s1 + $0x438] sm:$0xf]
  %v330 = vld [vmem:[%s1 + $0x43c] sm:$0xf]
  %v331 = vld [vmem:[%s1 + $0x440] sm:$0xf]
  %v332 = vld [vmem:[%s1 + $0x444] sm:$0xf]
  %v333 = vld [vmem:[%s1 + $0x448] sm:$0xf]
  %v334 = vld [vmem:[%s1 + $0x44c] sm:$0xf]
  %v335 = vld [vmem:[%s1 + $0x450] sm:$0xf]
  %v336 = vld [vmem:[%s1 + $0x454] sm:$0xf]
  %v337 = vld [vmem:[%s1 + $0x458] sm:$0xf]
  %v338 = vld [vmem:[%s1 + $0x45c] sm:$0xf]
  %v339 = vld [vmem:[%s1 + $0x460] sm:$0xf]
  %v340 = vld [vmem:[%s1 + $0x464] sm:$0xf]
  %v341 = vld [vmem:[%s1 + $0x468] sm:$0xf]
  %v342 = vld [vmem:[%s1 + $0x46c] sm:$0xf]
  %v343 = vld [vmem:[%s1 + $0x470] sm:$0xf]
  %v344 = vld [vmem:[%s1 + $0x474] sm:$0xf]
  %v345 = vld [vmem:[%s1 + $0x478] sm:$0xf]
  %v346 = vld [vmem:[%s1 + $0x47c] sm:$0xf]
  %v347 = vld [vmem:[%s1 + $0x480] sm:$0xf]
  %v348 = vld [vmem:[%s1 + $0x484] sm:$0xf]
  %v349 = vld [vmem:[%s1 + $0x488] sm:$0xf]
  %v350 = vld [vmem:[%s1 + $0x48c] sm:$0xf]
  %v351 = vld [vmem:[%s1 + $0x490] sm:$0xf]
  %v352 = vld [vmem:[%s1 + $0x494] sm:$0xf]
  %v353 = vld [vmem:[%s1 + $0x498] sm:$0xf]
  %v354 = vld [vmem:[%s1 + $0x49c] sm:$0xf]
  %v355 = vld [vmem:[%s1 + $0x4a0] sm:$0xf]
  %v356 = vld [vmem:[%s1 + $0x4a4] sm:$0xf]
  %v357 = vld [vmem:[%s1 + $0x4a8] sm:$0xf]
  %v358 = vld [vmem:[%s1 + $0x4ac] sm:$0xf]
  %v359 = vld [vmem:[%s1 + $0x4b0] sm:$0xf]
  %v360 = vld [vmem:[%s1 + $0x4b4] sm:$0xf]
  %v361 = vld [vmem:[%s1 + $0x4b8] sm:$0xf]
  %v362 = vld [vmem:[%s1 + $0x4bc] sm:$0xf]
  %v363 = vld [vmem:[%s1 + $0x4c0] sm:$0xf]
  %v364 = vld [vmem:[%s1 + $0x4c4] sm:$0xf]
  %v365 = vld [vmem:[%s1 + $0x4c8] sm:$0xf]
  %v366 = vld [vmem:[%s1 + $0x4cc] sm:$0xf]
  %v367 = vld [vmem:[%s1 + $0x4d0] sm:$0xf]
  %v368 = vld [vmem:[%s1 + $0x4d4] sm:$0xf]
  %v369 = vld [vmem:[%s1 + $0x4d8] sm:$0xf]
  %v370 = vld [vmem:[%s1 + $0x4dc] sm:$0xf]
  %v371 = vld [vmem:[%s1 + $0x4e0] sm:$0xf]
  %v372 = vld [vmem:[%s1 + $0x4e4] sm:$0xf]
  %v373 = vld [vmem:[%s1 + $0x4e8] sm:$0xf]
  %v374 = vld [vmem:[%s1 + $0x4ec] sm:$0xf]
  %v375 = vld [vmem:[%s1 + $0x4f0] sm:$0xf]
  %v376 = vld [vmem:[%s1 + $0x4f4] sm:$0xf]
  %v377 = vld [vmem:[%s1 + $0x4f8] sm:$0xf]
  %v378 = vld [vmem:[%s1 + $0x4fc] sm:$0xf]
  %v379 = vld [vmem:[%s1 + $0x500] sm:$0xf]
  %v380 = vld [vmem:[%s1 + $0x504] sm:$0xf]
  %v381 = vld [vmem:[%s1 + $0x508] sm:$0xf]
  %v382 = vld [vmem:[%s1 + $0x50c] sm:$0xf]
  %v383 = vld [vmem:[%s1 + $0x510] sm:$0xf]
  %v384 = vld [vmem:[%s1 + $0x514] sm:$0xf]
  %v385 = vld [vmem:[%s1 + $0x518] sm:$0xf]
  %v386 = vld [vmem:[%s1 + $0x51c] sm:$0xf]
  %v387 = vld [vmem:[%s1 + $0x520] sm:$0xf]
  %v388 = vld [vmem:[%s1 + $0x524] sm:$0xf]
  %v389 = vld [vmem:[%s1 + $0x528] sm:$0xf]
  %v390 = vld [vmem:[%s1 + $0x52c] sm:$0xf]
  %v391 = vld [vmem:[%s1 + $0x530] sm:$0xf]
  %v392 = vld [vmem:[%s1 + $0x534] sm:$0xf]
  %v393 = vld [vmem:[%s1 + $0x538] sm:$0xf]
  %v394 = vld [vmem:[%s1 + $0x53c] sm:$0xf]
  %v395 = vld [vmem:[%s1 + $0x540] sm:$0xf]
  %v396 = vld [vmem:[%s1 + $0x544] sm:$0xf]
  %v397 = vld [vmem:[%s1 + $0x548] sm:$0xf]
  %v398 = vld [vmem:[%s1 + $0x54c] sm:$0xf]
  %v399 = vld [vmem:[%s1 + $0x550] sm:$0xf]
  %v400 = vld [vmem:[%s1 + $0x554] sm:$0xf]
  %v401 = vld [vmem:[%s1 + $0x558] sm:$0xf]
  %v402 = vld [vmem:[%s1 + $0x55c] sm:$0xf]
  %v403 = vld [vmem:[%s1 + $0x560] sm:$0xf]
  %v404 = vld [vmem:[%s1 + $0x564] sm:$0xf]
  %v405 = vld [vmem:[%s1 + $0x568] sm:$0xf]
  %v406 = vld [vmem:[%s1 + $0x56c] sm:$0xf]
  %v407 = vld [vmem:[%s1 + $0x570] sm:$0xf]
  %v408 = vld [vmem:[%s1 + $0x574] sm:$0xf]
  %v409 = vld [vmem:[%s1 + $0x578] sm:$0xf]
  %v410 = vld [vmem:[%s1 + $0x57c] sm:$0xf]
  %v411 = vld [vmem:[%s1 + $0x580] sm:$0xf]
  %v412 = vld [vmem:[%s1 + $0x584] sm:$0xf]
  %v413 = vld [vmem:[%s1 + $0x588] sm:$0xf]
  %v414 = vld [vmem:[%s1 + $0x58c] sm:$0xf]
  %v415 = vld [vmem:[%s1 + $0x590] sm:$0xf]
  %v416 = vld [vmem:[%s1 + $0x594] sm:$0xf]
  %v417 = vld [vmem:[%s1 + $0x598] sm:$0xf]
  %v418 = vld [vmem:[%s1 + $0x59c] sm:$0xf]
  %v419 = vld [vmem:[%s1 + $0x5a0] sm:$0xf]
  %v420 = vld [vmem:[%s1 + $0x5a4] sm:$0xf]
  %v421 = vld [vmem:[%s1 + $0x5a8] sm:$0xf]
  %v422 = vld [vmem:[%s1 + $0x5ac] sm:$0xf]
  %v423 = vld [vmem:[%s1 + $0x5b0] sm:$0xf]
  %v424 = vld [vmem:[%s1 + $0x5b4] sm:$0xf]
  %v425 = vld [vmem:[%s1 + $0x5b8] sm:$0xf]
  %v426 = vld [vmem:[%s1 + $0x5bc] sm:$0xf]
  %v427 = vld [vmem:[%s1 + $0x5c0] sm:$0xf]
  %v428 = vld [vmem:[%s1 + $0x5c4] sm:$0xf]
  %v429 = vld [vmem:[%s1 + $0x5c8] sm:$0xf]
  %v430 = vld [vmem:[%s1 + $0x5cc] sm:$0xf]
  %v431 = vld [vmem:[%s1 + $0x5d0] sm:$0xf]
  %v432 = vld [vmem:[%s1 + $0x5d4] sm:$0xf]
  %v433 = vld [vmem:[%s1 + $0x5d8] sm:$0xf]
  %v434 = vld [vmem:[%s1 + $0x5dc] sm:$0xf]
  %v435 = vld [vmem:[%s1 + $0x5e0] sm:$0xf]
  %v436 = vld [vmem:[%s1 + $0x5e4] sm:$0xf]
  %v437 = vld [vmem:[%s1 + $0x5e8] sm:$0xf]
  %v438 = vld [vmem:[%s1 + $0x5ec] sm:$0xf]
  %v439 = vld [vmem:[%s1 + $0x5f0] sm:$0xf]
  %v440 = vld [vmem:[%s1 + $0x5f4] sm:$0xf]
  %v441 = vld [vmem:[%s1 + $0x5f8] sm:$0xf]
  %v442 = vld [vmem:[%s1 + $0x5fc] sm:$0xf]
  %v443 = vld [vmem:[%s1 + $0x600] sm:$0xf]
  %v444 = vld [vmem:[%s1 + $0x604] sm:$0xf]
  %v445 = vld [vmem:[%s1 + $0x608] sm:$0xf]
  %v446 = vld [vmem:[%s1 + $0x60c] sm:$0xf]
  %v447 = vld [vmem:[%s1 + $0x610] sm:$0xf]
  %v448 = vld [vmem:[%s1 + $0x614] sm:$0xf]
  %v449 = vld [vmem:[%s1 + $0x618] sm:$0xf]
  %v450 = vld [vmem:[%s1 + $0x61c] sm:$0xf]
  %v451 = vld [vmem:[%s1 + $0x620] sm:$0xf]
  %v452 = vld [vmem:[%s1 + $0x624] sm:$0xf]
  %v453 = vld [vmem:[%s1 + $0x628] sm:$0xf]
  %v454 = vld [vmem:[%s1 + $0x62c] sm:$0xf]
  %v455 = vld [vmem:[%s1 + $0x630] sm:$0xf]
  %v456 = vld [vmem:[%s1 + $0x634] sm:$0xf]
  %v457 = vld [vmem:[%s1 + $0x638] sm:$0xf]
  %v458 = vld [vmem:[%s1 + $0x63c] sm:$0xf]
  %v459 = vld [vmem:[%s1 + $0x640] sm:$0xf]
  %v460 = vld [vmem:[%s1 + $0x644] sm:$0xf]
  %v461 = vld [vmem:[%s1 + $0x648] sm:$0xf]
  %v462 = vld [vmem:[%s1 + $0x64c] sm:$0xf]
  %v463 = vld [vmem:[%s1 + $0x650] sm:$0xf]
  %v464 = vld [vmem:[%s1 + $0x654] sm:$0xf]
  %v465 = vld [vmem:[%s1 + $0x658] sm:$0xf]
  %v466 = vld [vmem:[%s1 + $0x65c] sm:$0xf]
  %v467 = vld [vmem:[%s1 + $0x660] sm:$0xf]
  %v468 = vld [vmem:[%s1 + $0x664] sm:$0xf]
  %v469 = vld [vmem:[%s1 + $0x668] sm:$0xf]
  %v470 = vld [vmem:[%s1 + $0x66c] sm:$0xf]
  %v471 = vld [vmem:[%s1 + $0x670] sm:$0xf]
  %v472 = vld [vmem:[%s1 + $0x674] sm:$0xf]
  %v473 = vld [vmem:[%s1 + $0x678] sm:$0xf]
  %v474 = vld [vmem:[%s1 + $0x67c] sm:$0xf]
  %v475 = vld [vmem:[%s1 + $0x680] sm:$0xf]
  %v476 = vld [vmem:[%s1 + $0x684] sm:$0xf]
  %v477 = vld [vmem:[%s1 + $0x688] sm:$0xf]
  %v478 = vld [vmem:[%s1 + $0x68c] sm:$0xf]
  %v479 = vld [vmem:[%s1 + $0x690] sm:$0xf]
  %v480 = vld [vmem:[%s1 + $0x694] sm:$0xf]
  %v481 = vld [vmem:[%s1 + $0x698] sm:$0xf]
  %v482 = vld [vmem:[%s1 + $0x69c] sm:$0xf]
  %v483 = vld [vmem:[%s1 + $0x6a0] sm:$0xf]
  %v484 = vld [vmem:[%s1 + $0x6a4] sm:$0xf]
  %v485 = vld [vmem:[%s1 + $0x6a8] sm:$0xf]
  %v486 = vld [vmem:[%s1 + $0x6ac] sm:$0xf]
  %v487 = vld [vmem:[%s1 + $0x6b0] sm:$0xf]
  %v488 = vld [vmem:[%s1 + $0x6b4] sm:$0xf]
  %v489 = vld [vmem:[%s1 + $0x6b8] sm:$0xf]
  %v490 = vld [vmem:[%s1 + $0x6bc] sm:$0xf]
  %v491 = vld [vmem:[%s1 + $0x6c0] sm:$0xf]
  %v492 = vld [vmem:[%s1 + $0x6c4] sm:$0xf]
  %v493 = vld [vmem:[%s1 + $0x6c8] sm:$0xf]
  %v494 = vld [vmem:[%s1 + $0x6cc] sm:$0xf]
  %v495 = vld [vmem:[%s1 + $0x6d0] sm:$0xf]
  %v496 = vld [vmem:[%s1 + $0x6d4] sm:$0xf]
  %v497 = vld [vmem:[%s1 + $0x6d8] sm:$0xf]
  %v498 = vld [vmem:[%s1 + $0x6dc] sm:$0xf]
  %v499 = vld [vmem:[%s1 + $0x6e0] sm:$0xf]
  %v500 = vld [vmem:[%s1 + $0x6e4] sm:$0xf]
  %v501 = vld [vmem:[%s1 + $0x6e8] sm:$0xf]
  %v502 = vld [vmem:[%s1 + $0x6ec] sm:$0xf]
  %v503 = vld [vmem:[%s1 + $0x6f0] sm:$0xf]
  %v504 = vld [vmem:[%s1 + $0x6f4] sm:$0xf]
  %v505 = vld [vmem:[%s1 + $0x6f8] sm:$0xf]
  %v506 = vld [vmem:[%s1 + $0x6fc] sm:$0xf]
  %v507 = vld [vmem:[%s1 + $0x700] sm:$0xf]
  %v508 = vld [vmem:[%s1 + $0x704] sm:$0xf]
  %v509 = vld [vmem:[%s1 + $0x708] sm:$0xf]
  %v510 = vld [vmem:[%s1 + $0x70c] sm:$0xf]
  %v511 = vld [vmem:[%s1 + $0x710] sm:$0xf]
  %v512 = vld [vmem:[%s1 + $0x714] sm:$0xf]
  %v513 = vld [vmem:[%s1 + $0x718] sm:$0xf]
  %v514 = vld [vmem:[%s1 + $0x71c] sm:$0xf]
  %v515 = vld [vmem:[%s1 + $0x720] sm:$0xf]
  %v516 = vld [vmem:[%s1 + $0x724] sm:$0xf]
  %v517 = vld [vmem:[%s1 + $0x728] sm:$0xf]
  %v518 = vld [vmem:[%s1 + $0x72c] sm:$0xf]
  %v519 = vld [vmem:[%s1 + $0x730] sm:$0xf]
  %v520 = vld [vmem:[%s1 + $0x734] sm:$0xf]
  %v521 = vld [vmem:[%s1 + $0x738] sm:$0xf]
  %v522 = vld [vmem:[%s1 + $0x73c] sm:$0xf]
  %v523 = vld [vmem:[%s1 + $0x740] sm:$0xf]
  %v524 = vld [vmem:[%s1 + $0x744] sm:$0xf]
  %v525 = vld [vmem:[%s1 + $0x748] sm:$0xf]
  %v526 = vld [vmem:[%s1 + $0x74c] sm:$0xf]
  %v527 = vld [vmem:[%s1 + $0x750] sm:$0xf]
  %v528 = vld [vmem:[%s1 + $0x754] sm:$0xf]
  %v529 = vld [vmem:[%s1 + $0x758] sm:$0xf]
  %v530 = vld [vmem:[%s1 + $0x75c] sm:$0xf]
  %v531 = vld [vmem:[%s1 + $0x760] sm:$0xf]
  %v532 = vld [vmem:[%s1 + $0x764] sm:$0xf]
  %v533 = vld [vmem:[%s1 + $0x768] sm:$0xf]
  %v534 = vld [vmem:[%s1 + $0x76c] sm:$0xf]
  %v535 = vld [vmem:[%s1 + $0x770] sm:$0xf]
  %v536 = vld [vmem:[%s1 + $0x774] sm:$0xf]
  %v537 = vld [vmem:[%s1 + $0x778] sm:$0xf]
  %v538 = vld [vmem:[%s1 + $0x77c] sm:$0xf]
  %v539 = vld [vmem:[%s1 + $0x780] sm:$0xf]
  %v540 = vld [vmem:[%s1 + $0x784] sm:$0xf]
  %v541 = vld [vmem:[%s1 + $0x788] sm:$0xf]
  %v542 = vld [vmem:[%s1 + $0x78c] sm:$0xf]
  %v543 = vld [vmem:[%s1 + $0x790] sm:$0xf]
  %v544 = vld [vmem:[%s1 + $0x794] sm:$0xf]
  %v545 = vld [vmem:[%s1 + $0x798] sm:$0xf]
  %v546 = vld [vmem:[%s1 + $0x79c] sm:$0xf]
  %v547 = vld [vmem:[%s1 + $0x7a0] sm:$0xf]
  %v548 = vld [vmem:[%s1 + $0x7a4] sm:$0xf]
  %v549 = vld [vmem:[%s1 + $0x7a8] sm:$0xf]
  %v550 = vld [vmem:[%s1 + $0x7ac] sm:$0xf]
  %v551 = vld [vmem:[%s1 + $0x7b0] sm:$0xf]
  %v552 = vld [vmem:[%s1 + $0x7b4] sm:$0xf]
  %v553 = vld [vmem:[%s1 + $0x7b8] sm:$0xf]
  %v554 = vld [vmem:[%s1 + $0x7bc] sm:$0xf]
  %v555 = vld [vmem:[%s1 + $0x7c0] sm:$0xf]
  %v556 = vld [vmem:[%s1 + $0x7c4] sm:$0xf]
  %v557 = vld [vmem:[%s1 + $0x7c8] sm:$0xf]
  %v558 = vld [vmem:[%s1 + $0x7cc] sm:$0xf]
  %v559 = vld [vmem:[%s1 + $0x7d0] sm:$0xf]
  %v560 = vld [vmem:[%s1 + $0x7d4] sm:$0xf]
  %v561 = vld [vmem:[%s1 + $0x7d8] sm:$0xf]
  %v562 = vld [vmem:[%s1 + $0x7dc] sm:$0xf]
  %v563 = vld [vmem:[%s1 + $0x7e0] sm:$0xf]
  %v564 = vld [vmem:[%s1 + $0x7e4] sm:$0xf]
  %v565 = vld [vmem:[%s1 + $0x7e8] sm:$0xf]
  %v566 = vld [vmem:[%s1 + $0x7ec] sm:$0xf]
  %v567 = vld [vmem:[%s1 + $0x7f0] sm:$0xf]
  %v568 = vld [vmem:[%s1 + $0x7f4] sm:$0xf]
  %v569 = vld [vmem:[%s1 + $0x7f8] sm:$0xf]
  %v570 = vld [vmem:[%s1 + $0x7fc] sm:$0xf]
  %v571 = vld [vmem:[%s1 + $0x800] sm:$0xf]
  %v572 = vld [vmem:[%s1 + $0x804] sm:$0xf]
  %v573 = vld [vmem:[%s1 + $0x808] sm:$0xf]
  %v574 = vld [vmem:[%s1 + $0x80c] sm:$0xf]
  %v575 = vld [vmem:[%s1 + $0x810] sm:$0xf]
  %v576 = vld [vmem:[%s1 + $0x814] sm:$0xf]
  %v577 = vld [vmem:[%s1 + $0x818] sm:$0xf]
  %v578 = vld [vmem:[%s1 + $0x81c] sm:$0xf]
  %v579 = vld [vmem:[%s1 + $0x820] sm:$0xf]
  %v580 = vld [vmem:[%s1 + $0x824] sm:$0xf]
  %v581 = vld [vmem:[%s1 + $0x828] sm:$0xf]
  %v582 = vld [vmem:[%s1 + $0x82c] sm:$0xf]
  %v583 = vld [vmem:[%s1 + $0x830] sm:$0xf]
  %v584 = vld [vmem:[%s1 + $0x834] sm:$0xf]
  %v585 = vld [vmem:[%s1 + $0x838] sm:$0xf]
  %v586 = vld [vmem:[%s1 + $0x83c] sm:$0xf]
  %v587 = vld [vmem:[%s1 + $0x840] sm:$0xf]
  %v588 = vld [vmem:[%s1 + $0x844] sm:$0xf]
  %v589 = vld [vmem:[%s1 + $0x848] sm:$0xf]
  %v590 = vld [vmem:[%s1 + $0x84c] sm:$0xf]
  %v591 = vld [vmem:[%s1 + $0x850] sm:$0xf]
  %v592 = vld [vmem:[%s1 + $0x854] sm:$0xf]
  %v593 = vld [vmem:[%s1 + $0x858] sm:$0xf]
  %v594 = vld [vmem:[%s1 + $0x85c] sm:$0xf]
  %v595 = vld [vmem:[%s1 + $0x860] sm:$0xf]
  %v596 = vld [vmem:[%s1 + $0x864] sm:$0xf]
  %v597 = vld [vmem:[%s1 + $0x868] sm:$0xf]
  %v598 = vld [vmem:[%s1 + $0x86c] sm:$0xf]
  %v599 = vld [vmem:[%s1 + $0x870] sm:$0xf]
  %v600 = vld [vmem:[%s1 + $0x874] sm:$0xf]
  %v601 = vld [vmem:[%s1 + $0x878] sm:$0xf]
  %v602 = vld [vmem:[%s1 + $0x87c] sm:$0xf]
  %v603 = vld [vmem:[%s1 + $0x880] sm:$0xf]
  %v604 = vld [vmem:[%s1 + $0x884] sm:$0xf]
  %v605 = vld [vmem:[%s1 + $0x888] sm:$0xf]
  %v606 = vld [vmem:[%s1 + $0x88c] sm:$0xf]
  %v607 = vld [vmem:[%s1 + $0x890] sm:$0xf]
  %v608 = vld [vmem:[%s1 + $0x894] sm:$0xf]
  %v609 = vld [vmem:[%s1 + $0x898] sm:$0xf]
  %v610 = vld [vmem:[%s1 + $0x89c] sm:$0xf]
  %v611 = vld [vmem:[%s1 + $0x8a0] sm:$0xf]
  %v612 = vld [vmem:[%s1 + $0x8a4] sm:$0xf]
  %v613 = vld [vmem:[%s1 + $0x8a8] sm:$0xf]
  %v614 = vld [vmem:[%s1 + $0x8ac] sm:$0xf]
  %v615 = vld [vmem:[%s1 + $0x8b0] sm:$0xf]
  %v616 = vld [vmem:[%s1 + $0x8b4] sm:$0xf]
  %v617 = vld [vmem:[%s1 + $0x8b8] sm:$0xf]
  %v618 = vld [vmem:[%s1 + $0x8bc] sm:$0xf]
  %v619 = vld [vmem:[%s1 + $0x8c0] sm:$0xf]
  %v620 = vld [vmem:[%s1 + $0x8c4] sm:$0xf]
  %v621 = vld [vmem:[%s1 + $0x8c8] sm:$0xf]
  %v622 = vld [vmem:[%s1 + $0x8cc] sm:$0xf]
  %v623 = vld [vmem:[%s1 + $0x8d0] sm:$0xf]
  %v624 = vld [vmem:[%s1 + $0x8d4] sm:$0xf]
  %v625 = vld [vmem:[%s1 + $0x8d8] sm:$0xf]
  %v626 = vld [vmem:[%s1 + $0x8dc] sm:$0xf]
  %v627 = vld [vmem:[%s1 + $0x8e0] sm:$0xf]
  %v628 = vld [vmem:[%s1 + $0x8e4] sm:$0xf]
  %v629 = vld [vmem:[%s1 + $0x8e8] sm:$0xf]
  %v630 = vld [vmem:[%s1 + $0x8ec] sm:$0xf]
  %v631 = vld [vmem:[%s1 + $0x8f0] sm:$0xf]
  %v632 = vld [vmem:[%s1 + $0x8f4] sm:$0xf]
  %v633 = vld [vmem:[%s1 + $0x8f8] sm:$0xf]
  %v634 = vld [vmem:[%s1 + $0x8fc] sm:$0xf]
  %v635 = vld [vmem:[%s1 + $0x900] sm:$0xf]
  %v636 = vld [vmem:[%s1 + $0x904] sm:$0xf]
  %v637 = vld [vmem:[%s1 + $0x908] sm:$0xf]
  %v638 = vld [vmem:[%s1 + $0x90c] sm:$0xf]
  %v639 = vld [vmem:[%s1 + $0x910] sm:$0xf]
  %v640 = vld [vmem:[%s1 + $0x914] sm:$0xf]
  %v641 = vld [vmem:[%s1 + $0x918] sm:$0xf]
  %v642 = vld [vmem:[%s1 + $0x91c] sm:$0xf]
  %v643 = vld [vmem:[%s1 + $0x920] sm:$0xf]
  %v644 = vld [vmem:[%s1 + $0x924] sm:$0xf]
  %v645 = vld [vmem:[%s1 + $0x928] sm:$0xf]
  %v646 = vld [vmem:[%s1 + $0x92c] sm:$0xf]
  %v647 = vld [vmem:[%s1 + $0x930] sm:$0xf]
  %v648 = vld [vmem:[%s1 + $0x934] sm:$0xf]
  %v649 = vld [vmem:[%s1 + $0x938] sm:$0xf]
  %v650 = vld [vmem:[%s1 + $0x93c] sm:$0xf]
  %v651 = vld [vmem:[%s1 + $0x940] sm:$0xf]
  %v652 = vld [vmem:[%s1 + $0x944] sm:$0xf]
  %v653 = vld [vmem:[%s1 + $0x948] sm:$0xf]
  %v654 = vld [vmem:[%s1 + $0x94c] sm:$0xf]
  %v655 = vld [vmem:[%s1 + $0x950] sm:$0xf]
  %v656 = vld [vmem:[%s1 + $0x954] sm:$0xf]
  %v657 = vld [vmem:[%s1 + $0x958] sm:$0xf]
  %v658 = vld [vmem:[%s1 + $0x95c] sm:$0xf]
  %v659 = vld [vmem:[%s1 + $0x960] sm:$0xf]
  %v660 = vld [vmem:[%s1 + $0x964] sm:$0xf]
  %v661 = vld [vmem:[%s1 + $0x968] sm:$0xf]
  %v662 = vld [vmem:[%s1 + $0x96c] sm:$0xf]
  %v663 = vld [vmem:[%s1 + $0x970] sm:$0xf]
  %v664 = vld [vmem:[%s1 + $0x974] sm:$0xf]
  %v665 = vld [vmem:[%s1 + $0x978] sm:$0xf]
  %v666 = vld [vmem:[%s1 + $0x97c] sm:$0xf]
  %v667 = vld [vmem:[%s1 + $0x980] sm:$0xf]
  %v668 = vld [vmem:[%s1 + $0x984] sm:$0xf]
  %v669 = vld [vmem:[%s1 + $0x988] sm:$0xf]
  %v670 = vld [vmem:[%s1 + $0x98c] sm:$0xf]
  %v671 = vld [vmem:[%s1 + $0x990] sm:$0xf]
  %v672 = vld [vmem:[%s1 + $0x994] sm:$0xf]
  %v673 = vld [vmem:[%s1 + $0x998] sm:$0xf]
  %v674 = vld [vmem:[%s1 + $0x99c] sm:$0xf]
  %v675 = vld [vmem:[%s1 + $0x9a0] sm:$0xf]
  %v676 = vld [vmem:[%s1 + $0x9a4] sm:$0xf]
  %v677 = vld [vmem:[%s1 + $0x9a8] sm:$0xf]
  %v678 = vld [vmem:[%s1 + $0x9ac] sm:$0xf]
  %v679 = vld [vmem:[%s1 + $0x9b0] sm:$0xf]
  %v680 = vld [vmem:[%s1 + $0x9b4] sm:$0xf]
  %v681 = vld [vmem:[%s1 + $0x9b8] sm:$0xf]
  %v682 = vld [vmem:[%s1 + $0x9bc] sm:$0xf]
  %v683 = vld [vmem:[%s1 + $0x9c0] sm:$0xf]
  %v684 = vld [vmem:[%s1 + $0x9c4] sm:$0xf]
  %v685 = vld [vmem:[%s1 + $0x9c8] sm:$0xf]
  %v686 = vld [vmem:[%s1 + $0x9cc] sm:$0xf]
  %v687 = vld [vmem:[%s1 + $0x9d0] sm:$0xf]
  %v688 = vld [vmem:[%s1 + $0x9d4] sm:$0xf]
  %v689 = vld [vmem:[%s1 + $0x9d8] sm:$0xf]
  %v690 = vld [vmem:[%s1 + $0x9dc] sm:$0xf]
  %v691 = vld [vmem:[%s1 + $0x9e0] sm:$0xf]
  %v692 = vld [vmem:[%s1 + $0x9e4] sm:$0xf]
  %v693 = vld [vmem:[%s1 + $0x9e8] sm:$0xf]
  %v694 = vld [vmem:[%s1 + $0x9ec] sm:$0xf]
  %v695 = vld [vmem:[%s1 + $0x9f0] sm:$0xf]
  %v696 = vld [vmem:[%s1 + $0x9f4] sm:$0xf]
  %v697 = vld [vmem:[%s1 + $0x9f8] sm:$0xf]
  %v698 = vld [vmem:[%s1 + $0x9fc] sm:$0xf]
  %v699 = vld [vmem:[%s1 + $0xa00] sm:$0xf]
  %v700 = vld [vmem:[%s1 + $0xa04] sm:$0xf]
  %v701 = vld [vmem:[%s1 + $0xa08] sm:$0xf]
  %v702 = vld [vmem:[%s1 + $0xa0c] sm:$0xf]
  %v703 = vld [vmem:[%s1 + $0xa10] sm:$0xf]
  %v704 = vld [vmem:[%s1 + $0xa14] sm:$0xf]
  %v705 = vld [vmem:[%s1 + $0xa18] sm:$0xf]
  %v706 = vld [vmem:[%s1 + $0xa1c] sm:$0xf]
  %v707 = vld [vmem:[%s1 + $0xa20] sm:$0xf]
  %v708 = vld [vmem:[%s1 + $0xa24] sm:$0xf]
  %v709 = vld [vmem:[%s1 + $0xa28] sm:$0xf]
  %v710 = vld [vmem:[%s1 + $0xa2c] sm:$0xf]
  %v711 = vld [vmem:[%s1 + $0xa30] sm:$0xf]
  %v712 = vld [vmem:[%s1 + $0xa34] sm:$0xf]
  %v713 = vld [vmem:[%s1 + $0xa38] sm:$0xf]
  %v714 = vld [vmem:[%s1 + $0xa3c] sm:$0xf]
  %v715 = vld [vmem:[%s1 + $0xa40] sm:$0xf]
  %v716 = vld [vmem:[%s1 + $0xa44] sm:$0xf]
  %v717 = vld [vmem:[%s1 + $0xa48] sm:$0xf]
  %v718 = vld [vmem:[%s1 + $0xa4c] sm:$0xf]
  %v719 = vld [vmem:[%s1 + $0xa50] sm:$0xf]
  %v720 = vld [vmem:[%s1 + $0xa54] sm:$0xf]
  %v721 = vld [vmem:[%s1 + $0xa58] sm:$0xf]
  %v722 = vld [vmem:[%s1 + $0xa5c] sm:$0xf]
  %v723 = vld [vmem:[%s1 + $0xa60] sm:$0xf]
  %v724 = vld [vmem:[%s1 + $0xa64] sm:$0xf]
  %v725 = vld [vmem:[%s1 + $0xa68] sm:$0xf]
  %v726 = vld [vmem:[%s1 + $0xa6c] sm:$0xf]
  %v727 = vld [vmem:[%s1 + $0xa70] sm:$0xf]
  %v728 = vld [vmem:[%s1 + $0xa74] sm:$0xf]
  %v729 = vld [vmem:[%s1 + $0xa78] sm:$0xf]
  %v730 = vld [vmem:[%s1 + $0xa7c] sm:$0xf]
  %v731 = vld [vmem:[%s1 + $0xa80] sm:$0xf]
  %v732 = vld [vmem:[%s1 + $0xa84] sm:$0xf]
  %v733 = vld [vmem:[%s1 + $0xa88] sm:$0xf]
  %v734 = vld [vmem:[%s1 + $0xa8c] sm:$0xf]
  %v735 = vld [vmem:[%s1 + $0xa90] sm:$0xf]
  %v736 = vld [vmem:[%s1 + $0xa94] sm:$0xf]
  %v737 = vld [vmem:[%s1 + $0xa98] sm:$0xf]
  %v738 = vld [vmem:[%s1 + $0xa9c] sm:$0xf]
  %v739 = vld [vmem:[%s1 + $0xaa0] sm:$0xf]
  %v740 = vld [vmem:[%s1 + $0xaa4] sm:$0xf]
  %v741 = vld [vmem:[%s1 + $0xaa8] sm:$0xf]
  %v742 = vld [vmem:[%s1 + $0xaac] sm:$0xf]
  %v743 = vld [vmem:[%s1 + $0xab0] sm:$0xf]
  %v744 = vld [vmem:[%s1 + $0xab4] sm:$0xf]
  %v745 = vld [vmem:[%s1 + $0xab8] sm:$0xf]
  %v746 = vld [vmem:[%s1 + $0xabc] sm:$0xf]
  %v747 = vld [vmem:[%s1 + $0xac0] sm:$0xf]
  %v748 = vld [vmem:[%s1 + $0xac4] sm:$0xf]
  %v749 = vld [vmem:[%s1 + $0xac8] sm:$0xf]
  %v750 = vld [vmem:[%s1 + $0xacc] sm:$0xf]
  %v751 = vld [vmem:[%s1 + $0xad0] sm:$0xf]
  %v752 = vld [vmem:[%s1 + $0xad4] sm:$0xf]
  %v753 = vld [vmem:[%s1 + $0xad8] sm:$0xf]
  %v754 = vld [vmem:[%s1 + $0xadc] sm:$0xf]
  %v755 = vld [vmem:[%s1 + $0xae0] sm:$0xf]
  %v756 = vld [vmem:[%s1 + $0xae4] sm:$0xf]
  %v757 = vld [vmem:[%s1 + $0xae8] sm:$0xf]
  %v758 = vld [vmem:[%s1 + $0xaec] sm:$0xf]
  %v759 = vld [vmem:[%s1 + $0xaf0] sm:$0xf]
  %v760 = vld [vmem:[%s1 + $0xaf4] sm:$0xf]
  %v761 = vld [vmem:[%s1 + $0xaf8] sm:$0xf]
  %v762 = vld [vmem:[%s1 + $0xafc] sm:$0xf]
  %v763 = vld [vmem:[%s1 + $0xb00] sm:$0xf]
  %v764 = vld [vmem:[%s1 + $0xb04] sm:$0xf]
  %v765 = vld [vmem:[%s1 + $0xb08] sm:$0xf]
  %v766 = vld [vmem:[%s1 + $0xb0c] sm:$0xf]
  %v767 = vld [vmem:[%s1 + $0xb10] sm:$0xf]
  %v768 = vld [vmem:[%s1 + $0xb14] sm:$0xf]
  %v769 = vld [vmem:[%s1 + $0xb18] sm:$0xf]
  %v770 = vld [vmem:[%s1 + $0xb1c] sm:$0xf]
  %v771 = vld [vmem:[%s1 + $0xb20] sm:$0xf]
  %v772 = vld [vmem:[%s1 + $0xb24] sm:$0xf]
  %v773 = vld [vmem:[%s1 + $0xb28] sm:$0xf]
  %v774 = vld [vmem:[%s1 + $0xb2c] sm:$0xf]
  %v775 = vld [vmem:[%s1 + $0xb30] sm:$0xf]
  %v776 = vld [vmem:[%s1 + $0xb34] sm:$0xf]
  %v777 = vld [vmem:[%s1 + $0xb38] sm:$0xf]
  %v778 = vld [vmem:[%s1 + $0xb3c] sm:$0xf]
  %v779 = vld [vmem:[%s1 + $0xb40] sm:$0xf]
  %v780 = vld [vmem:[%s1 + $0xb44] sm:$0xf]
  %v781 = vld [vmem:[%s1 + $0xb48] sm:$0xf]
  %v782 = vld [vmem:[%s1 + $0xb4c] sm:$0xf]
  %v783 = vld [vmem:[%s1 + $0xb50] sm:$0xf]
  %v784 = vld [vmem:[%s1 + $0xb54] sm:$0xf]
  %v785 = vld [vmem:[%s1 + $0xb58] sm:$0xf]
  %v786 = vld [vmem:[%s1 + $0xb5c] sm:$0xf]
  %v787 = vld [vmem:[%s1 + $0xb60] sm:$0xf]
  %v788 = vld [vmem:[%s1 + $0xb64] sm:$0xf]
  %v789 = vld [vmem:[%s1 + $0xb68] sm:$0xf]
  %v790 = vld [vmem:[%s1 + $0xb6c] sm:$0xf]
  %v791 = vld [vmem:[%s1 + $0xb70] sm:$0xf]
  %v792 = vld [vmem:[%s1 + $0xb74] sm:$0xf]
  %v793 = vld [vmem:[%s1 + $0xb78] sm:$0xf]
  %v794 = vld [vmem:[%s1 + $0xb7c] sm:$0xf]
  %v795 = vld [vmem:[%s1 + $0xb80] sm:$0xf]
  %v796 = vld [vmem:[%s1 + $0xb84] sm:$0xf]
  %v797 = vld [vmem:[%s1 + $0xb88] sm:$0xf]
  %v798 = vld [vmem:[%s1 + $0xb8c] sm:$0xf]
  %v799 = vld [vmem:[%s1 + $0xb90] sm:$0xf]
  %v800 = vld [vmem:[%s1 + $0xb94] sm:$0xf]
  %v801 = vld [vmem:[%s1 + $0xb98] sm:$0xf]
  %v802 = vld [vmem:[%s1 + $0xb9c] sm:$0xf]
  %v803 = vld [vmem:[%s1 + $0xba0] sm:$0xf]
  %v804 = vld [vmem:[%s1 + $0xba4] sm:$0xf]
  %v805 = vld [vmem:[%s1 + $0xba8] sm:$0xf]
  %v806 = vld [vmem:[%s1 + $0xbac] sm:$0xf]
  %v807 = vld [vmem:[%s1 + $0xbb0] sm:$0xf]
  %v808 = vld [vmem:[%s1 + $0xbb4] sm:$0xf]
  %v809 = vld [vmem:[%s1 + $0xbb8] sm:$0xf]
  %v810 = vld [vmem:[%s1 + $0xbbc] sm:$0xf]
  %v811 = vld [vmem:[%s1 + $0xbc0] sm:$0xf]
  %v812 = vld [vmem:[%s1 + $0xbc4] sm:$0xf]
  %v813 = vld [vmem:[%s1 + $0xbc8] sm:$0xf]
  %v814 = vld [vmem:[%s1 + $0xbcc] sm:$0xf]
  %v815 = vld [vmem:[%s1 + $0xbd0] sm:$0xf]
  %v816 = vld [vmem:[%s1 + $0xbd4] sm:$0xf]
  %v817 = vld [vmem:[%s1 + $0xbd8] sm:$0xf]
  %v818 = vld [vmem:[%s1 + $0xbdc] sm:$0xf]
  %v819 = vld [vmem:[%s1 + $0xbe0] sm:$0xf]
  %v820 = vld [vmem:[%s1 + $0xbe4] sm:$0xf]
  %v821 = vld [vmem:[%s1 + $0xbe8] sm:$0xf]
  %v822 = vld [vmem:[%s1 + $0xbec] sm:$0xf]
  %v823 = vld [vmem:[%s1 + $0xbf0] sm:$0xf]
  %v824 = vld [vmem:[%s1 + $0xbf4] sm:$0xf]
  %v825 = vld [vmem:[%s1 + $0xbf8] sm:$0xf]
  %v826 = vld [vmem:[%s1 + $0xbfc] sm:$0xf]
  %v827 = vld [vmem:[%s1 + $0xc00] sm:$0xf]
  %v828 = vld [vmem:[%s1 + $0xc04] sm:$0xf]
  %v829 = vld [vmem:[%s1 + $0xc08] sm:$0xf]
  %v830 = vld [vmem:[%s1 + $0xc0c] sm:$0xf]
  %v831 = vld [vmem:[%s1 + $0xc10] sm:$0xf]
  %v832 = vld [vmem:[%s1 + $0xc14] sm:$0xf]
  %v833 = vld [vmem:[%s1 + $0xc18] sm:$0xf]
  %v834 = vld [vmem:[%s1 + $0xc1c] sm:$0xf]
  %v835 = vld [vmem:[%s1 + $0xc20] sm:$0xf]
  %v836 = vld [vmem:[%s1 + $0xc24] sm:$0xf]
  %v837 = vld [vmem:[%s1 + $0xc28] sm:$0xf]
  %v838 = vld [vmem:[%s1 + $0xc2c] sm:$0xf]
  %v839 = vld [vmem:[%s1 + $0xc30] sm:$0xf]
  %v840 = vld [vmem:[%s1 + $0xc34] sm:$0xf]
  %v841 = vld [vmem:[%s1 + $0xc38] sm:$0xf]
  %v842 = vld [vmem:[%s1 + $0xc3c] sm:$0xf]
  %v843 = vld [vmem:[%s1 + $0xc40] sm:$0xf]
  %v844 = vld [vmem:[%s1 + $0xc44] sm:$0xf]
  %v845 = vld [vmem:[%s1 + $0xc48] sm:$0xf]
  %v846 = vld [vmem:[%s1 + $0xc4c] sm:$0xf]
  %v847 = vld [vmem:[%s1 + $0xc50] sm:$0xf]
  %v848 = vld [vmem:[%s1 + $0xc54] sm:$0xf]
  %v849 = vld [vmem:[%s1 + $0xc58] sm:$0xf]
  %v850 = vld [vmem:[%s1 + $0xc5c] sm:$0xf]
  %v851 = vld [vmem:[%s1 + $0xc60] sm:$0xf]
  %v852 = vld [vmem:[%s1 + $0xc64] sm:$0xf]
  %v853 = vld [vmem:[%s1 + $0xc68] sm:$0xf]
  %v854 = vld [vmem:[%s1 + $0xc6c] sm:$0xf]
  %v855 = vld [vmem:[%s1 + $0xc70] sm:$0xf]
  %v856 = vld [vmem:[%s1 + $0xc74] sm:$0xf]
  %v857 = vld [vmem:[%s1 + $0xc78] sm:$0xf]
  %v858 = vld [vmem:[%s1 + $0xc7c] sm:$0xf]
  %v859 = vld [vmem:[%s1 + $0xc80] sm:$0xf]
  %v860 = vld [vmem:[%s1 + $0xc84] sm:$0xf]
  %v861 = vld [vmem:[%s1 + $0xc88] sm:$0xf]
  %v862 = vld [vmem:[%s1 + $0xc8c] sm:$0xf]
  %v863 = vld [vmem:[%s1 + $0xc90] sm:$0xf]
  %v864 = vld [vmem:[%s1 + $0xc94] sm:$0xf]
  %v865 = vld [vmem:[%s1 + $0xc98] sm:$0xf]
  %v866 = vld [vmem:[%s1 + $0xc9c] sm:$0xf]
  %v867 = vld [vmem:[%s1 + $0xca0] sm:$0xf]
  %v868 = vld [vmem:[%s1 + $0xca4] sm:$0xf]
  %v869 = vld [vmem:[%s1 + $0xca8] sm:$0xf]
  %v870 = vld [vmem:[%s1 + $0xcac] sm:$0xf]
  %v871 = vld [vmem:[%s1 + $0xcb0] sm:$0xf]
  %v872 = vld [vmem:[%s1 + $0xcb4] sm:$0xf]
  %v873 = vld [vmem:[%s1 + $0xcb8] sm:$0xf]
  %v874 = vld [vmem:[%s1 + $0xcbc] sm:$0xf]
  %v875 = vld [vmem:[%s1 + $0xcc0] sm:$0xf]
  %v876 = vld [vmem:[%s1 + $0xcc4] sm:$0xf]
  %v877 = vld [vmem:[%s1 + $0xcc8] sm:$0xf]
  %v878 = vld [vmem:[%s1 + $0xccc] sm:$0xf]
  %v879 = vld [vmem:[%s1 + $0xcd0] sm:$0xf]
  %v880 = vld [vmem:[%s1 + $0xcd4] sm:$0xf]
  %v881 = vld [vmem:[%s1 + $0xcd8] sm:$0xf]
  %v882 = vld [vmem:[%s1 + $0xcdc] sm:$0xf]
  %v883 = vld [vmem:[%s1 + $0xce0] sm:$0xf]
  %v884 = vld [vmem:[%s1 + $0xce4] sm:$0xf]
  %v885 = vld [vmem:[%s1 + $0xce8] sm:$0xf]
  %v886 = vld [vmem:[%s1 + $0xcec] sm:$0xf]
  %v887 = vld [vmem:[%s1 + $0xcf0] sm:$0xf]
  %v888 = vld [vmem:[%s1 + $0xcf4] sm:$0xf]
  %v889 = vld [vmem:[%s1 + $0xcf8] sm:$0xf]
  %v890 = vld [vmem:[%s1 + $0xcfc] sm:$0xf]
  %v891 = vld [vmem:[%s1 + $0xd00] sm:$0xf]
  %v892 = vld [vmem:[%s1 + $0xd04] sm:$0xf]
  %v893 = vld [vmem:[%s1 + $0xd08] sm:$0xf]
  %v894 = vld [vmem:[%s1 + $0xd0c] sm:$0xf]
  %v895 = vld [vmem:[%s1 + $0xd10] sm:$0xf]
  %v896 = vld [vmem:[%s1 + $0xd14] sm:$0xf]
  %v897 = vld [vmem:[%s1 + $0xd18] sm:$0xf]
  %v898 = vld [vmem:[%s1 + $0xd1c] sm:$0xf]
  %v899 = vld [vmem:[%s1 + $0xd20] sm:$0xf]
  %v900 = vld [vmem:[%s1 + $0xd24] sm:$0xf]
  %v901 = vld [vmem:[%s1 + $0xd28] sm:$0xf]
  %v902 = vld [vmem:[%s1 + $0xd2c] sm:$0xf]
  %v903 = vld [vmem:[%s1 + $0xd30] sm:$0xf]
  %v904 = vld [vmem:[%s1 + $0xd34] sm:$0xf]
  %v905 = vld [vmem:[%s1 + $0xd38] sm:$0xf]
  %v906 = vld [vmem:[%s1 + $0xd3c] sm:$0xf]
  %v907 = vld [vmem:[%s1 + $0xd40] sm:$0xf]
  %v908 = vld [vmem:[%s1 + $0xd44] sm:$0xf]
  %v909 = vld [vmem:[%s1 + $0xd48] sm:$0xf]
  %v910 = vld [vmem:[%s1 + $0xd4c] sm:$0xf]
  %v911 = vld [vmem:[%s1 + $0xd50] sm:$0xf]
  %v912 = vld [vmem:[%s1 + $0xd54] sm:$0xf]
  %v913 = vld [vmem:[%s1 + $0xd58] sm:$0xf]
  %v914 = vld [vmem:[%s1 + $0xd5c] sm:$0xf]
  %v915 = vld [vmem:[%s1 + $0xd60] sm:$0xf]
  %v916 = vld [vmem:[%s1 + $0xd64] sm:$0xf]
  %v917 = vld [vmem:[%s1 + $0xd68] sm:$0xf]
  %v918 = vld [vmem:[%s1 + $0xd6c] sm:$0xf]
  %v919 = vld [vmem:[%s1 + $0xd70] sm:$0xf]
  %v920 = vld [vmem:[%s1 + $0xd74] sm:$0xf]
  %v921 = vld [vmem:[%s1 + $0xd78] sm:$0xf]
  %v922 = vld [vmem:[%s1 + $0xd7c] sm:$0xf]
  %v923 = vld [vmem:[%s1 + $0xd80] sm:$0xf]
  %v924 = vld [vmem:[%s1 + $0xd84] sm:$0xf]
  %v925 = vld [vmem:[%s1 + $0xd88] sm:$0xf]
  %v926 = vld [vmem:[%s1 + $0xd8c] sm:$0xf]
  %v927 = vld [vmem:[%s1 + $0xd90] sm:$0xf]
  %v928 = vld [vmem:[%s1 + $0xd94] sm:$0xf]
  %v929 = vld [vmem:[%s1 + $0xd98] sm:$0xf]
  %v930 = vld [vmem:[%s1 + $0xd9c] sm:$0xf]
  %v931 = vld [vmem:[%s1 + $0xda0] sm:$0xf]
  %v932 = vld [vmem:[%s1 + $0xda4] sm:$0xf]
  %v933 = vld [vmem:[%s1 + $0xda8] sm:$0xf]
  %v934 = vld [vmem:[%s1 + $0xdac] sm:$0xf]
  %v935 = vld [vmem:[%s1 + $0xdb0] sm:$0xf]
  %v936 = vld [vmem:[%s1 + $0xdb4] sm:$0xf]
  %v937 = vld [vmem:[%s1 + $0xdb8] sm:$0xf]
  %v938 = vld [vmem:[%s1 + $0xdbc] sm:$0xf]
  %v939 = vld [vmem:[%s1 + $0xdc0] sm:$0xf]
  %v940 = vld [vmem:[%s1 + $0xdc4] sm:$0xf]
  %v941 = vld [vmem:[%s1 + $0xdc8] sm:$0xf]
  %v942 = vld [vmem:[%s1 + $0xdcc] sm:$0xf]
  %v943 = vld [vmem:[%s1 + $0xdd0] sm:$0xf]
  %v944 = vld [vmem:[%s1 + $0xdd4] sm:$0xf]
  %v945 = vld [vmem:[%s1 + $0xdd8] sm:$0xf]
  %v946 = vld [vmem:[%s1 + $0xddc] sm:$0xf]
  %v947 = vld [vmem:[%s1 + $0xde0] sm:$0xf]
  %v948 = vld [vmem:[%s1 + $0xde4] sm:$0xf]
  %v949 = vld [vmem:[%s1 + $0xde8] sm:$0xf]
  %v950 = vld [vmem:[%s1 + $0xdec] sm:$0xf]
  %v951 = vld [vmem:[%s1 + $0xdf0] sm:$0xf]
  %v952 = vld [vmem:[%s1 + $0xdf4] sm:$0xf]
  %v953 = vld [vmem:[%s1 + $0xdf8] sm:$0xf]
  %v954 = vld [vmem:[%s1 + $0xdfc] sm:$0xf]
  %v955 = vld [vmem:[%s1 + $0xe00] sm:$0xf]
  %v956 = vld [vmem:[%s1 + $0xe04] sm:$0xf]
  %v957 = vld [vmem:[%s1 + $0xe08] sm:$0xf]
  %v958 = vld [vmem:[%s1 + $0xe0c] sm:$0xf]
  %v959 = vld [vmem:[%s1 + $0xe10] sm:$0xf]
  %v960 = vld [vmem:[%s1 + $0xe14] sm:$0xf]
  %v961 = vld [vmem:[%s1 + $0xe18] sm:$0xf]
  %v962 = vld [vmem:[%s1 + $0xe1c] sm:$0xf]
  %v963 = vld [vmem:[%s1 + $0xe20] sm:$0xf]
  %v964 = vld [vmem:[%s1 + $0xe24] sm:$0xf]
  %v965 = vld [vmem:[%s1 + $0xe28] sm:$0xf]
  %v966 = vld [vmem:[%s1 + $0xe2c] sm:$0xf]
  %v967 = vld [vmem:[%s1 + $0xe30] sm:$0xf]
  %v968 = vld [vmem:[%s1 + $0xe34] sm:$0xf]
  %v969 = vld [vmem:[%s1 + $0xe38] sm:$0xf]
  %v970 = vld [vmem:[%s1 + $0xe3c] sm:$0xf]
  %v971 = vld [vmem:[%s1 + $0xe40] sm:$0xf]
  %v972 = vld [vmem:[%s1 + $0xe44] sm:$0xf]
  %v973 = vld [vmem:[%s1 + $0xe48] sm:$0xf]
  %v974 = vld [vmem:[%s1 + $0xe4c] sm:$0xf]
  %v975 = vld [vmem:[%s1 + $0xe50] sm:$0xf]
  %v976 = vld [vmem:[%s1 + $0xe54] sm:$0xf]
  %v977 = vld [vmem:[%s1 + $0xe58] sm:$0xf]
  %v978 = vld [vmem:[%s1 + $0xe5c] sm:$0xf]
  %v979 = vld [vmem:[%s1 + $0xe60] sm:$0xf]
  %v980 = vld [vmem:[%s1 + $0xe64] sm:$0xf]
  %v981 = vld [vmem:[%s1 + $0xe68] sm:$0xf]
  %v982 = vld [vmem:[%s1 + $0xe6c] sm:$0xf]
  %v983 = vld [vmem:[%s1 + $0xe70] sm:$0xf]
  %v984 = vld [vmem:[%s1 + $0xe74] sm:$0xf]
  %v985 = vld [vmem:[%s1 + $0xe78] sm:$0xf]
  %v986 = vld [vmem:[%s1 + $0xe7c] sm:$0xf]
  %v987 = vld [vmem:[%s1 + $0xe80] sm:$0xf]
  %v988 = vld [vmem:[%s1 + $0xe84] sm:$0xf]
  %v989 = vld [vmem:[%s1 + $0xe88] sm:$0xf]
  %v990 = vld [vmem:[%s1 + $0xe8c] sm:$0xf]
  %v991 = vld [vmem:[%s1 + $0xe90] sm:$0xf]
  %v992 = vld [vmem:[%s1 + $0xe94] sm:$0xf]
  %v993 = vld [vmem:[%s1 + $0xe98] sm:$0xf]
  %v994 = vld [vmem:[%s1 + $0xe9c] sm:$0xf]
  %v995 = vld [vmem:[%s1 + $0xea0] sm:$0xf]
  %v996 = vld [vmem:[%s1 + $0xea4] sm:$0xf]
  %v997 = vld [vmem:[%s1 + $0xea8] sm:$0xf]
  %v998 = vld [vmem:[%s1 + $0xeac] sm:$0xf]
  %v999 = vld [vmem:[%s1 + $0xeb0] sm:$0xf]
  %v1000 = vld [vmem:[%s1 + $0xeb4] sm:$0xf]
  %v1001 = vld [vmem:[%s1 + $0xeb8] sm:$0xf]
  %v1002 = vld [vmem:[%s1 + $0xebc] sm:$0xf]
  %v1003 = vld [vmem:[%s1 + $0xec0] sm:$0xf]
  %v1004 = vld [vmem:[%s1 + $0xec4] sm:$0xf]
  %v1005 = vld [vmem:[%s1 + $0xec8] sm:$0xf]
  %v1006 = vld [vmem:[%s1 + $0xecc] sm:$0xf]
  %v1007 = vld [vmem:[%s1 + $0xed0] sm:$0xf]
  %v1008 = vld [vmem:[%s1 + $0xed4] sm:$0xf]
  %v1009 = vld [vmem:[%s1 + $0xed8] sm:$0xf]
  %v1010 = vld [vmem:[%s1 + $0xedc] sm:$0xf]
  %v1011 = vld [vmem:[%s1 + $0xee0] sm:$0xf]
  %v1012 = vld [vmem:[%s1 + $0xee4] sm:$0xf]
  %v1013 = vld [vmem:[%s1 + $0xee8] sm:$0xf]
  %v1014 = vld [vmem:[%s1 + $0xeec] sm:$0xf]
  %v1015 = vld [vmem:[%s1 + $0xef0] sm:$0xf]
  %v1016 = vld [vmem:[%s1 + $0xef4] sm:$0xf]
  %v1017 = vld [vmem:[%s1 + $0xef8] sm:$0xf]
  %v1018 = vld [vmem:[%s1 + $0xefc] sm:$0xf]
  %v1019 = vld [vmem:[%s1 + $0xf00] sm:$0xf]
  %v1020 = vld [vmem:[%s1 + $0xf04] sm:$0xf]
  %v1021 = vld [vmem:[%s1 + $0xf08] sm:$0xf]
  %v1022 = vld [vmem:[%s1 + $0xf0c] sm:$0xf]
  %v1023 = vld [vmem:[%s1 + $0xf10] sm:$0xf]
  %v1024 = vld [vmem:[%s1 + $0xf14] sm:$0xf]
  %v1025 = vld [vmem:[%s1 + $0xf18] sm:$0xf]
  %v1026 = vld [vmem:[%s1 + $0xf1c] sm:$0xf]
  %v1027 = vld [vmem:[%s1 + $0xf20] sm:$0xf]
  %v1028 = vld [vmem:[%s1 + $0xf24] sm:$0xf]
  %v1029 = vld [vmem:[%s1 + $0xf28] sm:$0xf]
  %v1030 = vld [vmem:[%s1 + $0xf2c] sm:$0xf]
  %v1031 = vld [vmem:[%s1 + $0xf30] sm:$0xf]
  %v1032 = vld [vmem:[%s1 + $0xf34] sm:$0xf]
  %v1033 = vld [vmem:[%s1 + $0xf38] sm:$0xf]
  %v1034 = vld [vmem:[%s1 + $0xf3c] sm:$0xf]
  %v1035 = vld [vmem:[%s1 + $0xf40] sm:$0xf]
  %v1036 = vld [vmem:[%s1 + $0xf44] sm:$0xf]
  %v1037 = vld [vmem:[%s1 + $0xf48] sm:$0xf]
  %v1038 = vld [vmem:[%s1 + $0xf4c] sm:$0xf]
  %v1039 = vld [vmem:[%s1 + $0xf50] sm:$0xf]
  %v1040 = vld [vmem:[%s1 + $0xf54] sm:$0xf]
  %v1041 = vld [vmem:[%s1 + $0xf58] sm:$0xf]
  %v1042 = vld [vmem:[%s1 + $0xf5c] sm:$0xf]
  %v1043 = vld [vmem:[%s1 + $0xf60] sm:$0xf]
  %v1044 = vld [vmem:[%s1 + $0xf64] sm:$0xf]
  %v1045 = vld [vmem:[%s1 + $0xf68] sm:$0xf]
  %v1046 = vld [vmem:[%s1 + $0xf6c] sm:$0xf]
  %v1047 = vld [vmem:[%s1 + $0xf70] sm:$0xf]
  %v1048 = vld [vmem:[%s1 + $0xf74] sm:$0xf]
  %v1049 = vld [vmem:[%s1 + $0xf78] sm:$0xf]
  %v1050 = vld [vmem:[%s1 + $0xf7c] sm:$0xf]
  %v1051 = vld [vmem:[%s1 + $0xf80] sm:$0xf]
  %v1052 = vld [vmem:[%s1 + $0xf84] sm:$0xf]
  %v1053 = vld [vmem:[%s1 + $0xf88] sm:$0xf]
  %v1054 = vld [vmem:[%s1 + $0xf8c] sm:$0xf]
  %v1055 = vld [vmem:[%s1 + $0xf90] sm:$0xf]
  %v1056 = vld [vmem:[%s1 + $0xf94] sm:$0xf]
  %v1057 = vld [vmem:[%s1 + $0xf98] sm:$0xf]
  %v1058 = vld [vmem:[%s1 + $0xf9c] sm:$0xf]
  %v1059 = vld [vmem:[%s1 + $0xfa0] sm:$0xf]
  %v1060 = vld [vmem:[%s1 + $0xfa4] sm:$0xf]
  %v1061 = vld [vmem:[%s1 + $0xfa8] sm:$0xf]
  %v1062 = vld [vmem:[%s1 + $0xfac] sm:$0xf]
  %v1063 = vld [vmem:[%s1 + $0xfb0] sm:$0xf]
  %v1064 = vld [vmem:[%s1 + $0xfb4] sm:$0xf]
  %v1065 = vld [vmem:[%s1 + $0xfb8] sm:$0xf]
  %v1066 = vld [vmem:[%s1 + $0xfbc] sm:$0xf]
  %v1067 = vld [vmem:[%s1 + $0xfc0] sm:$0xf]
  %v1068 = vld [vmem:[%s1 + $0xfc4] sm:$0xf]
  %v1069 = vld [vmem:[%s1 + $0xfc8] sm:$0xf]
  %v1070 = vld [vmem:[%s1 + $0xfcc] sm:$0xf]
  %v1071 = vld [vmem:[%s1 + $0xfd0] sm:$0xf]
  %v1072 = vld [vmem:[%s1 + $0xfd4] sm:$0xf]
  %v1073 = vld [vmem:[%s1 + $0xfd8] sm:$0xf]
  %v1074 = vld [vmem:[%s1 + $0xfdc] sm:$0xf]
  %v1075 = vld [vmem:[%s1 + $0xfe0] sm:$0xf]
  %v1076 = vld [vmem:[%s1 + $0xfe4] sm:$0xf]
  %v1077 = vld [vmem:[%s1 + $0xfe8] sm:$0xf]
  %v1078 = vld [vmem:[%s1 + $0xfec] sm:$0xf]
  %v1079 = vld [vmem:[%s1 + $0xff0] sm:$0xf]
  %v1080 = vld [vmem:[%s1 + $0xff4] sm:$0xf]
  %v1081 = vld [vmem:[%s1 + $0xff8] sm:$0xf]
  %v1082 = vld [vmem:[%s1 + $0xffc] sm:$0xf]
  %v1083 = vld [vmem:[%s2] sm:$0x1]
  %v1085 = vlaneseq
  %v1086 = vshrl.u32 %v1085, 7
  %v1087 = vsub.s32 0, %v1086
  %v1088 = vrot.slane %v1083, %v1087
  %v1122 = vunpack.c.l.b16 %v27
  %v1123 = vunpack.c.h.b16 %v27
  %v1124 = vunpack.c.l.b16 %v28
  %v1125 = vunpack.c.h.b16 %v28
  %v1126 = vunpack.c.l.b16 %v29
  %v1127 = vunpack.c.h.b16 %v29
  %v1128 = vunpack.c.l.b16 %v30
  %v1129 = vunpack.c.h.b16 %v30
  %v1130 = vunpack.c.l.b16 %v31
  %v1131 = vunpack.c.h.b16 %v31
  %v1132 = vunpack.c.l.b16 %v32
  %v1133 = vunpack.c.h.b16 %v32
  %v1134 = vunpack.c.l.b16 %v33
  %v1135 = vunpack.c.h.b16 %v33
  %v1136 = vunpack.c.l.b16 %v34
  %v1137 = vunpack.c.h.b16 %v34
  %v1138 = vunpack.c.l.b16 %v35
  %v1139 = vunpack.c.h.b16 %v35
  %v1140 = vunpack.c.l.b16 %v36
  %v1141 = vunpack.c.h.b16 %v36
  %v1142 = vunpack.c.l.b16 %v37
  %v1143 = vunpack.c.h.b16 %v37
  %v1144 = vunpack.c.l.b16 %v38
  %v1145 = vunpack.c.h.b16 %v38
  %v1146 = vunpack.c.l.b16 %v39
  %v1147 = vunpack.c.h.b16 %v39
  %v1148 = vunpack.c.l.b16 %v40
  %v1149 = vunpack.c.h.b16 %v40
  %v1150 = vunpack.c.l.b16 %v41
  %v1151 = vunpack.c.h.b16 %v41
  %v1152 = vunpack.c.l.b16 %v42
  %v1153 = vunpack.c.h.b16 %v42
  %v1154 = vunpack.c.l.b16 %v43
  %v1155 = vunpack.c.h.b16 %v43
  %v1156 = vunpack.c.l.b16 %v44
  %v1157 = vunpack.c.h.b16 %v44
  %v1158 = vunpack.c.l.b16 %v45
  %v1159 = vunpack.c.h.b16 %v45
  %v1160 = vunpack.c.l.b16 %v46
  %v1161 = vunpack.c.h.b16 %v46
  %v1162 = vunpack.c.l.b16 %v47
  %v1163 = vunpack.c.h.b16 %v47
  %v1164 = vunpack.c.l.b16 %v48
  %v1165 = vunpack.c.h.b16 %v48
  %v1166 = vunpack.c.l.b16 %v49
  %v1167 = vunpack.c.h.b16 %v49
  %v1168 = vunpack.c.l.b16 %v50
  %v1169 = vunpack.c.h.b16 %v50
  %v1170 = vunpack.c.l.b16 %v51
  %v1171 = vunpack.c.h.b16 %v51
  %v1172 = vunpack.c.l.b16 %v52
  %v1173 = vunpack.c.h.b16 %v52
  %v1174 = vunpack.c.l.b16 %v53
  %v1175 = vunpack.c.h.b16 %v53
  %v1176 = vunpack.c.l.b16 %v54
  %v1177 = vunpack.c.h.b16 %v54
  %v1178 = vunpack.c.l.b16 %v55
  %v1179 = vunpack.c.h.b16 %v55
  %v1180 = vunpack.c.l.b16 %v56
  %v1181 = vunpack.c.h.b16 %v56
  %v1182 = vunpack.c.l.b16 %v57
  %v1183 = vunpack.c.h.b16 %v57
  %v1184 = vunpack.c.l.b16 %v58
  %v1185 = vunpack.c.h.b16 %v58
  %v1186 = vpack.c.b16 %v1122, %v1122
  %v1187 = vpack.c.b16 %v1123, %v1123
  %v1188 = vpack.c.b16 %v1124, %v1124
  %v1189 = vpack.c.b16 %v1125, %v1125
  %v1190 = vpack.c.b16 %v1126, %v1126
  %v1191 = vpack.c.b16 %v1127, %v1127
  %v1192 = vpack.c.b16 %v1128, %v1128
  %v1193 = vpack.c.b16 %v1129, %v1129
  %v1194 = vpack.c.b16 %v1130, %v1130
  %v1195 = vpack.c.b16 %v1131, %v1131
  %v1196 = vpack.c.b16 %v1132, %v1132
  %v1197 = vpack.c.b16 %v1133, %v1133
  %v1198 = vpack.c.b16 %v1134, %v1134
  %v1199 = vpack.c.b16 %v1135, %v1135
  %v1200 = vpack.c.b16 %v1136, %v1136
  %v1201 = vpack.c.b16 %v1137, %v1137
  %v1202 = vpack.c.b16 %v1138, %v1138
  %v1203 = vpack.c.b16 %v1139, %v1139
  %v1204 = vpack.c.b16 %v1140, %v1140
  %v1205 = vpack.c.b16 %v1141, %v1141
  %v1206 = vpack.c.b16 %v1142, %v1142
  %v1207 = vpack.c.b16 %v1143, %v1143
  %v1208 = vpack.c.b16 %v1144, %v1144
  %v1209 = vpack.c.b16 %v1145, %v1145
  %v1210 = vpack.c.b16 %v1146, %v1146
  %v1211 = vpack.c.b16 %v1147, %v1147
  %v1212 = vpack.c.b16 %v1148, %v1148
  %v1213 = vpack.c.b16 %v1149, %v1149
  %v1214 = vpack.c.b16 %v1150, %v1150
  %v1215 = vpack.c.b16 %v1151, %v1151
  %v1216 = vpack.c.b16 %v1152, %v1152
  %v1217 = vpack.c.b16 %v1153, %v1153
  %v1218 = vpack.c.b16 %v1154, %v1154
  %v1219 = vpack.c.b16 %v1155, %v1155
  %v1220 = vpack.c.b16 %v1156, %v1156
  %v1221 = vpack.c.b16 %v1157, %v1157
  %v1222 = vpack.c.b16 %v1158, %v1158
  %v1223 = vpack.c.b16 %v1159, %v1159
  %v1224 = vpack.c.b16 %v1160, %v1160
  %v1225 = vpack.c.b16 %v1161, %v1161
  %v1226 = vpack.c.b16 %v1162, %v1162
  %v1227 = vpack.c.b16 %v1163, %v1163
  %v1228 = vpack.c.b16 %v1164, %v1164
  %v1229 = vpack.c.b16 %v1165, %v1165
  %v1230 = vpack.c.b16 %v1166, %v1166
  %v1231 = vpack.c.b16 %v1167, %v1167
  %v1232 = vpack.c.b16 %v1168, %v1168
  %v1233 = vpack.c.b16 %v1169, %v1169
  %v1234 = vpack.c.b16 %v1170, %v1170
  %v1235 = vpack.c.b16 %v1171, %v1171
  %v1236 = vpack.c.b16 %v1172, %v1172
  %v1237 = vpack.c.b16 %v1173, %v1173
  %v1238 = vpack.c.b16 %v1174, %v1174
  %v1239 = vpack.c.b16 %v1175, %v1175
  %v1240 = vpack.c.b16 %v1176, %v1176
  %v1241 = vpack.c.b16 %v1177, %v1177
  %v1242 = vpack.c.b16 %v1178, %v1178
  %v1243 = vpack.c.b16 %v1179, %v1179
  %v1244 = vpack.c.b16 %v1180, %v1180
  %v1245 = vpack.c.b16 %v1181, %v1181
  %v1246 = vpack.c.b16 %v1182, %v1182
  %v1247 = vpack.c.b16 %v1183, %v1183
  %v1248 = vpack.c.b16 %v1184, %v1184
  %v1249 = vpack.c.b16 %v1185, %v1185
  %v2338 = vunpack.c.l.b16 %v59
  %v2339 = vunpack.c.l.b16 %v60
  %v2340 = vunpack.c.l.b16 %v61
  %v2341 = vunpack.c.l.b16 %v62
  %v2342 = vunpack.c.l.b16 %v63
  %v2343 = vunpack.c.l.b16 %v64
  %v2344 = vunpack.c.l.b16 %v65
  %v2345 = vunpack.c.l.b16 %v66
  %v2346 = vunpack.c.l.b16 %v67
  %v2347 = vunpack.c.l.b16 %v68
  %v2348 = vunpack.c.l.b16 %v69
  %v2349 = vunpack.c.l.b16 %v70
  %v2350 = vunpack.c.l.b16 %v71
  %v2351 = vunpack.c.l.b16 %v72
  %v2352 = vunpack.c.l.b16 %v73
  %v2353 = vunpack.c.l.b16 %v74
  %v2354 = vunpack.c.l.b16 %v75
  %v2355 = vunpack.c.l.b16 %v76
  %v2356 = vunpack.c.l.b16 %v77
  %v2357 = vunpack.c.l.b16 %v78
  %v2358 = vunpack.c.l.b16 %v79
  %v2359 = vunpack.c.l.b16 %v80
  %v2360 = vunpack.c.l.b16 %v81
  %v2361 = vunpack.c.l.b16 %v82
  %v2362 = vunpack.c.l.b16 %v83
  %v2363 = vunpack.c.l.b16 %v84
  %v2364 = vunpack.c.l.b16 %v85
  %v2365 = vunpack.c.l.b16 %v86
  %v2366 = vunpack.c.l.b16 %v87
  %v2367 = vunpack.c.l.b16 %v88
  %v2368 = vunpack.c.l.b16 %v89
  %v2369 = vunpack.c.l.b16 %v90
  %v2370 = vunpack.c.l.b16 %v91
  %v2371 = vunpack.c.l.b16 %v92
  %v2372 = vunpack.c.l.b16 %v93
  %v2373 = vunpack.c.l.b16 %v94
  %v2374 = vunpack.c.l.b16 %v95
  %v2375 = vunpack.c.l.b16 %v96
  %v2376 = vunpack.c.l.b16 %v97
  %v2377 = vunpack.c.l.b16 %v98
  %v2378 = vunpack.c.l.b16 %v99
  %v2379 = vunpack.c.l.b16 %v100
  %v2380 = vunpack.c.l.b16 %v101
  %v2381 = vunpack.c.l.b16 %v102
  %v2382 = vunpack.c.l.b16 %v103
  %v2383 = vunpack.c.l.b16 %v104
  %v2384 = vunpack.c.l.b16 %v105
  %v2385 = vunpack.c.l.b16 %v106
  %v2386 = vunpack.c.l.b16 %v107
  %v2387 = vunpack.c.l.b16 %v108
  %v2388 = vunpack.c.l.b16 %v109
  %v2389 = vunpack.c.l.b16 %v110
  %v2390 = vunpack.c.l.b16 %v111
  %v2391 = vunpack.c.l.b16 %v112
  %v2392 = vunpack.c.l.b16 %v113
  %v2393 = vunpack.c.l.b16 %v114
  %v2394 = vunpack.c.l.b16 %v115
  %v2395 = vunpack.c.l.b16 %v116
  %v2396 = vunpack.c.l.b16 %v117
  %v2397 = vunpack.c.l.b16 %v118
  %v2398 = vunpack.c.l.b16 %v119
  %v2399 = vunpack.c.l.b16 %v120
  %v2400 = vunpack.c.l.b16 %v121
  %v2401 = vunpack.c.l.b16 %v122
  %v2402 = vunpack.c.l.b16 %v123
  %v2403 = vunpack.c.l.b16 %v124
  %v2404 = vunpack.c.l.b16 %v125
  %v2405 = vunpack.c.l.b16 %v126
  %v2406 = vunpack.c.l.b16 %v127
  %v2407 = vunpack.c.l.b16 %v128
  %v2408 = vunpack.c.l.b16 %v129
  %v2409 = vunpack.c.l.b16 %v130
  %v2410 = vunpack.c.l.b16 %v131
  %v2411 = vunpack.c.l.b16 %v132
  %v2412 = vunpack.c.l.b16 %v133
  %v2413 = vunpack.c.l.b16 %v134
  %v2414 = vunpack.c.l.b16 %v135
  %v2415 = vunpack.c.l.b16 %v136
  %v2416 = vunpack.c.l.b16 %v137
  %v2417 = vunpack.c.l.b16 %v138
  %v2418 = vunpack.c.l.b16 %v139
  %v2419 = vunpack.c.l.b16 %v140
  %v2420 = vunpack.c.l.b16 %v141
  %v2421 = vunpack.c.l.b16 %v142
  %v2422 = vunpack.c.l.b16 %v143
  %v2423 = vunpack.c.l.b16 %v144
  %v2424 = vunpack.c.l.b16 %v145
  %v2425 = vunpack.c.l.b16 %v146
  %v2426 = vunpack.c.l.b16 %v147
  %v2427 = vunpack.c.l.b16 %v148
  %v2428 = vunpack.c.l.b16 %v149
  %v2429 = vunpack.c.l.b16 %v150
  %v2430 = vunpack.c.l.b16 %v151
  %v2431 = vunpack.c.l.b16 %v152
  %v2432 = vunpack.c.l.b16 %v153
  %v2433 = vunpack.c.l.b16 %v154
  %v2434 = vunpack.c.l.b16 %v155
  %v2435 = vunpack.c.l.b16 %v156
  %v2436 = vunpack.c.l.b16 %v157
  %v2437 = vunpack.c.l.b16 %v158
  %v2438 = vunpack.c.l.b16 %v159
  %v2439 = vunpack.c.l.b16 %v160
  %v2440 = vunpack.c.l.b16 %v161
  %v2441 = vunpack.c.l.b16 %v162
  %v2442 = vunpack.c.l.b16 %v163
  %v2443 = vunpack.c.l.b16 %v164
  %v2444 = vunpack.c.l.b16 %v165
  %v2445 = vunpack.c.l.b16 %v166
  %v2446 = vunpack.c.l.b16 %v167
  %v2447 = vunpack.c.l.b16 %v168
  %v2448 = vunpack.c.l.b16 %v169
  %v2449 = vunpack.c.l.b16 %v170
  %v2450 = vunpack.c.l.b16 %v171
  %v2451 = vunpack.c.l.b16 %v172
  %v2452 = vunpack.c.l.b16 %v173
  %v2453 = vunpack.c.l.b16 %v174
  %v2454 = vunpack.c.l.b16 %v175
  %v2455 = vunpack.c.l.b16 %v176
  %v2456 = vunpack.c.l.b16 %v177
  %v2457 = vunpack.c.l.b16 %v178
  %v2458 = vunpack.c.l.b16 %v179
  %v2459 = vunpack.c.l.b16 %v180
  %v2460 = vunpack.c.l.b16 %v181
  %v2461 = vunpack.c.l.b16 %v182
  %v2462 = vunpack.c.l.b16 %v183
  %v2463 = vunpack.c.l.b16 %v184
  %v2464 = vunpack.c.l.b16 %v185
  %v2465 = vunpack.c.l.b16 %v186
  %v2466 = vunpack.c.l.b16 %v187
  %v2467 = vunpack.c.l.b16 %v188
  %v2468 = vunpack.c.l.b16 %v189
  %v2469 = vunpack.c.l.b16 %v190
  %v2470 = vunpack.c.l.b16 %v191
  %v2471 = vunpack.c.l.b16 %v192
  %v2472 = vunpack.c.l.b16 %v193
  %v2473 = vunpack.c.l.b16 %v194
  %v2474 = vunpack.c.l.b16 %v195
  %v2475 = vunpack.c.l.b16 %v196
  %v2476 = vunpack.c.l.b16 %v197
  %v2477 = vunpack.c.l.b16 %v198
  %v2478 = vunpack.c.l.b16 %v199
  %v2479 = vunpack.c.l.b16 %v200
  %v2480 = vunpack.c.l.b16 %v201
  %v2481 = vunpack.c.l.b16 %v202
  %v2482 = vunpack.c.l.b16 %v203
  %v2483 = vunpack.c.l.b16 %v204
  %v2484 = vunpack.c.l.b16 %v205
  %v2485 = vunpack.c.l.b16 %v206
  %v2486 = vunpack.c.l.b16 %v207
  %v2487 = vunpack.c.l.b16 %v208
  %v2488 = vunpack.c.l.b16 %v209
  %v2489 = vunpack.c.l.b16 %v210
  %v2490 = vunpack.c.l.b16 %v211
  %v2491 = vunpack.c.l.b16 %v212
  %v2492 = vunpack.c.l.b16 %v213
  %v2493 = vunpack.c.l.b16 %v214
  %v2494 = vunpack.c.l.b16 %v215
  %v2495 = vunpack.c.l.b16 %v216
  %v2496 = vunpack.c.l.b16 %v217
  %v2497 = vunpack.c.l.b16 %v218
  %v2498 = vunpack.c.l.b16 %v219
  %v2499 = vunpack.c.l.b16 %v220
  %v2500 = vunpack.c.l.b16 %v221
  %v2501 = vunpack.c.l.b16 %v222
  %v2502 = vunpack.c.l.b16 %v223
  %v2503 = vunpack.c.l.b16 %v224
  %v2504 = vunpack.c.l.b16 %v225
  %v2505 = vunpack.c.l.b16 %v226
  %v2506 = vunpack.c.l.b16 %v227
  %v2507 = vunpack.c.l.b16 %v228
  %v2508 = vunpack.c.l.b16 %v229
  %v2509 = vunpack.c.l.b16 %v230
  %v2510 = vunpack.c.l.b16 %v231
  %v2511 = vunpack.c.l.b16 %v232
  %v2512 = vunpack.c.l.b16 %v233
  %v2513 = vunpack.c.l.b16 %v234
  %v2514 = vunpack.c.l.b16 %v235
  %v2515 = vunpack.c.l.b16 %v236
  %v2516 = vunpack.c.l.b16 %v237
  %v2517 = vunpack.c.l.b16 %v238
  %v2518 = vunpack.c.l.b16 %v239
  %v2519 = vunpack.c.l.b16 %v240
  %v2520 = vunpack.c.l.b16 %v241
  %v2521 = vunpack.c.l.b16 %v242
  %v2522 = vunpack.c.l.b16 %v243
  %v2523 = vunpack.c.l.b16 %v244
  %v2524 = vunpack.c.l.b16 %v245
  %v2525 = vunpack.c.l.b16 %v246
  %v2526 = vunpack.c.l.b16 %v247
  %v2527 = vunpack.c.l.b16 %v248
  %v2528 = vunpack.c.l.b16 %v249
  %v2529 = vunpack.c.l.b16 %v250
  %v2530 = vunpack.c.l.b16 %v251
  %v2531 = vunpack.c.l.b16 %v252
  %v2532 = vunpack.c.l.b16 %v253
  %v2533 = vunpack.c.l.b16 %v254
  %v2534 = vunpack.c.l.b16 %v255
  %v2535 = vunpack.c.l.b16 %v256
  %v2536 = vunpack.c.l.b16 %v257
  %v2537 = vunpack.c.l.b16 %v258
  %v2538 = vunpack.c.l.b16 %v259
  %v2539 = vunpack.c.l.b16 %v260
  %v2540 = vunpack.c.l.b16 %v261
  %v2541 = vunpack.c.l.b16 %v262
  %v2542 = vunpack.c.l.b16 %v263
  %v2543 = vunpack.c.l.b16 %v264
  %v2544 = vunpack.c.l.b16 %v265
  %v2545 = vunpack.c.l.b16 %v266
  %v2546 = vunpack.c.l.b16 %v267
  %v2547 = vunpack.c.l.b16 %v268
  %v2548 = vunpack.c.l.b16 %v269
  %v2549 = vunpack.c.l.b16 %v270
  %v2550 = vunpack.c.l.b16 %v271
  %v2551 = vunpack.c.l.b16 %v272
  %v2552 = vunpack.c.l.b16 %v273
  %v2553 = vunpack.c.l.b16 %v274
  %v2554 = vunpack.c.l.b16 %v275
  %v2555 = vunpack.c.l.b16 %v276
  %v2556 = vunpack.c.l.b16 %v277
  %v2557 = vunpack.c.l.b16 %v278
  %v2558 = vunpack.c.l.b16 %v279
  %v2559 = vunpack.c.l.b16 %v280
  %v2560 = vunpack.c.l.b16 %v281
  %v2561 = vunpack.c.l.b16 %v282
  %v2562 = vunpack.c.l.b16 %v283
  %v2563 = vunpack.c.l.b16 %v284
  %v2564 = vunpack.c.l.b16 %v285
  %v2565 = vunpack.c.l.b16 %v286
  %v2566 = vunpack.c.l.b16 %v287
  %v2567 = vunpack.c.l.b16 %v288
  %v2568 = vunpack.c.l.b16 %v289
  %v2569 = vunpack.c.l.b16 %v290
  %v2570 = vunpack.c.l.b16 %v291
  %v2571 = vunpack.c.l.b16 %v292
  %v2572 = vunpack.c.l.b16 %v293
  %v2573 = vunpack.c.l.b16 %v294
  %v2574 = vunpack.c.l.b16 %v295
  %v2575 = vunpack.c.l.b16 %v296
  %v2576 = vunpack.c.l.b16 %v297
  %v2577 = vunpack.c.l.b16 %v298
  %v2578 = vunpack.c.l.b16 %v299
  %v2579 = vunpack.c.l.b16 %v300
  %v2580 = vunpack.c.l.b16 %v301
  %v2581 = vunpack.c.l.b16 %v302
  %v2582 = vunpack.c.l.b16 %v303
  %v2583 = vunpack.c.l.b16 %v304
  %v2584 = vunpack.c.l.b16 %v305
  %v2585 = vunpack.c.l.b16 %v306
  %v2586 = vunpack.c.l.b16 %v307
  %v2587 = vunpack.c.l.b16 %v308
  %v2588 = vunpack.c.l.b16 %v309
  %v2589 = vunpack.c.l.b16 %v310
  %v2590 = vunpack.c.l.b16 %v311
  %v2591 = vunpack.c.l.b16 %v312
  %v2592 = vunpack.c.l.b16 %v313
  %v2593 = vunpack.c.l.b16 %v314
  %v2594 = vunpack.c.l.b16 %v315
  %v2595 = vunpack.c.l.b16 %v316
  %v2596 = vunpack.c.l.b16 %v317
  %v2597 = vunpack.c.l.b16 %v318
  %v2598 = vunpack.c.l.b16 %v319
  %v2599 = vunpack.c.l.b16 %v320
  %v2600 = vunpack.c.l.b16 %v321
  %v2601 = vunpack.c.l.b16 %v322
  %v2602 = vunpack.c.l.b16 %v323
  %v2603 = vunpack.c.l.b16 %v324
  %v2604 = vunpack.c.l.b16 %v325
  %v2605 = vunpack.c.l.b16 %v326
  %v2606 = vunpack.c.l.b16 %v327
  %v2607 = vunpack.c.l.b16 %v328
  %v2608 = vunpack.c.l.b16 %v329
  %v2609 = vunpack.c.l.b16 %v330
  %v2610 = vunpack.c.l.b16 %v331
  %v2611 = vunpack.c.l.b16 %v332
  %v2612 = vunpack.c.l.b16 %v333
  %v2613 = vunpack.c.l.b16 %v334
  %v2614 = vunpack.c.l.b16 %v335
  %v2615 = vunpack.c.l.b16 %v336
  %v2616 = vunpack.c.l.b16 %v337
  %v2617 = vunpack.c.l.b16 %v338
  %v2618 = vunpack.c.l.b16 %v339
  %v2619 = vunpack.c.l.b16 %v340
  %v2620 = vunpack.c.l.b16 %v341
  %v2621 = vunpack.c.l.b16 %v342
  %v2622 = vunpack.c.l.b16 %v343
  %v2623 = vunpack.c.l.b16 %v344
  %v2624 = vunpack.c.l.b16 %v345
  %v2625 = vunpack.c.l.b16 %v346
  %v2626 = vunpack.c.l.b16 %v347
  %v2627 = vunpack.c.l.b16 %v348
  %v2628 = vunpack.c.l.b16 %v349
  %v2629 = vunpack.c.l.b16 %v350
  %v2630 = vunpack.c.l.b16 %v351
  %v2631 = vunpack.c.l.b16 %v352
  %v2632 = vunpack.c.l.b16 %v353
  %v2633 = vunpack.c.l.b16 %v354
  %v2634 = vunpack.c.l.b16 %v355
  %v2635 = vunpack.c.l.b16 %v356
  %v2636 = vunpack.c.l.b16 %v357
  %v2637 = vunpack.c.l.b16 %v358
  %v2638 = vunpack.c.l.b16 %v359
  %v2639 = vunpack.c.l.b16 %v360
  %v2640 = vunpack.c.l.b16 %v361
  %v2641 = vunpack.c.l.b16 %v362
  %v2642 = vunpack.c.l.b16 %v363
  %v2643 = vunpack.c.l.b16 %v364
  %v2644 = vunpack.c.l.b16 %v365
  %v2645 = vunpack.c.l.b16 %v366
  %v2646 = vunpack.c.l.b16 %v367
  %v2647 = vunpack.c.l.b16 %v368
  %v2648 = vunpack.c.l.b16 %v369
  %v2649 = vunpack.c.l.b16 %v370
  %v2650 = vunpack.c.l.b16 %v371
  %v2651 = vunpack.c.l.b16 %v372
  %v2652 = vunpack.c.l.b16 %v373
  %v2653 = vunpack.c.l.b16 %v374
  %v2654 = vunpack.c.l.b16 %v375
  %v2655 = vunpack.c.l.b16 %v376
  %v2656 = vunpack.c.l.b16 %v377
  %v2657 = vunpack.c.l.b16 %v378
  %v2658 = vunpack.c.l.b16 %v379
  %v2659 = vunpack.c.l.b16 %v380
  %v2660 = vunpack.c.l.b16 %v381
  %v2661 = vunpack.c.l.b16 %v382
  %v2662 = vunpack.c.l.b16 %v383
  %v2663 = vunpack.c.l.b16 %v384
  %v2664 = vunpack.c.l.b16 %v385
  %v2665 = vunpack.c.l.b16 %v386
  %v2666 = vunpack.c.l.b16 %v387
  %v2667 = vunpack.c.l.b16 %v388
  %v2668 = vunpack.c.l.b16 %v389
  %v2669 = vunpack.c.l.b16 %v390
  %v2670 = vunpack.c.l.b16 %v391
  %v2671 = vunpack.c.l.b16 %v392
  %v2672 = vunpack.c.l.b16 %v393
  %v2673 = vunpack.c.l.b16 %v394
  %v2674 = vunpack.c.l.b16 %v395
  %v2675 = vunpack.c.l.b16 %v396
  %v2676 = vunpack.c.l.b16 %v397
  %v2677 = vunpack.c.l.b16 %v398
  %v2678 = vunpack.c.l.b16 %v399
  %v2679 = vunpack.c.l.b16 %v400
  %v2680 = vunpack.c.l.b16 %v401
  %v2681 = vunpack.c.l.b16 %v402
  %v2682 = vunpack.c.l.b16 %v403
  %v2683 = vunpack.c.l.b16 %v404
  %v2684 = vunpack.c.l.b16 %v405
  %v2685 = vunpack.c.l.b16 %v406
  %v2686 = vunpack.c.l.b16 %v407
  %v2687 = vunpack.c.l.b16 %v408
  %v2688 = vunpack.c.l.b16 %v409
  %v2689 = vunpack.c.l.b16 %v410
  %v2690 = vunpack.c.l.b16 %v411
  %v2691 = vunpack.c.l.b16 %v412
  %v2692 = vunpack.c.l.b16 %v413
  %v2693 = vunpack.c.l.b16 %v414
  %v2694 = vunpack.c.l.b16 %v415
  %v2695 = vunpack.c.l.b16 %v416
  %v2696 = vunpack.c.l.b16 %v417
  %v2697 = vunpack.c.l.b16 %v418
  %v2698 = vunpack.c.l.b16 %v419
  %v2699 = vunpack.c.l.b16 %v420
  %v2700 = vunpack.c.l.b16 %v421
  %v2701 = vunpack.c.l.b16 %v422
  %v2702 = vunpack.c.l.b16 %v423
  %v2703 = vunpack.c.l.b16 %v424
  %v2704 = vunpack.c.l.b16 %v425
  %v2705 = vunpack.c.l.b16 %v426
  %v2706 = vunpack.c.l.b16 %v427
  %v2707 = vunpack.c.l.b16 %v428
  %v2708 = vunpack.c.l.b16 %v429
  %v2709 = vunpack.c.l.b16 %v430
  %v2710 = vunpack.c.l.b16 %v431
  %v2711 = vunpack.c.l.b16 %v432
  %v2712 = vunpack.c.l.b16 %v433
  %v2713 = vunpack.c.l.b16 %v434
  %v2714 = vunpack.c.l.b16 %v435
  %v2715 = vunpack.c.l.b16 %v436
  %v2716 = vunpack.c.l.b16 %v437
  %v2717 = vunpack.c.l.b16 %v438
  %v2718 = vunpack.c.l.b16 %v439
  %v2719 = vunpack.c.l.b16 %v440
  %v2720 = vunpack.c.l.b16 %v441
  %v2721 = vunpack.c.l.b16 %v442
  %v2722 = vunpack.c.l.b16 %v443
  %v2723 = vunpack.c.l.b16 %v444
  %v2724 = vunpack.c.l.b16 %v445
  %v2725 = vunpack.c.l.b16 %v446
  %v2726 = vunpack.c.l.b16 %v447
  %v2727 = vunpack.c.l.b16 %v448
  %v2728 = vunpack.c.l.b16 %v449
  %v2729 = vunpack.c.l.b16 %v450
  %v2730 = vunpack.c.l.b16 %v451
  %v2731 = vunpack.c.l.b16 %v452
  %v2732 = vunpack.c.l.b16 %v453
  %v2733 = vunpack.c.l.b16 %v454
  %v2734 = vunpack.c.l.b16 %v455
  %v2735 = vunpack.c.l.b16 %v456
  %v2736 = vunpack.c.l.b16 %v457
  %v2737 = vunpack.c.l.b16 %v458
  %v2738 = vunpack.c.l.b16 %v459
  %v2739 = vunpack.c.l.b16 %v460
  %v2740 = vunpack.c.l.b16 %v461
  %v2741 = vunpack.c.l.b16 %v462
  %v2742 = vunpack.c.l.b16 %v463
  %v2743 = vunpack.c.l.b16 %v464
  %v2744 = vunpack.c.l.b16 %v465
  %v2745 = vunpack.c.l.b16 %v466
  %v2746 = vunpack.c.l.b16 %v467
  %v2747 = vunpack.c.l.b16 %v468
  %v2748 = vunpack.c.l.b16 %v469
  %v2749 = vunpack.c.l.b16 %v470
  %v2750 = vunpack.c.l.b16 %v471
  %v2751 = vunpack.c.l.b16 %v472
  %v2752 = vunpack.c.l.b16 %v473
  %v2753 = vunpack.c.l.b16 %v474
  %v2754 = vunpack.c.l.b16 %v475
  %v2755 = vunpack.c.l.b16 %v476
  %v2756 = vunpack.c.l.b16 %v477
  %v2757 = vunpack.c.l.b16 %v478
  %v2758 = vunpack.c.l.b16 %v479
  %v2759 = vunpack.c.l.b16 %v480
  %v2760 = vunpack.c.l.b16 %v481
  %v2761 = vunpack.c.l.b16 %v482
  %v2762 = vunpack.c.l.b16 %v483
  %v2763 = vunpack.c.l.b16 %v484
  %v2764 = vunpack.c.l.b16 %v485
  %v2765 = vunpack.c.l.b16 %v486
  %v2766 = vunpack.c.l.b16 %v487
  %v2767 = vunpack.c.l.b16 %v488
  %v2768 = vunpack.c.l.b16 %v489
  %v2769 = vunpack.c.l.b16 %v490
  %v2770 = vunpack.c.l.b16 %v491
  %v2771 = vunpack.c.l.b16 %v492
  %v2772 = vunpack.c.l.b16 %v493
  %v2773 = vunpack.c.l.b16 %v494
  %v2774 = vunpack.c.l.b16 %v495
  %v2775 = vunpack.c.l.b16 %v496
  %v2776 = vunpack.c.l.b16 %v497
  %v2777 = vunpack.c.l.b16 %v498
  %v2778 = vunpack.c.l.b16 %v499
  %v2779 = vunpack.c.l.b16 %v500
  %v2780 = vunpack.c.l.b16 %v501
  %v2781 = vunpack.c.l.b16 %v502
  %v2782 = vunpack.c.l.b16 %v503
  %v2783 = vunpack.c.l.b16 %v504
  %v2784 = vunpack.c.l.b16 %v505
  %v2785 = vunpack.c.l.b16 %v506
  %v2786 = vunpack.c.l.b16 %v507
  %v2787 = vunpack.c.l.b16 %v508
  %v2788 = vunpack.c.l.b16 %v509
  %v2789 = vunpack.c.l.b16 %v510
  %v2790 = vunpack.c.l.b16 %v511
  %v2791 = vunpack.c.l.b16 %v512
  %v2792 = vunpack.c.l.b16 %v513
  %v2793 = vunpack.c.l.b16 %v514
  %v2794 = vunpack.c.l.b16 %v515
  %v2795 = vunpack.c.l.b16 %v516
  %v2796 = vunpack.c.l.b16 %v517
  %v2797 = vunpack.c.l.b16 %v518
  %v2798 = vunpack.c.l.b16 %v519
  %v2799 = vunpack.c.l.b16 %v520
  %v2800 = vunpack.c.l.b16 %v521
  %v2801 = vunpack.c.l.b16 %v522
  %v2802 = vunpack.c.l.b16 %v523
  %v2803 = vunpack.c.l.b16 %v524
  %v2804 = vunpack.c.l.b16 %v525
  %v2805 = vunpack.c.l.b16 %v526
  %v2806 = vunpack.c.l.b16 %v527
  %v2807 = vunpack.c.l.b16 %v528
  %v2808 = vunpack.c.l.b16 %v529
  %v2809 = vunpack.c.l.b16 %v530
  %v2810 = vunpack.c.l.b16 %v531
  %v2811 = vunpack.c.l.b16 %v532
  %v2812 = vunpack.c.l.b16 %v533
  %v2813 = vunpack.c.l.b16 %v534
  %v2814 = vunpack.c.l.b16 %v535
  %v2815 = vunpack.c.l.b16 %v536
  %v2816 = vunpack.c.l.b16 %v537
  %v2817 = vunpack.c.l.b16 %v538
  %v2818 = vunpack.c.l.b16 %v539
  %v2819 = vunpack.c.l.b16 %v540
  %v2820 = vunpack.c.l.b16 %v541
  %v2821 = vunpack.c.l.b16 %v542
  %v2822 = vunpack.c.l.b16 %v543
  %v2823 = vunpack.c.l.b16 %v544
  %v2824 = vunpack.c.l.b16 %v545
  %v2825 = vunpack.c.l.b16 %v546
  %v2826 = vunpack.c.l.b16 %v547
  %v2827 = vunpack.c.l.b16 %v548
  %v2828 = vunpack.c.l.b16 %v549
  %v2829 = vunpack.c.l.b16 %v550
  %v2830 = vunpack.c.l.b16 %v551
  %v2831 = vunpack.c.l.b16 %v552
  %v2832 = vunpack.c.l.b16 %v553
  %v2833 = vunpack.c.l.b16 %v554
  %v2834 = vunpack.c.l.b16 %v555
  %v2835 = vunpack.c.l.b16 %v556
  %v2836 = vunpack.c.l.b16 %v557
  %v2837 = vunpack.c.l.b16 %v558
  %v2838 = vunpack.c.l.b16 %v559
  %v2839 = vunpack.c.l.b16 %v560
  %v2840 = vunpack.c.l.b16 %v561
  %v2841 = vunpack.c.l.b16 %v562
  %v2842 = vunpack.c.l.b16 %v563
  %v2843 = vunpack.c.l.b16 %v564
  %v2844 = vunpack.c.l.b16 %v565
  %v2845 = vunpack.c.l.b16 %v566
  %v2846 = vunpack.c.l.b16 %v567
  %v2847 = vunpack.c.l.b16 %v568
  %v2848 = vunpack.c.l.b16 %v569
  %v2849 = vunpack.c.l.b16 %v570
  %v2850 = vunpack.c.l.b16 %v571
  %v2851 = vunpack.c.l.b16 %v572
  %v2852 = vunpack.c.l.b16 %v573
  %v2853 = vunpack.c.l.b16 %v574
  %v2854 = vunpack.c.l.b16 %v575
  %v2855 = vunpack.c.l.b16 %v576
  %v2856 = vunpack.c.l.b16 %v577
  %v2857 = vunpack.c.l.b16 %v578
  %v2858 = vunpack.c.l.b16 %v579
  %v2859 = vunpack.c.l.b16 %v580
  %v2860 = vunpack.c.l.b16 %v581
  %v2861 = vunpack.c.l.b16 %v582
  %v2862 = vunpack.c.l.b16 %v583
  %v2863 = vunpack.c.l.b16 %v584
  %v2864 = vunpack.c.l.b16 %v585
  %v2865 = vunpack.c.l.b16 %v586
  %v2866 = vunpack.c.l.b16 %v587
  %v2867 = vunpack.c.l.b16 %v588
  %v2868 = vunpack.c.l.b16 %v589
  %v2869 = vunpack.c.l.b16 %v590
  %v2870 = vunpack.c.l.b16 %v591
  %v2871 = vunpack.c.l.b16 %v592
  %v2872 = vunpack.c.l.b16 %v593
  %v2873 = vunpack.c.l.b16 %v594
  %v2874 = vunpack.c.l.b16 %v595
  %v2875 = vunpack.c.l.b16 %v596
  %v2876 = vunpack.c.l.b16 %v597
  %v2877 = vunpack.c.l.b16 %v598
  %v2878 = vunpack.c.l.b16 %v599
  %v2879 = vunpack.c.l.b16 %v600
  %v2880 = vunpack.c.l.b16 %v601
  %v2881 = vunpack.c.l.b16 %v602
  %v2882 = vunpack.c.l.b16 %v603
  %v2883 = vunpack.c.l.b16 %v604
  %v2884 = vunpack.c.l.b16 %v605
  %v2885 = vunpack.c.l.b16 %v606
  %v2886 = vunpack.c.l.b16 %v607
  %v2887 = vunpack.c.l.b16 %v608
  %v2888 = vunpack.c.l.b16 %v609
  %v2889 = vunpack.c.l.b16 %v610
  %v2890 = vunpack.c.l.b16 %v611
  %v2891 = vunpack.c.l.b16 %v612
  %v2892 = vunpack.c.l.b16 %v613
  %v2893 = vunpack.c.l.b16 %v614
  %v2894 = vunpack.c.l.b16 %v615
  %v2895 = vunpack.c.l.b16 %v616
  %v2896 = vunpack.c.l.b16 %v617
  %v2897 = vunpack.c.l.b16 %v618
  %v2898 = vunpack.c.l.b16 %v619
  %v2899 = vunpack.c.l.b16 %v620
  %v2900 = vunpack.c.l.b16 %v621
  %v2901 = vunpack.c.l.b16 %v622
  %v2902 = vunpack.c.l.b16 %v623
  %v2903 = vunpack.c.l.b16 %v624
  %v2904 = vunpack.c.l.b16 %v625
  %v2905 = vunpack.c.l.b16 %v626
  %v2906 = vunpack.c.l.b16 %v627
  %v2907 = vunpack.c.l.b16 %v628
  %v2908 = vunpack.c.l.b16 %v629
  %v2909 = vunpack.c.l.b16 %v630
  %v2910 = vunpack.c.l.b16 %v631
  %v2911 = vunpack.c.l.b16 %v632
  %v2912 = vunpack.c.l.b16 %v633
  %v2913 = vunpack.c.l.b16 %v634
  %v2914 = vunpack.c.l.b16 %v635
  %v2915 = vunpack.c.l.b16 %v636
  %v2916 = vunpack.c.l.b16 %v637
  %v2917 = vunpack.c.l.b16 %v638
  %v2918 = vunpack.c.l.b16 %v639
  %v2919 = vunpack.c.l.b16 %v640
  %v2920 = vunpack.c.l.b16 %v641
  %v2921 = vunpack.c.l.b16 %v642
  %v2922 = vunpack.c.l.b16 %v643
  %v2923 = vunpack.c.l.b16 %v644
  %v2924 = vunpack.c.l.b16 %v645
  %v2925 = vunpack.c.l.b16 %v646
  %v2926 = vunpack.c.l.b16 %v647
  %v2927 = vunpack.c.l.b16 %v648
  %v2928 = vunpack.c.l.b16 %v649
  %v2929 = vunpack.c.l.b16 %v650
  %v2930 = vunpack.c.l.b16 %v651
  %v2931 = vunpack.c.l.b16 %v652
  %v2932 = vunpack.c.l.b16 %v653
  %v2933 = vunpack.c.l.b16 %v654
  %v2934 = vunpack.c.l.b16 %v655
  %v2935 = vunpack.c.l.b16 %v656
  %v2936 = vunpack.c.l.b16 %v657
  %v2937 = vunpack.c.l.b16 %v658
  %v2938 = vunpack.c.l.b16 %v659
  %v2939 = vunpack.c.l.b16 %v660
  %v2940 = vunpack.c.l.b16 %v661
  %v2941 = vunpack.c.l.b16 %v662
  %v2942 = vunpack.c.l.b16 %v663
  %v2943 = vunpack.c.l.b16 %v664
  %v2944 = vunpack.c.l.b16 %v665
  %v2945 = vunpack.c.l.b16 %v666
  %v2946 = vunpack.c.l.b16 %v667
  %v2947 = vunpack.c.l.b16 %v668
  %v2948 = vunpack.c.l.b16 %v669
  %v2949 = vunpack.c.l.b16 %v670
  %v2950 = vunpack.c.l.b16 %v671
  %v2951 = vunpack.c.l.b16 %v672
  %v2952 = vunpack.c.l.b16 %v673
  %v2953 = vunpack.c.l.b16 %v674
  %v2954 = vunpack.c.l.b16 %v675
  %v2955 = vunpack.c.l.b16 %v676
  %v2956 = vunpack.c.l.b16 %v677
  %v2957 = vunpack.c.l.b16 %v678
  %v2958 = vunpack.c.l.b16 %v679
  %v2959 = vunpack.c.l.b16 %v680
  %v2960 = vunpack.c.l.b16 %v681
  %v2961 = vunpack.c.l.b16 %v682
  %v2962 = vunpack.c.l.b16 %v683
  %v2963 = vunpack.c.l.b16 %v684
  %v2964 = vunpack.c.l.b16 %v685
  %v2965 = vunpack.c.l.b16 %v686
  %v2966 = vunpack.c.l.b16 %v687
  %v2967 = vunpack.c.l.b16 %v688
  %v2968 = vunpack.c.l.b16 %v689
  %v2969 = vunpack.c.l.b16 %v690
  %v2970 = vunpack.c.l.b16 %v691
  %v2971 = vunpack.c.l.b16 %v692
  %v2972 = vunpack.c.l.b16 %v693
  %v2973 = vunpack.c.l.b16 %v694
  %v2974 = vunpack.c.l.b16 %v695
  %v2975 = vunpack.c.l.b16 %v696
  %v2976 = vunpack.c.l.b16 %v697
  %v2977 = vunpack.c.l.b16 %v698
  %v2978 = vunpack.c.l.b16 %v699
  %v2979 = vunpack.c.l.b16 %v700
  %v2980 = vunpack.c.l.b16 %v701
  %v2981 = vunpack.c.l.b16 %v702
  %v2982 = vunpack.c.l.b16 %v703
  %v2983 = vunpack.c.l.b16 %v704
  %v2984 = vunpack.c.l.b16 %v705
  %v2985 = vunpack.c.l.b16 %v706
  %v2986 = vunpack.c.l.b16 %v707
  %v2987 = vunpack.c.l.b16 %v708
  %v2988 = vunpack.c.l.b16 %v709
  %v2989 = vunpack.c.l.b16 %v710
  %v2990 = vunpack.c.l.b16 %v711
  %v2991 = vunpack.c.l.b16 %v712
  %v2992 = vunpack.c.l.b16 %v713
  %v2993 = vunpack.c.l.b16 %v714
  %v2994 = vunpack.c.l.b16 %v715
  %v2995 = vunpack.c.l.b16 %v716
  %v2996 = vunpack.c.l.b16 %v717
  %v2997 = vunpack.c.l.b16 %v718
  %v2998 = vunpack.c.l.b16 %v719
  %v2999 = vunpack.c.l.b16 %v720
  %v3000 = vunpack.c.l.b16 %v721
  %v3001 = vunpack.c.l.b16 %v722
  %v3002 = vunpack.c.l.b16 %v723
  %v3003 = vunpack.c.l.b16 %v724
  %v3004 = vunpack.c.l.b16 %v725
  %v3005 = vunpack.c.l.b16 %v726
  %v3006 = vunpack.c.l.b16 %v727
  %v3007 = vunpack.c.l.b16 %v728
  %v3008 = vunpack.c.l.b16 %v729
  %v3009 = vunpack.c.l.b16 %v730
  %v3010 = vunpack.c.l.b16 %v731
  %v3011 = vunpack.c.l.b16 %v732
  %v3012 = vunpack.c.l.b16 %v733
  %v3013 = vunpack.c.l.b16 %v734
  %v3014 = vunpack.c.l.b16 %v735
  %v3015 = vunpack.c.l.b16 %v736
  %v3016 = vunpack.c.l.b16 %v737
  %v3017 = vunpack.c.l.b16 %v738
  %v3018 = vunpack.c.l.b16 %v739
  %v3019 = vunpack.c.l.b16 %v740
  %v3020 = vunpack.c.l.b16 %v741
  %v3021 = vunpack.c.l.b16 %v742
  %v3022 = vunpack.c.l.b16 %v743
  %v3023 = vunpack.c.l.b16 %v744
  %v3024 = vunpack.c.l.b16 %v745
  %v3025 = vunpack.c.l.b16 %v746
  %v3026 = vunpack.c.l.b16 %v747
  %v3027 = vunpack.c.l.b16 %v748
  %v3028 = vunpack.c.l.b16 %v749
  %v3029 = vunpack.c.l.b16 %v750
  %v3030 = vunpack.c.l.b16 %v751
  %v3031 = vunpack.c.l.b16 %v752
  %v3032 = vunpack.c.l.b16 %v753
  %v3033 = vunpack.c.l.b16 %v754
  %v3034 = vunpack.c.l.b16 %v755
  %v3035 = vunpack.c.l.b16 %v756
  %v3036 = vunpack.c.l.b16 %v757
  %v3037 = vunpack.c.l.b16 %v758
  %v3038 = vunpack.c.l.b16 %v759
  %v3039 = vunpack.c.l.b16 %v760
  %v3040 = vunpack.c.l.b16 %v761
  %v3041 = vunpack.c.l.b16 %v762
  %v3042 = vunpack.c.l.b16 %v763
  %v3043 = vunpack.c.l.b16 %v764
  %v3044 = vunpack.c.l.b16 %v765
  %v3045 = vunpack.c.l.b16 %v766
  %v3046 = vunpack.c.l.b16 %v767
  %v3047 = vunpack.c.l.b16 %v768
  %v3048 = vunpack.c.l.b16 %v769
  %v3049 = vunpack.c.l.b16 %v770
  %v3050 = vunpack.c.l.b16 %v771
  %v3051 = vunpack.c.l.b16 %v772
  %v3052 = vunpack.c.l.b16 %v773
  %v3053 = vunpack.c.l.b16 %v774
  %v3054 = vunpack.c.l.b16 %v775
  %v3055 = vunpack.c.l.b16 %v776
  %v3056 = vunpack.c.l.b16 %v777
  %v3057 = vunpack.c.l.b16 %v778
  %v3058 = vunpack.c.l.b16 %v779
  %v3059 = vunpack.c.l.b16 %v780
  %v3060 = vunpack.c.l.b16 %v781
  %v3061 = vunpack.c.l.b16 %v782
  %v3062 = vunpack.c.l.b16 %v783
  %v3063 = vunpack.c.l.b16 %v784
  %v3064 = vunpack.c.l.b16 %v785
  %v3065 = vunpack.c.l.b16 %v786
  %v3066 = vunpack.c.l.b16 %v787
  %v3067 = vunpack.c.l.b16 %v788
  %v3068 = vunpack.c.l.b16 %v789
  %v3069 = vunpack.c.l.b16 %v790
  %v3070 = vunpack.c.l.b16 %v791
  %v3071 = vunpack.c.l.b16 %v792
  %v3072 = vunpack.c.l.b16 %v793
  %v3073 = vunpack.c.l.b16 %v794
  %v3074 = vunpack.c.l.b16 %v795
  %v3075 = vunpack.c.l.b16 %v796
  %v3076 = vunpack.c.l.b16 %v797
  %v3077 = vunpack.c.l.b16 %v798
  %v3078 = vunpack.c.l.b16 %v799
  %v3079 = vunpack.c.l.b16 %v800
  %v3080 = vunpack.c.l.b16 %v801
  %v3081 = vunpack.c.l.b16 %v802
  %v3082 = vunpack.c.l.b16 %v803
  %v3083 = vunpack.c.l.b16 %v804
  %v3084 = vunpack.c.l.b16 %v805
  %v3085 = vunpack.c.l.b16 %v806
  %v3086 = vunpack.c.l.b16 %v807
  %v3087 = vunpack.c.l.b16 %v808
  %v3088 = vunpack.c.l.b16 %v809
  %v3089 = vunpack.c.l.b16 %v810
  %v3090 = vunpack.c.l.b16 %v811
  %v3091 = vunpack.c.l.b16 %v812
  %v3092 = vunpack.c.l.b16 %v813
  %v3093 = vunpack.c.l.b16 %v814
  %v3094 = vunpack.c.l.b16 %v815
  %v3095 = vunpack.c.l.b16 %v816
  %v3096 = vunpack.c.l.b16 %v817
  %v3097 = vunpack.c.l.b16 %v818
  %v3098 = vunpack.c.l.b16 %v819
  %v3099 = vunpack.c.l.b16 %v820
  %v3100 = vunpack.c.l.b16 %v821
  %v3101 = vunpack.c.l.b16 %v822
  %v3102 = vunpack.c.l.b16 %v823
  %v3103 = vunpack.c.l.b16 %v824
  %v3104 = vunpack.c.l.b16 %v825
  %v3105 = vunpack.c.l.b16 %v826
  %v3106 = vunpack.c.l.b16 %v827
  %v3107 = vunpack.c.l.b16 %v828
  %v3108 = vunpack.c.l.b16 %v829
  %v3109 = vunpack.c.l.b16 %v830
  %v3110 = vunpack.c.l.b16 %v831
  %v3111 = vunpack.c.l.b16 %v832
  %v3112 = vunpack.c.l.b16 %v833
  %v3113 = vunpack.c.l.b16 %v834
  %v3114 = vunpack.c.l.b16 %v835
  %v3115 = vunpack.c.l.b16 %v836
  %v3116 = vunpack.c.l.b16 %v837
  %v3117 = vunpack.c.l.b16 %v838
  %v3118 = vunpack.c.l.b16 %v839
  %v3119 = vunpack.c.l.b16 %v840
  %v3120 = vunpack.c.l.b16 %v841
  %v3121 = vunpack.c.l.b16 %v842
  %v3122 = vunpack.c.l.b16 %v843
  %v3123 = vunpack.c.l.b16 %v844
  %v3124 = vunpack.c.l.b16 %v845
  %v3125 = vunpack.c.l.b16 %v846
  %v3126 = vunpack.c.l.b16 %v847
  %v3127 = vunpack.c.l.b16 %v848
  %v3128 = vunpack.c.l.b16 %v849
  %v3129 = vunpack.c.l.b16 %v850
  %v3130 = vunpack.c.l.b16 %v851
  %v3131 = vunpack.c.l.b16 %v852
  %v3132 = vunpack.c.l.b16 %v853
  %v3133 = vunpack.c.l.b16 %v854
  %v3134 = vunpack.c.l.b16 %v855
  %v3135 = vunpack.c.l.b16 %v856
  %v3136 = vunpack.c.l.b16 %v857
  %v3137 = vunpack.c.l.b16 %v858
  %v3138 = vunpack.c.l.b16 %v859
  %v3139 = vunpack.c.l.b16 %v860
  %v3140 = vunpack.c.l.b16 %v861
  %v3141 = vunpack.c.l.b16 %v862
  %v3142 = vunpack.c.l.b16 %v863
  %v3143 = vunpack.c.l.b16 %v864
  %v3144 = vunpack.c.l.b16 %v865
  %v3145 = vunpack.c.l.b16 %v866
  %v3146 = vunpack.c.l.b16 %v867
  %v3147 = vunpack.c.l.b16 %v868
  %v3148 = vunpack.c.l.b16 %v869
  %v3149 = vunpack.c.l.b16 %v870
  %v3150 = vunpack.c.l.b16 %v871
  %v3151 = vunpack.c.l.b16 %v872
  %v3152 = vunpack.c.l.b16 %v873
  %v3153 = vunpack.c.l.b16 %v874
  %v3154 = vunpack.c.l.b16 %v875
  %v3155 = vunpack.c.l.b16 %v876
  %v3156 = vunpack.c.l.b16 %v877
  %v3157 = vunpack.c.l.b16 %v878
  %v3158 = vunpack.c.l.b16 %v879
  %v3159 = vunpack.c.l.b16 %v880
  %v3160 = vunpack.c.l.b16 %v881
  %v3161 = vunpack.c.l.b16 %v882
  %v3162 = vunpack.c.l.b16 %v883
  %v3163 = vunpack.c.l.b16 %v884
  %v3164 = vunpack.c.l.b16 %v885
  %v3165 = vunpack.c.l.b16 %v886
  %v3166 = vunpack.c.l.b16 %v887
  %v3167 = vunpack.c.l.b16 %v888
  %v3168 = vunpack.c.l.b16 %v889
  %v3169 = vunpack.c.l.b16 %v890
  %v3170 = vunpack.c.l.b16 %v891
  %v3171 = vunpack.c.l.b16 %v892
  %v3172 = vunpack.c.l.b16 %v893
  %v3173 = vunpack.c.l.b16 %v894
  %v3174 = vunpack.c.l.b16 %v895
  %v3175 = vunpack.c.l.b16 %v896
  %v3176 = vunpack.c.l.b16 %v897
  %v3177 = vunpack.c.l.b16 %v898
  %v3178 = vunpack.c.l.b16 %v899
  %v3179 = vunpack.c.l.b16 %v900
  %v3180 = vunpack.c.l.b16 %v901
  %v3181 = vunpack.c.l.b16 %v902
  %v3182 = vunpack.c.l.b16 %v903
  %v3183 = vunpack.c.l.b16 %v904
  %v3184 = vunpack.c.l.b16 %v905
  %v3185 = vunpack.c.l.b16 %v906
  %v3186 = vunpack.c.l.b16 %v907
  %v3187 = vunpack.c.l.b16 %v908
  %v3188 = vunpack.c.l.b16 %v909
  %v3189 = vunpack.c.l.b16 %v910
  %v3190 = vunpack.c.l.b16 %v911
  %v3191 = vunpack.c.l.b16 %v912
  %v3192 = vunpack.c.l.b16 %v913
  %v3193 = vunpack.c.l.b16 %v914
  %v3194 = vunpack.c.l.b16 %v915
  %v3195 = vunpack.c.l.b16 %v916
  %v3196 = vunpack.c.l.b16 %v917
  %v3197 = vunpack.c.l.b16 %v918
  %v3198 = vunpack.c.l.b16 %v919
  %v3199 = vunpack.c.l.b16 %v920
  %v3200 = vunpack.c.l.b16 %v921
  %v3201 = vunpack.c.l.b16 %v922
  %v3202 = vunpack.c.l.b16 %v923
  %v3203 = vunpack.c.l.b16 %v924
  %v3204 = vunpack.c.l.b16 %v925
  %v3205 = vunpack.c.l.b16 %v926
  %v3206 = vunpack.c.l.b16 %v927
  %v3207 = vunpack.c.l.b16 %v928
  %v3208 = vunpack.c.l.b16 %v929
  %v3209 = vunpack.c.l.b16 %v930
  %v3210 = vunpack.c.l.b16 %v931
  %v3211 = vunpack.c.l.b16 %v932
  %v3212 = vunpack.c.l.b16 %v933
  %v3213 = vunpack.c.l.b16 %v934
  %v3214 = vunpack.c.l.b16 %v935
  %v3215 = vunpack.c.l.b16 %v936
  %v3216 = vunpack.c.l.b16 %v937
  %v3217 = vunpack.c.l.b16 %v938
  %v3218 = vunpack.c.l.b16 %v939
  %v3219 = vunpack.c.l.b16 %v940
  %v3220 = vunpack.c.l.b16 %v941
  %v3221 = vunpack.c.l.b16 %v942
  %v3222 = vunpack.c.l.b16 %v943
  %v3223 = vunpack.c.l.b16 %v944
  %v3224 = vunpack.c.l.b16 %v945
  %v3225 = vunpack.c.l.b16 %v946
  %v3226 = vunpack.c.l.b16 %v947
  %v3227 = vunpack.c.l.b16 %v948
  %v3228 = vunpack.c.l.b16 %v949
  %v3229 = vunpack.c.l.b16 %v950
  %v3230 = vunpack.c.l.b16 %v951
  %v3231 = vunpack.c.l.b16 %v952
  %v3232 = vunpack.c.l.b16 %v953
  %v3233 = vunpack.c.l.b16 %v954
  %v3234 = vunpack.c.l.b16 %v955
  %v3235 = vunpack.c.l.b16 %v956
  %v3236 = vunpack.c.l.b16 %v957
  %v3237 = vunpack.c.l.b16 %v958
  %v3238 = vunpack.c.l.b16 %v959
  %v3239 = vunpack.c.l.b16 %v960
  %v3240 = vunpack.c.l.b16 %v961
  %v3241 = vunpack.c.l.b16 %v962
  %v3242 = vunpack.c.l.b16 %v963
  %v3243 = vunpack.c.l.b16 %v964
  %v3244 = vunpack.c.l.b16 %v965
  %v3245 = vunpack.c.l.b16 %v966
  %v3246 = vunpack.c.l.b16 %v967
  %v3247 = vunpack.c.l.b16 %v968
  %v3248 = vunpack.c.l.b16 %v969
  %v3249 = vunpack.c.l.b16 %v970
  %v3250 = vunpack.c.l.b16 %v971
  %v3251 = vunpack.c.l.b16 %v972
  %v3252 = vunpack.c.l.b16 %v973
  %v3253 = vunpack.c.l.b16 %v974
  %v3254 = vunpack.c.l.b16 %v975
  %v3255 = vunpack.c.l.b16 %v976
  %v3256 = vunpack.c.l.b16 %v977
  %v3257 = vunpack.c.l.b16 %v978
  %v3258 = vunpack.c.l.b16 %v979
  %v3259 = vunpack.c.l.b16 %v980
  %v3260 = vunpack.c.l.b16 %v981
  %v3261 = vunpack.c.l.b16 %v982
  %v3262 = vunpack.c.l.b16 %v983
  %v3263 = vunpack.c.l.b16 %v984
  %v3264 = vunpack.c.l.b16 %v985
  %v3265 = vunpack.c.l.b16 %v986
  %v3266 = vunpack.c.l.b16 %v987
  %v3267 = vunpack.c.l.b16 %v988
  %v3268 = vunpack.c.l.b16 %v989
  %v3269 = vunpack.c.l.b16 %v990
  %v3270 = vunpack.c.l.b16 %v991
  %v3271 = vunpack.c.l.b16 %v992
  %v3272 = vunpack.c.l.b16 %v993
  %v3273 = vunpack.c.l.b16 %v994
  %v3274 = vunpack.c.l.b16 %v995
  %v3275 = vunpack.c.l.b16 %v996
  %v3276 = vunpack.c.l.b16 %v997
  %v3277 = vunpack.c.l.b16 %v998
  %v3278 = vunpack.c.l.b16 %v999
  %v3279 = vunpack.c.l.b16 %v1000
  %v3280 = vunpack.c.l.b16 %v1001
  %v3281 = vunpack.c.l.b16 %v1002
  %v3282 = vunpack.c.l.b16 %v1003
  %v3283 = vunpack.c.l.b16 %v1004
  %v3284 = vunpack.c.l.b16 %v1005
  %v3285 = vunpack.c.l.b16 %v1006
  %v3286 = vunpack.c.l.b16 %v1007
  %v3287 = vunpack.c.l.b16 %v1008
  %v3288 = vunpack.c.l.b16 %v1009
  %v3289 = vunpack.c.l.b16 %v1010
  %v3290 = vunpack.c.l.b16 %v1011
  %v3291 = vunpack.c.l.b16 %v1012
  %v3292 = vunpack.c.l.b16 %v1013
  %v3293 = vunpack.c.l.b16 %v1014
  %v3294 = vunpack.c.l.b16 %v1015
  %v3295 = vunpack.c.l.b16 %v1016
  %v3296 = vunpack.c.l.b16 %v1017
  %v3297 = vunpack.c.l.b16 %v1018
  %v3298 = vunpack.c.l.b16 %v1019
  %v3299 = vunpack.c.l.b16 %v1020
  %v3300 = vunpack.c.l.b16 %v1021
  %v3301 = vunpack.c.l.b16 %v1022
  %v3302 = vunpack.c.l.b16 %v1023
  %v3303 = vunpack.c.l.b16 %v1024
  %v3304 = vunpack.c.l.b16 %v1025
  %v3305 = vunpack.c.l.b16 %v1026
  %v3306 = vunpack.c.l.b16 %v1027
  %v3307 = vunpack.c.l.b16 %v1028
  %v3308 = vunpack.c.l.b16 %v1029
  %v3309 = vunpack.c.l.b16 %v1030
  %v3310 = vunpack.c.l.b16 %v1031
  %v3311 = vunpack.c.l.b16 %v1032
  %v3312 = vunpack.c.l.b16 %v1033
  %v3313 = vunpack.c.l.b16 %v1034
  %v3314 = vunpack.c.l.b16 %v1035
  %v3315 = vunpack.c.l.b16 %v1036
  %v3316 = vunpack.c.l.b16 %v1037
  %v3317 = vunpack.c.l.b16 %v1038
  %v3318 = vunpack.c.l.b16 %v1039
  %v3319 = vunpack.c.l.b16 %v1040
  %v3320 = vunpack.c.l.b16 %v1041
  %v3321 = vunpack.c.l.b16 %v1042
  %v3322 = vunpack.c.l.b16 %v1043
  %v3323 = vunpack.c.l.b16 %v1044
  %v3324 = vunpack.c.l.b16 %v1045
  %v3325 = vunpack.c.l.b16 %v1046
  %v3326 = vunpack.c.l.b16 %v1047
  %v3327 = vunpack.c.l.b16 %v1048
  %v3328 = vunpack.c.l.b16 %v1049
  %v3329 = vunpack.c.l.b16 %v1050
  %v3330 = vunpack.c.l.b16 %v1051
  %v3331 = vunpack.c.l.b16 %v1052
  %v3332 = vunpack.c.l.b16 %v1053
  %v3333 = vunpack.c.l.b16 %v1054
  %v3334 = vunpack.c.l.b16 %v1055
  %v3335 = vunpack.c.l.b16 %v1056
  %v3336 = vunpack.c.l.b16 %v1057
  %v3337 = vunpack.c.l.b16 %v1058
  %v3338 = vunpack.c.l.b16 %v1059
  %v3339 = vunpack.c.l.b16 %v1060
  %v3340 = vunpack.c.l.b16 %v1061
  %v3341 = vunpack.c.l.b16 %v1062
  %v3342 = vunpack.c.l.b16 %v1063
  %v3343 = vunpack.c.l.b16 %v1064
  %v3344 = vunpack.c.l.b16 %v1065
  %v3345 = vunpack.c.l.b16 %v1066
  %v3346 = vunpack.c.l.b16 %v1067
  %v3347 = vunpack.c.l.b16 %v1068
  %v3348 = vunpack.c.l.b16 %v1069
  %v3349 = vunpack.c.l.b16 %v1070
  %v3350 = vunpack.c.l.b16 %v1071
  %v3351 = vunpack.c.l.b16 %v1072
  %v3352 = vunpack.c.l.b16 %v1073
  %v3353 = vunpack.c.l.b16 %v1074
  %v3354 = vunpack.c.l.b16 %v1075
  %v3355 = vunpack.c.l.b16 %v1076
  %v3356 = vunpack.c.l.b16 %v1077
  %v3357 = vunpack.c.l.b16 %v1078
  %v3358 = vunpack.c.l.b16 %v1079
  %v3359 = vunpack.c.l.b16 %v1080
  %v3360 = vunpack.c.l.b16 %v1081
  %v3361 = vunpack.c.l.b16 %v1082
  %v3362 = vpack.c.b16 %v2339, %v2338
  %v3363 = vpack.c.b16 %v2341, %v2340
  %v3364 = vpack.c.b16 %v2343, %v2342
  %v3365 = vpack.c.b16 %v2345, %v2344
  %v3366 = vpack.c.b16 %v2347, %v2346
  %v3367 = vpack.c.b16 %v2349, %v2348
  %v3368 = vpack.c.b16 %v2351, %v2350
  %v3369 = vpack.c.b16 %v2353, %v2352
  %v3370 = vpack.c.b16 %v2355, %v2354
  %v3371 = vpack.c.b16 %v2357, %v2356
  %v3372 = vpack.c.b16 %v2359, %v2358
  %v3373 = vpack.c.b16 %v2361, %v2360
  %v3374 = vpack.c.b16 %v2363, %v2362
  %v3375 = vpack.c.b16 %v2365, %v2364
  %v3376 = vpack.c.b16 %v2367, %v2366
  %v3377 = vpack.c.b16 %v2369, %v2368
  %v3378 = vpack.c.b16 %v2371, %v2370
  %v3379 = vpack.c.b16 %v2373, %v2372
  %v3380 = vpack.c.b16 %v2375, %v2374
  %v3381 = vpack.c.b16 %v2377, %v2376
  %v3382 = vpack.c.b16 %v2379, %v2378
  %v3383 = vpack.c.b16 %v2381, %v2380
  %v3384 = vpack.c.b16 %v2383, %v2382
  %v3385 = vpack.c.b16 %v2385, %v2384
  %v3386 = vpack.c.b16 %v2387, %v2386
  %v3387 = vpack.c.b16 %v2389, %v2388
  %v3388 = vpack.c.b16 %v2391, %v2390
  %v3389 = vpack.c.b16 %v2393, %v2392
  %v3390 = vpack.c.b16 %v2395, %v2394
  %v3391 = vpack.c.b16 %v2397, %v2396
  %v3392 = vpack.c.b16 %v2399, %v2398
  %v3393 = vpack.c.b16 %v2401, %v2400
  %v3394 = vpack.c.b16 %v2403, %v2402
  %v3395 = vpack.c.b16 %v2405, %v2404
  %v3396 = vpack.c.b16 %v2407, %v2406
  %v3397 = vpack.c.b16 %v2409, %v2408
  %v3398 = vpack.c.b16 %v2411, %v2410
  %v3399 = vpack.c.b16 %v2413, %v2412
  %v3400 = vpack.c.b16 %v2415, %v2414
  %v3401 = vpack.c.b16 %v2417, %v2416
  %v3402 = vpack.c.b16 %v2419, %v2418
  %v3403 = vpack.c.b16 %v2421, %v2420
  %v3404 = vpack.c.b16 %v2423, %v2422
  %v3405 = vpack.c.b16 %v2425, %v2424
  %v3406 = vpack.c.b16 %v2427, %v2426
  %v3407 = vpack.c.b16 %v2429, %v2428
  %v3408 = vpack.c.b16 %v2431, %v2430
  %v3409 = vpack.c.b16 %v2433, %v2432
  %v3410 = vpack.c.b16 %v2435, %v2434
  %v3411 = vpack.c.b16 %v2437, %v2436
  %v3412 = vpack.c.b16 %v2439, %v2438
  %v3413 = vpack.c.b16 %v2441, %v2440
  %v3414 = vpack.c.b16 %v2443, %v2442
  %v3415 = vpack.c.b16 %v2445, %v2444
  %v3416 = vpack.c.b16 %v2447, %v2446
  %v3417 = vpack.c.b16 %v2449, %v2448
  %v3418 = vpack.c.b16 %v2451, %v2450
  %v3419 = vpack.c.b16 %v2453, %v2452
  %v3420 = vpack.c.b16 %v2455, %v2454
  %v3421 = vpack.c.b16 %v2457, %v2456
  %v3422 = vpack.c.b16 %v2459, %v2458
  %v3423 = vpack.c.b16 %v2461, %v2460
  %v3424 = vpack.c.b16 %v2463, %v2462
  %v3425 = vpack.c.b16 %v2465, %v2464
  %v3426 = vpack.c.b16 %v2467, %v2466
  %v3427 = vpack.c.b16 %v2469, %v2468
  %v3428 = vpack.c.b16 %v2471, %v2470
  %v3429 = vpack.c.b16 %v2473, %v2472
  %v3430 = vpack.c.b16 %v2475, %v2474
  %v3431 = vpack.c.b16 %v2477, %v2476
  %v3432 = vpack.c.b16 %v2479, %v2478
  %v3433 = vpack.c.b16 %v2481, %v2480
  %v3434 = vpack.c.b16 %v2483, %v2482
  %v3435 = vpack.c.b16 %v2485, %v2484
  %v3436 = vpack.c.b16 %v2487, %v2486
  %v3437 = vpack.c.b16 %v2489, %v2488
  %v3438 = vpack.c.b16 %v2491, %v2490
  %v3439 = vpack.c.b16 %v2493, %v2492
  %v3440 = vpack.c.b16 %v2495, %v2494
  %v3441 = vpack.c.b16 %v2497, %v2496
  %v3442 = vpack.c.b16 %v2499, %v2498
  %v3443 = vpack.c.b16 %v2501, %v2500
  %v3444 = vpack.c.b16 %v2503, %v2502
  %v3445 = vpack.c.b16 %v2505, %v2504
  %v3446 = vpack.c.b16 %v2507, %v2506
  %v3447 = vpack.c.b16 %v2509, %v2508
  %v3448 = vpack.c.b16 %v2511, %v2510
  %v3449 = vpack.c.b16 %v2513, %v2512
  %v3450 = vpack.c.b16 %v2515, %v2514
  %v3451 = vpack.c.b16 %v2517, %v2516
  %v3452 = vpack.c.b16 %v2519, %v2518
  %v3453 = vpack.c.b16 %v2521, %v2520
  %v3454 = vpack.c.b16 %v2523, %v2522
  %v3455 = vpack.c.b16 %v2525, %v2524
  %v3456 = vpack.c.b16 %v2527, %v2526
  %v3457 = vpack.c.b16 %v2529, %v2528
  %v3458 = vpack.c.b16 %v2531, %v2530
  %v3459 = vpack.c.b16 %v2533, %v2532
  %v3460 = vpack.c.b16 %v2535, %v2534
  %v3461 = vpack.c.b16 %v2537, %v2536
  %v3462 = vpack.c.b16 %v2539, %v2538
  %v3463 = vpack.c.b16 %v2541, %v2540
  %v3464 = vpack.c.b16 %v2543, %v2542
  %v3465 = vpack.c.b16 %v2545, %v2544
  %v3466 = vpack.c.b16 %v2547, %v2546
  %v3467 = vpack.c.b16 %v2549, %v2548
  %v3468 = vpack.c.b16 %v2551, %v2550
  %v3469 = vpack.c.b16 %v2553, %v2552
  %v3470 = vpack.c.b16 %v2555, %v2554
  %v3471 = vpack.c.b16 %v2557, %v2556
  %v3472 = vpack.c.b16 %v2559, %v2558
  %v3473 = vpack.c.b16 %v2561, %v2560
  %v3474 = vpack.c.b16 %v2563, %v2562
  %v3475 = vpack.c.b16 %v2565, %v2564
  %v3476 = vpack.c.b16 %v2567, %v2566
  %v3477 = vpack.c.b16 %v2569, %v2568
  %v3478 = vpack.c.b16 %v2571, %v2570
  %v3479 = vpack.c.b16 %v2573, %v2572
  %v3480 = vpack.c.b16 %v2575, %v2574
  %v3481 = vpack.c.b16 %v2577, %v2576
  %v3482 = vpack.c.b16 %v2579, %v2578
  %v3483 = vpack.c.b16 %v2581, %v2580
  %v3484 = vpack.c.b16 %v2583, %v2582
  %v3485 = vpack.c.b16 %v2585, %v2584
  %v3486 = vpack.c.b16 %v2587, %v2586
  %v3487 = vpack.c.b16 %v2589, %v2588
  %v3488 = vpack.c.b16 %v2591, %v2590
  %v3489 = vpack.c.b16 %v2593, %v2592
  %v3490 = vpack.c.b16 %v2595, %v2594
  %v3491 = vpack.c.b16 %v2597, %v2596
  %v3492 = vpack.c.b16 %v2599, %v2598
  %v3493 = vpack.c.b16 %v2601, %v2600
  %v3494 = vpack.c.b16 %v2603, %v2602
  %v3495 = vpack.c.b16 %v2605, %v2604
  %v3496 = vpack.c.b16 %v2607, %v2606
  %v3497 = vpack.c.b16 %v2609, %v2608
  %v3498 = vpack.c.b16 %v2611, %v2610
  %v3499 = vpack.c.b16 %v2613, %v2612
  %v3500 = vpack.c.b16 %v2615, %v2614
  %v3501 = vpack.c.b16 %v2617, %v2616
  %v3502 = vpack.c.b16 %v2619, %v2618
  %v3503 = vpack.c.b16 %v2621, %v2620
  %v3504 = vpack.c.b16 %v2623, %v2622
  %v3505 = vpack.c.b16 %v2625, %v2624
  %v3506 = vpack.c.b16 %v2627, %v2626
  %v3507 = vpack.c.b16 %v2629, %v2628
  %v3508 = vpack.c.b16 %v2631, %v2630
  %v3509 = vpack.c.b16 %v2633, %v2632
  %v3510 = vpack.c.b16 %v2635, %v2634
  %v3511 = vpack.c.b16 %v2637, %v2636
  %v3512 = vpack.c.b16 %v2639, %v2638
  %v3513 = vpack.c.b16 %v2641, %v2640
  %v3514 = vpack.c.b16 %v2643, %v2642
  %v3515 = vpack.c.b16 %v2645, %v2644
  %v3516 = vpack.c.b16 %v2647, %v2646
  %v3517 = vpack.c.b16 %v2649, %v2648
  %v3518 = vpack.c.b16 %v2651, %v2650
  %v3519 = vpack.c.b16 %v2653, %v2652
  %v3520 = vpack.c.b16 %v2655, %v2654
  %v3521 = vpack.c.b16 %v2657, %v2656
  %v3522 = vpack.c.b16 %v2659, %v2658
  %v3523 = vpack.c.b16 %v2661, %v2660
  %v3524 = vpack.c.b16 %v2663, %v2662
  %v3525 = vpack.c.b16 %v2665, %v2664
  %v3526 = vpack.c.b16 %v2667, %v2666
  %v3527 = vpack.c.b16 %v2669, %v2668
  %v3528 = vpack.c.b16 %v2671, %v2670
  %v3529 = vpack.c.b16 %v2673, %v2672
  %v3530 = vpack.c.b16 %v2675, %v2674
  %v3531 = vpack.c.b16 %v2677, %v2676
  %v3532 = vpack.c.b16 %v2679, %v2678
  %v3533 = vpack.c.b16 %v2681, %v2680
  %v3534 = vpack.c.b16 %v2683, %v2682
  %v3535 = vpack.c.b16 %v2685, %v2684
  %v3536 = vpack.c.b16 %v2687, %v2686
  %v3537 = vpack.c.b16 %v2689, %v2688
  %v3538 = vpack.c.b16 %v2691, %v2690
  %v3539 = vpack.c.b16 %v2693, %v2692
  %v3540 = vpack.c.b16 %v2695, %v2694
  %v3541 = vpack.c.b16 %v2697, %v2696
  %v3542 = vpack.c.b16 %v2699, %v2698
  %v3543 = vpack.c.b16 %v2701, %v2700
  %v3544 = vpack.c.b16 %v2703, %v2702
  %v3545 = vpack.c.b16 %v2705, %v2704
  %v3546 = vpack.c.b16 %v2707, %v2706
  %v3547 = vpack.c.b16 %v2709, %v2708
  %v3548 = vpack.c.b16 %v2711, %v2710
  %v3549 = vpack.c.b16 %v2713, %v2712
  %v3550 = vpack.c.b16 %v2715, %v2714
  %v3551 = vpack.c.b16 %v2717, %v2716
  %v3552 = vpack.c.b16 %v2719, %v2718
  %v3553 = vpack.c.b16 %v2721, %v2720
  %v3554 = vpack.c.b16 %v2723, %v2722
  %v3555 = vpack.c.b16 %v2725, %v2724
  %v3556 = vpack.c.b16 %v2727, %v2726
  %v3557 = vpack.c.b16 %v2729, %v2728
  %v3558 = vpack.c.b16 %v2731, %v2730
  %v3559 = vpack.c.b16 %v2733, %v2732
  %v3560 = vpack.c.b16 %v2735, %v2734
  %v3561 = vpack.c.b16 %v2737, %v2736
  %v3562 = vpack.c.b16 %v2739, %v2738
  %v3563 = vpack.c.b16 %v2741, %v2740
  %v3564 = vpack.c.b16 %v2743, %v2742
  %v3565 = vpack.c.b16 %v2745, %v2744
  %v3566 = vpack.c.b16 %v2747, %v2746
  %v3567 = vpack.c.b16 %v2749, %v2748
  %v3568 = vpack.c.b16 %v2751, %v2750
  %v3569 = vpack.c.b16 %v2753, %v2752
  %v3570 = vpack.c.b16 %v2755, %v2754
  %v3571 = vpack.c.b16 %v2757, %v2756
  %v3572 = vpack.c.b16 %v2759, %v2758
  %v3573 = vpack.c.b16 %v2761, %v2760
  %v3574 = vpack.c.b16 %v2763, %v2762
  %v3575 = vpack.c.b16 %v2765, %v2764
  %v3576 = vpack.c.b16 %v2767, %v2766
  %v3577 = vpack.c.b16 %v2769, %v2768
  %v3578 = vpack.c.b16 %v2771, %v2770
  %v3579 = vpack.c.b16 %v2773, %v2772
  %v3580 = vpack.c.b16 %v2775, %v2774
  %v3581 = vpack.c.b16 %v2777, %v2776
  %v3582 = vpack.c.b16 %v2779, %v2778
  %v3583 = vpack.c.b16 %v2781, %v2780
  %v3584 = vpack.c.b16 %v2783, %v2782
  %v3585 = vpack.c.b16 %v2785, %v2784
  %v3586 = vpack.c.b16 %v2787, %v2786
  %v3587 = vpack.c.b16 %v2789, %v2788
  %v3588 = vpack.c.b16 %v2791, %v2790
  %v3589 = vpack.c.b16 %v2793, %v2792
  %v3590 = vpack.c.b16 %v2795, %v2794
  %v3591 = vpack.c.b16 %v2797, %v2796
  %v3592 = vpack.c.b16 %v2799, %v2798
  %v3593 = vpack.c.b16 %v2801, %v2800
  %v3594 = vpack.c.b16 %v2803, %v2802
  %v3595 = vpack.c.b16 %v2805, %v2804
  %v3596 = vpack.c.b16 %v2807, %v2806
  %v3597 = vpack.c.b16 %v2809, %v2808
  %v3598 = vpack.c.b16 %v2811, %v2810
  %v3599 = vpack.c.b16 %v2813, %v2812
  %v3600 = vpack.c.b16 %v2815, %v2814
  %v3601 = vpack.c.b16 %v2817, %v2816
  %v3602 = vpack.c.b16 %v2819, %v2818
  %v3603 = vpack.c.b16 %v2821, %v2820
  %v3604 = vpack.c.b16 %v2823, %v2822
  %v3605 = vpack.c.b16 %v2825, %v2824
  %v3606 = vpack.c.b16 %v2827, %v2826
  %v3607 = vpack.c.b16 %v2829, %v2828
  %v3608 = vpack.c.b16 %v2831, %v2830
  %v3609 = vpack.c.b16 %v2833, %v2832
  %v3610 = vpack.c.b16 %v2835, %v2834
  %v3611 = vpack.c.b16 %v2837, %v2836
  %v3612 = vpack.c.b16 %v2839, %v2838
  %v3613 = vpack.c.b16 %v2841, %v2840
  %v3614 = vpack.c.b16 %v2843, %v2842
  %v3615 = vpack.c.b16 %v2845, %v2844
  %v3616 = vpack.c.b16 %v2847, %v2846
  %v3617 = vpack.c.b16 %v2849, %v2848
  %v3618 = vpack.c.b16 %v2851, %v2850
  %v3619 = vpack.c.b16 %v2853, %v2852
  %v3620 = vpack.c.b16 %v2855, %v2854
  %v3621 = vpack.c.b16 %v2857, %v2856
  %v3622 = vpack.c.b16 %v2859, %v2858
  %v3623 = vpack.c.b16 %v2861, %v2860
  %v3624 = vpack.c.b16 %v2863, %v2862
  %v3625 = vpack.c.b16 %v2865, %v2864
  %v3626 = vpack.c.b16 %v2867, %v2866
  %v3627 = vpack.c.b16 %v2869, %v2868
  %v3628 = vpack.c.b16 %v2871, %v2870
  %v3629 = vpack.c.b16 %v2873, %v2872
  %v3630 = vpack.c.b16 %v2875, %v2874
  %v3631 = vpack.c.b16 %v2877, %v2876
  %v3632 = vpack.c.b16 %v2879, %v2878
  %v3633 = vpack.c.b16 %v2881, %v2880
  %v3634 = vpack.c.b16 %v2883, %v2882
  %v3635 = vpack.c.b16 %v2885, %v2884
  %v3636 = vpack.c.b16 %v2887, %v2886
  %v3637 = vpack.c.b16 %v2889, %v2888
  %v3638 = vpack.c.b16 %v2891, %v2890
  %v3639 = vpack.c.b16 %v2893, %v2892
  %v3640 = vpack.c.b16 %v2895, %v2894
  %v3641 = vpack.c.b16 %v2897, %v2896
  %v3642 = vpack.c.b16 %v2899, %v2898
  %v3643 = vpack.c.b16 %v2901, %v2900
  %v3644 = vpack.c.b16 %v2903, %v2902
  %v3645 = vpack.c.b16 %v2905, %v2904
  %v3646 = vpack.c.b16 %v2907, %v2906
  %v3647 = vpack.c.b16 %v2909, %v2908
  %v3648 = vpack.c.b16 %v2911, %v2910
  %v3649 = vpack.c.b16 %v2913, %v2912
  %v3650 = vpack.c.b16 %v2915, %v2914
  %v3651 = vpack.c.b16 %v2917, %v2916
  %v3652 = vpack.c.b16 %v2919, %v2918
  %v3653 = vpack.c.b16 %v2921, %v2920
  %v3654 = vpack.c.b16 %v2923, %v2922
  %v3655 = vpack.c.b16 %v2925, %v2924
  %v3656 = vpack.c.b16 %v2927, %v2926
  %v3657 = vpack.c.b16 %v2929, %v2928
  %v3658 = vpack.c.b16 %v2931, %v2930
  %v3659 = vpack.c.b16 %v2933, %v2932
  %v3660 = vpack.c.b16 %v2935, %v2934
  %v3661 = vpack.c.b16 %v2937, %v2936
  %v3662 = vpack.c.b16 %v2939, %v2938
  %v3663 = vpack.c.b16 %v2941, %v2940
  %v3664 = vpack.c.b16 %v2943, %v2942
  %v3665 = vpack.c.b16 %v2945, %v2944
  %v3666 = vpack.c.b16 %v2947, %v2946
  %v3667 = vpack.c.b16 %v2949, %v2948
  %v3668 = vpack.c.b16 %v2951, %v2950
  %v3669 = vpack.c.b16 %v2953, %v2952
  %v3670 = vpack.c.b16 %v2955, %v2954
  %v3671 = vpack.c.b16 %v2957, %v2956
  %v3672 = vpack.c.b16 %v2959, %v2958
  %v3673 = vpack.c.b16 %v2961, %v2960
  %v3674 = vpack.c.b16 %v2963, %v2962
  %v3675 = vpack.c.b16 %v2965, %v2964
  %v3676 = vpack.c.b16 %v2967, %v2966
  %v3677 = vpack.c.b16 %v2969, %v2968
  %v3678 = vpack.c.b16 %v2971, %v2970
  %v3679 = vpack.c.b16 %v2973, %v2972
  %v3680 = vpack.c.b16 %v2975, %v2974
  %v3681 = vpack.c.b16 %v2977, %v2976
  %v3682 = vpack.c.b16 %v2979, %v2978
  %v3683 = vpack.c.b16 %v2981, %v2980
  %v3684 = vpack.c.b16 %v2983, %v2982
  %v3685 = vpack.c.b16 %v2985, %v2984
  %v3686 = vpack.c.b16 %v2987, %v2986
  %v3687 = vpack.c.b16 %v2989, %v2988
  %v3688 = vpack.c.b16 %v2991, %v2990
  %v3689 = vpack.c.b16 %v2993, %v2992
  %v3690 = vpack.c.b16 %v2995, %v2994
  %v3691 = vpack.c.b16 %v2997, %v2996
  %v3692 = vpack.c.b16 %v2999, %v2998
  %v3693 = vpack.c.b16 %v3001, %v3000
  %v3694 = vpack.c.b16 %v3003, %v3002
  %v3695 = vpack.c.b16 %v3005, %v3004
  %v3696 = vpack.c.b16 %v3007, %v3006
  %v3697 = vpack.c.b16 %v3009, %v3008
  %v3698 = vpack.c.b16 %v3011, %v3010
  %v3699 = vpack.c.b16 %v3013, %v3012
  %v3700 = vpack.c.b16 %v3015, %v3014
  %v3701 = vpack.c.b16 %v3017, %v3016
  %v3702 = vpack.c.b16 %v3019, %v3018
  %v3703 = vpack.c.b16 %v3021, %v3020
  %v3704 = vpack.c.b16 %v3023, %v3022
  %v3705 = vpack.c.b16 %v3025, %v3024
  %v3706 = vpack.c.b16 %v3027, %v3026
  %v3707 = vpack.c.b16 %v3029, %v3028
  %v3708 = vpack.c.b16 %v3031, %v3030
  %v3709 = vpack.c.b16 %v3033, %v3032
  %v3710 = vpack.c.b16 %v3035, %v3034
  %v3711 = vpack.c.b16 %v3037, %v3036
  %v3712 = vpack.c.b16 %v3039, %v3038
  %v3713 = vpack.c.b16 %v3041, %v3040
  %v3714 = vpack.c.b16 %v3043, %v3042
  %v3715 = vpack.c.b16 %v3045, %v3044
  %v3716 = vpack.c.b16 %v3047, %v3046
  %v3717 = vpack.c.b16 %v3049, %v3048
  %v3718 = vpack.c.b16 %v3051, %v3050
  %v3719 = vpack.c.b16 %v3053, %v3052
  %v3720 = vpack.c.b16 %v3055, %v3054
  %v3721 = vpack.c.b16 %v3057, %v3056
  %v3722 = vpack.c.b16 %v3059, %v3058
  %v3723 = vpack.c.b16 %v3061, %v3060
  %v3724 = vpack.c.b16 %v3063, %v3062
  %v3725 = vpack.c.b16 %v3065, %v3064
  %v3726 = vpack.c.b16 %v3067, %v3066
  %v3727 = vpack.c.b16 %v3069, %v3068
  %v3728 = vpack.c.b16 %v3071, %v3070
  %v3729 = vpack.c.b16 %v3073, %v3072
  %v3730 = vpack.c.b16 %v3075, %v3074
  %v3731 = vpack.c.b16 %v3077, %v3076
  %v3732 = vpack.c.b16 %v3079, %v3078
  %v3733 = vpack.c.b16 %v3081, %v3080
  %v3734 = vpack.c.b16 %v3083, %v3082
  %v3735 = vpack.c.b16 %v3085, %v3084
  %v3736 = vpack.c.b16 %v3087, %v3086
  %v3737 = vpack.c.b16 %v3089, %v3088
  %v3738 = vpack.c.b16 %v3091, %v3090
  %v3739 = vpack.c.b16 %v3093, %v3092
  %v3740 = vpack.c.b16 %v3095, %v3094
  %v3741 = vpack.c.b16 %v3097, %v3096
  %v3742 = vpack.c.b16 %v3099, %v3098
  %v3743 = vpack.c.b16 %v3101, %v3100
  %v3744 = vpack.c.b16 %v3103, %v3102
  %v3745 = vpack.c.b16 %v3105, %v3104
  %v3746 = vpack.c.b16 %v3107, %v3106
  %v3747 = vpack.c.b16 %v3109, %v3108
  %v3748 = vpack.c.b16 %v3111, %v3110
  %v3749 = vpack.c.b16 %v3113, %v3112
  %v3750 = vpack.c.b16 %v3115, %v3114
  %v3751 = vpack.c.b16 %v3117, %v3116
  %v3752 = vpack.c.b16 %v3119, %v3118
  %v3753 = vpack.c.b16 %v3121, %v3120
  %v3754 = vpack.c.b16 %v3123, %v3122
  %v3755 = vpack.c.b16 %v3125, %v3124
  %v3756 = vpack.c.b16 %v3127, %v3126
  %v3757 = vpack.c.b16 %v3129, %v3128
  %v3758 = vpack.c.b16 %v3131, %v3130
  %v3759 = vpack.c.b16 %v3133, %v3132
  %v3760 = vpack.c.b16 %v3135, %v3134
  %v3761 = vpack.c.b16 %v3137, %v3136
  %v3762 = vpack.c.b16 %v3139, %v3138
  %v3763 = vpack.c.b16 %v3141, %v3140
  %v3764 = vpack.c.b16 %v3143, %v3142
  %v3765 = vpack.c.b16 %v3145, %v3144
  %v3766 = vpack.c.b16 %v3147, %v3146
  %v3767 = vpack.c.b16 %v3149, %v3148
  %v3768 = vpack.c.b16 %v3151, %v3150
  %v3769 = vpack.c.b16 %v3153, %v3152
  %v3770 = vpack.c.b16 %v3155, %v3154
  %v3771 = vpack.c.b16 %v3157, %v3156
  %v3772 = vpack.c.b16 %v3159, %v3158
  %v3773 = vpack.c.b16 %v3161, %v3160
  %v3774 = vpack.c.b16 %v3163, %v3162
  %v3775 = vpack.c.b16 %v3165, %v3164
  %v3776 = vpack.c.b16 %v3167, %v3166
  %v3777 = vpack.c.b16 %v3169, %v3168
  %v3778 = vpack.c.b16 %v3171, %v3170
  %v3779 = vpack.c.b16 %v3173, %v3172
  %v3780 = vpack.c.b16 %v3175, %v3174
  %v3781 = vpack.c.b16 %v3177, %v3176
  %v3782 = vpack.c.b16 %v3179, %v3178
  %v3783 = vpack.c.b16 %v3181, %v3180
  %v3784 = vpack.c.b16 %v3183, %v3182
  %v3785 = vpack.c.b16 %v3185, %v3184
  %v3786 = vpack.c.b16 %v3187, %v3186
  %v3787 = vpack.c.b16 %v3189, %v3188
  %v3788 = vpack.c.b16 %v3191, %v3190
  %v3789 = vpack.c.b16 %v3193, %v3192
  %v3790 = vpack.c.b16 %v3195, %v3194
  %v3791 = vpack.c.b16 %v3197, %v3196
  %v3792 = vpack.c.b16 %v3199, %v3198
  %v3793 = vpack.c.b16 %v3201, %v3200
  %v3794 = vpack.c.b16 %v3203, %v3202
  %v3795 = vpack.c.b16 %v3205, %v3204
  %v3796 = vpack.c.b16 %v3207, %v3206
  %v3797 = vpack.c.b16 %v3209, %v3208
  %v3798 = vpack.c.b16 %v3211, %v3210
  %v3799 = vpack.c.b16 %v3213, %v3212
  %v3800 = vpack.c.b16 %v3215, %v3214
  %v3801 = vpack.c.b16 %v3217, %v3216
  %v3802 = vpack.c.b16 %v3219, %v3218
  %v3803 = vpack.c.b16 %v3221, %v3220
  %v3804 = vpack.c.b16 %v3223, %v3222
  %v3805 = vpack.c.b16 %v3225, %v3224
  %v3806 = vpack.c.b16 %v3227, %v3226
  %v3807 = vpack.c.b16 %v3229, %v3228
  %v3808 = vpack.c.b16 %v3231, %v3230
  %v3809 = vpack.c.b16 %v3233, %v3232
  %v3810 = vpack.c.b16 %v3235, %v3234
  %v3811 = vpack.c.b16 %v3237, %v3236
  %v3812 = vpack.c.b16 %v3239, %v3238
  %v3813 = vpack.c.b16 %v3241, %v3240
  %v3814 = vpack.c.b16 %v3243, %v3242
  %v3815 = vpack.c.b16 %v3245, %v3244
  %v3816 = vpack.c.b16 %v3247, %v3246
  %v3817 = vpack.c.b16 %v3249, %v3248
  %v3818 = vpack.c.b16 %v3251, %v3250
  %v3819 = vpack.c.b16 %v3253, %v3252
  %v3820 = vpack.c.b16 %v3255, %v3254
  %v3821 = vpack.c.b16 %v3257, %v3256
  %v3822 = vpack.c.b16 %v3259, %v3258
  %v3823 = vpack.c.b16 %v3261, %v3260
  %v3824 = vpack.c.b16 %v3263, %v3262
  %v3825 = vpack.c.b16 %v3265, %v3264
  %v3826 = vpack.c.b16 %v3267, %v3266
  %v3827 = vpack.c.b16 %v3269, %v3268
  %v3828 = vpack.c.b16 %v3271, %v3270
  %v3829 = vpack.c.b16 %v3273, %v3272
  %v3830 = vpack.c.b16 %v3275, %v3274
  %v3831 = vpack.c.b16 %v3277, %v3276
  %v3832 = vpack.c.b16 %v3279, %v3278
  %v3833 = vpack.c.b16 %v3281, %v3280
  %v3834 = vpack.c.b16 %v3283, %v3282
  %v3835 = vpack.c.b16 %v3285, %v3284
  %v3836 = vpack.c.b16 %v3287, %v3286
  %v3837 = vpack.c.b16 %v3289, %v3288
  %v3838 = vpack.c.b16 %v3291, %v3290
  %v3839 = vpack.c.b16 %v3293, %v3292
  %v3840 = vpack.c.b16 %v3295, %v3294
  %v3841 = vpack.c.b16 %v3297, %v3296
  %v3842 = vpack.c.b16 %v3299, %v3298
  %v3843 = vpack.c.b16 %v3301, %v3300
  %v3844 = vpack.c.b16 %v3303, %v3302
  %v3845 = vpack.c.b16 %v3305, %v3304
  %v3846 = vpack.c.b16 %v3307, %v3306
  %v3847 = vpack.c.b16 %v3309, %v3308
  %v3848 = vpack.c.b16 %v3311, %v3310
  %v3849 = vpack.c.b16 %v3313, %v3312
  %v3850 = vpack.c.b16 %v3315, %v3314
  %v3851 = vpack.c.b16 %v3317, %v3316
  %v3852 = vpack.c.b16 %v3319, %v3318
  %v3853 = vpack.c.b16 %v3321, %v3320
  %v3854 = vpack.c.b16 %v3323, %v3322
  %v3855 = vpack.c.b16 %v3325, %v3324
  %v3856 = vpack.c.b16 %v3327, %v3326
  %v3857 = vpack.c.b16 %v3329, %v3328
  %v3858 = vpack.c.b16 %v3331, %v3330
  %v3859 = vpack.c.b16 %v3333, %v3332
  %v3860 = vpack.c.b16 %v3335, %v3334
  %v3861 = vpack.c.b16 %v3337, %v3336
  %v3862 = vpack.c.b16 %v3339, %v3338
  %v3863 = vpack.c.b16 %v3341, %v3340
  %v3864 = vpack.c.b16 %v3343, %v3342
  %v3865 = vpack.c.b16 %v3345, %v3344
  %v3866 = vpack.c.b16 %v3347, %v3346
  %v3867 = vpack.c.b16 %v3349, %v3348
  %v3868 = vpack.c.b16 %v3351, %v3350
  %v3869 = vpack.c.b16 %v3353, %v3352
  %v3870 = vpack.c.b16 %v3355, %v3354
  %v3871 = vpack.c.b16 %v3357, %v3356
  %v3872 = vpack.c.b16 %v3359, %v3358
  %v3873 = vpack.c.b16 %v3361, %v3360
  %4386 = vmatprep.subr.bf16.mxu0 0
  %4387 = vmatpush1.bf16.msra.mxu0 %v3362
  %4388 = vmatprep.subr.bf16.mxu0 0
  %4389 = vmatpush1.bf16.msra.mxu0 %v3363
  %4390 = vmatprep.subr.bf16.mxu0 0
  %4391 = vmatpush1.bf16.msra.mxu0 %v3364
  %4392 = vmatprep.subr.bf16.mxu0 0
  %4393 = vmatpush1.bf16.msra.mxu0 %v3365
  %4394 = vmatprep.subr.bf16.mxu0 0
  %4395 = vmatpush1.bf16.msra.mxu0 %v3366
  %4396 = vmatprep.subr.bf16.mxu0 0
  %4397 = vmatpush1.bf16.msra.mxu0 %v3367
  %4398 = vmatprep.subr.bf16.mxu0 0
  %4399 = vmatpush1.bf16.msra.mxu0 %v3368
  %4400 = vmatprep.subr.bf16.mxu0 0
  %4401 = vmatpush1.bf16.msra.mxu0 %v3369
  %4402 = vmatprep.subr.bf16.mxu0 0
  %4403 = vmatpush1.bf16.msra.mxu0 %v3370
  %4404 = vmatprep.subr.bf16.mxu0 0
  %4405 = vmatpush1.bf16.msra.mxu0 %v3371
  %4406 = vmatprep.subr.bf16.mxu0 0
  %4407 = vmatpush1.bf16.msra.mxu0 %v3372
  %4408 = vmatprep.subr.bf16.mxu0 0
  %4409 = vmatpush1.bf16.msra.mxu0 %v3373
  %4410 = vmatprep.subr.bf16.mxu0 0
  %4411 = vmatpush1.bf16.msra.mxu0 %v3374
  %4412 = vmatprep.subr.bf16.mxu0 0
  %4413 = vmatpush1.bf16.msra.mxu0 %v3375
  %4414 = vmatprep.subr.bf16.mxu0 0
  %4415 = vmatpush1.bf16.msra.mxu0 %v3376
  %4416 = vmatprep.subr.bf16.mxu0 0
  %4417 = vmatpush1.bf16.msra.mxu0 %v3377
  %4418 = vmatprep.mubr.bf16.mxu0 %v1187
  %4419 = vmatmul.mubr.bf16.gmra.mrb[0].mxu0 %v1186
  %v4420 = vpop.f32.mrb[0].mxu0
  %v4421 = vadd.f32 %v1088, %v4420
  %v4422 = vpop.f32.mrb[0].mxu0
  %v4423 = vpop.f32.mrb[0].mxu0
  %v4424 = vpop.f32.mrb[0].mxu0
  %4425 = vdwg.mxu0
  %4426 = vmatprep.subr.bf16.mxu0 0
  %4427 = vmatpush1.bf16.msra.mxu0 %v3378
  %4428 = vmatprep.subr.bf16.mxu0 0
  %4429 = vmatpush1.bf16.msra.mxu0 %v3379
  %4430 = vmatprep.subr.bf16.mxu0 0
  %4431 = vmatpush1.bf16.msra.mxu0 %v3380
  %4432 = vmatprep.subr.bf16.mxu0 0
  %4433 = vmatpush1.bf16.msra.mxu0 %v3381
  %4434 = vmatprep.subr.bf16.mxu0 0
  %4435 = vmatpush1.bf16.msra.mxu0 %v3382
  %4436 = vmatprep.subr.bf16.mxu0 0
  %4437 = vmatpush1.bf16.msra.mxu0 %v3383
  %4438 = vmatprep.subr.bf16.mxu0 0
  %4439 = vmatpush1.bf16.msra.mxu0 %v3384
  %4440 = vmatprep.subr.bf16.mxu0 0
  %4441 = vmatpush1.bf16.msra.mxu0 %v3385
  %4442 = vmatprep.subr.bf16.mxu0 0
  %4443 = vmatpush1.bf16.msra.mxu0 %v3386
  %4444 = vmatprep.subr.bf16.mxu0 0
  %4445 = vmatpush1.bf16.msra.mxu0 %v3387
  %4446 = vmatprep.subr.bf16.mxu0 0
  %4447 = vmatpush1.bf16.msra.mxu0 %v3388
  %4448 = vmatprep.subr.bf16.mxu0 0
  %4449 = vmatpush1.bf16.msra.mxu0 %v3389
  %4450 = vmatprep.subr.bf16.mxu0 0
  %4451 = vmatpush1.bf16.msra.mxu0 %v3390
  %4452 = vmatprep.subr.bf16.mxu0 0
  %4453 = vmatpush1.bf16.msra.mxu0 %v3391
  %4454 = vmatprep.subr.bf16.mxu0 0
  %4455 = vmatpush1.bf16.msra.mxu0 %v3392
  %4456 = vmatprep.subr.bf16.mxu0 0
  %4457 = vmatpush1.bf16.msra.mxu0 %v3393
  %4458 = vmatprep.mubr.bf16.mxu0 %v1189
  %4459 = vmatmul.mubr.bf16.gmra.mrb[0].mxu0 %v1188
  %v4460 = vpop.f32.mrb[0].mxu0
  %v4461 = vadd.f32 %v4421, %v4460
  %v4462 = vpop.f32.mrb[0].mxu0
  %v4463 = vpop.f32.mrb[0].mxu0
  %v4464 = vpop.f32.mrb[0].mxu0
  %4465 = vdwg.mxu0
  %4466 = vmatprep.subr.bf16.mxu0 0
  %4467 = vmatpush1.bf16.msra.mxu0 %v3394
  %4468 = vmatprep.subr.bf16.mxu0 0
  %4469 = vmatpush1.bf16.msra.mxu0 %v3395
  %4470 = vmatprep.subr.bf16.mxu0 0
  %4471 = vmatpush1.bf16.msra.mxu0 %v3396
  %4472 = vmatprep.subr.bf16.mxu0 0
  %4473 = vmatpush1.bf16.msra.mxu0 %v3397
  %4474 = vmatprep.subr.bf16.mxu0 0
  %4475 = vmatpush1.bf16.msra.mxu0 %v3398
  %4476 = vmatprep.subr.bf16.mxu0 0
  %4477 = vmatpush1.bf16.msra.mxu0 %v3399
  %4478 = vmatprep.subr.bf16.mxu0 0
  %4479 = vmatpush1.bf16.msra.mxu0 %v3400
  %4480 = vmatprep.subr.bf16.mxu0 0
  %4481 = vmatpush1.bf16.msra.mxu0 %v3401
  %4482 = vmatprep.subr.bf16.mxu0 0
  %4483 = vmatpush1.bf16.msra.mxu0 %v3402
  %4484 = vmatprep.subr.bf16.mxu0 0
  %4485 = vmatpush1.bf16.msra.mxu0 %v3403
  %4486 = vmatprep.subr.bf16.mxu0 0
  %4487 = vmatpush1.bf16.msra.mxu0 %v3404
  %4488 = vmatprep.subr.bf16.mxu0 0
  %4489 = vmatpush1.bf16.msra.mxu0 %v3405
  %4490 = vmatprep.subr.bf16.mxu0 0
  %4491 = vmatpush1.bf16.msra.mxu0 %v3406
  %4492 = vmatprep.subr.bf16.mxu0 0
  %4493 = vmatpush1.bf16.msra.mxu0 %v3407
  %4494 = vmatprep.subr.bf16.mxu0 0
  %4495 = vmatpush1.bf16.msra.mxu0 %v3408
  %4496 = vmatprep.subr.bf16.mxu0 0
  %4497 = vmatpush1.bf16.msra.mxu0 %v3409
  %4498 = vmatprep.mubr.bf16.mxu0 %v1191
  %4499 = vmatmul.mubr.bf16.gmra.mrb[0].mxu0 %v1190
  %v4500 = vpop.f32.mrb[0].mxu0
  %v4501 = vadd.f32 %v4461, %v4500
  %v4502 = vpop.f32.mrb[0].mxu0
  %v4503 = vpop.f32.mrb[0].mxu0
  %v4504 = vpop.f32.mrb[0].mxu0
  %4505 = vdwg.mxu0
  %4506 = vmatprep.subr.bf16.mxu0 0
  %4507 = vmatpush1.bf16.msra.mxu0 %v3410
  %4508 = vmatprep.subr.bf16.mxu0 0
  %4509 = vmatpush1.bf16.msra.mxu0 %v3411
  %4510 = vmatprep.subr.bf16.mxu0 0
  %4511 = vmatpush1.bf16.msra.mxu0 %v3412
  %4512 = vmatprep.subr.bf16.mxu0 0
  %4513 = vmatpush1.bf16.msra.mxu0 %v3413
  %4514 = vmatprep.subr.bf16.mxu0 0
  %4515 = vmatpush1.bf16.msra.mxu0 %v3414
  %4516 = vmatprep.subr.bf16.mxu0 0
  %4517 = vmatpush1.bf16.msra.mxu0 %v3415
  %4518 = vmatprep.subr.bf16.mxu0 0
  %4519 = vmatpush1.bf16.msra.mxu0 %v3416
  %4520 = vmatprep.subr.bf16.mxu0 0
  %4521 = vmatpush1.bf16.msra.mxu0 %v3417
  %4522 = vmatprep.subr.bf16.mxu0 0
  %4523 = vmatpush1.bf16.msra.mxu0 %v3418
  %4524 = vmatprep.subr.bf16.mxu0 0
  %4525 = vmatpush1.bf16.msra.mxu0 %v3419
  %4526 = vmatprep.subr.bf16.mxu0 0
  %4527 = vmatpush1.bf16.msra.mxu0 %v3420
  %4528 = vmatprep.subr.bf16.mxu0 0
  %4529 = vmatpush1.bf16.msra.mxu0 %v3421
  %4530 = vmatprep.subr.bf16.mxu0 0
  %4531 = vmatpush1.bf16.msra.mxu0 %v3422
  %4532 = vmatprep.subr.bf16.mxu0 0
  %4533 = vmatpush1.bf16.msra.mxu0 %v3423
  %4534 = vmatprep.subr.bf16.mxu0 0
  %4535 = vmatpush1.bf16.msra.mxu0 %v3424
  %4536 = vmatprep.subr.bf16.mxu0 0
  %4537 = vmatpush1.bf16.msra.mxu0 %v3425
  %4538 = vmatprep.mubr.bf16.mxu0 %v1193
  %4539 = vmatmul.mubr.bf16.gmra.mrb[0].mxu0 %v1192
  %v4540 = vpop.f32.mrb[0].mxu0
  %v4541 = vadd.f32 %v4501, %v4540
  %v4542 = vpop.f32.mrb[0].mxu0
  %v4543 = vpop.f32.mrb[0].mxu0
  %v4544 = vpop.f32.mrb[0].mxu0
  %4545 = vdwg.mxu0
  %4546 = vmatprep.subr.bf16.mxu0 0
  %4547 = vmatpush1.bf16.msra.mxu0 %v3426
  %4548 = vmatprep.subr.bf16.mxu0 0
  %4549 = vmatpush1.bf16.msra.mxu0 %v3427
  %4550 = vmatprep.subr.bf16.mxu0 0
  %4551 = vmatpush1.bf16.msra.mxu0 %v3428
  %4552 = vmatprep.subr.bf16.mxu0 0
  %4553 = vmatpush1.bf16.msra.mxu0 %v3429
  %4554 = vmatprep.subr.bf16.mxu0 0
  %4555 = vmatpush1.bf16.msra.mxu0 %v3430
  %4556 = vmatprep.subr.bf16.mxu0 0
  %4557 = vmatpush1.bf16.msra.mxu0 %v3431
  %4558 = vmatprep.subr.bf16.mxu0 0
  %4559 = vmatpush1.bf16.msra.mxu0 %v3432
  %4560 = vmatprep.subr.bf16.mxu0 0
  %4561 = vmatpush1.bf16.msra.mxu0 %v3433
  %4562 = vmatprep.subr.bf16.mxu0 0
  %4563 = vmatpush1.bf16.msra.mxu0 %v3434
  %4564 = vmatprep.subr.bf16.mxu0 0
  %4565 = vmatpush1.bf16.msra.mxu0 %v3435
  %4566 = vmatprep.subr.bf16.mxu0 0
  %4567 = vmatpush1.bf16.msra.mxu0 %v3436
  %4568 = vmatprep.subr.bf16.mxu0 0
  %4569 = vmatpush1.bf16.msra.mxu0 %v3437
  %4570 = vmatprep.subr.bf16.mxu0 0
  %4571 = vmatpush1.bf16.msra.mxu0 %v3438
  %4572 = vmatprep.subr.bf16.mxu0 0
  %4573 = vmatpush1.bf16.msra.mxu0 %v3439
  %4574 = vmatprep.subr.bf16.mxu0 0
  %4575 = vmatpush1.bf16.msra.mxu0 %v3440
  %4576 = vmatprep.subr.bf16.mxu0 0
  %4577 = vmatpush1.bf16.msra.mxu0 %v3441
  %4578 = vmatprep.mubr.bf16.mxu0 %v1195
  %4579 = vmatmul.mubr.bf16.gmra.mrb[0].mxu0 %v1194
  %v4580 = vpop.f32.mrb[0].mxu0
  %v4581 = vadd.f32 %v4541, %v4580
  %v4582 = vpop.f32.mrb[0].mxu0
  %v4583 = vpop.f32.mrb[0].mxu0
  %v4584 = vpop.f32.mrb[0].mxu0
  %4585 = vdwg.mxu0
  %4586 = vmatprep.subr.bf16.mxu0 0
  %4587 = vmatpush1.bf16.msra.mxu0 %v3442
  %4588 = vmatprep.subr.bf16.mxu0 0
  %4589 = vmatpush1.bf16.msra.mxu0 %v3443
  %4590 = vmatprep.subr.bf16.mxu0 0
  %4591 = vmatpush1.bf16.msra.mxu0 %v3444
  %4592 = vmatprep.subr.bf16.mxu0 0
  %4593 = vmatpush1.bf16.msra.mxu0 %v3445
  %4594 = vmatprep.subr.bf16.mxu0 0
  %4595 = vmatpush1.bf16.msra.mxu0 %v3446
  %4596 = vmatprep.subr.bf16.mxu0 0
  %4597 = vmatpush1.bf16.msra.mxu0 %v3447
  %4598 = vmatprep.subr.bf16.mxu0 0
  %4599 = vmatpush1.bf16.msra.mxu0 %v3448
  %4600 = vmatprep.subr.bf16.mxu0 0
  %4601 = vmatpush1.bf16.msra.mxu0 %v3449
  %4602 = vmatprep.subr.bf16.mxu0 0
  %4603 = vmatpush1.bf16.msra.mxu0 %v3450
  %4604 = vmatprep.subr.bf16.mxu0 0
  %4605 = vmatpush1.bf16.msra.mxu0 %v3451
  %4606 = vmatprep.subr.bf16.mxu0 0
  %4607 = vmatpush1.bf16.msra.mxu0 %v3452
  %4608 = vmatprep.subr.bf16.mxu0 0
  %4609 = vmatpush1.bf16.msra.mxu0 %v3453
  %4610 = vmatprep.subr.bf16.mxu0 0
  %4611 = vmatpush1.bf16.msra.mxu0 %v3454
  %4612 = vmatprep.subr.bf16.mxu0 0
  %4613 = vmatpush1.bf16.msra.mxu0 %v3455
  %4614 = vmatprep.subr.bf16.mxu0 0
  %4615 = vmatpush1.bf16.msra.mxu0 %v3456
  %4616 = vmatprep.subr.bf16.mxu0 0
  %4617 = vmatpush1.bf16.msra.mxu0 %v3457
  %4618 = vmatprep.mubr.bf16.mxu0 %v1197
  %4619 = vmatmul.mubr.bf16.gmra.mrb[0].mxu0 %v1196
  %v4620 = vpop.f32.mrb[0].mxu0
  %v4621 = vadd.f32 %v4581, %v4620
  %v4622 = vpop.f32.mrb[0].mxu0
  %v4623 = vpop.f32.mrb[0].mxu0
  %v4624 = vpop.f32.mrb[0].mxu0
  %4625 = vdwg.mxu0
  %4626 = vmatprep.subr.bf16.mxu0 0
  %4627 = vmatpush1.bf16.msra.mxu0 %v3458
  %4628 = vmatprep.subr.bf16.mxu0 0
  %4629 = vmatpush1.bf16.msra.mxu0 %v3459
  %4630 = vmatprep.subr.bf16.mxu0 0
  %4631 = vmatpush1.bf16.msra.mxu0 %v3460
  %4632 = vmatprep.subr.bf16.mxu0 0
  %4633 = vmatpush1.bf16.msra.mxu0 %v3461
  %4634 = vmatprep.subr.bf16.mxu0 0
  %4635 = vmatpush1.bf16.msra.mxu0 %v3462
  %4636 = vmatprep.subr.bf16.mxu0 0
  %4637 = vmatpush1.bf16.msra.mxu0 %v3463
  %4638 = vmatprep.subr.bf16.mxu0 0
  %4639 = vmatpush1.bf16.msra.mxu0 %v3464
  %4640 = vmatprep.subr.bf16.mxu0 0
  %4641 = vmatpush1.bf16.msra.mxu0 %v3465
  %4642 = vmatprep.subr.bf16.mxu0 0
  %4643 = vmatpush1.bf16.msra.mxu0 %v3466
  %4644 = vmatprep.subr.bf16.mxu0 0
  %4645 = vmatpush1.bf16.msra.mxu0 %v3467
  %4646 = vmatprep.subr.bf16.mxu0 0
  %4647 = vmatpush1.bf16.msra.mxu0 %v3468
  %4648 = vmatprep.subr.bf16.mxu0 0
  %4649 = vmatpush1.bf16.msra.mxu0 %v3469
  %4650 = vmatprep.subr.bf16.mxu0 0
  %4651 = vmatpush1.bf16.msra.mxu0 %v3470
  %4652 = vmatprep.subr.bf16.mxu0 0
  %4653 = vmatpush1.bf16.msra.mxu0 %v3471
  %4654 = vmatprep.subr.bf16.mxu0 0
  %4655 = vmatpush1.bf16.msra.mxu0 %v3472
  %4656 = vmatprep.subr.bf16.mxu0 0
  %4657 = vmatpush1.bf16.msra.mxu0 %v3473
  %4658 = vmatprep.mubr.bf16.mxu0 %v1199
  %4659 = vmatmul.mubr.bf16.gmra.mrb[0].mxu0 %v1198
  %v4660 = vpop.f32.mrb[0].mxu0
  %v4661 = vadd.f32 %v4621, %v4660
  %v4662 = vpop.f32.mrb[0].mxu0
  %v4663 = vpop.f32.mrb[0].mxu0
  %v4664 = vpop.f32.mrb[0].mxu0
  %4665 = vdwg.mxu0
  %4666 = vmatprep.subr.bf16.mxu0 0
  %4667 = vmatpush1.bf16.msra.mxu0 %v3474
  %4668 = vmatprep.subr.bf16.mxu0 0
  %4669 = vmatpush1.bf16.msra.mxu0 %v3475
  %4670 = vmatprep.subr.bf16.mxu0 0
  %4671 = vmatpush1.bf16.msra.mxu0 %v3476
  %4672 = vmatprep.subr.bf16.mxu0 0
  %4673 = vmatpush1.bf16.msra.mxu0 %v3477
  %4674 = vmatprep.subr.bf16.mxu0 0
  %4675 = vmatpush1.bf16.msra.mxu0 %v3478
  %4676 = vmatprep.subr.bf16.mxu0 0
  %4677 = vmatpush1.bf16.msra.mxu0 %v3479
  %4678 = vmatprep.subr.bf16.mxu0 0
  %4679 = vmatpush1.bf16.msra.mxu0 %v3480
  %4680 = vmatprep.subr.bf16.mxu0 0
  %4681 = vmatpush1.bf16.msra.mxu0 %v3481
  %4682 = vmatprep.subr.bf16.mxu0 0
  %4683 = vmatpush1.bf16.msra.mxu0 %v3482
  %4684 = vmatprep.subr.bf16.mxu0 0
  %4685 = vmatpush1.bf16.msra.mxu0 %v3483
  %4686 = vmatprep.subr.bf16.mxu0 0
  %4687 = vmatpush1.bf16.msra.mxu0 %v3484
  %4688 = vmatprep.subr.bf16.mxu0 0
  %4689 = vmatpush1.bf16.msra.mxu0 %v3485
  %4690 = vmatprep.subr.bf16.mxu0 0
  %4691 = vmatpush1.bf16.msra.mxu0 %v3486
  %4692 = vmatprep.subr.bf16.mxu0 0
  %4693 = vmatpush1.bf16.msra.mxu0 %v3487
  %4694 = vmatprep.subr.bf16.mxu0 0
  %4695 = vmatpush1.bf16.msra.mxu0 %v3488
  %4696 = vmatprep.subr.bf16.mxu0 0
  %4697 = vmatpush1.bf16.msra.mxu0 %v3489
  %4698 = vmatprep.mubr.bf16.mxu0 %v1201
  %4699 = vmatmul.mubr.bf16.gmra.mrb[0].mxu0 %v1200
  %v4700 = vpop.f32.mrb[0].mxu0
  %v4701 = vadd.f32 %v4661, %v4700
  %v4702 = vpop.f32.mrb[0].mxu0
  %v4703 = vpop.f32.mrb[0].mxu0
  %v4704 = vpop.f32.mrb[0].mxu0
  %4705 = vdwg.mxu0
  %4706 = vmatprep.subr.bf16.mxu0 0
  %4707 = vmatpush1.bf16.msra.mxu0 %v3490
  %4708 = vmatprep.subr.bf16.mxu0 0
  %4709 = vmatpush1.bf16.msra.mxu0 %v3491
  %4710 = vmatprep.subr.bf16.mxu0 0
  %4711 = vmatpush1.bf16.msra.mxu0 %v3492
  %4712 = vmatprep.subr.bf16.mxu0 0
  %4713 = vmatpush1.bf16.msra.mxu0 %v3493
  %4714 = vmatprep.subr.bf16.mxu0 0
  %4715 = vmatpush1.bf16.msra.mxu0 %v3494
  %4716 = vmatprep.subr.bf16.mxu0 0
  %4717 = vmatpush1.bf16.msra.mxu0 %v3495
  %4718 = vmatprep.subr.bf16.mxu0 0
  %4719 = vmatpush1.bf16.msra.mxu0 %v3496
  %4720 = vmatprep.subr.bf16.mxu0 0
  %4721 = vmatpush1.bf16.msra.mxu0 %v3497
  %4722 = vmatprep.subr.bf16.mxu0 0
  %4723 = vmatpush1.bf16.msra.mxu0 %v3498
  %4724 = vmatprep.subr.bf16.mxu0 0
  %4725 = vmatpush1.bf16.msra.mxu0 %v3499
  %4726 = vmatprep.subr.bf16.mxu0 0
  %4727 = vmatpush1.bf16.msra.mxu0 %v3500
  %4728 = vmatprep.subr.bf16.mxu0 0
  %4729 = vmatpush1.bf16.msra.mxu0 %v3501
  %4730 = vmatprep.subr.bf16.mxu0 0
  %4731 = vmatpush1.bf16.msra.mxu0 %v3502
  %4732 = vmatprep.subr.bf16.mxu0 0
  %4733 = vmatpush1.bf16.msra.mxu0 %v3503
  %4734 = vmatprep.subr.bf16.mxu0 0
  %4735 = vmatpush1.bf16.msra.mxu0 %v3504
  %4736 = vmatprep.subr.bf16.mxu0 0
  %4737 = vmatpush1.bf16.msra.mxu0 %v3505
  %4738 = vmatprep.mubr.bf16.mxu0 %v1203
  %4739 = vmatmul.mubr.bf16.gmra.mrb[0].mxu0 %v1202
  %v4740 = vpop.f32.mrb[0].mxu0
  %v4741 = vadd.f32 %v4701, %v4740
  %v4742 = vpop.f32.mrb[0].mxu0
  %v4743 = vpop.f32.mrb[0].mxu0
  %v4744 = vpop.f32.mrb[0].mxu0
  %4745 = vdwg.mxu0
  %4746 = vmatprep.subr.bf16.mxu0 0
  %4747 = vmatpush1.bf16.msra.mxu0 %v3506
  %4748 = vmatprep.subr.bf16.mxu0 0
  %4749 = vmatpush1.bf16.msra.mxu0 %v3507
  %4750 = vmatprep.subr.bf16.mxu0 0
  %4751 = vmatpush1.bf16.msra.mxu0 %v3508
  %4752 = vmatprep.subr.bf16.mxu0 0
  %4753 = vmatpush1.bf16.msra.mxu0 %v3509
  %4754 = vmatprep.subr.bf16.mxu0 0
  %4755 = vmatpush1.bf16.msra.mxu0 %v3510
  %4756 = vmatprep.subr.bf16.mxu0 0
  %4757 = vmatpush1.bf16.msra.mxu0 %v3511
  %4758 = vmatprep.subr.bf16.mxu0 0
  %4759 = vmatpush1.bf16.msra.mxu0 %v3512
  %4760 = vmatprep.subr.bf16.mxu0 0
  %4761 = vmatpush1.bf16.msra.mxu0 %v3513
  %4762 = vmatprep.subr.bf16.mxu0 0
  %4763 = vmatpush1.bf16.msra.mxu0 %v3514
  %4764 = vmatprep.subr.bf16.mxu0 0
  %4765 = vmatpush1.bf16.msra.mxu0 %v3515
  %4766 = vmatprep.subr.bf16.mxu0 0
  %4767 = vmatpush1.bf16.msra.mxu0 %v3516
  %4768 = vmatprep.subr.bf16.mxu0 0
  %4769 = vmatpush1.bf16.msra.mxu0 %v3517
  %4770 = vmatprep.subr.bf16.mxu0 0
  %4771 = vmatpush1.bf16.msra.mxu0 %v3518
  %4772 = vmatprep.subr.bf16.mxu0 0
  %4773 = vmatpush1.bf16.msra.mxu0 %v3519
  %4774 = vmatprep.subr.bf16.mxu0 0
  %4775 = vmatpush1.bf16.msra.mxu0 %v3520
  %4776 = vmatprep.subr.bf16.mxu0 0
  %4777 = vmatpush1.bf16.msra.mxu0 %v3521
  %4778 = vmatprep.mubr.bf16.mxu0 %v1205
  %4779 = vmatmul.mubr.bf16.gmra.mrb[0].mxu0 %v1204
  %v4780 = vpop.f32.mrb[0].mxu0
  %v4781 = vadd.f32 %v4741, %v4780
  %v4782 = vpop.f32.mrb[0].mxu0
  %v4783 = vpop.f32.mrb[0].mxu0
  %v4784 = vpop.f32.mrb[0].mxu0
  %4785 = vdwg.mxu0
  %4786 = vmatprep.subr.bf16.mxu0 0
  %4787 = vmatpush1.bf16.msra.mxu0 %v3522
  %4788 = vmatprep.subr.bf16.mxu0 0
  %4789 = vmatpush1.bf16.msra.mxu0 %v3523
  %4790 = vmatprep.subr.bf16.mxu0 0
  %4791 = vmatpush1.bf16.msra.mxu0 %v3524
  %4792 = vmatprep.subr.bf16.mxu0 0
  %4793 = vmatpush1.bf16.msra.mxu0 %v3525
  %4794 = vmatprep.subr.bf16.mxu0 0
  %4795 = vmatpush1.bf16.msra.mxu0 %v3526
  %4796 = vmatprep.subr.bf16.mxu0 0
  %4797 = vmatpush1.bf16.msra.mxu0 %v3527
  %4798 = vmatprep.subr.bf16.mxu0 0
  %4799 = vmatpush1.bf16.msra.mxu0 %v3528
  %4800 = vmatprep.subr.bf16.mxu0 0
  %4801 = vmatpush1.bf16.msra.mxu0 %v3529
  %4802 = vmatprep.subr.bf16.mxu0 0
  %4803 = vmatpush1.bf16.msra.mxu0 %v3530
  %4804 = vmatprep.subr.bf16.mxu0 0
  %4805 = vmatpush1.bf16.msra.mxu0 %v3531
  %4806 = vmatprep.subr.bf16.mxu0 0
  %4807 = vmatpush1.bf16.msra.mxu0 %v3532
  %4808 = vmatprep.subr.bf16.mxu0 0
  %4809 = vmatpush1.bf16.msra.mxu0 %v3533
  %4810 = vmatprep.subr.bf16.mxu0 0
  %4811 = vmatpush1.bf16.msra.mxu0 %v3534
  %4812 = vmatprep.subr.bf16.mxu0 0
  %4813 = vmatpush1.bf16.msra.mxu0 %v3535
  %4814 = vmatprep.subr.bf16.mxu0 0
  %4815 = vmatpush1.bf16.msra.mxu0 %v3536
  %4816 = vmatprep.subr.bf16.mxu0 0
  %4817 = vmatpush1.bf16.msra.mxu0 %v3537
  %4818 = vmatprep.mubr.bf16.mxu0 %v1207
  %4819 = vmatmul.mubr.bf16.gmra.mrb[0].mxu0 %v1206
  %v4820 = vpop.f32.mrb[0].mxu0
  %v4821 = vadd.f32 %v4781, %v4820
  %v4822 = vpop.f32.mrb[0].mxu0
  %v4823 = vpop.f32.mrb[0].mxu0
  %v4824 = vpop.f32.mrb[0].mxu0
  %4825 = vdwg.mxu0
  %4826 = vmatprep.subr.bf16.mxu0 0
  %4827 = vmatpush1.bf16.msra.mxu0 %v3538
  %4828 = vmatprep.subr.bf16.mxu0 0
  %4829 = vmatpush1.bf16.msra.mxu0 %v3539
  %4830 = vmatprep.subr.bf16.mxu0 0
  %4831 = vmatpush1.bf16.msra.mxu0 %v3540
  %4832 = vmatprep.subr.bf16.mxu0 0
  %4833 = vmatpush1.bf16.msra.mxu0 %v3541
  %4834 = vmatprep.subr.bf16.mxu0 0
  %4835 = vmatpush1.bf16.msra.mxu0 %v3542
  %4836 = vmatprep.subr.bf16.mxu0 0
  %4837 = vmatpush1.bf16.msra.mxu0 %v3543
  %4838 = vmatprep.subr.bf16.mxu0 0
  %4839 = vmatpush1.bf16.msra.mxu0 %v3544
  %4840 = vmatprep.subr.bf16.mxu0 0
  %4841 = vmatpush1.bf16.msra.mxu0 %v3545
  %4842 = vmatprep.subr.bf16.mxu0 0
  %4843 = vmatpush1.bf16.msra.mxu0 %v3546
  %4844 = vmatprep.subr.bf16.mxu0 0
  %4845 = vmatpush1.bf16.msra.mxu0 %v3547
  %4846 = vmatprep.subr.bf16.mxu0 0
  %4847 = vmatpush1.bf16.msra.mxu0 %v3548
  %4848 = vmatprep.subr.bf16.mxu0 0
  %4849 = vmatpush1.bf16.msra.mxu0 %v3549
  %4850 = vmatprep.subr.bf16.mxu0 0
  %4851 = vmatpush1.bf16.msra.mxu0 %v3550
  %4852 = vmatprep.subr.bf16.mxu0 0
  %4853 = vmatpush1.bf16.msra.mxu0 %v3551
  %4854 = vmatprep.subr.bf16.mxu0 0
  %4855 = vmatpush1.bf16.msra.mxu0 %v3552
  %4856 = vmatprep.subr.bf16.mxu0 0
  %4857 = vmatpush1.bf16.msra.mxu0 %v3553
  %4858 = vmatprep.mubr.bf16.mxu0 %v1209
  %4859 = vmatmul.mubr.bf16.gmra.mrb[0].mxu0 %v1208
  %v4860 = vpop.f32.mrb[0].mxu0
  %v4861 = vadd.f32 %v4821, %v4860
  %v4862 = vpop.f32.mrb[0].mxu0
  %v4863 = vpop.f32.mrb[0].mxu0
  %v4864 = vpop.f32.mrb[0].mxu0
  %4865 = vdwg.mxu0
  %4866 = vmatprep.subr.bf16.mxu0 0
  %4867 = vmatpush1.bf16.msra.mxu0 %v3554
  %4868 = vmatprep.subr.bf16.mxu0 0
  %4869 = vmatpush1.bf16.msra.mxu0 %v3555
  %4870 = vmatprep.subr.bf16.mxu0 0
  %4871 = vmatpush1.bf16.msra.mxu0 %v3556
  %4872 = vmatprep.subr.bf16.mxu0 0
  %4873 = vmatpush1.bf16.msra.mxu0 %v3557
  %4874 = vmatprep.subr.bf16.mxu0 0
  %4875 = vmatpush1.bf16.msra.mxu0 %v3558
  %4876 = vmatprep.subr.bf16.mxu0 0
  %4877 = vmatpush1.bf16.msra.mxu0 %v3559
  %4878 = vmatprep.subr.bf16.mxu0 0
  %4879 = vmatpush1.bf16.msra.mxu0 %v3560
  %4880 = vmatprep.subr.bf16.mxu0 0
  %4881 = vmatpush1.bf16.msra.mxu0 %v3561
  %4882 = vmatprep.subr.bf16.mxu0 0
  %4883 = vmatpush1.bf16.msra.mxu0 %v3562
  %4884 = vmatprep.subr.bf16.mxu0 0
  %4885 = vmatpush1.bf16.msra.mxu0 %v3563
  %4886 = vmatprep.subr.bf16.mxu0 0
  %4887 = vmatpush1.bf16.msra.mxu0 %v3564
  %4888 = vmatprep.subr.bf16.mxu0 0
  %4889 = vmatpush1.bf16.msra.mxu0 %v3565
  %4890 = vmatprep.subr.bf16.mxu0 0
  %4891 = vmatpush1.bf16.msra.mxu0 %v3566
  %4892 = vmatprep.subr.bf16.mxu0 0
  %4893 = vmatpush1.bf16.msra.mxu0 %v3567
  %4894 = vmatprep.subr.bf16.mxu0 0
  %4895 = vmatpush1.bf16.msra.mxu0 %v3568
  %4896 = vmatprep.subr.bf16.mxu0 0
  %4897 = vmatpush1.bf16.msra.mxu0 %v3569
  %4898 = vmatprep.mubr.bf16.mxu0 %v1211
  %4899 = vmatmul.mubr.bf16.gmra.mrb[0].mxu0 %v1210
  %v4900 = vpop.f32.mrb[0].mxu0
  %v4901 = vadd.f32 %v4861, %v4900
  %v4902 = vpop.f32.mrb[0].mxu0
  %v4903 = vpop.f32.mrb[0].mxu0
  %v4904 = vpop.f32.mrb[0].mxu0
  %4905 = vdwg.mxu0
  %4906 = vmatprep.subr.bf16.mxu0 0
  %4907 = vmatpush1.bf16.msra.mxu0 %v3570
  %4908 = vmatprep.subr.bf16.mxu0 0
  %4909 = vmatpush1.bf16.msra.mxu0 %v3571
  %4910 = vmatprep.subr.bf16.mxu0 0
  %4911 = vmatpush1.bf16.msra.mxu0 %v3572
  %4912 = vmatprep.subr.bf16.mxu0 0
  %4913 = vmatpush1.bf16.msra.mxu0 %v3573
  %4914 = vmatprep.subr.bf16.mxu0 0
  %4915 = vmatpush1.bf16.msra.mxu0 %v3574
  %4916 = vmatprep.subr.bf16.mxu0 0
  %4917 = vmatpush1.bf16.msra.mxu0 %v3575
  %4918 = vmatprep.subr.bf16.mxu0 0
  %4919 = vmatpush1.bf16.msra.mxu0 %v3576
  %4920 = vmatprep.subr.bf16.mxu0 0
  %4921 = vmatpush1.bf16.msra.mxu0 %v3577
  %4922 = vmatprep.subr.bf16.mxu0 0
  %4923 = vmatpush1.bf16.msra.mxu0 %v3578
  %4924 = vmatprep.subr.bf16.mxu0 0
  %4925 = vmatpush1.bf16.msra.mxu0 %v3579
  %4926 = vmatprep.subr.bf16.mxu0 0
  %4927 = vmatpush1.bf16.msra.mxu0 %v3580
  %4928 = vmatprep.subr.bf16.mxu0 0
  %4929 = vmatpush1.bf16.msra.mxu0 %v3581
  %4930 = vmatprep.subr.bf16.mxu0 0
  %4931 = vmatpush1.bf16.msra.mxu0 %v3582
  %4932 = vmatprep.subr.bf16.mxu0 0
  %4933 = vmatpush1.bf16.msra.mxu0 %v3583
  %4934 = vmatprep.subr.bf16.mxu0 0
  %4935 = vmatpush1.bf16.msra.mxu0 %v3584
  %4936 = vmatprep.subr.bf16.mxu0 0
  %4937 = vmatpush1.bf16.msra.mxu0 %v3585
  %4938 = vmatprep.mubr.bf16.mxu0 %v1213
  %4939 = vmatmul.mubr.bf16.gmra.mrb[0].mxu0 %v1212
  %v4940 = vpop.f32.mrb[0].mxu0
  %v4941 = vadd.f32 %v4901, %v4940
  %v4942 = vpop.f32.mrb[0].mxu0
  %v4943 = vpop.f32.mrb[0].mxu0
  %v4944 = vpop.f32.mrb[0].mxu0
  %4945 = vdwg.mxu0
  %4946 = vmatprep.subr.bf16.mxu0 0
  %4947 = vmatpush1.bf16.msra.mxu0 %v3586
  %4948 = vmatprep.subr.bf16.mxu0 0
  %4949 = vmatpush1.bf16.msra.mxu0 %v3587
  %4950 = vmatprep.subr.bf16.mxu0 0
  %4951 = vmatpush1.bf16.msra.mxu0 %v3588
  %4952 = vmatprep.subr.bf16.mxu0 0
  %4953 = vmatpush1.bf16.msra.mxu0 %v3589
  %4954 = vmatprep.subr.bf16.mxu0 0
  %4955 = vmatpush1.bf16.msra.mxu0 %v3590
  %4956 = vmatprep.subr.bf16.mxu0 0
  %4957 = vmatpush1.bf16.msra.mxu0 %v3591
  %4958 = vmatprep.subr.bf16.mxu0 0
  %4959 = vmatpush1.bf16.msra.mxu0 %v3592
  %4960 = vmatprep.subr.bf16.mxu0 0
  %4961 = vmatpush1.bf16.msra.mxu0 %v3593
  %4962 = vmatprep.subr.bf16.mxu0 0
  %4963 = vmatpush1.bf16.msra.mxu0 %v3594
  %4964 = vmatprep.subr.bf16.mxu0 0
  %4965 = vmatpush1.bf16.msra.mxu0 %v3595
  %4966 = vmatprep.subr.bf16.mxu0 0
  %4967 = vmatpush1.bf16.msra.mxu0 %v3596
  %4968 = vmatprep.subr.bf16.mxu0 0
  %4969 = vmatpush1.bf16.msra.mxu0 %v3597
  %4970 = vmatprep.subr.bf16.mxu0 0
  %4971 = vmatpush1.bf16.msra.mxu0 %v3598
  %4972 = vmatprep.subr.bf16.mxu0 0
  %4973 = vmatpush1.bf16.msra.mxu0 %v3599
  %4974 = vmatprep.subr.bf16.mxu0 0
  %4975 = vmatpush1.bf16.msra.mxu0 %v3600
  %4976 = vmatprep.subr.bf16.mxu0 0
  %4977 = vmatpush1.bf16.msra.mxu0 %v3601
  %4978 = vmatprep.mubr.bf16.mxu0 %v1215
  %4979 = vmatmul.mubr.bf16.gmra.mrb[0].mxu0 %v1214
  %v4980 = vpop.f32.mrb[0].mxu0
  %v4981 = vadd.f32 %v4941, %v4980
  %v4982 = vpop.f32.mrb[0].mxu0
  %v4983 = vpop.f32.mrb[0].mxu0
  %v4984 = vpop.f32.mrb[0].mxu0
  %4985 = vdwg.mxu0
  %4986 = vmatprep.subr.bf16.mxu0 0
  %4987 = vmatpush1.bf16.msra.mxu0 %v3602
  %4988 = vmatprep.subr.bf16.mxu0 0
  %4989 = vmatpush1.bf16.msra.mxu0 %v3603
  %4990 = vmatprep.subr.bf16.mxu0 0
  %4991 = vmatpush1.bf16.msra.mxu0 %v3604
  %4992 = vmatprep.subr.bf16.mxu0 0
  %4993 = vmatpush1.bf16.msra.mxu0 %v3605
  %4994 = vmatprep.subr.bf16.mxu0 0
  %4995 = vmatpush1.bf16.msra.mxu0 %v3606
  %4996 = vmatprep.subr.bf16.mxu0 0
  %4997 = vmatpush1.bf16.msra.mxu0 %v3607
  %4998 = vmatprep.subr.bf16.mxu0 0
  %4999 = vmatpush1.bf16.msra.mxu0 %v3608
  %5000 = vmatprep.subr.bf16.mxu0 0
  %5001 = vmatpush1.bf16.msra.mxu0 %v3609
  %5002 = vmatprep.subr.bf16.mxu0 0
  %5003 = vmatpush1.bf16.msra.mxu0 %v3610
  %5004 = vmatprep.subr.bf16.mxu0 0
  %5005 = vmatpush1.bf16.msra.mxu0 %v3611
  %5006 = vmatprep.subr.bf16.mxu0 0
  %5007 = vmatpush1.bf16.msra.mxu0 %v3612
  %5008 = vmatprep.subr.bf16.mxu0 0
  %5009 = vmatpush1.bf16.msra.mxu0 %v3613
  %5010 = vmatprep.subr.bf16.mxu0 0
  %5011 = vmatpush1.bf16.msra.mxu0 %v3614
  %5012 = vmatprep.subr.bf16.mxu0 0
  %5013 = vmatpush1.bf16.msra.mxu0 %v3615
  %5014 = vmatprep.subr.bf16.mxu0 0
  %5015 = vmatpush1.bf16.msra.mxu0 %v3616
  %5016 = vmatprep.subr.bf16.mxu0 0
  %5017 = vmatpush1.bf16.msra.mxu0 %v3617
  %5018 = vmatprep.mubr.bf16.mxu0 %v1217
  %5019 = vmatmul.mubr.bf16.gmra.mrb[0].mxu0 %v1216
  %v5020 = vpop.f32.mrb[0].mxu0
  %v5021 = vadd.f32 %v4981, %v5020
  %v5022 = vpop.f32.mrb[0].mxu0
  %v5023 = vpop.f32.mrb[0].mxu0
  %v5024 = vpop.f32.mrb[0].mxu0
  %5025 = vdwg.mxu0
  %5026 = vmatprep.subr.bf16.mxu0 0
  %5027 = vmatpush1.bf16.msra.mxu0 %v3618
  %5028 = vmatprep.subr.bf16.mxu0 0
  %5029 = vmatpush1.bf16.msra.mxu0 %v3619
  %5030 = vmatprep.subr.bf16.mxu0 0
  %5031 = vmatpush1.bf16.msra.mxu0 %v3620
  %5032 = vmatprep.subr.bf16.mxu0 0
  %5033 = vmatpush1.bf16.msra.mxu0 %v3621
  %5034 = vmatprep.subr.bf16.mxu0 0
  %5035 = vmatpush1.bf16.msra.mxu0 %v3622
  %5036 = vmatprep.subr.bf16.mxu0 0
  %5037 = vmatpush1.bf16.msra.mxu0 %v3623
  %5038 = vmatprep.subr.bf16.mxu0 0
  %5039 = vmatpush1.bf16.msra.mxu0 %v3624
  %5040 = vmatprep.subr.bf16.mxu0 0
  %5041 = vmatpush1.bf16.msra.mxu0 %v3625
  %5042 = vmatprep.subr.bf16.mxu0 0
  %5043 = vmatpush1.bf16.msra.mxu0 %v3626
  %5044 = vmatprep.subr.bf16.mxu0 0
  %5045 = vmatpush1.bf16.msra.mxu0 %v3627
  %5046 = vmatprep.subr.bf16.mxu0 0
  %5047 = vmatpush1.bf16.msra.mxu0 %v3628
  %5048 = vmatprep.subr.bf16.mxu0 0
  %5049 = vmatpush1.bf16.msra.mxu0 %v3629
  %5050 = vmatprep.subr.bf16.mxu0 0
  %5051 = vmatpush1.bf16.msra.mxu0 %v3630
  %5052 = vmatprep.subr.bf16.mxu0 0
  %5053 = vmatpush1.bf16.msra.mxu0 %v3631
  %5054 = vmatprep.subr.bf16.mxu0 0
  %5055 = vmatpush1.bf16.msra.mxu0 %v3632
  %5056 = vmatprep.subr.bf16.mxu0 0
  %5057 = vmatpush1.bf16.msra.mxu0 %v3633
  %5058 = vmatprep.mubr.bf16.mxu0 %v1219
  %5059 = vmatmul.mubr.bf16.gmra.mrb[0].mxu0 %v1218
  %v5060 = vpop.f32.mrb[0].mxu0
  %v5061 = vadd.f32 %v5021, %v5060
  %v5062 = vpop.f32.mrb[0].mxu0
  %v5063 = vpop.f32.mrb[0].mxu0
  %v5064 = vpop.f32.mrb[0].mxu0
  %5065 = vdwg.mxu0
  %5066 = vmatprep.subr.bf16.mxu0 0
  %5067 = vmatpush1.bf16.msra.mxu0 %v3634
  %5068 = vmatprep.subr.bf16.mxu0 0
  %5069 = vmatpush1.bf16.msra.mxu0 %v3635
  %5070 = vmatprep.subr.bf16.mxu0 0
  %5071 = vmatpush1.bf16.msra.mxu0 %v3636
  %5072 = vmatprep.subr.bf16.mxu0 0
  %5073 = vmatpush1.bf16.msra.mxu0 %v3637
  %5074 = vmatprep.subr.bf16.mxu0 0
  %5075 = vmatpush1.bf16.msra.mxu0 %v3638
  %5076 = vmatprep.subr.bf16.mxu0 0
  %5077 = vmatpush1.bf16.msra.mxu0 %v3639
  %5078 = vmatprep.subr.bf16.mxu0 0
  %5079 = vmatpush1.bf16.msra.mxu0 %v3640
  %5080 = vmatprep.subr.bf16.mxu0 0
  %5081 = vmatpush1.bf16.msra.mxu0 %v3641
  %5082 = vmatprep.subr.bf16.mxu0 0
  %5083 = vmatpush1.bf16.msra.mxu0 %v3642
  %5084 = vmatprep.subr.bf16.mxu0 0
  %5085 = vmatpush1.bf16.msra.mxu0 %v3643
  %5086 = vmatprep.subr.bf16.mxu0 0
  %5087 = vmatpush1.bf16.msra.mxu0 %v3644
  %5088 = vmatprep.subr.bf16.mxu0 0
  %5089 = vmatpush1.bf16.msra.mxu0 %v3645
  %5090 = vmatprep.subr.bf16.mxu0 0
  %5091 = vmatpush1.bf16.msra.mxu0 %v3646
  %5092 = vmatprep.subr.bf16.mxu0 0
  %5093 = vmatpush1.bf16.msra.mxu0 %v3647
  %5094 = vmatprep.subr.bf16.mxu0 0
  %5095 = vmatpush1.bf16.msra.mxu0 %v3648
  %5096 = vmatprep.subr.bf16.mxu0 0
  %5097 = vmatpush1.bf16.msra.mxu0 %v3649
  %5098 = vmatprep.mubr.bf16.mxu0 %v1221
  %5099 = vmatmul.mubr.bf16.gmra.mrb[0].mxu0 %v1220
  %v5100 = vpop.f32.mrb[0].mxu0
  %v5101 = vadd.f32 %v5061, %v5100
  %v5102 = vpop.f32.mrb[0].mxu0
  %v5103 = vpop.f32.mrb[0].mxu0
  %v5104 = vpop.f32.mrb[0].mxu0
  %5105 = vdwg.mxu0
  %5106 = vmatprep.subr.bf16.mxu0 0
  %5107 = vmatpush1.bf16.msra.mxu0 %v3650
  %5108 = vmatprep.subr.bf16.mxu0 0
  %5109 = vmatpush1.bf16.msra.mxu0 %v3651
  %5110 = vmatprep.subr.bf16.mxu0 0
  %5111 = vmatpush1.bf16.msra.mxu0 %v3652
  %5112 = vmatprep.subr.bf16.mxu0 0
  %5113 = vmatpush1.bf16.msra.mxu0 %v3653
  %5114 = vmatprep.subr.bf16.mxu0 0
  %5115 = vmatpush1.bf16.msra.mxu0 %v3654
  %5116 = vmatprep.subr.bf16.mxu0 0
  %5117 = vmatpush1.bf16.msra.mxu0 %v3655
  %5118 = vmatprep.subr.bf16.mxu0 0
  %5119 = vmatpush1.bf16.msra.mxu0 %v3656
  %5120 = vmatprep.subr.bf16.mxu0 0
  %5121 = vmatpush1.bf16.msra.mxu0 %v3657
  %5122 = vmatprep.subr.bf16.mxu0 0
  %5123 = vmatpush1.bf16.msra.mxu0 %v3658
  %5124 = vmatprep.subr.bf16.mxu0 0
  %5125 = vmatpush1.bf16.msra.mxu0 %v3659
  %5126 = vmatprep.subr.bf16.mxu0 0
  %5127 = vmatpush1.bf16.msra.mxu0 %v3660
  %5128 = vmatprep.subr.bf16.mxu0 0
  %5129 = vmatpush1.bf16.msra.mxu0 %v3661
  %5130 = vmatprep.subr.bf16.mxu0 0
  %5131 = vmatpush1.bf16.msra.mxu0 %v3662
  %5132 = vmatprep.subr.bf16.mxu0 0
  %5133 = vmatpush1.bf16.msra.mxu0 %v3663
  %5134 = vmatprep.subr.bf16.mxu0 0
  %5135 = vmatpush1.bf16.msra.mxu0 %v3664
  %5136 = vmatprep.subr.bf16.mxu0 0
  %5137 = vmatpush1.bf16.msra.mxu0 %v3665
  %5138 = vmatprep.mubr.bf16.mxu0 %v1223
  %5139 = vmatmul.mubr.bf16.gmra.mrb[0].mxu0 %v1222
  %v5140 = vpop.f32.mrb[0].mxu0
  %v5141 = vadd.f32 %v5101, %v5140
  %v5142 = vpop.f32.mrb[0].mxu0
  %v5143 = vpop.f32.mrb[0].mxu0
  %v5144 = vpop.f32.mrb[0].mxu0
  %5145 = vdwg.mxu0
  %5146 = vmatprep.subr.bf16.mxu0 0
  %5147 = vmatpush1.bf16.msra.mxu0 %v3666
  %5148 = vmatprep.subr.bf16.mxu0 0
  %5149 = vmatpush1.bf16.msra.mxu0 %v3667
  %5150 = vmatprep.subr.bf16.mxu0 0
  %5151 = vmatpush1.bf16.msra.mxu0 %v3668
  %5152 = vmatprep.subr.bf16.mxu0 0
  %5153 = vmatpush1.bf16.msra.mxu0 %v3669
  %5154 = vmatprep.subr.bf16.mxu0 0
  %5155 = vmatpush1.bf16.msra.mxu0 %v3670
  %5156 = vmatprep.subr.bf16.mxu0 0
  %5157 = vmatpush1.bf16.msra.mxu0 %v3671
  %5158 = vmatprep.subr.bf16.mxu0 0
  %5159 = vmatpush1.bf16.msra.mxu0 %v3672
  %5160 = vmatprep.subr.bf16.mxu0 0
  %5161 = vmatpush1.bf16.msra.mxu0 %v3673
  %5162 = vmatprep.subr.bf16.mxu0 0
  %5163 = vmatpush1.bf16.msra.mxu0 %v3674
  %5164 = vmatprep.subr.bf16.mxu0 0
  %5165 = vmatpush1.bf16.msra.mxu0 %v3675
  %5166 = vmatprep.subr.bf16.mxu0 0
  %5167 = vmatpush1.bf16.msra.mxu0 %v3676
  %5168 = vmatprep.subr.bf16.mxu0 0
  %5169 = vmatpush1.bf16.msra.mxu0 %v3677
  %5170 = vmatprep.subr.bf16.mxu0 0
  %5171 = vmatpush1.bf16.msra.mxu0 %v3678
  %5172 = vmatprep.subr.bf16.mxu0 0
  %5173 = vmatpush1.bf16.msra.mxu0 %v3679
  %5174 = vmatprep.subr.bf16.mxu0 0
  %5175 = vmatpush1.bf16.msra.mxu0 %v3680
  %5176 = vmatprep.subr.bf16.mxu0 0
  %5177 = vmatpush1.bf16.msra.mxu0 %v3681
  %5178 = vmatprep.mubr.bf16.mxu0 %v1225
  %5179 = vmatmul.mubr.bf16.gmra.mrb[0].mxu0 %v1224
  %v5180 = vpop.f32.mrb[0].mxu0
  %v5181 = vadd.f32 %v5141, %v5180
  %v5182 = vpop.f32.mrb[0].mxu0
  %v5183 = vpop.f32.mrb[0].mxu0
  %v5184 = vpop.f32.mrb[0].mxu0
  %5185 = vdwg.mxu0
  %5186 = vmatprep.subr.bf16.mxu0 0
  %5187 = vmatpush1.bf16.msra.mxu0 %v3682
  %5188 = vmatprep.subr.bf16.mxu0 0
  %5189 = vmatpush1.bf16.msra.mxu0 %v3683
  %5190 = vmatprep.subr.bf16.mxu0 0
  %5191 = vmatpush1.bf16.msra.mxu0 %v3684
  %5192 = vmatprep.subr.bf16.mxu0 0
  %5193 = vmatpush1.bf16.msra.mxu0 %v3685
  %5194 = vmatprep.subr.bf16.mxu0 0
  %5195 = vmatpush1.bf16.msra.mxu0 %v3686
  %5196 = vmatprep.subr.bf16.mxu0 0
  %5197 = vmatpush1.bf16.msra.mxu0 %v3687
  %5198 = vmatprep.subr.bf16.mxu0 0
  %5199 = vmatpush1.bf16.msra.mxu0 %v3688
  %5200 = vmatprep.subr.bf16.mxu0 0
  %5201 = vmatpush1.bf16.msra.mxu0 %v3689
  %5202 = vmatprep.subr.bf16.mxu0 0
  %5203 = vmatpush1.bf16.msra.mxu0 %v3690
  %5204 = vmatprep.subr.bf16.mxu0 0
  %5205 = vmatpush1.bf16.msra.mxu0 %v3691
  %5206 = vmatprep.subr.bf16.mxu0 0
  %5207 = vmatpush1.bf16.msra.mxu0 %v3692
  %5208 = vmatprep.subr.bf16.mxu0 0
  %5209 = vmatpush1.bf16.msra.mxu0 %v3693
  %5210 = vmatprep.subr.bf16.mxu0 0
  %5211 = vmatpush1.bf16.msra.mxu0 %v3694
  %5212 = vmatprep.subr.bf16.mxu0 0
  %5213 = vmatpush1.bf16.msra.mxu0 %v3695
  %5214 = vmatprep.subr.bf16.mxu0 0
  %5215 = vmatpush1.bf16.msra.mxu0 %v3696
  %5216 = vmatprep.subr.bf16.mxu0 0
  %5217 = vmatpush1.bf16.msra.mxu0 %v3697
  %5218 = vmatprep.mubr.bf16.mxu0 %v1227
  %5219 = vmatmul.mubr.bf16.gmra.mrb[0].mxu0 %v1226
  %v5220 = vpop.f32.mrb[0].mxu0
  %v5221 = vadd.f32 %v5181, %v5220
  %v5222 = vpop.f32.mrb[0].mxu0
  %v5223 = vpop.f32.mrb[0].mxu0
  %v5224 = vpop.f32.mrb[0].mxu0
  %5225 = vdwg.mxu0
  %5226 = vmatprep.subr.bf16.mxu0 0
  %5227 = vmatpush1.bf16.msra.mxu0 %v3698
  %5228 = vmatprep.subr.bf16.mxu0 0
  %5229 = vmatpush1.bf16.msra.mxu0 %v3699
  %5230 = vmatprep.subr.bf16.mxu0 0
  %5231 = vmatpush1.bf16.msra.mxu0 %v3700
  %5232 = vmatprep.subr.bf16.mxu0 0
  %5233 = vmatpush1.bf16.msra.mxu0 %v3701
  %5234 = vmatprep.subr.bf16.mxu0 0
  %5235 = vmatpush1.bf16.msra.mxu0 %v3702
  %5236 = vmatprep.subr.bf16.mxu0 0
  %5237 = vmatpush1.bf16.msra.mxu0 %v3703
  %5238 = vmatprep.subr.bf16.mxu0 0
  %5239 = vmatpush1.bf16.msra.mxu0 %v3704
  %5240 = vmatprep.subr.bf16.mxu0 0
  %5241 = vmatpush1.bf16.msra.mxu0 %v3705
  %5242 = vmatprep.subr.bf16.mxu0 0
  %5243 = vmatpush1.bf16.msra.mxu0 %v3706
  %5244 = vmatprep.subr.bf16.mxu0 0
  %5245 = vmatpush1.bf16.msra.mxu0 %v3707
  %5246 = vmatprep.subr.bf16.mxu0 0
  %5247 = vmatpush1.bf16.msra.mxu0 %v3708
  %5248 = vmatprep.subr.bf16.mxu0 0
  %5249 = vmatpush1.bf16.msra.mxu0 %v3709
  %5250 = vmatprep.subr.bf16.mxu0 0
  %5251 = vmatpush1.bf16.msra.mxu0 %v3710
  %5252 = vmatprep.subr.bf16.mxu0 0
  %5253 = vmatpush1.bf16.msra.mxu0 %v3711
  %5254 = vmatprep.subr.bf16.mxu0 0
  %5255 = vmatpush1.bf16.msra.mxu0 %v3712
  %5256 = vmatprep.subr.bf16.mxu0 0
  %5257 = vmatpush1.bf16.msra.mxu0 %v3713
  %5258 = vmatprep.mubr.bf16.mxu0 %v1229
  %5259 = vmatmul.mubr.bf16.gmra.mrb[0].mxu0 %v1228
  %v5260 = vpop.f32.mrb[0].mxu0
  %v5261 = vadd.f32 %v5221, %v5260
  %v5262 = vpop.f32.mrb[0].mxu0
  %v5263 = vpop.f32.mrb[0].mxu0
  %v5264 = vpop.f32.mrb[0].mxu0
  %5265 = vdwg.mxu0
  %5266 = vmatprep.subr.bf16.mxu0 0
  %5267 = vmatpush1.bf16.msra.mxu0 %v3714
  %5268 = vmatprep.subr.bf16.mxu0 0
  %5269 = vmatpush1.bf16.msra.mxu0 %v3715
  %5270 = vmatprep.subr.bf16.mxu0 0
  %5271 = vmatpush1.bf16.msra.mxu0 %v3716
  %5272 = vmatprep.subr.bf16.mxu0 0
  %5273 = vmatpush1.bf16.msra.mxu0 %v3717
  %5274 = vmatprep.subr.bf16.mxu0 0
  %5275 = vmatpush1.bf16.msra.mxu0 %v3718
  %5276 = vmatprep.subr.bf16.mxu0 0
  %5277 = vmatpush1.bf16.msra.mxu0 %v3719
  %5278 = vmatprep.subr.bf16.mxu0 0
  %5279 = vmatpush1.bf16.msra.mxu0 %v3720
  %5280 = vmatprep.subr.bf16.mxu0 0
  %5281 = vmatpush1.bf16.msra.mxu0 %v3721
  %5282 = vmatprep.subr.bf16.mxu0 0
  %5283 = vmatpush1.bf16.msra.mxu0 %v3722
  %5284 = vmatprep.subr.bf16.mxu0 0
  %5285 = vmatpush1.bf16.msra.mxu0 %v3723
  %5286 = vmatprep.subr.bf16.mxu0 0
  %5287 = vmatpush1.bf16.msra.mxu0 %v3724
  %5288 = vmatprep.subr.bf16.mxu0 0
  %5289 = vmatpush1.bf16.msra.mxu0 %v3725
  %5290 = vmatprep.subr.bf16.mxu0 0
  %5291 = vmatpush1.bf16.msra.mxu0 %v3726
  %5292 = vmatprep.subr.bf16.mxu0 0
  %5293 = vmatpush1.bf16.msra.mxu0 %v3727
  %5294 = vmatprep.subr.bf16.mxu0 0
  %5295 = vmatpush1.bf16.msra.mxu0 %v3728
  %5296 = vmatprep.subr.bf16.mxu0 0
  %5297 = vmatpush1.bf16.msra.mxu0 %v3729
  %5298 = vmatprep.mubr.bf16.mxu0 %v1231
  %5299 = vmatmul.mubr.bf16.gmra.mrb[0].mxu0 %v1230
  %v5300 = vpop.f32.mrb[0].mxu0
  %v5301 = vadd.f32 %v5261, %v5300
  %v5302 = vpop.f32.mrb[0].mxu0
  %v5303 = vpop.f32.mrb[0].mxu0
  %v5304 = vpop.f32.mrb[0].mxu0
  %5305 = vdwg.mxu0
  %5306 = vmatprep.subr.bf16.mxu0 0
  %5307 = vmatpush1.bf16.msra.mxu0 %v3730
  %5308 = vmatprep.subr.bf16.mxu0 0
  %5309 = vmatpush1.bf16.msra.mxu0 %v3731
  %5310 = vmatprep.subr.bf16.mxu0 0
  %5311 = vmatpush1.bf16.msra.mxu0 %v3732
  %5312 = vmatprep.subr.bf16.mxu0 0
  %5313 = vmatpush1.bf16.msra.mxu0 %v3733
  %5314 = vmatprep.subr.bf16.mxu0 0
  %5315 = vmatpush1.bf16.msra.mxu0 %v3734
  %5316 = vmatprep.subr.bf16.mxu0 0
  %5317 = vmatpush1.bf16.msra.mxu0 %v3735
  %5318 = vmatprep.subr.bf16.mxu0 0
  %5319 = vmatpush1.bf16.msra.mxu0 %v3736
  %5320 = vmatprep.subr.bf16.mxu0 0
  %5321 = vmatpush1.bf16.msra.mxu0 %v3737
  %5322 = vmatprep.subr.bf16.mxu0 0
  %5323 = vmatpush1.bf16.msra.mxu0 %v3738
  %5324 = vmatprep.subr.bf16.mxu0 0
  %5325 = vmatpush1.bf16.msra.mxu0 %v3739
  %5326 = vmatprep.subr.bf16.mxu0 0
  %5327 = vmatpush1.bf16.msra.mxu0 %v3740
  %5328 = vmatprep.subr.bf16.mxu0 0
  %5329 = vmatpush1.bf16.msra.mxu0 %v3741
  %5330 = vmatprep.subr.bf16.mxu0 0
  %5331 = vmatpush1.bf16.msra.mxu0 %v3742
  %5332 = vmatprep.subr.bf16.mxu0 0
  %5333 = vmatpush1.bf16.msra.mxu0 %v3743
  %5334 = vmatprep.subr.bf16.mxu0 0
  %5335 = vmatpush1.bf16.msra.mxu0 %v3744
  %5336 = vmatprep.subr.bf16.mxu0 0
  %5337 = vmatpush1.bf16.msra.mxu0 %v3745
  %5338 = vmatprep.mubr.bf16.mxu0 %v1233
  %5339 = vmatmul.mubr.bf16.gmra.mrb[0].mxu0 %v1232
  %v5340 = vpop.f32.mrb[0].mxu0
  %v5341 = vadd.f32 %v5301, %v5340
  %v5342 = vpop.f32.mrb[0].mxu0
  %v5343 = vpop.f32.mrb[0].mxu0
  %v5344 = vpop.f32.mrb[0].mxu0
  %5345 = vdwg.mxu0
  %5346 = vmatprep.subr.bf16.mxu0 0
  %5347 = vmatpush1.bf16.msra.mxu0 %v3746
  %5348 = vmatprep.subr.bf16.mxu0 0
  %5349 = vmatpush1.bf16.msra.mxu0 %v3747
  %5350 = vmatprep.subr.bf16.mxu0 0
  %5351 = vmatpush1.bf16.msra.mxu0 %v3748
  %5352 = vmatprep.subr.bf16.mxu0 0
  %5353 = vmatpush1.bf16.msra.mxu0 %v3749
  %5354 = vmatprep.subr.bf16.mxu0 0
  %5355 = vmatpush1.bf16.msra.mxu0 %v3750
  %5356 = vmatprep.subr.bf16.mxu0 0
  %5357 = vmatpush1.bf16.msra.mxu0 %v3751
  %5358 = vmatprep.subr.bf16.mxu0 0
  %5359 = vmatpush1.bf16.msra.mxu0 %v3752
  %5360 = vmatprep.subr.bf16.mxu0 0
  %5361 = vmatpush1.bf16.msra.mxu0 %v3753
  %5362 = vmatprep.subr.bf16.mxu0 0
  %5363 = vmatpush1.bf16.msra.mxu0 %v3754
  %5364 = vmatprep.subr.bf16.mxu0 0
  %5365 = vmatpush1.bf16.msra.mxu0 %v3755
  %5366 = vmatprep.subr.bf16.mxu0 0
  %5367 = vmatpush1.bf16.msra.mxu0 %v3756
  %5368 = vmatprep.subr.bf16.mxu0 0
  %5369 = vmatpush1.bf16.msra.mxu0 %v3757
  %5370 = vmatprep.subr.bf16.mxu0 0
  %5371 = vmatpush1.bf16.msra.mxu0 %v3758
  %5372 = vmatprep.subr.bf16.mxu0 0
  %5373 = vmatpush1.bf16.msra.mxu0 %v3759
  %5374 = vmatprep.subr.bf16.mxu0 0
  %5375 = vmatpush1.bf16.msra.mxu0 %v3760
  %5376 = vmatprep.subr.bf16.mxu0 0
  %5377 = vmatpush1.bf16.msra.mxu0 %v3761
  %5378 = vmatprep.mubr.bf16.mxu0 %v1235
  %5379 = vmatmul.mubr.bf16.gmra.mrb[0].mxu0 %v1234
  %v5380 = vpop.f32.mrb[0].mxu0
  %v5381 = vadd.f32 %v5341, %v5380
  %v5382 = vpop.f32.mrb[0].mxu0
  %v5383 = vpop.f32.mrb[0].mxu0
  %v5384 = vpop.f32.mrb[0].mxu0
  %5385 = vdwg.mxu0
  %5386 = vmatprep.subr.bf16.mxu0 0
  %5387 = vmatpush1.bf16.msra.mxu0 %v3762
  %5388 = vmatprep.subr.bf16.mxu0 0
  %5389 = vmatpush1.bf16.msra.mxu0 %v3763
  %5390 = vmatprep.subr.bf16.mxu0 0
  %5391 = vmatpush1.bf16.msra.mxu0 %v3764
  %5392 = vmatprep.subr.bf16.mxu0 0
  %5393 = vmatpush1.bf16.msra.mxu0 %v3765
  %5394 = vmatprep.subr.bf16.mxu0 0
  %5395 = vmatpush1.bf16.msra.mxu0 %v3766
  %5396 = vmatprep.subr.bf16.mxu0 0
  %5397 = vmatpush1.bf16.msra.mxu0 %v3767
  %5398 = vmatprep.subr.bf16.mxu0 0
  %5399 = vmatpush1.bf16.msra.mxu0 %v3768
  %5400 = vmatprep.subr.bf16.mxu0 0
  %5401 = vmatpush1.bf16.msra.mxu0 %v3769
  %5402 = vmatprep.subr.bf16.mxu0 0
  %5403 = vmatpush1.bf16.msra.mxu0 %v3770
  %5404 = vmatprep.subr.bf16.mxu0 0
  %5405 = vmatpush1.bf16.msra.mxu0 %v3771
  %5406 = vmatprep.subr.bf16.mxu0 0
  %5407 = vmatpush1.bf16.msra.mxu0 %v3772
  %5408 = vmatprep.subr.bf16.mxu0 0
  %5409 = vmatpush1.bf16.msra.mxu0 %v3773
  %5410 = vmatprep.subr.bf16.mxu0 0
  %5411 = vmatpush1.bf16.msra.mxu0 %v3774
  %5412 = vmatprep.subr.bf16.mxu0 0
  %5413 = vmatpush1.bf16.msra.mxu0 %v3775
  %5414 = vmatprep.subr.bf16.mxu0 0
  %5415 = vmatpush1.bf16.msra.mxu0 %v3776
  %5416 = vmatprep.subr.bf16.mxu0 0
  %5417 = vmatpush1.bf16.msra.mxu0 %v3777
  %5418 = vmatprep.mubr.bf16.mxu0 %v1237
  %5419 = vmatmul.mubr.bf16.gmra.mrb[0].mxu0 %v1236
  %v5420 = vpop.f32.mrb[0].mxu0
  %v5421 = vadd.f32 %v5381, %v5420
  %v5422 = vpop.f32.mrb[0].mxu0
  %v5423 = vpop.f32.mrb[0].mxu0
  %v5424 = vpop.f32.mrb[0].mxu0
  %5425 = vdwg.mxu0
  %5426 = vmatprep.subr.bf16.mxu0 0
  %5427 = vmatpush1.bf16.msra.mxu0 %v3778
  %5428 = vmatprep.subr.bf16.mxu0 0
  %5429 = vmatpush1.bf16.msra.mxu0 %v3779
  %5430 = vmatprep.subr.bf16.mxu0 0
  %5431 = vmatpush1.bf16.msra.mxu0 %v3780
  %5432 = vmatprep.subr.bf16.mxu0 0
  %5433 = vmatpush1.bf16.msra.mxu0 %v3781
  %5434 = vmatprep.subr.bf16.mxu0 0
  %5435 = vmatpush1.bf16.msra.mxu0 %v3782
  %5436 = vmatprep.subr.bf16.mxu0 0
  %5437 = vmatpush1.bf16.msra.mxu0 %v3783
  %5438 = vmatprep.subr.bf16.mxu0 0
  %5439 = vmatpush1.bf16.msra.mxu0 %v3784
  %5440 = vmatprep.subr.bf16.mxu0 0
  %5441 = vmatpush1.bf16.msra.mxu0 %v3785
  %5442 = vmatprep.subr.bf16.mxu0 0
  %5443 = vmatpush1.bf16.msra.mxu0 %v3786
  %5444 = vmatprep.subr.bf16.mxu0 0
  %5445 = vmatpush1.bf16.msra.mxu0 %v3787
  %5446 = vmatprep.subr.bf16.mxu0 0
  %5447 = vmatpush1.bf16.msra.mxu0 %v3788
  %5448 = vmatprep.subr.bf16.mxu0 0
  %5449 = vmatpush1.bf16.msra.mxu0 %v3789
  %5450 = vmatprep.subr.bf16.mxu0 0
  %5451 = vmatpush1.bf16.msra.mxu0 %v3790
  %5452 = vmatprep.subr.bf16.mxu0 0
  %5453 = vmatpush1.bf16.msra.mxu0 %v3791
  %5454 = vmatprep.subr.bf16.mxu0 0
  %5455 = vmatpush1.bf16.msra.mxu0 %v3792
  %5456 = vmatprep.subr.bf16.mxu0 0
  %5457 = vmatpush1.bf16.msra.mxu0 %v3793
  %5458 = vmatprep.mubr.bf16.mxu0 %v1239
  %5459 = vmatmul.mubr.bf16.gmra.mrb[0].mxu0 %v1238
  %v5460 = vpop.f32.mrb[0].mxu0
  %v5461 = vadd.f32 %v5421, %v5460
  %v5462 = vpop.f32.mrb[0].mxu0
  %v5463 = vpop.f32.mrb[0].mxu0
  %v5464 = vpop.f32.mrb[0].mxu0
  %5465 = vdwg.mxu0
  %5466 = vmatprep.subr.bf16.mxu0 0
  %5467 = vmatpush1.bf16.msra.mxu0 %v3794
  %5468 = vmatprep.subr.bf16.mxu0 0
  %5469 = vmatpush1.bf16.msra.mxu0 %v3795
  %5470 = vmatprep.subr.bf16.mxu0 0
  %5471 = vmatpush1.bf16.msra.mxu0 %v3796
  %5472 = vmatprep.subr.bf16.mxu0 0
  %5473 = vmatpush1.bf16.msra.mxu0 %v3797
  %5474 = vmatprep.subr.bf16.mxu0 0
  %5475 = vmatpush1.bf16.msra.mxu0 %v3798
  %5476 = vmatprep.subr.bf16.mxu0 0
  %5477 = vmatpush1.bf16.msra.mxu0 %v3799
  %5478 = vmatprep.subr.bf16.mxu0 0
  %5479 = vmatpush1.bf16.msra.mxu0 %v3800
  %5480 = vmatprep.subr.bf16.mxu0 0
  %5481 = vmatpush1.bf16.msra.mxu0 %v3801
  %5482 = vmatprep.subr.bf16.mxu0 0
  %5483 = vmatpush1.bf16.msra.mxu0 %v3802
  %5484 = vmatprep.subr.bf16.mxu0 0
  %5485 = vmatpush1.bf16.msra.mxu0 %v3803
  %5486 = vmatprep.subr.bf16.mxu0 0
  %5487 = vmatpush1.bf16.msra.mxu0 %v3804
  %5488 = vmatprep.subr.bf16.mxu0 0
  %5489 = vmatpush1.bf16.msra.mxu0 %v3805
  %5490 = vmatprep.subr.bf16.mxu0 0
  %5491 = vmatpush1.bf16.msra.mxu0 %v3806
  %5492 = vmatprep.subr.bf16.mxu0 0
  %5493 = vmatpush1.bf16.msra.mxu0 %v3807
  %5494 = vmatprep.subr.bf16.mxu0 0
  %5495 = vmatpush1.bf16.msra.mxu0 %v3808
  %5496 = vmatprep.subr.bf16.mxu0 0
  %5497 = vmatpush1.bf16.msra.mxu0 %v3809
  %5498 = vmatprep.mubr.bf16.mxu0 %v1241
  %5499 = vmatmul.mubr.bf16.gmra.mrb[0].mxu0 %v1240
  %v5500 = vpop.f32.mrb[0].mxu0
  %v5501 = vadd.f32 %v5461, %v5500
  %v5502 = vpop.f32.mrb[0].mxu0
  %v5503 = vpop.f32.mrb[0].mxu0
  %v5504 = vpop.f32.mrb[0].mxu0
  %5505 = vdwg.mxu0
  %5506 = vmatprep.subr.bf16.mxu0 0
  %5507 = vmatpush1.bf16.msra.mxu0 %v3810
  %5508 = vmatprep.subr.bf16.mxu0 0
  %5509 = vmatpush1.bf16.msra.mxu0 %v3811
  %5510 = vmatprep.subr.bf16.mxu0 0
  %5511 = vmatpush1.bf16.msra.mxu0 %v3812
  %5512 = vmatprep.subr.bf16.mxu0 0
  %5513 = vmatpush1.bf16.msra.mxu0 %v3813
  %5514 = vmatprep.subr.bf16.mxu0 0
  %5515 = vmatpush1.bf16.msra.mxu0 %v3814
  %5516 = vmatprep.subr.bf16.mxu0 0
  %5517 = vmatpush1.bf16.msra.mxu0 %v3815
  %5518 = vmatprep.subr.bf16.mxu0 0
  %5519 = vmatpush1.bf16.msra.mxu0 %v3816
  %5520 = vmatprep.subr.bf16.mxu0 0
  %5521 = vmatpush1.bf16.msra.mxu0 %v3817
  %5522 = vmatprep.subr.bf16.mxu0 0
  %5523 = vmatpush1.bf16.msra.mxu0 %v3818
  %5524 = vmatprep.subr.bf16.mxu0 0
  %5525 = vmatpush1.bf16.msra.mxu0 %v3819
  %5526 = vmatprep.subr.bf16.mxu0 0
  %5527 = vmatpush1.bf16.msra.mxu0 %v3820
  %5528 = vmatprep.subr.bf16.mxu0 0
  %5529 = vmatpush1.bf16.msra.mxu0 %v3821
  %5530 = vmatprep.subr.bf16.mxu0 0
  %5531 = vmatpush1.bf16.msra.mxu0 %v3822
  %5532 = vmatprep.subr.bf16.mxu0 0
  %5533 = vmatpush1.bf16.msra.mxu0 %v3823
  %5534 = vmatprep.subr.bf16.mxu0 0
  %5535 = vmatpush1.bf16.msra.mxu0 %v3824
  %5536 = vmatprep.subr.bf16.mxu0 0
  %5537 = vmatpush1.bf16.msra.mxu0 %v3825
  %5538 = vmatprep.mubr.bf16.mxu0 %v1243
  %5539 = vmatmul.mubr.bf16.gmra.mrb[0].mxu0 %v1242
  %v5540 = vpop.f32.mrb[0].mxu0
  %v5541 = vadd.f32 %v5501, %v5540
  %v5542 = vpop.f32.mrb[0].mxu0
  %v5543 = vpop.f32.mrb[0].mxu0
  %v5544 = vpop.f32.mrb[0].mxu0
  %5545 = vdwg.mxu0
  %5546 = vmatprep.subr.bf16.mxu0 0
  %5547 = vmatpush1.bf16.msra.mxu0 %v3826
  %5548 = vmatprep.subr.bf16.mxu0 0
  %5549 = vmatpush1.bf16.msra.mxu0 %v3827
  %5550 = vmatprep.subr.bf16.mxu0 0
  %5551 = vmatpush1.bf16.msra.mxu0 %v3828
  %5552 = vmatprep.subr.bf16.mxu0 0
  %5553 = vmatpush1.bf16.msra.mxu0 %v3829
  %5554 = vmatprep.subr.bf16.mxu0 0
  %5555 = vmatpush1.bf16.msra.mxu0 %v3830
  %5556 = vmatprep.subr.bf16.mxu0 0
  %5557 = vmatpush1.bf16.msra.mxu0 %v3831
  %5558 = vmatprep.subr.bf16.mxu0 0
  %5559 = vmatpush1.bf16.msra.mxu0 %v3832
  %5560 = vmatprep.subr.bf16.mxu0 0
  %5561 = vmatpush1.bf16.msra.mxu0 %v3833
  %5562 = vmatprep.subr.bf16.mxu0 0
  %5563 = vmatpush1.bf16.msra.mxu0 %v3834
  %5564 = vmatprep.subr.bf16.mxu0 0
  %5565 = vmatpush1.bf16.msra.mxu0 %v3835
  %5566 = vmatprep.subr.bf16.mxu0 0
  %5567 = vmatpush1.bf16.msra.mxu0 %v3836
  %5568 = vmatprep.subr.bf16.mxu0 0
  %5569 = vmatpush1.bf16.msra.mxu0 %v3837
  %5570 = vmatprep.subr.bf16.mxu0 0
  %5571 = vmatpush1.bf16.msra.mxu0 %v3838
  %5572 = vmatprep.subr.bf16.mxu0 0
  %5573 = vmatpush1.bf16.msra.mxu0 %v3839
  %5574 = vmatprep.subr.bf16.mxu0 0
  %5575 = vmatpush1.bf16.msra.mxu0 %v3840
  %5576 = vmatprep.subr.bf16.mxu0 0
  %5577 = vmatpush1.bf16.msra.mxu0 %v3841
  %5578 = vmatprep.mubr.bf16.mxu0 %v1245
  %5579 = vmatmul.mubr.bf16.gmra.mrb[0].mxu0 %v1244
  %v5580 = vpop.f32.mrb[0].mxu0
  %v5581 = vadd.f32 %v5541, %v5580
  %v5582 = vpop.f32.mrb[0].mxu0
  %v5583 = vpop.f32.mrb[0].mxu0
  %v5584 = vpop.f32.mrb[0].mxu0
  %5585 = vdwg.mxu0
  %5586 = vmatprep.subr.bf16.mxu0 0
  %5587 = vmatpush1.bf16.msra.mxu0 %v3842
  %5588 = vmatprep.subr.bf16.mxu0 0
  %5589 = vmatpush1.bf16.msra.mxu0 %v3843
  %5590 = vmatprep.subr.bf16.mxu0 0
  %5591 = vmatpush1.bf16.msra.mxu0 %v3844
  %5592 = vmatprep.subr.bf16.mxu0 0
  %5593 = vmatpush1.bf16.msra.mxu0 %v3845
  %5594 = vmatprep.subr.bf16.mxu0 0
  %5595 = vmatpush1.bf16.msra.mxu0 %v3846
  %5596 = vmatprep.subr.bf16.mxu0 0
  %5597 = vmatpush1.bf16.msra.mxu0 %v3847
  %5598 = vmatprep.subr.bf16.mxu0 0
  %5599 = vmatpush1.bf16.msra.mxu0 %v3848
  %5600 = vmatprep.subr.bf16.mxu0 0
  %5601 = vmatpush1.bf16.msra.mxu0 %v3849
  %5602 = vmatprep.subr.bf16.mxu0 0
  %5603 = vmatpush1.bf16.msra.mxu0 %v3850
  %5604 = vmatprep.subr.bf16.mxu0 0
  %5605 = vmatpush1.bf16.msra.mxu0 %v3851
  %5606 = vmatprep.subr.bf16.mxu0 0
  %5607 = vmatpush1.bf16.msra.mxu0 %v3852
  %5608 = vmatprep.subr.bf16.mxu0 0
  %5609 = vmatpush1.bf16.msra.mxu0 %v3853
  %5610 = vmatprep.subr.bf16.mxu0 0
  %5611 = vmatpush1.bf16.msra.mxu0 %v3854
  %5612 = vmatprep.subr.bf16.mxu0 0
  %5613 = vmatpush1.bf16.msra.mxu0 %v3855
  %5614 = vmatprep.subr.bf16.mxu0 0
  %5615 = vmatpush1.bf16.msra.mxu0 %v3856
  %5616 = vmatprep.subr.bf16.mxu0 0
  %5617 = vmatpush1.bf16.msra.mxu0 %v3857
  %5618 = vmatprep.mubr.bf16.mxu0 %v1247
  %5619 = vmatmul.mubr.bf16.gmra.mrb[0].mxu0 %v1246
  %v5620 = vpop.f32.mrb[0].mxu0
  %v5621 = vadd.f32 %v5581, %v5620
  %v5622 = vpop.f32.mrb[0].mxu0
  %v5623 = vpop.f32.mrb[0].mxu0
  %v5624 = vpop.f32.mrb[0].mxu0
  %5625 = vdwg.mxu0
  %5626 = vmatprep.subr.bf16.mxu0 0
  %5627 = vmatpush1.bf16.msra.mxu0 %v3858
  %5628 = vmatprep.subr.bf16.mxu0 0
  %5629 = vmatpush1.bf16.msra.mxu0 %v3859
  %5630 = vmatprep.subr.bf16.mxu0 0
  %5631 = vmatpush1.bf16.msra.mxu0 %v3860
  %5632 = vmatprep.subr.bf16.mxu0 0
  %5633 = vmatpush1.bf16.msra.mxu0 %v3861
  %5634 = vmatprep.subr.bf16.mxu0 0
  %5635 = vmatpush1.bf16.msra.mxu0 %v3862
  %5636 = vmatprep.subr.bf16.mxu0 0
  %5637 = vmatpush1.bf16.msra.mxu0 %v3863
  %5638 = vmatprep.subr.bf16.mxu0 0
  %5639 = vmatpush1.bf16.msra.mxu0 %v3864
  %5640 = vmatprep.subr.bf16.mxu0 0
  %5641 = vmatpush1.bf16.msra.mxu0 %v3865
  %5642 = vmatprep.subr.bf16.mxu0 0
  %5643 = vmatpush1.bf16.msra.mxu0 %v3866
  %5644 = vmatprep.subr.bf16.mxu0 0
  %5645 = vmatpush1.bf16.msra.mxu0 %v3867
  %5646 = vmatprep.subr.bf16.mxu0 0
  %5647 = vmatpush1.bf16.msra.mxu0 %v3868
  %5648 = vmatprep.subr.bf16.mxu0 0
  %5649 = vmatpush1.bf16.msra.mxu0 %v3869
  %5650 = vmatprep.subr.bf16.mxu0 0
  %5651 = vmatpush1.bf16.msra.mxu0 %v3870
  %5652 = vmatprep.subr.bf16.mxu0 0
  %5653 = vmatpush1.bf16.msra.mxu0 %v3871
  %5654 = vmatprep.subr.bf16.mxu0 0
  %5655 = vmatpush1.bf16.msra.mxu0 %v3872
  %5656 = vmatprep.subr.bf16.mxu0 0
  %5657 = vmatpush1.bf16.msra.mxu0 %v3873
  %5658 = vmatprep.mubr.bf16.mxu0 %v1249
  %5659 = vmatmul.mubr.bf16.gmra.mrb[0].mxu0 %v1248
  %v5660 = vpop.f32.mrb[0].mxu0
  %v5661 = vadd.f32 %v5621, %v5660
  %v5662 = vpop.f32.mrb[0].mxu0
  %v5663 = vpop.f32.mrb[0].mxu0
  %v5664 = vpop.f32.mrb[0].mxu0
  %5665 = vdwg.mxu0
  %v5666 = vmax.f32 %v5661, 0.0
  %v5667 = vpack.c.bf16 %v5666, %v5666
  %v5668 = vld [vmem:[%s3] sm:$0xf]
  %v5669 = vld [vmem:[%s3 + $0x4] sm:$0xf]
  %v5670 = vld [vmem:[%s3 + $0x8] sm:$0xf]
  %v5671 = vld [vmem:[%s3 + $0xc] sm:$0xf]
  %v5672 = vld [vmem:[%s3 + $0x10] sm:$0xf]
  %v5673 = vld [vmem:[%s3 + $0x14] sm:$0xf]
  %v5674 = vld [vmem:[%s3 + $0x18] sm:$0xf]
  %v5675 = vld [vmem:[%s3 + $0x1c] sm:$0xf]
  %v5676 = vld [vmem:[%s3 + $0x20] sm:$0xf]
  %v5677 = vld [vmem:[%s3 + $0x24] sm:$0xf]
  %v5678 = vld [vmem:[%s3 + $0x28] sm:$0xf]
  %v5679 = vld [vmem:[%s3 + $0x2c] sm:$0xf]
  %v5680 = vld [vmem:[%s3 + $0x30] sm:$0xf]
  %v5681 = vld [vmem:[%s3 + $0x34] sm:$0xf]
  %v5682 = vld [vmem:[%s3 + $0x38] sm:$0xf]
  %v5683 = vld [vmem:[%s3 + $0x3c] sm:$0xf]
  %v5684 = vld [vmem:[%s4] sm:$0x1]
  %v5686 = vlaneseq
  %v5687 = vshrl.u32 %v5686, 7
  %v5688 = vsub.s32 0, %v5687
  %v5689 = vrot.slane %v5684, %v5688
  %v5707 = vunpack.c.l.b16 %v5668
  %v5708 = vunpack.c.l.b16 %v5669
  %v5709 = vunpack.c.l.b16 %v5670
  %v5710 = vunpack.c.l.b16 %v5671
  %v5711 = vunpack.c.l.b16 %v5672
  %v5712 = vunpack.c.l.b16 %v5673
  %v5713 = vunpack.c.l.b16 %v5674
  %v5714 = vunpack.c.l.b16 %v5675
  %v5715 = vunpack.c.l.b16 %v5676
  %v5716 = vunpack.c.l.b16 %v5677
  %v5717 = vunpack.c.l.b16 %v5678
  %v5718 = vunpack.c.l.b16 %v5679
  %v5719 = vunpack.c.l.b16 %v5680
  %v5720 = vunpack.c.l.b16 %v5681
  %v5721 = vunpack.c.l.b16 %v5682
  %v5722 = vunpack.c.l.b16 %v5683
  %v5723 = vpack.c.b16 %v5708, %v5707
  %v5724 = vpack.c.b16 %v5710, %v5709
  %v5725 = vpack.c.b16 %v5712, %v5711
  %v5726 = vpack.c.b16 %v5714, %v5713
  %v5727 = vpack.c.b16 %v5716, %v5715
  %v5728 = vpack.c.b16 %v5718, %v5717
  %v5729 = vpack.c.b16 %v5720, %v5719
  %v5730 = vpack.c.b16 %v5722, %v5721
  %5739 = vmatprep.subr.bf16.mxu0 0
  %5740 = vmatpush1.bf16.msra.mxu0 %v5723
  %5741 = vmatprep.subr.bf16.mxu0 0
  %5742 = vmatpush1.bf16.msra.mxu0 %v5724
  %5743 = vmatprep.subr.bf16.mxu0 0
  %5744 = vmatpush1.bf16.msra.mxu0 %v5725
  %5745 = vmatprep.subr.bf16.mxu0 0
  %5746 = vmatpush1.bf16.msra.mxu0 %v5726
  %5747 = vmatprep.subr.bf16.mxu0 0
  %5748 = vmatpush1.bf16.msra.mxu0 %v5727
  %5749 = vmatprep.subr.bf16.mxu0 0
  %5750 = vmatpush1.bf16.msra.mxu0 %v5728
  %5751 = vmatprep.subr.bf16.mxu0 0
  %5752 = vmatpush1.bf16.msra.mxu0 %v5729
  %5753 = vmatprep.subr.bf16.mxu0 0
  %5754 = vmatpush1.bf16.msra.mxu0 %v5730
  %5755 = vmatprep.subr.bf16.mxu0 0
  %5756 = vmatpush1.bf16.msra.mxu0 0
  %5757 = vmatprep.subr.bf16.mxu0 0
  %5758 = vmatpush1.bf16.msra.mxu0 0
  %5759 = vmatprep.subr.bf16.mxu0 0
  %5760 = vmatpush1.bf16.msra.mxu0 0
  %5761 = vmatprep.subr.bf16.mxu0 0
  %5762 = vmatpush1.bf16.msra.mxu0 0
  %5763 = vmatprep.subr.bf16.mxu0 0
  %5764 = vmatpush1.bf16.msra.mxu0 0
  %5765 = vmatprep.subr.bf16.mxu0 0
  %5766 = vmatpush1.bf16.msra.mxu0 0
  %5767 = vmatprep.subr.bf16.mxu0 0
  %5768 = vmatpush1.bf16.msra.mxu0 0
  %5769 = vmatprep.subr.bf16.mxu0 0
  %5770 = vmatpush1.bf16.msra.mxu0 0
  %5771 = vmatprep.mubr.bf16.mxu0 0
  %5772 = vmatmul.mubr.bf16.gmra.mrb[0].mxu0 %v5667
  %v5773 = vpop.f32.mrb[0].mxu0
  %v5774 = vadd.f32 %v5689, %v5773
  %v5775 = vpop.f32.mrb[0].mxu0
  %v5776 = vpop.f32.mrb[0].mxu0
  %v5777 = vpop.f32.mrb[0].mxu0
  %5778 = vdwg.mxu0
  %v5779 = vmax.f32 %v5774, 0.0
  %v5780 = vpack.c.bf16 %v5779, %v5779
  %v5781 = vld [vmem:[%s5] sm:$0xf]
  %v5782 = vld [vmem:[%s5 + $0x4] sm:$0xf]
  %v5783 = vld [vmem:[%s5 + $0x8] sm:$0xf]
  %v5784 = vld [vmem:[%s5 + $0xc] sm:$0xf]
  %v5785 = vld [vmem:[%s5 + $0x10] sm:$0xf]
  %v5786 = vld [vmem:[%s5 + $0x14] sm:$0xf]
  %v5787 = vld [vmem:[%s5 + $0x18] sm:$0xf]
  %v5788 = vld [vmem:[%s5 + $0x1c] sm:$0xf]
  %v5789 = vld [vmem:[%s5 + $0x20] sm:$0xf]
  %v5790 = vld [vmem:[%s5 + $0x24] sm:$0xf]
  %v5791 = vld [vmem:[%s5 + $0x28] sm:$0xf]
  %v5792 = vld [vmem:[%s5 + $0x2c] sm:$0xf]
  %v5793 = vld [vmem:[%s5 + $0x30] sm:$0xf]
  %v5794 = vld [vmem:[%s5 + $0x34] sm:$0xf]
  %v5795 = vld [vmem:[%s5 + $0x38] sm:$0xf]
  %v5796 = vld [vmem:[%s5 + $0x3c] sm:$0xf]
  %v5797 = vld [vmem:[%s6] sm:$0x1]
  %v5799 = vlaneseq
  %v5800 = vshrl.u32 %v5799, 7
  %v5801 = vsub.s32 0, %v5800
  %v5802 = vrot.slane %v5797, %v5801
  %v5820 = vunpack.c.l.b16 %v5781
  %v5821 = vunpack.c.l.b16 %v5782
  %v5822 = vunpack.c.l.b16 %v5783
  %v5823 = vunpack.c.l.b16 %v5784
  %v5824 = vunpack.c.l.b16 %v5785
  %v5825 = vunpack.c.l.b16 %v5786
  %v5826 = vunpack.c.l.b16 %v5787
  %v5827 = vunpack.c.l.b16 %v5788
  %v5828 = vunpack.c.l.b16 %v5789
  %v5829 = vunpack.c.l.b16 %v5790
  %v5830 = vunpack.c.l.b16 %v5791
  %v5831 = vunpack.c.l.b16 %v5792
  %v5832 = vunpack.c.l.b16 %v5793
  %v5833 = vunpack.c.l.b16 %v5794
  %v5834 = vunpack.c.l.b16 %v5795
  %v5835 = vunpack.c.l.b16 %v5796
  %v5836 = vpack.c.b16 %v5821, %v5820
  %v5837 = vpack.c.b16 %v5823, %v5822
  %v5838 = vpack.c.b16 %v5825, %v5824
  %v5839 = vpack.c.b16 %v5827, %v5826
  %v5840 = vpack.c.b16 %v5829, %v5828
  %v5841 = vpack.c.b16 %v5831, %v5830
  %v5842 = vpack.c.b16 %v5833, %v5832
  %v5843 = vpack.c.b16 %v5835, %v5834
  %5852 = vmatprep.subr.bf16.mxu0 0
  %5853 = vmatpush1.bf16.msra.mxu0 %v5836
  %5854 = vmatprep.subr.bf16.mxu0 0
  %5855 = vmatpush1.bf16.msra.mxu0 %v5837
  %5856 = vmatprep.subr.bf16.mxu0 0
  %5857 = vmatpush1.bf16.msra.mxu0 %v5838
  %5858 = vmatprep.subr.bf16.mxu0 0
  %5859 = vmatpush1.bf16.msra.mxu0 %v5839
  %5860 = vmatprep.subr.bf16.mxu0 0
  %5861 = vmatpush1.bf16.msra.mxu0 %v5840
  %5862 = vmatprep.subr.bf16.mxu0 0
  %5863 = vmatpush1.bf16.msra.mxu0 %v5841
  %5864 = vmatprep.subr.bf16.mxu0 0
  %5865 = vmatpush1.bf16.msra.mxu0 %v5842
  %5866 = vmatprep.subr.bf16.mxu0 0
  %5867 = vmatpush1.bf16.msra.mxu0 %v5843
  %5868 = vmatprep.subr.bf16.mxu0 0
  %5869 = vmatpush1.bf16.msra.mxu0 0
  %5870 = vmatprep.subr.bf16.mxu0 0
  %5871 = vmatpush1.bf16.msra.mxu0 0
  %5872 = vmatprep.subr.bf16.mxu0 0
  %5873 = vmatpush1.bf16.msra.mxu0 0
  %5874 = vmatprep.subr.bf16.mxu0 0
  %5875 = vmatpush1.bf16.msra.mxu0 0
  %5876 = vmatprep.subr.bf16.mxu0 0
  %5877 = vmatpush1.bf16.msra.mxu0 0
  %5878 = vmatprep.subr.bf16.mxu0 0
  %5879 = vmatpush1.bf16.msra.mxu0 0
  %5880 = vmatprep.subr.bf16.mxu0 0
  %5881 = vmatpush1.bf16.msra.mxu0 0
  %5882 = vmatprep.subr.bf16.mxu0 0
  %5883 = vmatpush1.bf16.msra.mxu0 0
  %5884 = vmatprep.mubr.bf16.mxu0 0
  %5885 = vmatmul.mubr.bf16.gmra.mrb[0].mxu0 %v5780
  %v5886 = vpop.f32.mrb[0].mxu0
  %v5887 = vadd.f32 %v5802, %v5886
  %v5888 = vpop.f32.mrb[0].mxu0
  %v5889 = vpop.f32.mrb[0].mxu0
  %v5890 = vpop.f32.mrb[0].mxu0
  %5891 = vdwg.mxu0
  %5892 = vst [vmem:[%s7] sm:$0xff] %v5887
  // Predicated region
  $region30: #{lenet_forward.5} parent=0 // pred_check
    _
  $region31: #{lenet_forward.5} parent=0 // pred_check_branch
    %5894 = sbr.rel (0) target = $region33
  $region32: #{lenet_forward.5} parent=0 // pred_region
    _
  $region33: #{lenet_forward.5} parent=0 // pred_fallthru
    _
  // Predicated region
  $region34: #{lenet_forward.5} parent=0 // pred_check
    _
  $region35: #{lenet_forward.5} parent=0 // pred_check_branch
    %5896 = sbr.rel (0) target = $region37
  $region36: #{lenet_forward.5} parent=0 // pred_region
    _
  $region37: #{lenet_forward.5} parent=0 // pred_fallthru
    _

</llo_original>
